<compile_context>
chip_gen: v7x
topology: tpu7x:2x2x1
jax: 0.10.0
libtpu: 0.0.40
codegen_flags: <defaults>
</compile_context>

<pallas_src>
from functools import partial

import jax
import jax.numpy as jnp
from jax import lax
from jax.experimental import pallas as pl
from jax.experimental.pallas import tpu as pltpu


# ----------------------------- Pallas kernels ------------------------------

def _conv_pool_kernel(p1_ref, w1_ref, b1_ref, w2_ref, b2_ref, o_ref, p2_scr):
    """conv1 GEMM + ReLU + pool1, in-kernel conv2 im2col, conv2 GEMM + ReLU + pool2.

    p1_ref : (1, 32, 4*BS) conv1 patches; K padded 25->32; lane = g*BS + b*256 + s,
             g = 2x2-pool shift, s = u*14 + v (pooled position), BS = BT*256.
    w1_ref : (8, 32)   conv1 weight (out channels padded 6->8, K padded 25->32).
    b1_ref : (8, 1)    conv1 bias (padded rows zero).
    w2_ref : (16, 200) conv2 weight; column = tap*8 + in_channel (in ch. padded 6->8).
    b2_ref : (16, 1)   conv2 bias.
    o_ref  : (1, 16, BS) pooled conv2 output; lane = b*256 + p*14 + q, valid at
             p = 2u, q = 2v (u, v < 5); other lanes are garbage (sliced off later).
    p2_scr : (200, BS) VMEM scratch for the in-kernel conv2 im2col matrix.
    """
    BS = o_ref.shape[2]
    w1 = w1_ref[...]
    b1 = b1_ref[...]

    # conv1 + bias + ReLU per pool-shift group; pool1 = max over the 4 groups.
    pooled1 = None
    for g in range(4):
        yg = jnp.dot(w1, p1_ref[0, :, g * BS:(g + 1) * BS],
                     preferred_element_type=jnp.float32)
        yg = jnp.maximum(yg + b1, 0.0)
        pooled1 = yg if pooled1 is None else jnp.maximum(pooled1, yg)
    # pooled1: (8, BS), lane = b*256 + u*14 + v (valid u, v < 14).

    # conv2 im2col via the shift trick: the input value for tap (dh, dw) of
    # output position (p, q) lives dh*14 + dw lanes to the right of lane p*14+q
    # inside the same image slab.  Append a 128-lane circular guard so every
    # shifted view is a constant-width slice (wrapped lanes land only in
    # garbage output lanes, never in valid ones).
    p1g = jnp.concatenate([pooled1, pooled1[:, :128]], axis=1)   # (8, BS + 128)
    for k in range(25):
        off = (k // 5) * 14 + (k % 5)                            # dh*14 + dw
        p2_scr[k * 8:(k + 1) * 8, :] = p1g[:, off:off + BS]

    # conv2 as a single K=200 GEMM + bias + ReLU.
    y2 = jnp.dot(w2_ref[...], p2_scr[...], preferred_element_type=jnp.float32)
    y2 = jnp.maximum(y2 + b2_ref[...], 0.0)                      # (16, BS)

    # Fused 2x2 max-pool: window members sit at lane offsets {0, 1, 14, 15}.
    y2g = jnp.concatenate([y2, y2[:, :128]], axis=1)             # (16, BS + 128)
    o_ref[0] = jnp.maximum(
        jnp.maximum(y2, y2g[:, 1:BS + 1]),
        jnp.maximum(y2g[:, 14:BS + 14], y2g[:, 15:BS + 15]))


def _fc_kernel(a_ref, w1_ref, b1_ref, w2_ref, b2_ref, w3_ref, b3_ref, o_ref):
    """fc1 -> ReLU -> fc2 -> ReLU -> fc3 on a (BT, 512) activation tile."""
    h = jnp.dot(a_ref[...], w1_ref[...], preferred_element_type=jnp.float32)
    h = jnp.maximum(h + b1_ref[...], 0.0)
    h = jnp.dot(h, w2_ref[...], preferred_element_type=jnp.float32)
    h = jnp.maximum(h + b2_ref[...], 0.0)
    o_ref[...] = (jnp.dot(h, w3_ref[...], preferred_element_type=jnp.float32)
                  + b3_ref[...])


# --------------------------- wrapper-side helpers ---------------------------

def _conv1_patches(x, bt):
    """im2col for conv1 (5x5, VALID), output positions grouped by the four 2x2
    max-pool shifts, batch tile merged into lanes; K padded 25->32 and the 196
    pooled positions padded to 256 with a single pad op."""
    n = x.shape[0]
    t = n // bt
    pat = lax.conv_general_dilated_patches(
        x, (5, 5), (1, 1), "VALID",
        dimension_numbers=("NCHW", "OIHW", "NCHW"))        # (n, 25, 28, 28)
    p = pat.reshape(t, bt, 25, 14, 2, 14, 2)               # (t,b,k,u,gh,v,gw)
    p = p.transpose(0, 2, 4, 6, 1, 3, 5)                   # (t,k,gh,gw,b,u,v)
    p = p.reshape(t, 25, 4, bt, 196)
    p = jnp.pad(p, ((0, 0), (0, 7), (0, 0), (0, 0), (0, 60)))
    return p.reshape(t, 32, 4 * bt * 256)


def init_params(key):
    def uni(k, shape, fan_in):
        bound = 1.0 / float(fan_in) ** 0.5
        return jax.random.uniform(k, shape, jnp.float32, -bound, bound)

    ks = jax.random.split(key, 10)
    return {
        "conv1_w": uni(ks[0], (6, 1, 5, 5), 25),
        "conv1_b": uni(ks[1], (6,), 25),
        "conv2_w": uni(ks[2], (16, 6, 5, 5), 150),
        "conv2_b": uni(ks[3], (16,), 150),
        "fc1_w": uni(ks[4], (120, 400), 400),
        "fc1_b": uni(ks[5], (120,), 400),
        "fc2_w": uni(ks[6], (84, 120), 120),
        "fc2_b": uni(ks[7], (84,), 120),
        "fc3_w": uni(ks[8], (10, 84), 84),
        "fc3_b": uni(ks[9], (10,), 84),
    }


def prepare_params(params):
    """One-time conversion to padded, pre-transposed, lane-dense layouts."""
    f32 = jnp.float32
    w1c = jnp.zeros((8, 32), f32).at[:6, :25].set(
        params["conv1_w"].reshape(6, 25).astype(f32))
    b1c = jnp.zeros((8, 1), f32).at[:6, 0].set(params["conv1_b"].astype(f32))
    # conv2 weight in tap-major / padded-in-channel layout: col = tap*8 + c.
    w2 = params["conv2_w"].astype(f32).transpose(0, 2, 3, 1).reshape(16, 25, 6)
    w2p = jnp.zeros((16, 25, 8), f32).at[:, :, :6].set(w2).reshape(16, 200)
    b2c = params["conv2_b"].astype(f32).reshape(16, 1)
    # fc weights pre-transposed and zero-padded to 128-wide lane-dense layouts.
    w1f = jnp.zeros((512, 128), f32).at[:400, :120].set(
        params["fc1_w"].astype(f32).T)
    b1f = jnp.zeros((1, 128), f32).at[0, :120].set(params["fc1_b"].astype(f32))
    w2f = jnp.zeros((128, 128), f32).at[:120, :84].set(
        params["fc2_w"].astype(f32).T)
    b2f = jnp.zeros((1, 128), f32).at[0, :84].set(params["fc2_b"].astype(f32))
    w3f = jnp.zeros((128, 128), f32).at[:84, :10].set(
        params["fc3_w"].astype(f32).T)
    b3f = jnp.zeros((1, 128), f32).at[0, :10].set(params["fc3_b"].astype(f32))
    return dict(w1c=w1c, b1c=b1c, w2p=w2p, b2c=b2c, w1f=w1f, b1f=b1f,
                w2f=w2f, b2f=b2f, w3f=w3f, b3f=b3f)


# ------------------------------- forward pass -------------------------------

def _net_forward(prep, x, bt=8):
    assert x.shape[1:] == (1, 32, 32), x.shape
    assert bt % 8 == 0, "batch tile must be a multiple of 8"
    f32 = jnp.float32
    n = x.shape[0]
    npad = ((n + bt - 1) // bt) * bt
    if npad != n:
        x = jnp.pad(x, ((0, npad - n), (0, 0), (0, 0), (0, 0)))
    t = npad // bt
    bs = bt * 256

    cparams = pltpu.CompilerParams(
        dimension_semantics=("parallel",),
        vmem_limit_bytes=32 * 1024 * 1024)

    # ---- kernel A: conv1 + relu + pool1 + conv2 + relu + pool2 ----
    p1 = _conv1_patches(x.astype(f32), bt)                 # (t, 32, 4*bs)
    pooled2 = pl.pallas_call(
        _conv_pool_kernel,
        out_shape=jax.ShapeDtypeStruct((t, 16, bs), f32),
        grid=(t,),
        in_specs=[
            pl.BlockSpec((1, 32, 4 * bs), lambda i: (i, 0, 0)),
            pl.BlockSpec((8, 32), lambda i: (0, 0)),
            pl.BlockSpec((8, 1), lambda i: (0, 0)),
            pl.BlockSpec((16, 200), lambda i: (0, 0)),
            pl.BlockSpec((16, 1), lambda i: (0, 0)),
        ],
        out_specs=pl.BlockSpec((1, 16, bs), lambda i: (i, 0, 0)),
        scratch_shapes=[pltpu.VMEM((200, bs), f32)],
        compiler_params=cparams,
    )(p1, prep["w1c"], prep["b1c"], prep["w2p"], prep["b2c"])

    # Tiny wrapper-side flatten into torch's (c, h, w)-major 400-vector.
    z = pooled2.reshape(t, 16, bt, 256).transpose(0, 2, 1, 3)
    z = z.reshape(npad, 16, 256)[:, :, :140].reshape(npad, 16, 10, 14)
    z = z[:, :, ::2, 0:10:2]                               # (npad, 16, 5, 5)
    flat = jnp.pad(z.reshape(npad, 400), ((0, 0), (0, 112)))   # (npad, 512)

    # ---- kernel B: fc1 -> relu -> fc2 -> relu -> fc3 ----
    out = pl.pallas_call(
        _fc_kernel,
        out_shape=jax.ShapeDtypeStruct((npad, 128), f32),
        grid=(npad // bt,),
        in_specs=[
            pl.BlockSpec((bt, 512), lambda i: (i, 0)),
            pl.BlockSpec((512, 128), lambda i: (0, 0)),
            pl.BlockSpec((1, 128), lambda i: (0, 0)),
            pl.BlockSpec((128, 128), lambda i: (0, 0)),
            pl.BlockSpec((1, 128), lambda i: (0, 0)),
            pl.BlockSpec((128, 128), lambda i: (0, 0)),
            pl.BlockSpec((1, 128), lambda i: (0, 0)),
        ],
        out_specs=pl.BlockSpec((bt, 128), lambda i: (i, 0)),
        compiler_params=cparams,
    )(flat, prep["w1f"], prep["b1f"], prep["w2f"], prep["b2f"],
      prep["w3f"], prep["b3f"])
    return out[:n, :10]


net_forward = jax.jit(_net_forward, static_argnames=("bt",))


def reference_forward(params, x):
    """Pure-JAX reference (lax.conv / reduce_window) for correctness check."""
    def conv(x, w, b):
        y = lax.conv_general_dilated(
            x, w, (1, 1), "VALID", dimension_numbers=("NCHW", "OIHW", "NCHW"))
        return jax.nn.relu(y + b.reshape(1, -1, 1, 1))

    def pool(x):
        return lax.reduce_window(x, -jnp.inf, lax.max,
                                 (1, 1, 2, 2), (1, 1, 2, 2), "VALID")

    x = pool(conv(x, params["conv1_w"], params["conv1_b"]))
    x = pool(conv(x, params["conv2_w"], params["conv2_b"]))
    x = x.reshape(x.shape[0], -1)
    x = jax.nn.relu(x @ params["fc1_w"].T + params["fc1_b"])
    x = jax.nn.relu(x @ params["fc2_w"].T + params["fc2_b"])
    return x @ params["fc3_w"].T + params["fc3_b"]


if __name__ == "__main__":
    key = jax.random.PRNGKey(0)
    k_param, k_x = jax.random.split(key)
    params = init_params(k_param)
    prep = prepare_params(params)
    # N=16 with batch tile 8 -> both kernel grids have 2 parallel steps.
    x = jax.random.normal(k_x, (16, 1, 32, 32), jnp.float32)

    out = jax.block_until_ready(net_forward(prep, x, bt=8))
    ref = jax.block_until_ready(reference_forward(params, x))

    assert out.shape == (16, 10), out.shape
    err = float(jnp.max(jnp.abs(out - ref)))
    assert jnp.allclose(out, ref, atol=1e-4, rtol=1e-4), f"max abs err {err}"
    print("KERNEL_OK")
</pallas_src>

<mosaic_0001>
module attributes {stable_mosaic.version = 11 : i64} {
  func.func @_conv_pool_kernel(%arg0: i32, %arg1: memref<1x32x8192xf32, #tpu.memory_space<vmem>>, %arg2: memref<8x32xf32, #tpu.memory_space<vmem>>, %arg3: memref<8x1xf32, #tpu.memory_space<vmem>>, %arg4: memref<16x200xf32, #tpu.memory_space<vmem>>, %arg5: memref<16x1xf32, #tpu.memory_space<vmem>>, %arg6: memref<1x16x2048xf32, #tpu.memory_space<vmem>>, %arg7: memref<200x2048xf32, #tpu.memory_space<vmem>>) attributes {dimension_semantics = [#tpu.dimension_semantics<parallel>], iteration_bounds = array<i64: 2>, scalar_prefetch = 0 : i64, scratch_operands = 1 : i64, tpu.core_type = #tpu.core_type<tc>, window_params = [{transform_indices = @transform_0, window_bounds = array<i64: 1, 32, 8192>}, {pipeline_mode = #tpu.pipeline_mode<synchronous>, transform_indices = @transform_1, window_bounds = array<i64: 8, 32>}, {pipeline_mode = #tpu.pipeline_mode<synchronous>, transform_indices = @transform_2, window_bounds = array<i64: 8, 1>}, {pipeline_mode = #tpu.pipeline_mode<synchronous>, transform_indices = @transform_3, window_bounds = array<i64: 16, 200>}, {pipeline_mode = #tpu.pipeline_mode<synchronous>, transform_indices = @transform_4, window_bounds = array<i64: 16, 1>}, {transform_indices = @transform_5, window_bounds = array<i64: 1, 16, 2048>}]} {
    %c0 = arith.constant 0 : index
    %c0_0 = arith.constant 0 : index
    %0 = vector.load %arg2[%c0, %c0_0] : memref<8x32xf32, #tpu.memory_space<vmem>>, vector<8x32xf32>
    %c0_1 = arith.constant 0 : index
    %c0_2 = arith.constant 0 : index
    %1 = vector.load %arg3[%c0_1, %c0_2] : memref<8x1xf32, #tpu.memory_space<vmem>>, vector<8x1xf32>
    %c0_3 = arith.constant 0 : index
    %c0_4 = arith.constant 0 : index
    %c0_5 = arith.constant 0 : index
    %2 = vector.load %arg1[%c0_3, %c0_4, %c0_5] : memref<1x32x8192xf32, #tpu.memory_space<vmem>>, vector<1x32x2048xf32>
    %3 = vector.shape_cast %2 : vector<1x32x2048xf32> to vector<32x2048xf32>
    %cst = arith.constant dense<0.000000e+00> : vector<8x2048xf32>
    %4 = tpu.matmul %0, %3, %cst {dimension_numbers = #tpu.dot_dimension_numbers<[1], [0], [0], [1], [0, 0, 1, 1], [], []>} : vector<8x32xf32>, vector<32x2048xf32>, vector<8x2048xf32> -> vector<8x2048xf32>
    %5 = vector.broadcast %1 : vector<8x1xf32> to vector<8x2048xf32>
    %6 = arith.addf %4, %5 : vector<8x2048xf32>
    %cst_6 = arith.constant 0.000000e+00 : f32
    %7 = vector.broadcast %cst_6 : f32 to vector<8x2048xf32>
    %8 = arith.maximumf %6, %7 : vector<8x2048xf32>
    %c0_7 = arith.constant 0 : index
    %c0_8 = arith.constant 0 : index
    %c2048 = arith.constant 2048 : index
    %9 = vector.load %arg1[%c0_7, %c0_8, %c2048] : memref<1x32x8192xf32, #tpu.memory_space<vmem>>, vector<1x32x2048xf32>
    %10 = vector.shape_cast %9 : vector<1x32x2048xf32> to vector<32x2048xf32>
    %cst_9 = arith.constant dense<0.000000e+00> : vector<8x2048xf32>
    %11 = tpu.matmul %0, %10, %cst_9 {dimension_numbers = #tpu.dot_dimension_numbers<[1], [0], [0], [1], [0, 0, 1, 1], [], []>} : vector<8x32xf32>, vector<32x2048xf32>, vector<8x2048xf32> -> vector<8x2048xf32>
    %12 = vector.broadcast %1 : vector<8x1xf32> to vector<8x2048xf32>
    %13 = arith.addf %11, %12 : vector<8x2048xf32>
    %cst_10 = arith.constant 0.000000e+00 : f32
    %14 = vector.broadcast %cst_10 : f32 to vector<8x2048xf32>
    %15 = arith.maximumf %13, %14 : vector<8x2048xf32>
    %16 = arith.maximumf %8, %15 : vector<8x2048xf32>
    %c0_11 = arith.constant 0 : index
    %c0_12 = arith.constant 0 : index
    %c4096 = arith.constant 4096 : index
    %17 = vector.load %arg1[%c0_11, %c0_12, %c4096] : memref<1x32x8192xf32, #tpu.memory_space<vmem>>, vector<1x32x2048xf32>
    %18 = vector.shape_cast %17 : vector<1x32x2048xf32> to vector<32x2048xf32>
    %cst_13 = arith.constant dense<0.000000e+00> : vector<8x2048xf32>
    %19 = tpu.matmul %0, %18, %cst_13 {dimension_numbers = #tpu.dot_dimension_numbers<[1], [0], [0], [1], [0, 0, 1, 1], [], []>} : vector<8x32xf32>, vector<32x2048xf32>, vector<8x2048xf32> -> vector<8x2048xf32>
    %20 = vector.broadcast %1 : vector<8x1xf32> to vector<8x2048xf32>
    %21 = arith.addf %19, %20 : vector<8x2048xf32>
    %cst_14 = arith.constant 0.000000e+00 : f32
    %22 = vector.broadcast %cst_14 : f32 to vector<8x2048xf32>
    %23 = arith.maximumf %21, %22 : vector<8x2048xf32>
    %24 = arith.maximumf %16, %23 : vector<8x2048xf32>
    %c0_15 = arith.constant 0 : index
    %c0_16 = arith.constant 0 : index
    %c6144 = arith.constant 6144 : index
    %25 = vector.load %arg1[%c0_15, %c0_16, %c6144] : memref<1x32x8192xf32, #tpu.memory_space<vmem>>, vector<1x32x2048xf32>
    %26 = vector.shape_cast %25 : vector<1x32x2048xf32> to vector<32x2048xf32>
    %cst_17 = arith.constant dense<0.000000e+00> : vector<8x2048xf32>
    %27 = tpu.matmul %0, %26, %cst_17 {dimension_numbers = #tpu.dot_dimension_numbers<[1], [0], [0], [1], [0, 0, 1, 1], [], []>} : vector<8x32xf32>, vector<32x2048xf32>, vector<8x2048xf32> -> vector<8x2048xf32>
    %28 = vector.broadcast %1 : vector<8x1xf32> to vector<8x2048xf32>
    %29 = arith.addf %27, %28 : vector<8x2048xf32>
    %cst_18 = arith.constant 0.000000e+00 : f32
    %30 = vector.broadcast %cst_18 : f32 to vector<8x2048xf32>
    %31 = arith.maximumf %29, %30 : vector<8x2048xf32>
    %32 = arith.maximumf %24, %31 : vector<8x2048xf32>
    %33 = vector.extract_strided_slice %32 {offsets = [0, 0], sizes = [8, 128], strides = [1, 1]} : vector<8x2048xf32> to vector<8x128xf32>
    %34 = tpu.concatenate %32, %33 in 1 : vector<8x2048xf32>, vector<8x128xf32> -> vector<8x2176xf32>
    %35 = vector.extract_strided_slice %34 {offsets = [0, 0], sizes = [8, 2048], strides = [1, 1]} : vector<8x2176xf32> to vector<8x2048xf32>
    %c0_19 = arith.constant 0 : index
    %c0_20 = arith.constant 0 : index
    %36 = vector.load %arg7[%c0_19, %c0_20] : memref<200x2048xf32, #tpu.memory_space<vmem>>, vector<8x2048xf32>
    tpu.vector_store %arg7[%c0_19, %c0_20], %35 {strides = array<i32>} : memref<200x2048xf32, #tpu.memory_space<vmem>>, vector<8x2048xf32>,
    %37 = vector.extract_strided_slice %34 {offsets = [0, 1], sizes = [8, 2048], strides = [1, 1]} : vector<8x2176xf32> to vector<8x2048xf32>
    %c8 = arith.constant 8 : index
    %c0_21 = arith.constant 0 : index
    %38 = vector.load %arg7[%c8, %c0_21] : memref<200x2048xf32, #tpu.memory_space<vmem>>, vector<8x2048xf32>
    tpu.vector_store %arg7[%c8, %c0_21], %37 {strides = array<i32>} : memref<200x2048xf32, #tpu.memory_space<vmem>>, vector<8x2048xf32>,
    %39 = vector.extract_strided_slice %34 {offsets = [0, 2], sizes = [8, 2048], strides = [1, 1]} : vector<8x2176xf32> to vector<8x2048xf32>
    %c16 = arith.constant 16 : index
    %c0_22 = arith.constant 0 : index
    %40 = vector.load %arg7[%c16, %c0_22] : memref<200x2048xf32, #tpu.memory_space<vmem>>, vector<8x2048xf32>
    tpu.vector_store %arg7[%c16, %c0_22], %39 {strides = array<i32>} : memref<200x2048xf32, #tpu.memory_space<vmem>>, vector<8x2048xf32>,
    %41 = vector.extract_strided_slice %34 {offsets = [0, 3], sizes = [8, 2048], strides = [1, 1]} : vector<8x2176xf32> to vector<8x2048xf32>
    %c24 = arith.constant 24 : index
    %c0_23 = arith.constant 0 : index
    %42 = vector.load %arg7[%c24, %c0_23] : memref<200x2048xf32, #tpu.memory_space<vmem>>, vector<8x2048xf32>
    tpu.vector_store %arg7[%c24, %c0_23], %41 {strides = array<i32>} : memref<200x2048xf32, #tpu.memory_space<vmem>>, vector<8x2048xf32>,
    %43 = vector.extract_strided_slice %34 {offsets = [0, 4], sizes = [8, 2048], strides = [1, 1]} : vector<8x2176xf32> to vector<8x2048xf32>
    %c32 = arith.constant 32 : index
    %c0_24 = arith.constant 0 : index
    %44 = vector.load %arg7[%c32, %c0_24] : memref<200x2048xf32, #tpu.memory_space<vmem>>, vector<8x2048xf32>
    tpu.vector_store %arg7[%c32, %c0_24], %43 {strides = array<i32>} : memref<200x2048xf32, #tpu.memory_space<vmem>>, vector<8x2048xf32>,
    %45 = vector.extract_strided_slice %34 {offsets = [0, 14], sizes = [8, 2048], strides = [1, 1]} : vector<8x2176xf32> to vector<8x2048xf32>
    %c40 = arith.constant 40 : index
    %c0_25 = arith.constant 0 : index
    %46 = vector.load %arg7[%c40, %c0_25] : memref<200x2048xf32, #tpu.memory_space<vmem>>, vector<8x2048xf32>
    tpu.vector_store %arg7[%c40, %c0_25], %45 {strides = array<i32>} : memref<200x2048xf32, #tpu.memory_space<vmem>>, vector<8x2048xf32>,
    %47 = vector.extract_strided_slice %34 {offsets = [0, 15], sizes = [8, 2048], strides = [1, 1]} : vector<8x2176xf32> to vector<8x2048xf32>
    %c48 = arith.constant 48 : index
    %c0_26 = arith.constant 0 : index
    %48 = vector.load %arg7[%c48, %c0_26] : memref<200x2048xf32, #tpu.memory_space<vmem>>, vector<8x2048xf32>
    tpu.vector_store %arg7[%c48, %c0_26], %47 {strides = array<i32>} : memref<200x2048xf32, #tpu.memory_space<vmem>>, vector<8x2048xf32>,
    %49 = vector.extract_strided_slice %34 {offsets = [0, 16], sizes = [8, 2048], strides = [1, 1]} : vector<8x2176xf32> to vector<8x2048xf32>
    %c56 = arith.constant 56 : index
    %c0_27 = arith.constant 0 : index
    %50 = vector.load %arg7[%c56, %c0_27] : memref<200x2048xf32, #tpu.memory_space<vmem>>, vector<8x2048xf32>
    tpu.vector_store %arg7[%c56, %c0_27], %49 {strides = array<i32>} : memref<200x2048xf32, #tpu.memory_space<vmem>>, vector<8x2048xf32>,
    %51 = vector.extract_strided_slice %34 {offsets = [0, 17], sizes = [8, 2048], strides = [1, 1]} : vector<8x2176xf32> to vector<8x2048xf32>
    %c64 = arith.constant 64 : index
    %c0_28 = arith.constant 0 : index
    %52 = vector.load %arg7[%c64, %c0_28] : memref<200x2048xf32, #tpu.memory_space<vmem>>, vector<8x2048xf32>
    tpu.vector_store %arg7[%c64, %c0_28], %51 {strides = array<i32>} : memref<200x2048xf32, #tpu.memory_space<vmem>>, vector<8x2048xf32>,
    %53 = vector.extract_strided_slice %34 {offsets = [0, 18], sizes = [8, 2048], strides = [1, 1]} : vector<8x2176xf32> to vector<8x2048xf32>
    %c72 = arith.constant 72 : index
    %c0_29 = arith.constant 0 : index
    %54 = vector.load %arg7[%c72, %c0_29] : memref<200x2048xf32, #tpu.memory_space<vmem>>, vector<8x2048xf32>
    tpu.vector_store %arg7[%c72, %c0_29], %53 {strides = array<i32>} : memref<200x2048xf32, #tpu.memory_space<vmem>>, vector<8x2048xf32>,
    %55 = vector.extract_strided_slice %34 {offsets = [0, 28], sizes = [8, 2048], strides = [1, 1]} : vector<8x2176xf32> to vector<8x2048xf32>
    %c80 = arith.constant 80 : index
    %c0_30 = arith.constant 0 : index
    %56 = vector.load %arg7[%c80, %c0_30] : memref<200x2048xf32, #tpu.memory_space<vmem>>, vector<8x2048xf32>
    tpu.vector_store %arg7[%c80, %c0_30], %55 {strides = array<i32>} : memref<200x2048xf32, #tpu.memory_space<vmem>>, vector<8x2048xf32>,
    %57 = vector.extract_strided_slice %34 {offsets = [0, 29], sizes = [8, 2048], strides = [1, 1]} : vector<8x2176xf32> to vector<8x2048xf32>
    %c88 = arith.constant 88 : index
    %c0_31 = arith.constant 0 : index
    %58 = vector.load %arg7[%c88, %c0_31] : memref<200x2048xf32, #tpu.memory_space<vmem>>, vector<8x2048xf32>
    tpu.vector_store %arg7[%c88, %c0_31], %57 {strides = array<i32>} : memref<200x2048xf32, #tpu.memory_space<vmem>>, vector<8x2048xf32>,
    %59 = vector.extract_strided_slice %34 {offsets = [0, 30], sizes = [8, 2048], strides = [1, 1]} : vector<8x2176xf32> to vector<8x2048xf32>
    %c96 = arith.constant 96 : index
    %c0_32 = arith.constant 0 : index
    %60 = vector.load %arg7[%c96, %c0_32] : memref<200x2048xf32, #tpu.memory_space<vmem>>, vector<8x2048xf32>
    tpu.vector_store %arg7[%c96, %c0_32], %59 {strides = array<i32>} : memref<200x2048xf32, #tpu.memory_space<vmem>>, vector<8x2048xf32>,
    %61 = vector.extract_strided_slice %34 {offsets = [0, 31], sizes = [8, 2048], strides = [1, 1]} : vector<8x2176xf32> to vector<8x2048xf32>
    %c104 = arith.constant 104 : index
    %c0_33 = arith.constant 0 : index
    %62 = vector.load %arg7[%c104, %c0_33] : memref<200x2048xf32, #tpu.memory_space<vmem>>, vector<8x2048xf32>
    tpu.vector_store %arg7[%c104, %c0_33], %61 {strides = array<i32>} : memref<200x2048xf32, #tpu.memory_space<vmem>>, vector<8x2048xf32>,
    %63 = vector.extract_strided_slice %34 {offsets = [0, 32], sizes = [8, 2048], strides = [1, 1]} : vector<8x2176xf32> to vector<8x2048xf32>
    %c112 = arith.constant 112 : index
    %c0_34 = arith.constant 0 : index
    %64 = vector.load %arg7[%c112, %c0_34] : memref<200x2048xf32, #tpu.memory_space<vmem>>, vector<8x2048xf32>
    tpu.vector_store %arg7[%c112, %c0_34], %63 {strides = array<i32>} : memref<200x2048xf32, #tpu.memory_space<vmem>>, vector<8x2048xf32>,
    %65 = vector.extract_strided_slice %34 {offsets = [0, 42], sizes = [8, 2048], strides = [1, 1]} : vector<8x2176xf32> to vector<8x2048xf32>
    %c120 = arith.constant 120 : index
    %c0_35 = arith.constant 0 : index
    %66 = vector.load %arg7[%c120, %c0_35] : memref<200x2048xf32, #tpu.memory_space<vmem>>, vector<8x2048xf32>
    tpu.vector_store %arg7[%c120, %c0_35], %65 {strides = array<i32>} : memref<200x2048xf32, #tpu.memory_space<vmem>>, vector<8x2048xf32>,
    %67 = vector.extract_strided_slice %34 {offsets = [0, 43], sizes = [8, 2048], strides = [1, 1]} : vector<8x2176xf32> to vector<8x2048xf32>
    %c128 = arith.constant 128 : index
    %c0_36 = arith.constant 0 : index
    %68 = vector.load %arg7[%c128, %c0_36] : memref<200x2048xf32, #tpu.memory_space<vmem>>, vector<8x2048xf32>
    tpu.vector_store %arg7[%c128, %c0_36], %67 {strides = array<i32>} : memref<200x2048xf32, #tpu.memory_space<vmem>>, vector<8x2048xf32>,
    %69 = vector.extract_strided_slice %34 {offsets = [0, 44], sizes = [8, 2048], strides = [1, 1]} : vector<8x2176xf32> to vector<8x2048xf32>
    %c136 = arith.constant 136 : index
    %c0_37 = arith.constant 0 : index
    %70 = vector.load %arg7[%c136, %c0_37] : memref<200x2048xf32, #tpu.memory_space<vmem>>, vector<8x2048xf32>
    tpu.vector_store %arg7[%c136, %c0_37], %69 {strides = array<i32>} : memref<200x2048xf32, #tpu.memory_space<vmem>>, vector<8x2048xf32>,
    %71 = vector.extract_strided_slice %34 {offsets = [0, 45], sizes = [8, 2048], strides = [1, 1]} : vector<8x2176xf32> to vector<8x2048xf32>
    %c144 = arith.constant 144 : index
    %c0_38 = arith.constant 0 : index
    %72 = vector.load %arg7[%c144, %c0_38] : memref<200x2048xf32, #tpu.memory_space<vmem>>, vector<8x2048xf32>
    tpu.vector_store %arg7[%c144, %c0_38], %71 {strides = array<i32>} : memref<200x2048xf32, #tpu.memory_space<vmem>>, vector<8x2048xf32>,
    %73 = vector.extract_strided_slice %34 {offsets = [0, 46], sizes = [8, 2048], strides = [1, 1]} : vector<8x2176xf32> to vector<8x2048xf32>
    %c152 = arith.constant 152 : index
    %c0_39 = arith.constant 0 : index
    %74 = vector.load %arg7[%c152, %c0_39] : memref<200x2048xf32, #tpu.memory_space<vmem>>, vector<8x2048xf32>
    tpu.vector_store %arg7[%c152, %c0_39], %73 {strides = array<i32>} : memref<200x2048xf32, #tpu.memory_space<vmem>>, vector<8x2048xf32>,
    %75 = vector.extract_strided_slice %34 {offsets = [0, 56], sizes = [8, 2048], strides = [1, 1]} : vector<8x2176xf32> to vector<8x2048xf32>
    %c160 = arith.constant 160 : index
    %c0_40 = arith.constant 0 : index
    %76 = vector.load %arg7[%c160, %c0_40] : memref<200x2048xf32, #tpu.memory_space<vmem>>, vector<8x2048xf32>
    tpu.vector_store %arg7[%c160, %c0_40], %75 {strides = array<i32>} : memref<200x2048xf32, #tpu.memory_space<vmem>>, vector<8x2048xf32>,
    %77 = vector.extract_strided_slice %34 {offsets = [0, 57], sizes = [8, 2048], strides = [1, 1]} : vector<8x2176xf32> to vector<8x2048xf32>
    %c168 = arith.constant 168 : index
    %c0_41 = arith.constant 0 : index
    %78 = vector.load %arg7[%c168, %c0_41] : memref<200x2048xf32, #tpu.memory_space<vmem>>, vector<8x2048xf32>
    tpu.vector_store %arg7[%c168, %c0_41], %77 {strides = array<i32>} : memref<200x2048xf32, #tpu.memory_space<vmem>>, vector<8x2048xf32>,
    %79 = vector.extract_strided_slice %34 {offsets = [0, 58], sizes = [8, 2048], strides = [1, 1]} : vector<8x2176xf32> to vector<8x2048xf32>
    %c176 = arith.constant 176 : index
    %c0_42 = arith.constant 0 : index
    %80 = vector.load %arg7[%c176, %c0_42] : memref<200x2048xf32, #tpu.memory_space<vmem>>, vector<8x2048xf32>
    tpu.vector_store %arg7[%c176, %c0_42], %79 {strides = array<i32>} : memref<200x2048xf32, #tpu.memory_space<vmem>>, vector<8x2048xf32>,
    %81 = vector.extract_strided_slice %34 {offsets = [0, 59], sizes = [8, 2048], strides = [1, 1]} : vector<8x2176xf32> to vector<8x2048xf32>
    %c184 = arith.constant 184 : index
    %c0_43 = arith.constant 0 : index
    %82 = vector.load %arg7[%c184, %c0_43] : memref<200x2048xf32, #tpu.memory_space<vmem>>, vector<8x2048xf32>
    tpu.vector_store %arg7[%c184, %c0_43], %81 {strides = array<i32>} : memref<200x2048xf32, #tpu.memory_space<vmem>>, vector<8x2048xf32>,
    %83 = vector.extract_strided_slice %34 {offsets = [0, 60], sizes = [8, 2048], strides = [1, 1]} : vector<8x2176xf32> to vector<8x2048xf32>
    %c192 = arith.constant 192 : index
    %c0_44 = arith.constant 0 : index
    %84 = vector.load %arg7[%c192, %c0_44] : memref<200x2048xf32, #tpu.memory_space<vmem>>, vector<8x2048xf32>
    tpu.vector_store %arg7[%c192, %c0_44], %83 {strides = array<i32>} : memref<200x2048xf32, #tpu.memory_space<vmem>>, vector<8x2048xf32>,
    %c0_45 = arith.constant 0 : index
    %c0_46 = arith.constant 0 : index
    %85 = vector.load %arg4[%c0_45, %c0_46] : memref<16x200xf32, #tpu.memory_space<vmem>>, vector<16x200xf32>
    %c0_47 = arith.constant 0 : index
    %c0_48 = arith.constant 0 : index
    %86 = vector.load %arg7[%c0_47, %c0_48] : memref<200x2048xf32, #tpu.memory_space<vmem>>, vector<200x2048xf32>
    %cst_49 = arith.constant dense<0.000000e+00> : vector<16x2048xf32>
    %87 = tpu.matmul %85, %86, %cst_49 {dimension_numbers = #tpu.dot_dimension_numbers<[1], [0], [0], [1], [0, 0, 1, 1], [], []>} : vector<16x200xf32>, vector<200x2048xf32>, vector<16x2048xf32> -> vector<16x2048xf32>
    %c0_50 = arith.constant 0 : index
    %c0_51 = arith.constant 0 : index
    %88 = vector.load %arg5[%c0_50, %c0_51] : memref<16x1xf32, #tpu.memory_space<vmem>>, vector<16x1xf32>
    %89 = vector.broadcast %88 : vector<16x1xf32> to vector<16x2048xf32>
    %90 = arith.addf %87, %89 : vector<16x2048xf32>
    %cst_52 = arith.constant 0.000000e+00 : f32
    %91 = vector.broadcast %cst_52 : f32 to vector<16x2048xf32>
    %92 = arith.maximumf %90, %91 : vector<16x2048xf32>
    %93 = vector.extract_strided_slice %92 {offsets = [0, 0], sizes = [16, 128], strides = [1, 1]} : vector<16x2048xf32> to vector<16x128xf32>
    %94 = tpu.concatenate %92, %93 in 1 : vector<16x2048xf32>, vector<16x128xf32> -> vector<16x2176xf32>
    %95 = vector.extract_strided_slice %94 {offsets = [0, 1], sizes = [16, 2048], strides = [1, 1]} : vector<16x2176xf32> to vector<16x2048xf32>
    %96 = arith.maximumf %92, %95 : vector<16x2048xf32>
    %97 = vector.extract_strided_slice %94 {offsets = [0, 14], sizes = [16, 2048], strides = [1, 1]} : vector<16x2176xf32> to vector<16x2048xf32>
    %98 = vector.extract_strided_slice %94 {offsets = [0, 15], sizes = [16, 2048], strides = [1, 1]} : vector<16x2176xf32> to vector<16x2048xf32>
    %99 = arith.maximumf %97, %98 : vector<16x2048xf32>
    %100 = arith.maximumf %96, %99 : vector<16x2048xf32>
    %c0_53 = arith.constant 0 : index
    %c0_54 = arith.constant 0 : index
    %c0_55 = arith.constant 0 : index
    %101 = vector.load %arg6[%c0_53, %c0_54, %c0_55] : memref<1x16x2048xf32, #tpu.memory_space<vmem>>, vector<1x16x2048xf32>
    %102 = vector.shape_cast %101 : vector<1x16x2048xf32> to vector<16x2048xf32>
    %103 = vector.shape_cast %100 : vector<16x2048xf32> to vector<1x16x2048xf32>
    tpu.vector_store %arg6[%c0_53, %c0_54, %c0_55], %103 {strides = array<i32>} : memref<1x16x2048xf32, #tpu.memory_space<vmem>>, vector<1x16x2048xf32>,
    return
  }
  func.func @transform_0(%arg0: i32) -> (i32, i32, i32) {
    %c0_i32 = arith.constant 0 : i32
    %c0_i32_0 = arith.constant 0 : i32
    %c0_i32_1 = arith.constant 0 : i32
    return %arg0, %c0_i32, %c0_i32_0 : i32, i32, i32
  }
  func.func @transform_1(%arg0: i32) -> (i32, i32) {
    %c0_i32 = arith.constant 0 : i32
    %c0_i32_0 = arith.constant 0 : i32
    %c0_i32_1 = arith.constant 0 : i32
    return %c0_i32, %c0_i32_0 : i32, i32
  }
  func.func @transform_2(%arg0: i32) -> (i32, i32) {
    %c0_i32 = arith.constant 0 : i32
    %c0_i32_0 = arith.constant 0 : i32
    %c0_i32_1 = arith.constant 0 : i32
    return %c0_i32, %c0_i32_0 : i32, i32
  }
  func.func @transform_3(%arg0: i32) -> (i32, i32) {
    %c0_i32 = arith.constant 0 : i32
    %c0_i32_0 = arith.constant 0 : i32
    %c0_i32_1 = arith.constant 0 : i32
    return %c0_i32, %c0_i32_0 : i32, i32
  }
  func.func @transform_4(%arg0: i32) -> (i32, i32) {
    %c0_i32 = arith.constant 0 : i32
    %c0_i32_0 = arith.constant 0 : i32
    %c0_i32_1 = arith.constant 0 : i32
    return %c0_i32, %c0_i32_0 : i32, i32
  }
  func.func @transform_5(%arg0: i32) -> (i32, i32, i32) {
    %c0_i32 = arith.constant 0 : i32
    %c0_i32_0 = arith.constant 0 : i32
    %c0_i32_1 = arith.constant 0 : i32
    return %arg0, %c0_i32, %c0_i32_0 : i32, i32, i32
  }
}

module attributes {stable_mosaic.version = 11 : i64} {
  func.func @_fc_kernel(%arg0: i32, %arg1: memref<8x512xf32, #tpu.memory_space<vmem>>, %arg2: memref<512x128xf32, #tpu.memory_space<vmem>>, %arg3: memref<1x128xf32, #tpu.memory_space<vmem>>, %arg4: memref<128x128xf32, #tpu.memory_space<vmem>>, %arg5: memref<1x128xf32, #tpu.memory_space<vmem>>, %arg6: memref<128x128xf32, #tpu.memory_space<vmem>>, %arg7: memref<1x128xf32, #tpu.memory_space<vmem>>, %arg8: memref<8x128xf32, #tpu.memory_space<vmem>>) attributes {dimension_semantics = [#tpu.dimension_semantics<parallel>], iteration_bounds = array<i64: 2>, scalar_prefetch = 0 : i64, scratch_operands = 0 : i64, tpu.core_type = #tpu.core_type<tc>, window_params = [{transform_indices = @transform_0, window_bounds = array<i64: 8, 512>}, {pipeline_mode = #tpu.pipeline_mode<synchronous>, transform_indices = @transform_1, window_bounds = array<i64: 512, 128>}, {pipeline_mode = #tpu.pipeline_mode<synchronous>, transform_indices = @transform_2, window_bounds = array<i64: 1, 128>}, {pipeline_mode = #tpu.pipeline_mode<synchronous>, transform_indices = @transform_3, window_bounds = array<i64: 128, 128>}, {pipeline_mode = #tpu.pipeline_mode<synchronous>, transform_indices = @transform_4, window_bounds = array<i64: 1, 128>}, {pipeline_mode = #tpu.pipeline_mode<synchronous>, transform_indices = @transform_5, window_bounds = array<i64: 128, 128>}, {pipeline_mode = #tpu.pipeline_mode<synchronous>, transform_indices = @transform_6, window_bounds = array<i64: 1, 128>}, {transform_indices = @transform_7, window_bounds = array<i64: 8, 128>}]} {
    %c0 = arith.constant 0 : index
    %c0_0 = arith.constant 0 : index
    %0 = vector.load %arg1[%c0, %c0_0] : memref<8x512xf32, #tpu.memory_space<vmem>>, vector<8x512xf32>
    %c0_1 = arith.constant 0 : index
    %c0_2 = arith.constant 0 : index
    %1 = vector.load %arg2[%c0_1, %c0_2] : memref<512x128xf32, #tpu.memory_space<vmem>>, vector<512x128xf32>
    %cst = arith.constant dense<0.000000e+00> : vector<8x128xf32>
    %2 = tpu.matmul %0, %1, %cst {dimension_numbers = #tpu.dot_dimension_numbers<[1], [0], [0], [1], [0, 0, 1, 1], [], []>} : vector<8x512xf32>, vector<512x128xf32>, vector<8x128xf32> -> vector<8x128xf32>
    %c0_3 = arith.constant 0 : index
    %c0_4 = arith.constant 0 : index
    %3 = vector.load %arg3[%c0_3, %c0_4] : memref<1x128xf32, #tpu.memory_space<vmem>>, vector<1x128xf32>
    %4 = vector.broadcast %3 : vector<1x128xf32> to vector<8x128xf32>
    %5 = arith.addf %2, %4 : vector<8x128xf32>
    %cst_5 = arith.constant 0.000000e+00 : f32
    %6 = vector.broadcast %cst_5 : f32 to vector<8x128xf32>
    %7 = arith.maximumf %5, %6 : vector<8x128xf32>
    %c0_6 = arith.constant 0 : index
    %c0_7 = arith.constant 0 : index
    %8 = vector.load %arg4[%c0_6, %c0_7] : memref<128x128xf32, #tpu.memory_space<vmem>>, vector<128x128xf32>
    %cst_8 = arith.constant dense<0.000000e+00> : vector<8x128xf32>
    %9 = tpu.matmul %7, %8, %cst_8 {dimension_numbers = #tpu.dot_dimension_numbers<[1], [0], [0], [1], [0, 0, 1, 1], [], []>} : vector<8x128xf32>, vector<128x128xf32>, vector<8x128xf32> -> vector<8x128xf32>
    %c0_9 = arith.constant 0 : index
    %c0_10 = arith.constant 0 : index
    %10 = vector.load %arg5[%c0_9, %c0_10] : memref<1x128xf32, #tpu.memory_space<vmem>>, vector<1x128xf32>
    %11 = vector.broadcast %10 : vector<1x128xf32> to vector<8x128xf32>
    %12 = arith.addf %9, %11 : vector<8x128xf32>
    %cst_11 = arith.constant 0.000000e+00 : f32
    %13 = vector.broadcast %cst_11 : f32 to vector<8x128xf32>
    %14 = arith.maximumf %12, %13 : vector<8x128xf32>
    %c0_12 = arith.constant 0 : index
    %c0_13 = arith.constant 0 : index
    %15 = vector.load %arg6[%c0_12, %c0_13] : memref<128x128xf32, #tpu.memory_space<vmem>>, vector<128x128xf32>
    %cst_14 = arith.constant dense<0.000000e+00> : vector<8x128xf32>
    %16 = tpu.matmul %14, %15, %cst_14 {dimension_numbers = #tpu.dot_dimension_numbers<[1], [0], [0], [1], [0, 0, 1, 1], [], []>} : vector<8x128xf32>, vector<128x128xf32>, vector<8x128xf32> -> vector<8x128xf32>
    %c0_15 = arith.constant 0 : index
    %c0_16 = arith.constant 0 : index
    %17 = vector.load %arg7[%c0_15, %c0_16] : memref<1x128xf32, #tpu.memory_space<vmem>>, vector<1x128xf32>
    %18 = vector.broadcast %17 : vector<1x128xf32> to vector<8x128xf32>
    %19 = arith.addf %16, %18 : vector<8x128xf32>
    %c0_17 = arith.constant 0 : index
    %c0_18 = arith.constant 0 : index
    %20 = vector.load %arg8[%c0_17, %c0_18] : memref<8x128xf32, #tpu.memory_space<vmem>>, vector<8x128xf32>
    tpu.vector_store %arg8[%c0_17, %c0_18], %19 {strides = array<i32>} : memref<8x128xf32, #tpu.memory_space<vmem>>, vector<8x128xf32>,
    return
  }
  func.func @transform_0(%arg0: i32) -> (i32, i32) {
    %c0_i32 = arith.constant 0 : i32
    %c0_i32_0 = arith.constant 0 : i32
    return %arg0, %c0_i32 : i32, i32
  }
  func.func @transform_1(%arg0: i32) -> (i32, i32) {
    %c0_i32 = arith.constant 0 : i32
    %c0_i32_0 = arith.constant 0 : i32
    %c0_i32_1 = arith.constant 0 : i32
    return %c0_i32, %c0_i32_0 : i32, i32
  }
  func.func @transform_2(%arg0: i32) -> (i32, i32) {
    %c0_i32 = arith.constant 0 : i32
    %c0_i32_0 = arith.constant 0 : i32
    %c0_i32_1 = arith.constant 0 : i32
    return %c0_i32, %c0_i32_0 : i32, i32
  }
  func.func @transform_3(%arg0: i32) -> (i32, i32) {
    %c0_i32 = arith.constant 0 : i32
    %c0_i32_0 = arith.constant 0 : i32
    %c0_i32_1 = arith.constant 0 : i32
    return %c0_i32, %c0_i32_0 : i32, i32
  }
  func.func @transform_4(%arg0: i32) -> (i32, i32) {
    %c0_i32 = arith.constant 0 : i32
    %c0_i32_0 = arith.constant 0 : i32
    %c0_i32_1 = arith.constant 0 : i32
    return %c0_i32, %c0_i32_0 : i32, i32
  }
  func.func @transform_5(%arg0: i32) -> (i32, i32) {
    %c0_i32 = arith.constant 0 : i32
    %c0_i32_0 = arith.constant 0 : i32
    %c0_i32_1 = arith.constant 0 : i32
    return %c0_i32, %c0_i32_0 : i32, i32
  }
  func.func @transform_6(%arg0: i32) -> (i32, i32) {
    %c0_i32 = arith.constant 0 : i32
    %c0_i32_0 = arith.constant 0 : i32
    %c0_i32_1 = arith.constant 0 : i32
    return %c0_i32, %c0_i32_0 : i32, i32
  }
  func.func @transform_7(%arg0: i32) -> (i32, i32) {
    %c0_i32 = arith.constant 0 : i32
    %c0_i32_0 = arith.constant 0 : i32
    return %arg0, %c0_i32 : i32, i32
  }
}

</mosaic_0001>

<llo_original>
// kernel: _net_forward.3
$region0: #{_net_forward.3}
  #allocation0 [shape = 'u32[]', space=smem, size = 0x4, offset = 0x4, fixed_abs, tag = 'smem constant byte address 0x4 - core index']
  #allocation1 [shape = 'u32[144,128]{1,0:T(1,128)}', space=vmem, size = 0x12000, scoped, tag = 'internal scratch']
  %s0 = inlined_call_operand.vmem [shape: f32[16,512], index: 0, kind: input, shape index: {}]
  %s1 = inlined_call_operand.vmem [shape: f32[512,128], index: 1, kind: input, shape index: {}]
  %s2 = inlined_call_operand.vmem [shape: f32[1,128], index: 2, kind: input, shape index: {}]
  %s3 = inlined_call_operand.vmem [shape: f32[128,128], index: 3, kind: input, shape index: {}]
  %s4 = inlined_call_operand.vmem [shape: f32[1,128], index: 4, kind: input, shape index: {}]
  %s5 = inlined_call_operand.vmem [shape: f32[128,128], index: 5, kind: input, shape index: {}]
  %s6 = inlined_call_operand.vmem [shape: f32[1,128], index: 6, kind: input, shape index: {}]
  %s7 = inlined_call_operand.hbm [shape: f32[16,128], index: 7, kind: output, shape index: {}]
  %s8 = sld [smem:[#allocation0]]
  $region61: #{_net_forward.3} parent=0
    _
  %s10 = ssub.s32 1, %s8
  %s11 = scalar_select 0, %s10, %s8
  $region1: #{_net_forward.3} parent=0
    #allocation2 [shape = 'u8[8192]{0}', space=vmem, size = 0x2000, scoped, tag = 'output window, operand 0']
    #allocation3 [shape = 's32[2]{0}', space=sflag, size = 0x8, scoped, tag = 'scoped memory for _net_forward.3']
    %12 = vsyncpa [#allocation3], 0
    %s13 = scalar_lea.sflag [#allocation3], 1
    %14 = vsyncpa %s13, 0
    loop: start=0, step=1, limit=4
    $region2: #{_net_forward.3} parent=1 // loop_pre_header
      _
    $region3: #{_net_forward.3} parent=1 // loop_header
      %s16 = sphi 0, %s20
      %p17 = scmp.ge.s32.totalorder %s16, 4
      %s26 = sphi 0, %s28
      %s29 = sphi 0, %s26
      %s30 = sphi 0, %s29
      %s46 = sphi 0, %s30
      %s50 = sphi 0, %s50
      %s52 = sphi 0, %s50
      %s53 = sphi 0, %s52
      %s67 = sphi 0, %s53
      %s71 = sphi 0, %s71
      %s73 = sphi 0, %s71
      %s74 = sphi 0, %s73
      %s88 = sphi 0, %s74
      %s92 = sphi 0, %s92
      %s94 = sphi 0, %s92
      %s95 = sphi 0, %s94
      %s109 = sphi 0, %s95
      %s113 = sphi 0, %s113
      %s115 = sphi 0, %s113
      %s116 = sphi 0, %s115
      %s130 = sphi 0, %s116
      %s134 = sphi 0, %s134
      %s136 = sphi 0, %s134
      %s137 = sphi 0, %s136
      %s151 = sphi 0, %s137
      %s155 = sphi 0, %s155
      %s157 = sphi 0, %s155
      %s158 = sphi 0, %s157
      %s172 = sphi 0, %s158
      %s178 = sphi 0, %s180
      %s181 = sphi 0, %s178
      %s182 = sphi 0, %s181
      %s198 = sphi 0, %s182
    $region4: #{_net_forward.3} parent=1 // loop_header_branch
      %19 = sbr.rel (%p17) target = $region8
    $region5: #{_net_forward.3} parent=1 // loop_body
      %s21 = ssub.s32 %s16, 1
      %s22 = ssub.s32 %s16, 2
      %s23 = sadd.s32 %s16, 1
      %s24 = ssub.s32 %s16, %s23
      %p25 = scmp.eq.s32.totalorder %s24, 0
      %s27 = sadd.s32 %s26, 1
      %s28 = scalar_select %p25, %s26, %s27
      %p31 = pneg %p25
      %p32 = scmp.eq.s32.totalorder %s16, 1
      %p33 = por %p31, %p32
      %p34 = scmp.ne.s32.totalorder %s26, %s29
      %p35 = scmp.eq.s32.totalorder %s16, 0
      %p36 = por %p34, %p35
      %p37 = scmp.ne.s32.totalorder %s26, %s29
      %p38 = scmp.eq.s32.totalorder %s21, 1
      %p39 = por %p37, %p38
      %p40 = scmp.ne.s32.totalorder %s29, %s30
      %p41 = scmp.eq.s32.totalorder %s21, 0
      %p42 = por %p40, %p41
      %p43 = scmp.ne.s32.totalorder %s29, %s30
      %p44 = scmp.eq.s32.totalorder %s22, 1
      %p45 = por %p43, %p44
      %p47 = scmp.ne.s32.totalorder %s30, %s46
      %p48 = scmp.eq.s32.totalorder %s22, 0
      %p49 = por %p47, %p48
      %s51 = sadd.s32 %s50, 1
      %p54 = scmp.eq.s32.totalorder %s16, 1
      %p55 = scmp.ne.s32.totalorder %s50, %s52
      %p56 = scmp.eq.s32.totalorder %s16, 0
      %p57 = por %p55, %p56
      %p58 = scmp.ne.s32.totalorder %s50, %s52
      %p59 = scmp.eq.s32.totalorder %s21, 1
      %p60 = por %p58, %p59
      %p61 = scmp.ne.s32.totalorder %s52, %s53
      %p62 = scmp.eq.s32.totalorder %s21, 0
      %p63 = por %p61, %p62
      %p64 = scmp.ne.s32.totalorder %s52, %s53
      %p65 = scmp.eq.s32.totalorder %s22, 1
      %p66 = por %p64, %p65
      %p68 = scmp.ne.s32.totalorder %s53, %s67
      %p69 = scmp.eq.s32.totalorder %s22, 0
      %p70 = por %p68, %p69
      %s72 = sadd.s32 %s71, 1
      %p75 = scmp.eq.s32.totalorder %s16, 1
      %p76 = scmp.ne.s32.totalorder %s71, %s73
      %p77 = scmp.eq.s32.totalorder %s16, 0
      %p78 = por %p76, %p77
      %p79 = scmp.ne.s32.totalorder %s71, %s73
      %p80 = scmp.eq.s32.totalorder %s21, 1
      %p81 = por %p79, %p80
      %p82 = scmp.ne.s32.totalorder %s73, %s74
      %p83 = scmp.eq.s32.totalorder %s21, 0
      %p84 = por %p82, %p83
      %p85 = scmp.ne.s32.totalorder %s73, %s74
      %p86 = scmp.eq.s32.totalorder %s22, 1
      %p87 = por %p85, %p86
      %p89 = scmp.ne.s32.totalorder %s74, %s88
      %p90 = scmp.eq.s32.totalorder %s22, 0
      %p91 = por %p89, %p90
      %s93 = sadd.s32 %s92, 1
      %p96 = scmp.eq.s32.totalorder %s16, 1
      %p97 = scmp.ne.s32.totalorder %s92, %s94
      %p98 = scmp.eq.s32.totalorder %s16, 0
      %p99 = por %p97, %p98
      %p100 = scmp.ne.s32.totalorder %s92, %s94
      %p101 = scmp.eq.s32.totalorder %s21, 1
      %p102 = por %p100, %p101
      %p103 = scmp.ne.s32.totalorder %s94, %s95
      %p104 = scmp.eq.s32.totalorder %s21, 0
      %p105 = por %p103, %p104
      %p106 = scmp.ne.s32.totalorder %s94, %s95
      %p107 = scmp.eq.s32.totalorder %s22, 1
      %p108 = por %p106, %p107
      %p110 = scmp.ne.s32.totalorder %s95, %s109
      %p111 = scmp.eq.s32.totalorder %s22, 0
      %p112 = por %p110, %p111
      %s114 = sadd.s32 %s113, 1
      %p117 = scmp.eq.s32.totalorder %s16, 1
      %p118 = scmp.ne.s32.totalorder %s113, %s115
      %p119 = scmp.eq.s32.totalorder %s16, 0
      %p120 = por %p118, %p119
      %p121 = scmp.ne.s32.totalorder %s113, %s115
      %p122 = scmp.eq.s32.totalorder %s21, 1
      %p123 = por %p121, %p122
      %p124 = scmp.ne.s32.totalorder %s115, %s116
      %p125 = scmp.eq.s32.totalorder %s21, 0
      %p126 = por %p124, %p125
      %p127 = scmp.ne.s32.totalorder %s115, %s116
      %p128 = scmp.eq.s32.totalorder %s22, 1
      %p129 = por %p127, %p128
      %p131 = scmp.ne.s32.totalorder %s116, %s130
      %p132 = scmp.eq.s32.totalorder %s22, 0
      %p133 = por %p131, %p132
      %s135 = sadd.s32 %s134, 1
      %p138 = scmp.eq.s32.totalorder %s16, 1
      %p139 = scmp.ne.s32.totalorder %s134, %s136
      %p140 = scmp.eq.s32.totalorder %s16, 0
      %p141 = por %p139, %p140
      %p142 = scmp.ne.s32.totalorder %s134, %s136
      %p143 = scmp.eq.s32.totalorder %s21, 1
      %p144 = por %p142, %p143
      %p145 = scmp.ne.s32.totalorder %s136, %s137
      %p146 = scmp.eq.s32.totalorder %s21, 0
      %p147 = por %p145, %p146
      %p148 = scmp.ne.s32.totalorder %s136, %s137
      %p149 = scmp.eq.s32.totalorder %s22, 1
      %p150 = por %p148, %p149
      %p152 = scmp.ne.s32.totalorder %s137, %s151
      %p153 = scmp.eq.s32.totalorder %s22, 0
      %p154 = por %p152, %p153
      %s156 = sadd.s32 %s155, 1
      %p159 = scmp.eq.s32.totalorder %s16, 1
      %p160 = scmp.ne.s32.totalorder %s155, %s157
      %p161 = scmp.eq.s32.totalorder %s16, 0
      %p162 = por %p160, %p161
      %p163 = scmp.ne.s32.totalorder %s155, %s157
      %p164 = scmp.eq.s32.totalorder %s21, 1
      %p165 = por %p163, %p164
      %p166 = scmp.ne.s32.totalorder %s157, %s158
      %p167 = scmp.eq.s32.totalorder %s21, 0
      %p168 = por %p166, %p167
      %p169 = scmp.ne.s32.totalorder %s157, %s158
      %p170 = scmp.eq.s32.totalorder %s22, 1
      %p171 = por %p169, %p170
      %p173 = scmp.ne.s32.totalorder %s158, %s172
      %p174 = scmp.eq.s32.totalorder %s22, 0
      %p175 = por %p173, %p174
      %s176 = ssub.s32 %s16, %s23
      %p177 = scmp.eq.s32.totalorder %s176, 0
      %s179 = sadd.s32 %s178, 1
      %s180 = scalar_select %p177, %s178, %s179
      %p183 = pneg %p177
      %p184 = scmp.eq.s32.totalorder %s16, 1
      %p185 = por %p183, %p184
      %p186 = scmp.ne.s32.totalorder %s178, %s181
      %p187 = scmp.eq.s32.totalorder %s16, 0
      %p188 = por %p186, %p187
      %p189 = scmp.ne.s32.totalorder %s178, %s181
      %p190 = scmp.eq.s32.totalorder %s21, 1
      %p191 = por %p189, %p190
      %p192 = scmp.ne.s32.totalorder %s181, %s182
      %p193 = scmp.eq.s32.totalorder %s21, 0
      %p194 = por %p192, %p193
      %p195 = scmp.ne.s32.totalorder %s181, %s182
      %p196 = scmp.eq.s32.totalorder %s22, 1
      %p197 = por %p195, %p196
      %p199 = scmp.ne.s32.totalorder %s182, %s198
      %p200 = scmp.eq.s32.totalorder %s22, 0
      %p201 = por %p199, %p200
      %p202 = scmp.le.s32.totalorder 1, %s16
      %p203 = scmp.lt.s32.totalorder %s16, 3
      %p204 = pnand %p202, %p203
      %p205 = pneg %p204
      // Predicated region
      $region9: #{_net_forward.3} parent=5 // pred_check
        _
      $region10: #{_net_forward.3} parent=5 // pred_check_branch
        %207 = sbr.rel (%p204) target = $region12
      $region11: #{_net_forward.3} parent=5 // pred_region
        %s208 = ssub.s32 %s16, 1
        // Predicated region
        $region13: #{_net_forward.3} parent=11 // pred_check
          %p209 = pneg %p63
        $region14: #{_net_forward.3} parent=11 // pred_check_branch
          %211 = sbr.rel (%p209) target = $region16
        $region15: #{_net_forward.3} parent=11 // pred_region
          _
        $region16: #{_net_forward.3} parent=11 // pred_fallthru
          _
        // Predicated region
        $region17: #{_net_forward.3} parent=11 // pred_check
          %p212 = pneg %p84
        $region18: #{_net_forward.3} parent=11 // pred_check_branch
          %214 = sbr.rel (%p212) target = $region20
        $region19: #{_net_forward.3} parent=11 // pred_region
          _
        $region20: #{_net_forward.3} parent=11 // pred_fallthru
          _
        // Predicated region
        $region21: #{_net_forward.3} parent=11 // pred_check
          %p215 = pneg %p105
        $region22: #{_net_forward.3} parent=11 // pred_check_branch
          %217 = sbr.rel (%p215) target = $region24
        $region23: #{_net_forward.3} parent=11 // pred_region
          _
        $region24: #{_net_forward.3} parent=11 // pred_fallthru
          _
        // Predicated region
        $region25: #{_net_forward.3} parent=11 // pred_check
          %p218 = pneg %p126
        $region26: #{_net_forward.3} parent=11 // pred_check_branch
          %220 = sbr.rel (%p218) target = $region28
        $region27: #{_net_forward.3} parent=11 // pred_region
          _
        $region28: #{_net_forward.3} parent=11 // pred_fallthru
          _
        // Predicated region
        $region29: #{_net_forward.3} parent=11 // pred_check
          %p221 = pneg %p147
        $region30: #{_net_forward.3} parent=11 // pred_check_branch
          %223 = sbr.rel (%p221) target = $region32
        $region31: #{_net_forward.3} parent=11 // pred_region
          _
        $region32: #{_net_forward.3} parent=11 // pred_fallthru
          _
        // Predicated region
        $region33: #{_net_forward.3} parent=11 // pred_check
          %p224 = pneg %p168
        $region34: #{_net_forward.3} parent=11 // pred_check_branch
          %226 = sbr.rel (%p224) target = $region36
        $region35: #{_net_forward.3} parent=11 // pred_region
          _
        $region36: #{_net_forward.3} parent=11 // pred_fallthru
          _
      $region12: #{_net_forward.3} parent=5 // pred_fallthru
        _
      %p227 = scmp.lt.s32.totalorder %s16, 2
      // Predicated region
      $region37: #{_net_forward.3} parent=5 // pred_check
        %p228 = pneg %p227
      $region38: #{_net_forward.3} parent=5 // pred_check_branch
        %230 = sbr.rel (%p228) target = $region40
      $region39: #{_net_forward.3} parent=5 // pred_region
        // Predicated region
        $region41: #{_net_forward.3} parent=39 // pred_check
          %p231 = pneg %p36
        $region42: #{_net_forward.3} parent=39 // pred_check_branch
          %233 = sbr.rel (%p231) target = $region44
        $region43: #{_net_forward.3} parent=39 // pred_region
          %p234 = scmp.lt.s32.totalorder %s16, 1
          %s235 = scalar_select %p234, %s16, 1
          %s236 = smul.addr %s235, 4
          %s237 = smul.addr %s236, 8
          %s238 = scalar_lea.vmem %s0, %s237
        $region44: #{_net_forward.3} parent=39 // pred_fallthru
          _
      $region40: #{_net_forward.3} parent=5 // pred_fallthru
        _
      %p239 = scmp.le.s32.totalorder 1, %s16
      %p240 = scmp.lt.s32.totalorder %s16, 3
      %p241 = pnand %p239, %p240
      %p242 = pneg %p241
      // Predicated region
      $region45: #{_net_forward.3} parent=5 // pred_check
        _
      $region46: #{_net_forward.3} parent=5 // pred_check_branch
        %244 = sbr.rel (%p241) target = $region48
      $region47: #{_net_forward.3} parent=5 // pred_region
        %s245 = ssub.s32 %s16, 1
        %p246 = scmp.lt.s32.totalorder %s21, 1
        %s247 = scalar_select %p246, %s21, 1
        %s248 = smul.addr %s247, 4
        %s249 = smul.addr %s248, 8
        %s250 = scalar_lea.vmem %s0, %s249
        %p251 = pneg %p42
        %p252 = pneg %p39
        %p253 = pneg %p63
        %p254 = pneg %p60
        %p255 = pneg %p84
        %p256 = pneg %p81
        %p257 = pneg %p105
        %p258 = pneg %p102
        %p259 = pneg %p126
        %p260 = pneg %p123
        %p261 = pneg %p147
        %p262 = pneg %p144
        %p263 = pneg %p168
        %p264 = pneg %p165
        %p265 = pneg %p194
        %p266 = pneg %p191
        %s267 = sand.u32 %s181, 1
        %s268 = scalar_lea.sflag [#allocation3], %s267
        %s269 = sand.u32 %s181, 1
        %s270 = smul.addr %s269, 8
        %s271 = scalar_lea.vmem [#allocation2], %s270
        %p272 = scmp.lt.s32.totalorder %s21, 1
        %s273 = scalar_select %p272, %s21, 1
        %s274 = smul.addr %s273, 4
        %s275 = smul.addr %s274, 8
        %s276 = scalar_lea.vmem %s0, %s275
        %v277 = vld [vmem:[%s276] sm:$0xff]
        %v278 = vld [vmem:[%s276 + $0x8] sm:$0xff]
        %v279 = vld [vmem:[%s276 + $0x10] sm:$0xff]
        %v280 = vld [vmem:[%s276 + $0x18] sm:$0xff]
        %v281 = vld [vmem:[%s1] sm:$0xff]
        %v282 = vld [vmem:[%s1 + $0x8] sm:$0xff]
        %v283 = vld [vmem:[%s1 + $0x10] sm:$0xff]
        %v284 = vld [vmem:[%s1 + $0x18] sm:$0xff]
        %v285 = vld [vmem:[%s1 + $0x20] sm:$0xff]
        %v286 = vld [vmem:[%s1 + $0x28] sm:$0xff]
        %v287 = vld [vmem:[%s1 + $0x30] sm:$0xff]
        %v288 = vld [vmem:[%s1 + $0x38] sm:$0xff]
        %v289 = vld [vmem:[%s1 + $0x40] sm:$0xff]
        %v290 = vld [vmem:[%s1 + $0x48] sm:$0xff]
        %v291 = vld [vmem:[%s1 + $0x50] sm:$0xff]
        %v292 = vld [vmem:[%s1 + $0x58] sm:$0xff]
        %v293 = vld [vmem:[%s1 + $0x60] sm:$0xff]
        %v294 = vld [vmem:[%s1 + $0x68] sm:$0xff]
        %v295 = vld [vmem:[%s1 + $0x70] sm:$0xff]
        %v296 = vld [vmem:[%s1 + $0x78] sm:$0xff]
        %v297 = vld [vmem:[%s1 + $0x80] sm:$0xff]
        %v298 = vld [vmem:[%s1 + $0x88] sm:$0xff]
        %v299 = vld [vmem:[%s1 + $0x90] sm:$0xff]
        %v300 = vld [vmem:[%s1 + $0x98] sm:$0xff]
        %v301 = vld [vmem:[%s1 + $0xa0] sm:$0xff]
        %v302 = vld [vmem:[%s1 + $0xa8] sm:$0xff]
        %v303 = vld [vmem:[%s1 + $0xb0] sm:$0xff]
        %v304 = vld [vmem:[%s1 + $0xb8] sm:$0xff]
        %v305 = vld [vmem:[%s1 + $0xc0] sm:$0xff]
        %v306 = vld [vmem:[%s1 + $0xc8] sm:$0xff]
        %v307 = vld [vmem:[%s1 + $0xd0] sm:$0xff]
        %v308 = vld [vmem:[%s1 + $0xd8] sm:$0xff]
        %v309 = vld [vmem:[%s1 + $0xe0] sm:$0xff]
        %v310 = vld [vmem:[%s1 + $0xe8] sm:$0xff]
        %v311 = vld [vmem:[%s1 + $0xf0] sm:$0xff]
        %v312 = vld [vmem:[%s1 + $0xf8] sm:$0xff]
        %v313 = vld [vmem:[%s1 + $0x100] sm:$0xff]
        %v314 = vld [vmem:[%s1 + $0x108] sm:$0xff]
        %v315 = vld [vmem:[%s1 + $0x110] sm:$0xff]
        %v316 = vld [vmem:[%s1 + $0x118] sm:$0xff]
        %v317 = vld [vmem:[%s1 + $0x120] sm:$0xff]
        %v318 = vld [vmem:[%s1 + $0x128] sm:$0xff]
        %v319 = vld [vmem:[%s1 + $0x130] sm:$0xff]
        %v320 = vld [vmem:[%s1 + $0x138] sm:$0xff]
        %v321 = vld [vmem:[%s1 + $0x140] sm:$0xff]
        %v322 = vld [vmem:[%s1 + $0x148] sm:$0xff]
        %v323 = vld [vmem:[%s1 + $0x150] sm:$0xff]
        %v324 = vld [vmem:[%s1 + $0x158] sm:$0xff]
        %v325 = vld [vmem:[%s1 + $0x160] sm:$0xff]
        %v326 = vld [vmem:[%s1 + $0x168] sm:$0xff]
        %v327 = vld [vmem:[%s1 + $0x170] sm:$0xff]
        %v328 = vld [vmem:[%s1 + $0x178] sm:$0xff]
        %v329 = vld [vmem:[%s1 + $0x180] sm:$0xff]
        %v330 = vld [vmem:[%s1 + $0x188] sm:$0xff]
        %v331 = vld [vmem:[%s1 + $0x190] sm:$0xff]
        %v332 = vld [vmem:[%s1 + $0x198] sm:$0xff]
        %v333 = vld [vmem:[%s1 + $0x1a0] sm:$0xff]
        %v334 = vld [vmem:[%s1 + $0x1a8] sm:$0xff]
        %v335 = vld [vmem:[%s1 + $0x1b0] sm:$0xff]
        %v336 = vld [vmem:[%s1 + $0x1b8] sm:$0xff]
        %v337 = vld [vmem:[%s1 + $0x1c0] sm:$0xff]
        %v338 = vld [vmem:[%s1 + $0x1c8] sm:$0xff]
        %v339 = vld [vmem:[%s1 + $0x1d0] sm:$0xff]
        %v340 = vld [vmem:[%s1 + $0x1d8] sm:$0xff]
        %v341 = vld [vmem:[%s1 + $0x1e0] sm:$0xff]
        %v342 = vld [vmem:[%s1 + $0x1e8] sm:$0xff]
        %v343 = vld [vmem:[%s1 + $0x1f0] sm:$0xff]
        %v344 = vld [vmem:[%s1 + $0x1f8] sm:$0xff]
        %v345 = vld [vmem:[%s2] sm:$0x1]
        %v347 = vlaneseq
        %v348 = vshrl.u32 %v347, 7
        %v349 = vsub.s32 0, %v348
        %v350 = vrot.slane %v345, %v349
        %352 = vmatprep.subr.mxu0 0.0
        %353 = vmatpush1.msra.mxu0 %v281
        %354 = vmatprep.subr.mxu0 0.0
        %355 = vmatpush1.msra.mxu0 %v282
        %356 = vmatprep.subr.mxu0 0.0
        %357 = vmatpush1.msra.mxu0 %v283
        %358 = vmatprep.subr.mxu0 0.0
        %359 = vmatpush1.msra.mxu0 %v284
        %360 = vmatprep.subr.mxu0 0.0
        %361 = vmatpush1.msra.mxu0 %v285
        %362 = vmatprep.subr.mxu0 0.0
        %363 = vmatpush1.msra.mxu0 %v286
        %364 = vmatprep.subr.mxu0 0.0
        %365 = vmatpush1.msra.mxu0 %v287
        %366 = vmatprep.subr.mxu0 0.0
        %367 = vmatpush1.msra.mxu0 %v288
        %368 = vmatprep.subr.mxu0 0.0
        %369 = vmatpush1.msra.mxu0 %v289
        %370 = vmatprep.subr.mxu0 0.0
        %371 = vmatpush1.msra.mxu0 %v290
        %372 = vmatprep.subr.mxu0 0.0
        %373 = vmatpush1.msra.mxu0 %v291
        %374 = vmatprep.subr.mxu0 0.0
        %375 = vmatpush1.msra.mxu0 %v292
        %376 = vmatprep.subr.mxu0 0.0
        %377 = vmatpush1.msra.mxu0 %v293
        %378 = vmatprep.subr.mxu0 0.0
        %379 = vmatpush1.msra.mxu0 %v294
        %380 = vmatprep.subr.mxu0 0.0
        %381 = vmatpush1.msra.mxu0 %v295
        %382 = vmatprep.subr.mxu0 0.0
        %383 = vmatpush1.msra.mxu0 %v296
        %384 = vmatprep.subr.mxu0 0.0
        %385 = vmatpush1.msra.mxu0 %v297
        %386 = vmatprep.subr.mxu0 0.0
        %387 = vmatpush1.msra.mxu0 %v298
        %388 = vmatprep.subr.mxu0 0.0
        %389 = vmatpush1.msra.mxu0 %v299
        %390 = vmatprep.subr.mxu0 0.0
        %391 = vmatpush1.msra.mxu0 %v300
        %392 = vmatprep.subr.mxu0 0.0
        %393 = vmatpush1.msra.mxu0 %v301
        %394 = vmatprep.subr.mxu0 0.0
        %395 = vmatpush1.msra.mxu0 %v302
        %396 = vmatprep.subr.mxu0 0.0
        %397 = vmatpush1.msra.mxu0 %v303
        %398 = vmatprep.subr.mxu0 0.0
        %399 = vmatpush1.msra.mxu0 %v304
        %400 = vmatprep.subr.mxu0 0.0
        %401 = vmatpush1.msra.mxu0 %v305
        %402 = vmatprep.subr.mxu0 0.0
        %403 = vmatpush1.msra.mxu0 %v306
        %404 = vmatprep.subr.mxu0 0.0
        %405 = vmatpush1.msra.mxu0 %v307
        %406 = vmatprep.subr.mxu0 0.0
        %407 = vmatpush1.msra.mxu0 %v308
        %408 = vmatprep.subr.mxu0 0.0
        %409 = vmatpush1.msra.mxu0 %v309
        %410 = vmatprep.subr.mxu0 0.0
        %411 = vmatpush1.msra.mxu0 %v310
        %412 = vmatprep.subr.mxu0 0.0
        %413 = vmatpush1.msra.mxu0 %v311
        %414 = vmatprep.subr.mxu0 0.0
        %415 = vmatpush1.msra.mxu0 %v312
        %416 = vmatprep.mubr.f32.mxu0 %v278
        %417 = vmatmul.mubr.f32.gmra.mrb[0].mxu0 %v277
        %v418 = vpop.f32.mrb[0].mxu0
        %v419 = vadd.f32 %v350, %v418
        %v420 = vpop.f32.mrb[0].mxu0
        %421 = vdwg.mxu0
        %422 = vmatprep.subr.mxu0 0.0
        %423 = vmatpush1.msra.mxu0 %v313
        %424 = vmatprep.subr.mxu0 0.0
        %425 = vmatpush1.msra.mxu0 %v314
        %426 = vmatprep.subr.mxu0 0.0
        %427 = vmatpush1.msra.mxu0 %v315
        %428 = vmatprep.subr.mxu0 0.0
        %429 = vmatpush1.msra.mxu0 %v316
        %430 = vmatprep.subr.mxu0 0.0
        %431 = vmatpush1.msra.mxu0 %v317
        %432 = vmatprep.subr.mxu0 0.0
        %433 = vmatpush1.msra.mxu0 %v318
        %434 = vmatprep.subr.mxu0 0.0
        %435 = vmatpush1.msra.mxu0 %v319
        %436 = vmatprep.subr.mxu0 0.0
        %437 = vmatpush1.msra.mxu0 %v320
        %438 = vmatprep.subr.mxu0 0.0
        %439 = vmatpush1.msra.mxu0 %v321
        %440 = vmatprep.subr.mxu0 0.0
        %441 = vmatpush1.msra.mxu0 %v322
        %442 = vmatprep.subr.mxu0 0.0
        %443 = vmatpush1.msra.mxu0 %v323
        %444 = vmatprep.subr.mxu0 0.0
        %445 = vmatpush1.msra.mxu0 %v324
        %446 = vmatprep.subr.mxu0 0.0
        %447 = vmatpush1.msra.mxu0 %v325
        %448 = vmatprep.subr.mxu0 0.0
        %449 = vmatpush1.msra.mxu0 %v326
        %450 = vmatprep.subr.mxu0 0.0
        %451 = vmatpush1.msra.mxu0 %v327
        %452 = vmatprep.subr.mxu0 0.0
        %453 = vmatpush1.msra.mxu0 %v328
        %454 = vmatprep.subr.mxu0 0.0
        %455 = vmatpush1.msra.mxu0 %v329
        %456 = vmatprep.subr.mxu0 0.0
        %457 = vmatpush1.msra.mxu0 %v330
        %458 = vmatprep.subr.mxu0 0.0
        %459 = vmatpush1.msra.mxu0 %v331
        %460 = vmatprep.subr.mxu0 0.0
        %461 = vmatpush1.msra.mxu0 %v332
        %462 = vmatprep.subr.mxu0 0.0
        %463 = vmatpush1.msra.mxu0 %v333
        %464 = vmatprep.subr.mxu0 0.0
        %465 = vmatpush1.msra.mxu0 %v334
        %466 = vmatprep.subr.mxu0 0.0
        %467 = vmatpush1.msra.mxu0 %v335
        %468 = vmatprep.subr.mxu0 0.0
        %469 = vmatpush1.msra.mxu0 %v336
        %470 = vmatprep.subr.mxu0 0.0
        %471 = vmatpush1.msra.mxu0 %v337
        %472 = vmatprep.subr.mxu0 0.0
        %473 = vmatpush1.msra.mxu0 %v338
        %474 = vmatprep.subr.mxu0 0.0
        %475 = vmatpush1.msra.mxu0 %v339
        %476 = vmatprep.subr.mxu0 0.0
        %477 = vmatpush1.msra.mxu0 %v340
        %478 = vmatprep.subr.mxu0 0.0
        %479 = vmatpush1.msra.mxu0 %v341
        %480 = vmatprep.subr.mxu0 0.0
        %481 = vmatpush1.msra.mxu0 %v342
        %482 = vmatprep.subr.mxu0 0.0
        %483 = vmatpush1.msra.mxu0 %v343
        %484 = vmatprep.subr.mxu0 0.0
        %485 = vmatpush1.msra.mxu0 %v344
        %486 = vmatprep.mubr.f32.mxu0 %v280
        %487 = vmatmul.mubr.f32.gmra.mrb[0].mxu0 %v279
        %v488 = vpop.f32.mrb[0].mxu0
        %v489 = vadd.f32 %v419, %v488
        %v490 = vpop.f32.mrb[0].mxu0
        %491 = vdwg.mxu0
        %v492 = vmax.f32 %v489, 0.0
        %v493 = vld [vmem:[%s3] sm:$0xff]
        %v494 = vld [vmem:[%s3 + $0x8] sm:$0xff]
        %v495 = vld [vmem:[%s3 + $0x10] sm:$0xff]
        %v496 = vld [vmem:[%s3 + $0x18] sm:$0xff]
        %v497 = vld [vmem:[%s3 + $0x20] sm:$0xff]
        %v498 = vld [vmem:[%s3 + $0x28] sm:$0xff]
        %v499 = vld [vmem:[%s3 + $0x30] sm:$0xff]
        %v500 = vld [vmem:[%s3 + $0x38] sm:$0xff]
        %v501 = vld [vmem:[%s3 + $0x40] sm:$0xff]
        %v502 = vld [vmem:[%s3 + $0x48] sm:$0xff]
        %v503 = vld [vmem:[%s3 + $0x50] sm:$0xff]
        %v504 = vld [vmem:[%s3 + $0x58] sm:$0xff]
        %v505 = vld [vmem:[%s3 + $0x60] sm:$0xff]
        %v506 = vld [vmem:[%s3 + $0x68] sm:$0xff]
        %v507 = vld [vmem:[%s3 + $0x70] sm:$0xff]
        %v508 = vld [vmem:[%s3 + $0x78] sm:$0xff]
        %v509 = vld [vmem:[%s4] sm:$0x1]
        %v511 = vlaneseq
        %v512 = vshrl.u32 %v511, 7
        %v513 = vsub.s32 0, %v512
        %v514 = vrot.slane %v509, %v513
        %516 = vmatprep.subr.mxu0 0.0
        %517 = vmatpush1.msra.mxu0 %v493
        %518 = vmatprep.subr.mxu0 0.0
        %519 = vmatpush1.msra.mxu0 %v494
        %520 = vmatprep.subr.mxu0 0.0
        %521 = vmatpush1.msra.mxu0 %v495
        %522 = vmatprep.subr.mxu0 0.0
        %523 = vmatpush1.msra.mxu0 %v496
        %524 = vmatprep.subr.mxu0 0.0
        %525 = vmatpush1.msra.mxu0 %v497
        %526 = vmatprep.subr.mxu0 0.0
        %527 = vmatpush1.msra.mxu0 %v498
        %528 = vmatprep.subr.mxu0 0.0
        %529 = vmatpush1.msra.mxu0 %v499
        %530 = vmatprep.subr.mxu0 0.0
        %531 = vmatpush1.msra.mxu0 %v500
        %532 = vmatprep.subr.mxu0 0.0
        %533 = vmatpush1.msra.mxu0 %v501
        %534 = vmatprep.subr.mxu0 0.0
        %535 = vmatpush1.msra.mxu0 %v502
        %536 = vmatprep.subr.mxu0 0.0
        %537 = vmatpush1.msra.mxu0 %v503
        %538 = vmatprep.subr.mxu0 0.0
        %539 = vmatpush1.msra.mxu0 %v504
        %540 = vmatprep.subr.mxu0 0.0
        %541 = vmatpush1.msra.mxu0 %v505
        %542 = vmatprep.subr.mxu0 0.0
        %543 = vmatpush1.msra.mxu0 %v506
        %544 = vmatprep.subr.mxu0 0.0
        %545 = vmatpush1.msra.mxu0 %v507
        %546 = vmatprep.subr.mxu0 0.0
        %547 = vmatpush1.msra.mxu0 %v508
        %548 = vmatprep.subr.mxu0 0.0
        %549 = vmatpush1.msra.mxu0 0.0
        %550 = vmatprep.subr.mxu0 0.0
        %551 = vmatpush1.msra.mxu0 0.0
        %552 = vmatprep.subr.mxu0 0.0
        %553 = vmatpush1.msra.mxu0 0.0
        %554 = vmatprep.subr.mxu0 0.0
        %555 = vmatpush1.msra.mxu0 0.0
        %556 = vmatprep.subr.mxu0 0.0
        %557 = vmatpush1.msra.mxu0 0.0
        %558 = vmatprep.subr.mxu0 0.0
        %559 = vmatpush1.msra.mxu0 0.0
        %560 = vmatprep.subr.mxu0 0.0
        %561 = vmatpush1.msra.mxu0 0.0
        %562 = vmatprep.subr.mxu0 0.0
        %563 = vmatpush1.msra.mxu0 0.0
        %564 = vmatprep.subr.mxu0 0.0
        %565 = vmatpush1.msra.mxu0 0.0
        %566 = vmatprep.subr.mxu0 0.0
        %567 = vmatpush1.msra.mxu0 0.0
        %568 = vmatprep.subr.mxu0 0.0
        %569 = vmatpush1.msra.mxu0 0.0
        %570 = vmatprep.subr.mxu0 0.0
        %571 = vmatpush1.msra.mxu0 0.0
        %572 = vmatprep.subr.mxu0 0.0
        %573 = vmatpush1.msra.mxu0 0.0
        %574 = vmatprep.subr.mxu0 0.0
        %575 = vmatpush1.msra.mxu0 0.0
        %576 = vmatprep.subr.mxu0 0.0
        %577 = vmatpush1.msra.mxu0 0.0
        %578 = vmatprep.subr.mxu0 0.0
        %579 = vmatpush1.msra.mxu0 0.0
        %580 = vmatprep.mubr.f32.mxu0 0.0
        %581 = vmatmul.mubr.f32.gmra.mrb[0].mxu0 %v492
        %v582 = vpop.f32.mrb[0].mxu0
        %v583 = vadd.f32 %v514, %v582
        %v584 = vpop.f32.mrb[0].mxu0
        %585 = vdwg.mxu0
        %v586 = vmax.f32 %v583, 0.0
        %v587 = vld [vmem:[%s5] sm:$0xff]
        %v588 = vld [vmem:[%s5 + $0x8] sm:$0xff]
        %v589 = vld [vmem:[%s5 + $0x10] sm:$0xff]
        %v590 = vld [vmem:[%s5 + $0x18] sm:$0xff]
        %v591 = vld [vmem:[%s5 + $0x20] sm:$0xff]
        %v592 = vld [vmem:[%s5 + $0x28] sm:$0xff]
        %v593 = vld [vmem:[%s5 + $0x30] sm:$0xff]
        %v594 = vld [vmem:[%s5 + $0x38] sm:$0xff]
        %v595 = vld [vmem:[%s5 + $0x40] sm:$0xff]
        %v596 = vld [vmem:[%s5 + $0x48] sm:$0xff]
        %v597 = vld [vmem:[%s5 + $0x50] sm:$0xff]
        %v598 = vld [vmem:[%s5 + $0x58] sm:$0xff]
        %v599 = vld [vmem:[%s5 + $0x60] sm:$0xff]
        %v600 = vld [vmem:[%s5 + $0x68] sm:$0xff]
        %v601 = vld [vmem:[%s5 + $0x70] sm:$0xff]
        %v602 = vld [vmem:[%s5 + $0x78] sm:$0xff]
        %v603 = vld [vmem:[%s6] sm:$0x1]
        %v605 = vlaneseq
        %v606 = vshrl.u32 %v605, 7
        %v607 = vsub.s32 0, %v606
        %v608 = vrot.slane %v603, %v607
        %610 = vmatprep.subr.mxu0 0.0
        %611 = vmatpush1.msra.mxu0 %v587
        %612 = vmatprep.subr.mxu0 0.0
        %613 = vmatpush1.msra.mxu0 %v588
        %614 = vmatprep.subr.mxu0 0.0
        %615 = vmatpush1.msra.mxu0 %v589
        %616 = vmatprep.subr.mxu0 0.0
        %617 = vmatpush1.msra.mxu0 %v590
        %618 = vmatprep.subr.mxu0 0.0
        %619 = vmatpush1.msra.mxu0 %v591
        %620 = vmatprep.subr.mxu0 0.0
        %621 = vmatpush1.msra.mxu0 %v592
        %622 = vmatprep.subr.mxu0 0.0
        %623 = vmatpush1.msra.mxu0 %v593
        %624 = vmatprep.subr.mxu0 0.0
        %625 = vmatpush1.msra.mxu0 %v594
        %626 = vmatprep.subr.mxu0 0.0
        %627 = vmatpush1.msra.mxu0 %v595
        %628 = vmatprep.subr.mxu0 0.0
        %629 = vmatpush1.msra.mxu0 %v596
        %630 = vmatprep.subr.mxu0 0.0
        %631 = vmatpush1.msra.mxu0 %v597
        %632 = vmatprep.subr.mxu0 0.0
        %633 = vmatpush1.msra.mxu0 %v598
        %634 = vmatprep.subr.mxu0 0.0
        %635 = vmatpush1.msra.mxu0 %v599
        %636 = vmatprep.subr.mxu0 0.0
        %637 = vmatpush1.msra.mxu0 %v600
        %638 = vmatprep.subr.mxu0 0.0
        %639 = vmatpush1.msra.mxu0 %v601
        %640 = vmatprep.subr.mxu0 0.0
        %641 = vmatpush1.msra.mxu0 %v602
        %642 = vmatprep.subr.mxu0 0.0
        %643 = vmatpush1.msra.mxu0 0.0
        %644 = vmatprep.subr.mxu0 0.0
        %645 = vmatpush1.msra.mxu0 0.0
        %646 = vmatprep.subr.mxu0 0.0
        %647 = vmatpush1.msra.mxu0 0.0
        %648 = vmatprep.subr.mxu0 0.0
        %649 = vmatpush1.msra.mxu0 0.0
        %650 = vmatprep.subr.mxu0 0.0
        %651 = vmatpush1.msra.mxu0 0.0
        %652 = vmatprep.subr.mxu0 0.0
        %653 = vmatpush1.msra.mxu0 0.0
        %654 = vmatprep.subr.mxu0 0.0
        %655 = vmatpush1.msra.mxu0 0.0
        %656 = vmatprep.subr.mxu0 0.0
        %657 = vmatpush1.msra.mxu0 0.0
        %658 = vmatprep.subr.mxu0 0.0
        %659 = vmatpush1.msra.mxu0 0.0
        %660 = vmatprep.subr.mxu0 0.0
        %661 = vmatpush1.msra.mxu0 0.0
        %662 = vmatprep.subr.mxu0 0.0
        %663 = vmatpush1.msra.mxu0 0.0
        %664 = vmatprep.subr.mxu0 0.0
        %665 = vmatpush1.msra.mxu0 0.0
        %666 = vmatprep.subr.mxu0 0.0
        %667 = vmatpush1.msra.mxu0 0.0
        %668 = vmatprep.subr.mxu0 0.0
        %669 = vmatpush1.msra.mxu0 0.0
        %670 = vmatprep.subr.mxu0 0.0
        %671 = vmatpush1.msra.mxu0 0.0
        %672 = vmatprep.subr.mxu0 0.0
        %673 = vmatpush1.msra.mxu0 0.0
        %674 = vmatprep.mubr.f32.mxu0 0.0
        %675 = vmatmul.mubr.f32.gmra.mrb[0].mxu0 %v586
        %v676 = vpop.f32.mrb[0].mxu0
        %v677 = vadd.f32 %v608, %v676
        %v678 = vpop.f32.mrb[0].mxu0
        %679 = vdwg.mxu0
        %680 = vst [vmem:[%s271] sm:$0xff] %v677
        %s681 = sand.u32 %s181, 1
        %s682 = scalar_lea.sflag [#allocation3], %s681
        %s683 = sand.u32 %s181, 1
        %s684 = smul.addr %s683, 8
        %s685 = scalar_lea.vmem [#allocation2], %s684
        // Predicated region
        $region49: #{_net_forward.3} parent=47 // pred_check
          %p686 = pneg %p191
        $region50: #{_net_forward.3} parent=47 // pred_check_branch
          %688 = sbr.rel (%p686) target = $region52
        $region51: #{_net_forward.3} parent=47 // pred_region
          %s690 = ssub.s32 128, 128
          %691 = vsyncadd %s682, %s690
          %s692 = smul.addr %s21, 128
          %s693 = scalar_lea.hbm %s7, %s692
          %s695 = sshll.u32 %s685, 4
          %s696 = int_to_ptr.vmem [resolvable:$true] %s695
          %698 = dma.vmem_to_hbm [thread:$0]  %s696, 128, %s693, %s682
        $region52: #{_net_forward.3} parent=47 // pred_fallthru
          _
      $region48: #{_net_forward.3} parent=5 // pred_fallthru
        _
      %p699 = scmp.le.s32.totalorder 2, %s16
      // Predicated region
      $region53: #{_net_forward.3} parent=5 // pred_check
        %p700 = pneg %p699
      $region54: #{_net_forward.3} parent=5 // pred_check_branch
        %702 = sbr.rel (%p700) target = $region56
      $region55: #{_net_forward.3} parent=5 // pred_region
        %s703 = ssub.s32 %s16, 2
        // Predicated region
        $region57: #{_net_forward.3} parent=55 // pred_check
          %p704 = pneg %p197
        $region58: #{_net_forward.3} parent=55 // pred_check_branch
          %706 = sbr.rel (%p704) target = $region60
        $region59: #{_net_forward.3} parent=55 // pred_region
          %s707 = sand.u32 %s182, 1
          %s708 = scalar_lea.sflag [#allocation3], %s707
          %s709 = sand.u32 %s182, 1
          %s710 = smul.addr %s709, 8
          %s711 = scalar_lea.vmem [#allocation2], %s710
          %712 = dma.done %s708, 128
        $region60: #{_net_forward.3} parent=55 // pred_fallthru
          _
      $region56: #{_net_forward.3} parent=5 // pred_fallthru
        _
    $region6: #{_net_forward.3} parent=1 // loop_footer
      %s20 = sadd.s32 1, %s16
    $region7: #{_net_forward.3} parent=1 // loop_footer_branch
      %15 = sbr.rel target = $region3
    $region8: #{_net_forward.3} parent=1 // loop_exit
      _
    %713 = vsyncpa [#allocation3], 1
    %s714 = scalar_lea.sflag [#allocation3], 1
    %715 = vsyncpa %s714, 1

// kernel: _net_forward.2
$region0: #{_net_forward.2}
  #allocation0 [shape = 'u32[]', space=smem, size = 0x4, offset = 0x4, fixed_abs, tag = 'smem constant byte address 0x4 - core index']
  #allocation1 [shape = 'u32[144,128]{1,0:T(1,128)}', space=vmem, size = 0x12000, scoped, tag = 'internal scratch']
  #allocation2 [shape = 'f32[200,2048]{1,0:T(8,128)}', space=vmem, size = 0x190000, scoped, tag = 'scratch operand']
  %s0 = inlined_call_operand.vmem [shape: f32[2,32,8192], index: 0, kind: input, shape index: {}]
  %s1 = inlined_call_operand.vmem [shape: f32[8,32], index: 1, kind: input, shape index: {}]
  %s2 = inlined_call_operand.vmem [shape: f32[8,1], index: 2, kind: input, shape index: {}]
  %s3 = inlined_call_operand.vmem [shape: f32[16,200], index: 3, kind: input, shape index: {}]
  %s4 = inlined_call_operand.vmem [shape: f32[16,1], index: 4, kind: input, shape index: {}]
  %s5 = inlined_call_operand.vmem [shape: f32[2,16,2048], index: 5, kind: output, shape index: {}]
  %s6 = sld [smem:[#allocation0]]
  $region53: #{_net_forward.2} parent=0
    _
  %s8 = ssub.s32 1, %s6
  %s9 = scalar_select 0, %s8, %s6
  loop: start=0, step=1, limit=4
  $region2: #{_net_forward.2} parent=0 // loop_pre_header
    _
  $region3: #{_net_forward.2} parent=0 // loop_header
    %s11 = sphi 0, %s15
    %p12 = scmp.ge.s32.totalorder %s11, 4
    %s21 = sphi 0, %s23
    %s24 = sphi 0, %s21
    %s25 = sphi 0, %s24
    %s41 = sphi 0, %s25
    %s45 = sphi 0, %s45
    %s47 = sphi 0, %s45
    %s48 = sphi 0, %s47
    %s62 = sphi 0, %s48
    %s66 = sphi 0, %s66
    %s68 = sphi 0, %s66
    %s69 = sphi 0, %s68
    %s83 = sphi 0, %s69
    %s87 = sphi 0, %s87
    %s89 = sphi 0, %s87
    %s90 = sphi 0, %s89
    %s104 = sphi 0, %s90
    %s108 = sphi 0, %s108
    %s110 = sphi 0, %s108
    %s111 = sphi 0, %s110
    %s125 = sphi 0, %s111
    %s131 = sphi 0, %s133
    %s134 = sphi 0, %s131
    %s135 = sphi 0, %s134
    %s151 = sphi 0, %s135
  $region4: #{_net_forward.2} parent=0 // loop_header_branch
    %14 = sbr.rel (%p12) target = $region8
  $region5: #{_net_forward.2} parent=0 // loop_body
    %s16 = ssub.s32 %s11, 1
    %s17 = ssub.s32 %s11, 2
    %s18 = sadd.s32 %s11, 1
    %s19 = ssub.s32 %s11, %s18
    %p20 = scmp.eq.s32.totalorder %s19, 0
    %s22 = sadd.s32 %s21, 1
    %s23 = scalar_select %p20, %s21, %s22
    %p26 = pneg %p20
    %p27 = scmp.eq.s32.totalorder %s11, 1
    %p28 = por %p26, %p27
    %p29 = scmp.ne.s32.totalorder %s21, %s24
    %p30 = scmp.eq.s32.totalorder %s11, 0
    %p31 = por %p29, %p30
    %p32 = scmp.ne.s32.totalorder %s21, %s24
    %p33 = scmp.eq.s32.totalorder %s16, 1
    %p34 = por %p32, %p33
    %p35 = scmp.ne.s32.totalorder %s24, %s25
    %p36 = scmp.eq.s32.totalorder %s16, 0
    %p37 = por %p35, %p36
    %p38 = scmp.ne.s32.totalorder %s24, %s25
    %p39 = scmp.eq.s32.totalorder %s17, 1
    %p40 = por %p38, %p39
    %p42 = scmp.ne.s32.totalorder %s25, %s41
    %p43 = scmp.eq.s32.totalorder %s17, 0
    %p44 = por %p42, %p43
    %s46 = sadd.s32 %s45, 1
    %p49 = scmp.eq.s32.totalorder %s11, 1
    %p50 = scmp.ne.s32.totalorder %s45, %s47
    %p51 = scmp.eq.s32.totalorder %s11, 0
    %p52 = por %p50, %p51
    %p53 = scmp.ne.s32.totalorder %s45, %s47
    %p54 = scmp.eq.s32.totalorder %s16, 1
    %p55 = por %p53, %p54
    %p56 = scmp.ne.s32.totalorder %s47, %s48
    %p57 = scmp.eq.s32.totalorder %s16, 0
    %p58 = por %p56, %p57
    %p59 = scmp.ne.s32.totalorder %s47, %s48
    %p60 = scmp.eq.s32.totalorder %s17, 1
    %p61 = por %p59, %p60
    %p63 = scmp.ne.s32.totalorder %s48, %s62
    %p64 = scmp.eq.s32.totalorder %s17, 0
    %p65 = por %p63, %p64
    %s67 = sadd.s32 %s66, 1
    %p70 = scmp.eq.s32.totalorder %s11, 1
    %p71 = scmp.ne.s32.totalorder %s66, %s68
    %p72 = scmp.eq.s32.totalorder %s11, 0
    %p73 = por %p71, %p72
    %p74 = scmp.ne.s32.totalorder %s66, %s68
    %p75 = scmp.eq.s32.totalorder %s16, 1
    %p76 = por %p74, %p75
    %p77 = scmp.ne.s32.totalorder %s68, %s69
    %p78 = scmp.eq.s32.totalorder %s16, 0
    %p79 = por %p77, %p78
    %p80 = scmp.ne.s32.totalorder %s68, %s69
    %p81 = scmp.eq.s32.totalorder %s17, 1
    %p82 = por %p80, %p81
    %p84 = scmp.ne.s32.totalorder %s69, %s83
    %p85 = scmp.eq.s32.totalorder %s17, 0
    %p86 = por %p84, %p85
    %s88 = sadd.s32 %s87, 1
    %p91 = scmp.eq.s32.totalorder %s11, 1
    %p92 = scmp.ne.s32.totalorder %s87, %s89
    %p93 = scmp.eq.s32.totalorder %s11, 0
    %p94 = por %p92, %p93
    %p95 = scmp.ne.s32.totalorder %s87, %s89
    %p96 = scmp.eq.s32.totalorder %s16, 1
    %p97 = por %p95, %p96
    %p98 = scmp.ne.s32.totalorder %s89, %s90
    %p99 = scmp.eq.s32.totalorder %s16, 0
    %p100 = por %p98, %p99
    %p101 = scmp.ne.s32.totalorder %s89, %s90
    %p102 = scmp.eq.s32.totalorder %s17, 1
    %p103 = por %p101, %p102
    %p105 = scmp.ne.s32.totalorder %s90, %s104
    %p106 = scmp.eq.s32.totalorder %s17, 0
    %p107 = por %p105, %p106
    %s109 = sadd.s32 %s108, 1
    %p112 = scmp.eq.s32.totalorder %s11, 1
    %p113 = scmp.ne.s32.totalorder %s108, %s110
    %p114 = scmp.eq.s32.totalorder %s11, 0
    %p115 = por %p113, %p114
    %p116 = scmp.ne.s32.totalorder %s108, %s110
    %p117 = scmp.eq.s32.totalorder %s16, 1
    %p118 = por %p116, %p117
    %p119 = scmp.ne.s32.totalorder %s110, %s111
    %p120 = scmp.eq.s32.totalorder %s16, 0
    %p121 = por %p119, %p120
    %p122 = scmp.ne.s32.totalorder %s110, %s111
    %p123 = scmp.eq.s32.totalorder %s17, 1
    %p124 = por %p122, %p123
    %p126 = scmp.ne.s32.totalorder %s111, %s125
    %p127 = scmp.eq.s32.totalorder %s17, 0
    %p128 = por %p126, %p127
    %s129 = ssub.s32 %s11, %s18
    %p130 = scmp.eq.s32.totalorder %s129, 0
    %s132 = sadd.s32 %s131, 1
    %s133 = scalar_select %p130, %s131, %s132
    %p136 = pneg %p130
    %p137 = scmp.eq.s32.totalorder %s11, 1
    %p138 = por %p136, %p137
    %p139 = scmp.ne.s32.totalorder %s131, %s134
    %p140 = scmp.eq.s32.totalorder %s11, 0
    %p141 = por %p139, %p140
    %p142 = scmp.ne.s32.totalorder %s131, %s134
    %p143 = scmp.eq.s32.totalorder %s16, 1
    %p144 = por %p142, %p143
    %p145 = scmp.ne.s32.totalorder %s134, %s135
    %p146 = scmp.eq.s32.totalorder %s16, 0
    %p147 = por %p145, %p146
    %p148 = scmp.ne.s32.totalorder %s134, %s135
    %p149 = scmp.eq.s32.totalorder %s17, 1
    %p150 = por %p148, %p149
    %p152 = scmp.ne.s32.totalorder %s135, %s151
    %p153 = scmp.eq.s32.totalorder %s17, 0
    %p154 = por %p152, %p153
    %p155 = scmp.le.s32.totalorder 1, %s11
    %p156 = scmp.lt.s32.totalorder %s11, 3
    %p157 = pnand %p155, %p156
    %p158 = pneg %p157
    // Predicated region
    $region9: #{_net_forward.2} parent=5 // pred_check
      _
    $region10: #{_net_forward.2} parent=5 // pred_check_branch
      %160 = sbr.rel (%p157) target = $region12
    $region11: #{_net_forward.2} parent=5 // pred_region
      %s161 = ssub.s32 %s11, 1
      // Predicated region
      $region13: #{_net_forward.2} parent=11 // pred_check
        %p162 = pneg %p58
      $region14: #{_net_forward.2} parent=11 // pred_check_branch
        %164 = sbr.rel (%p162) target = $region16
      $region15: #{_net_forward.2} parent=11 // pred_region
        _
      $region16: #{_net_forward.2} parent=11 // pred_fallthru
        _
      // Predicated region
      $region17: #{_net_forward.2} parent=11 // pred_check
        %p165 = pneg %p79
      $region18: #{_net_forward.2} parent=11 // pred_check_branch
        %167 = sbr.rel (%p165) target = $region20
      $region19: #{_net_forward.2} parent=11 // pred_region
        _
      $region20: #{_net_forward.2} parent=11 // pred_fallthru
        _
      // Predicated region
      $region21: #{_net_forward.2} parent=11 // pred_check
        %p168 = pneg %p100
      $region22: #{_net_forward.2} parent=11 // pred_check_branch
        %170 = sbr.rel (%p168) target = $region24
      $region23: #{_net_forward.2} parent=11 // pred_region
        _
      $region24: #{_net_forward.2} parent=11 // pred_fallthru
        _
      // Predicated region
      $region25: #{_net_forward.2} parent=11 // pred_check
        %p171 = pneg %p121
      $region26: #{_net_forward.2} parent=11 // pred_check_branch
        %173 = sbr.rel (%p171) target = $region28
      $region27: #{_net_forward.2} parent=11 // pred_region
        _
      $region28: #{_net_forward.2} parent=11 // pred_fallthru
        _
    $region12: #{_net_forward.2} parent=5 // pred_fallthru
      _
    %p174 = scmp.lt.s32.totalorder %s11, 2
    // Predicated region
    $region29: #{_net_forward.2} parent=5 // pred_check
      %p175 = pneg %p174
    $region30: #{_net_forward.2} parent=5 // pred_check_branch
      %177 = sbr.rel (%p175) target = $region32
    $region31: #{_net_forward.2} parent=5 // pred_region
      // Predicated region
      $region33: #{_net_forward.2} parent=31 // pred_check
        %p178 = pneg %p31
      $region34: #{_net_forward.2} parent=31 // pred_check_branch
        %180 = sbr.rel (%p178) target = $region36
      $region35: #{_net_forward.2} parent=31 // pred_region
        %p181 = scmp.lt.s32.totalorder %s11, 1
        %s182 = scalar_select %p181, %s11, 1
        %s183 = smul.addr %s182, 256
        %s184 = smul.addr %s183, 8
        %s185 = scalar_lea.vmem %s0, %s184
      $region36: #{_net_forward.2} parent=31 // pred_fallthru
        _
    $region32: #{_net_forward.2} parent=5 // pred_fallthru
      _
    %p186 = scmp.le.s32.totalorder 1, %s11
    %p187 = scmp.lt.s32.totalorder %s11, 3
    %p188 = pnand %p186, %p187
    %p189 = pneg %p188
    // Predicated region
    $region37: #{_net_forward.2} parent=5 // pred_check
      _
    $region38: #{_net_forward.2} parent=5 // pred_check_branch
      %191 = sbr.rel (%p188) target = $region40
    $region39: #{_net_forward.2} parent=5 // pred_region
      %s192 = ssub.s32 %s11, 1
      %p193 = scmp.lt.s32.totalorder %s16, 1
      %s194 = scalar_select %p193, %s16, 1
      %s195 = smul.addr %s194, 256
      %s196 = smul.addr %s195, 8
      %s197 = scalar_lea.vmem %s0, %s196
      %p198 = pneg %p37
      %p199 = pneg %p34
      %p200 = pneg %p58
      %p201 = pneg %p55
      %p202 = pneg %p79
      %p203 = pneg %p76
      %p204 = pneg %p100
      %p205 = pneg %p97
      %p206 = pneg %p121
      %p207 = pneg %p118
      %p208 = pneg %p147
      %p209 = pneg %p144
      %p210 = scmp.lt.s32.totalorder %s16, 1
      %s211 = scalar_select %p210, %s16, 1
      %s212 = smul.addr %s211, 32
      %s213 = smul.addr %s212, 8
      %s214 = scalar_lea.vmem %s5, %s213
      %p215 = scmp.lt.s32.totalorder %s16, 1
      %s216 = scalar_select %p215, %s16, 1
      %s217 = smul.addr %s216, 256
      %s218 = smul.addr %s217, 8
      %s219 = scalar_lea.vmem %s0, %s218
      %p220 = scmp.lt.s32.totalorder %s16, 1
      %s221 = scalar_select %p220, %s16, 1
      %s222 = smul.addr %s221, 32
      %s223 = smul.addr %s222, 8
      %s224 = scalar_lea.vmem %s5, %s223
      %v225 = vld [vmem:[%s1] sm:$0xff]
      %v226 = vld [vmem:[%s2] sm:$0xff]
      %v227 = vld [vmem:[%s219] sm:$0xff]
      %v228 = vld [vmem:[%s219 + $0x8] sm:$0xff]
      %v229 = vld [vmem:[%s219 + $0x10] sm:$0xff]
      %v230 = vld [vmem:[%s219 + $0x18] sm:$0xff]
      %v231 = vld [vmem:[%s219 + $0x20] sm:$0xff]
      %v232 = vld [vmem:[%s219 + $0x28] sm:$0xff]
      %v233 = vld [vmem:[%s219 + $0x30] sm:$0xff]
      %v234 = vld [vmem:[%s219 + $0x38] sm:$0xff]
      %v235 = vld [vmem:[%s219 + $0x40] sm:$0xff]
      %v236 = vld [vmem:[%s219 + $0x48] sm:$0xff]
      %v237 = vld [vmem:[%s219 + $0x50] sm:$0xff]
      %v238 = vld [vmem:[%s219 + $0x58] sm:$0xff]
      %v239 = vld [vmem:[%s219 + $0x60] sm:$0xff]
      %v240 = vld [vmem:[%s219 + $0x68] sm:$0xff]
      %v241 = vld [vmem:[%s219 + $0x70] sm:$0xff]
      %v242 = vld [vmem:[%s219 + $0x78] sm:$0xff]
      %v243 = vld [vmem:[%s219 + $0x200] sm:$0xff]
      %v244 = vld [vmem:[%s219 + $0x208] sm:$0xff]
      %v245 = vld [vmem:[%s219 + $0x210] sm:$0xff]
      %v246 = vld [vmem:[%s219 + $0x218] sm:$0xff]
      %v247 = vld [vmem:[%s219 + $0x220] sm:$0xff]
      %v248 = vld [vmem:[%s219 + $0x228] sm:$0xff]
      %v249 = vld [vmem:[%s219 + $0x230] sm:$0xff]
      %v250 = vld [vmem:[%s219 + $0x238] sm:$0xff]
      %v251 = vld [vmem:[%s219 + $0x240] sm:$0xff]
      %v252 = vld [vmem:[%s219 + $0x248] sm:$0xff]
      %v253 = vld [vmem:[%s219 + $0x250] sm:$0xff]
      %v254 = vld [vmem:[%s219 + $0x258] sm:$0xff]
      %v255 = vld [vmem:[%s219 + $0x260] sm:$0xff]
      %v256 = vld [vmem:[%s219 + $0x268] sm:$0xff]
      %v257 = vld [vmem:[%s219 + $0x270] sm:$0xff]
      %v258 = vld [vmem:[%s219 + $0x278] sm:$0xff]
      %v259 = vld [vmem:[%s219 + $0x400] sm:$0xff]
      %v260 = vld [vmem:[%s219 + $0x408] sm:$0xff]
      %v261 = vld [vmem:[%s219 + $0x410] sm:$0xff]
      %v262 = vld [vmem:[%s219 + $0x418] sm:$0xff]
      %v263 = vld [vmem:[%s219 + $0x420] sm:$0xff]
      %v264 = vld [vmem:[%s219 + $0x428] sm:$0xff]
      %v265 = vld [vmem:[%s219 + $0x430] sm:$0xff]
      %v266 = vld [vmem:[%s219 + $0x438] sm:$0xff]
      %v267 = vld [vmem:[%s219 + $0x440] sm:$0xff]
      %v268 = vld [vmem:[%s219 + $0x448] sm:$0xff]
      %v269 = vld [vmem:[%s219 + $0x450] sm:$0xff]
      %v270 = vld [vmem:[%s219 + $0x458] sm:$0xff]
      %v271 = vld [vmem:[%s219 + $0x460] sm:$0xff]
      %v272 = vld [vmem:[%s219 + $0x468] sm:$0xff]
      %v273 = vld [vmem:[%s219 + $0x470] sm:$0xff]
      %v274 = vld [vmem:[%s219 + $0x478] sm:$0xff]
      %v275 = vld [vmem:[%s219 + $0x600] sm:$0xff]
      %v276 = vld [vmem:[%s219 + $0x608] sm:$0xff]
      %v277 = vld [vmem:[%s219 + $0x610] sm:$0xff]
      %v278 = vld [vmem:[%s219 + $0x618] sm:$0xff]
      %v279 = vld [vmem:[%s219 + $0x620] sm:$0xff]
      %v280 = vld [vmem:[%s219 + $0x628] sm:$0xff]
      %v281 = vld [vmem:[%s219 + $0x630] sm:$0xff]
      %v282 = vld [vmem:[%s219 + $0x638] sm:$0xff]
      %v283 = vld [vmem:[%s219 + $0x640] sm:$0xff]
      %v284 = vld [vmem:[%s219 + $0x648] sm:$0xff]
      %v285 = vld [vmem:[%s219 + $0x650] sm:$0xff]
      %v286 = vld [vmem:[%s219 + $0x658] sm:$0xff]
      %v287 = vld [vmem:[%s219 + $0x660] sm:$0xff]
      %v288 = vld [vmem:[%s219 + $0x668] sm:$0xff]
      %v289 = vld [vmem:[%s219 + $0x670] sm:$0xff]
      %v290 = vld [vmem:[%s219 + $0x678] sm:$0xff]
      %292 = vset.pattern.permute.xlu0 0
      %293 = vperm.xlu0 %292, %v226
      %v294 = vpop.permute.xlu0 %293
      %vm296 = vcmask 261120
      %v298 = vsel %vm296, %v225, 0
      %300 = vmatprep.subr.mxu0 %v228
      %301 = vmatpush1.msra.mxu0 %v227
      %302 = vmatprep.subr.mxu0 %v244
      %303 = vmatpush1.msra.mxu0 %v243
      %304 = vmatprep.subr.mxu0 %v260
      %305 = vmatpush1.msra.mxu0 %v259
      %306 = vmatprep.subr.mxu0 %v276
      %307 = vmatpush1.msra.mxu0 %v275
      %308 = vmatprep.subr.mxu0 0.0
      %309 = vmatpush1.msra.mxu0 0.0
      %310 = vmatprep.subr.mxu0 0.0
      %311 = vmatpush1.msra.mxu0 0.0
      %312 = vmatprep.subr.mxu0 0.0
      %313 = vmatpush1.msra.mxu0 0.0
      %314 = vmatprep.subr.mxu0 0.0
      %315 = vmatpush1.msra.mxu0 0.0
      %316 = vmatprep.subr.mxu0 0.0
      %317 = vmatpush1.msra.mxu0 0.0
      %318 = vmatprep.subr.mxu0 0.0
      %319 = vmatpush1.msra.mxu0 0.0
      %320 = vmatprep.subr.mxu0 0.0
      %321 = vmatpush1.msra.mxu0 0.0
      %322 = vmatprep.subr.mxu0 0.0
      %323 = vmatpush1.msra.mxu0 0.0
      %324 = vmatprep.subr.mxu0 0.0
      %325 = vmatpush1.msra.mxu0 0.0
      %326 = vmatprep.subr.mxu0 0.0
      %327 = vmatpush1.msra.mxu0 0.0
      %328 = vmatprep.subr.mxu0 0.0
      %329 = vmatpush1.msra.mxu0 0.0
      %330 = vmatprep.subr.mxu0 0.0
      %331 = vmatpush1.msra.mxu0 0.0
      %332 = vmatprep.subr.mxu0 0.0
      %333 = vmatpush1.msra.mxu0 0.0
      %334 = vmatprep.subr.mxu0 0.0
      %335 = vmatpush1.msra.mxu0 0.0
      %336 = vmatprep.subr.mxu0 0.0
      %337 = vmatpush1.msra.mxu0 0.0
      %338 = vmatprep.subr.mxu0 0.0
      %339 = vmatpush1.msra.mxu0 0.0
      %340 = vmatprep.subr.mxu0 0.0
      %341 = vmatpush1.msra.mxu0 0.0
      %342 = vmatprep.subr.mxu0 0.0
      %343 = vmatpush1.msra.mxu0 0.0
      %344 = vmatprep.subr.mxu0 0.0
      %345 = vmatpush1.msra.mxu0 0.0
      %346 = vmatprep.subr.mxu0 0.0
      %347 = vmatpush1.msra.mxu0 0.0
      %348 = vmatprep.subr.mxu0 0.0
      %349 = vmatpush1.msra.mxu0 0.0
      %350 = vmatprep.subr.mxu0 0.0
      %351 = vmatpush1.msra.mxu0 0.0
      %352 = vmatprep.subr.mxu0 0.0
      %353 = vmatpush1.msra.mxu0 0.0
      %354 = vmatprep.subr.mxu0 0.0
      %355 = vmatpush1.msra.mxu0 0.0
      %356 = vmatprep.subr.mxu0 0.0
      %357 = vmatpush1.msra.mxu0 0.0
      %358 = vmatprep.subr.mxu0 0.0
      %359 = vmatpush1.msra.mxu0 0.0
      %360 = vmatprep.subr.mxu0 0.0
      %361 = vmatpush1.msra.mxu0 0.0
      %362 = vmatprep.subr.mxu0 0.0
      %363 = vmatpush1.msra.mxu0 0.0
      %364 = vmatprep.mubr.f32.mxu0 0.0
      %365 = vmatmul.mubr.f32.gmra.mrb[0].mxu0 %v298
      %v366 = vpop.f32.mrb[0].mxu0
      %v367 = vadd.f32 %v294, %v366
      %v368 = vpop.f32.mrb[0].mxu0
      %v369 = vadd.f32 %v294, %v368
      %370 = vdwg.mxu0
      %371 = vmatprep.subr.mxu0 %v230
      %372 = vmatpush1.msra.mxu0 %v229
      %373 = vmatprep.subr.mxu0 %v246
      %374 = vmatpush1.msra.mxu0 %v245
      %375 = vmatprep.subr.mxu0 %v262
      %376 = vmatpush1.msra.mxu0 %v261
      %377 = vmatprep.subr.mxu0 %v278
      %378 = vmatpush1.msra.mxu0 %v277
      %379 = vmatprep.subr.mxu0 0.0
      %380 = vmatpush1.msra.mxu0 0.0
      %381 = vmatprep.subr.mxu0 0.0
      %382 = vmatpush1.msra.mxu0 0.0
      %383 = vmatprep.subr.mxu0 0.0
      %384 = vmatpush1.msra.mxu0 0.0
      %385 = vmatprep.subr.mxu0 0.0
      %386 = vmatpush1.msra.mxu0 0.0
      %387 = vmatprep.subr.mxu0 0.0
      %388 = vmatpush1.msra.mxu0 0.0
      %389 = vmatprep.subr.mxu0 0.0
      %390 = vmatpush1.msra.mxu0 0.0
      %391 = vmatprep.subr.mxu0 0.0
      %392 = vmatpush1.msra.mxu0 0.0
      %393 = vmatprep.subr.mxu0 0.0
      %394 = vmatpush1.msra.mxu0 0.0
      %395 = vmatprep.subr.mxu0 0.0
      %396 = vmatpush1.msra.mxu0 0.0
      %397 = vmatprep.subr.mxu0 0.0
      %398 = vmatpush1.msra.mxu0 0.0
      %399 = vmatprep.subr.mxu0 0.0
      %400 = vmatpush1.msra.mxu0 0.0
      %401 = vmatprep.subr.mxu0 0.0
      %402 = vmatpush1.msra.mxu0 0.0
      %403 = vmatprep.subr.mxu0 0.0
      %404 = vmatpush1.msra.mxu0 0.0
      %405 = vmatprep.subr.mxu0 0.0
      %406 = vmatpush1.msra.mxu0 0.0
      %407 = vmatprep.subr.mxu0 0.0
      %408 = vmatpush1.msra.mxu0 0.0
      %409 = vmatprep.subr.mxu0 0.0
      %410 = vmatpush1.msra.mxu0 0.0
      %411 = vmatprep.subr.mxu0 0.0
      %412 = vmatpush1.msra.mxu0 0.0
      %413 = vmatprep.subr.mxu0 0.0
      %414 = vmatpush1.msra.mxu0 0.0
      %415 = vmatprep.subr.mxu0 0.0
      %416 = vmatpush1.msra.mxu0 0.0
      %417 = vmatprep.subr.mxu0 0.0
      %418 = vmatpush1.msra.mxu0 0.0
      %419 = vmatprep.subr.mxu0 0.0
      %420 = vmatpush1.msra.mxu0 0.0
      %421 = vmatprep.subr.mxu0 0.0
      %422 = vmatpush1.msra.mxu0 0.0
      %423 = vmatprep.subr.mxu0 0.0
      %424 = vmatpush1.msra.mxu0 0.0
      %425 = vmatprep.subr.mxu0 0.0
      %426 = vmatpush1.msra.mxu0 0.0
      %427 = vmatprep.subr.mxu0 0.0
      %428 = vmatpush1.msra.mxu0 0.0
      %429 = vmatprep.subr.mxu0 0.0
      %430 = vmatpush1.msra.mxu0 0.0
      %431 = vmatprep.subr.mxu0 0.0
      %432 = vmatpush1.msra.mxu0 0.0
      %433 = vmatprep.subr.mxu0 0.0
      %434 = vmatpush1.msra.mxu0 0.0
      %435 = vmatprep.mubr.f32.mxu0 0.0
      %436 = vmatmul.mubr.f32.gmra.mrb[0].mxu0 %v298
      %v437 = vpop.f32.mrb[0].mxu0
      %v438 = vadd.f32 %v294, %v437
      %v439 = vpop.f32.mrb[0].mxu0
      %v440 = vadd.f32 %v294, %v439
      %441 = vdwg.mxu0
      %442 = vmatprep.subr.mxu0 %v232
      %443 = vmatpush1.msra.mxu0 %v231
      %444 = vmatprep.subr.mxu0 %v248
      %445 = vmatpush1.msra.mxu0 %v247
      %446 = vmatprep.subr.mxu0 %v264
      %447 = vmatpush1.msra.mxu0 %v263
      %448 = vmatprep.subr.mxu0 %v280
      %449 = vmatpush1.msra.mxu0 %v279
      %450 = vmatprep.subr.mxu0 0.0
      %451 = vmatpush1.msra.mxu0 0.0
      %452 = vmatprep.subr.mxu0 0.0
      %453 = vmatpush1.msra.mxu0 0.0
      %454 = vmatprep.subr.mxu0 0.0
      %455 = vmatpush1.msra.mxu0 0.0
      %456 = vmatprep.subr.mxu0 0.0
      %457 = vmatpush1.msra.mxu0 0.0
      %458 = vmatprep.subr.mxu0 0.0
      %459 = vmatpush1.msra.mxu0 0.0
      %460 = vmatprep.subr.mxu0 0.0
      %461 = vmatpush1.msra.mxu0 0.0
      %462 = vmatprep.subr.mxu0 0.0
      %463 = vmatpush1.msra.mxu0 0.0
      %464 = vmatprep.subr.mxu0 0.0
      %465 = vmatpush1.msra.mxu0 0.0
      %466 = vmatprep.subr.mxu0 0.0
      %467 = vmatpush1.msra.mxu0 0.0
      %468 = vmatprep.subr.mxu0 0.0
      %469 = vmatpush1.msra.mxu0 0.0
      %470 = vmatprep.subr.mxu0 0.0
      %471 = vmatpush1.msra.mxu0 0.0
      %472 = vmatprep.subr.mxu0 0.0
      %473 = vmatpush1.msra.mxu0 0.0
      %474 = vmatprep.subr.mxu0 0.0
      %475 = vmatpush1.msra.mxu0 0.0
      %476 = vmatprep.subr.mxu0 0.0
      %477 = vmatpush1.msra.mxu0 0.0
      %478 = vmatprep.subr.mxu0 0.0
      %479 = vmatpush1.msra.mxu0 0.0
      %480 = vmatprep.subr.mxu0 0.0
      %481 = vmatpush1.msra.mxu0 0.0
      %482 = vmatprep.subr.mxu0 0.0
      %483 = vmatpush1.msra.mxu0 0.0
      %484 = vmatprep.subr.mxu0 0.0
      %485 = vmatpush1.msra.mxu0 0.0
      %486 = vmatprep.subr.mxu0 0.0
      %487 = vmatpush1.msra.mxu0 0.0
      %488 = vmatprep.subr.mxu0 0.0
      %489 = vmatpush1.msra.mxu0 0.0
      %490 = vmatprep.subr.mxu0 0.0
      %491 = vmatpush1.msra.mxu0 0.0
      %492 = vmatprep.subr.mxu0 0.0
      %493 = vmatpush1.msra.mxu0 0.0
      %494 = vmatprep.subr.mxu0 0.0
      %495 = vmatpush1.msra.mxu0 0.0
      %496 = vmatprep.subr.mxu0 0.0
      %497 = vmatpush1.msra.mxu0 0.0
      %498 = vmatprep.subr.mxu0 0.0
      %499 = vmatpush1.msra.mxu0 0.0
      %500 = vmatprep.subr.mxu0 0.0
      %501 = vmatpush1.msra.mxu0 0.0
      %502 = vmatprep.subr.mxu0 0.0
      %503 = vmatpush1.msra.mxu0 0.0
      %504 = vmatprep.subr.mxu0 0.0
      %505 = vmatpush1.msra.mxu0 0.0
      %506 = vmatprep.mubr.f32.mxu0 0.0
      %507 = vmatmul.mubr.f32.gmra.mrb[0].mxu0 %v298
      %v508 = vpop.f32.mrb[0].mxu0
      %v509 = vadd.f32 %v294, %v508
      %v510 = vpop.f32.mrb[0].mxu0
      %v511 = vadd.f32 %v294, %v510
      %512 = vdwg.mxu0
      %513 = vmatprep.subr.mxu0 %v234
      %514 = vmatpush1.msra.mxu0 %v233
      %515 = vmatprep.subr.mxu0 %v250
      %516 = vmatpush1.msra.mxu0 %v249
      %517 = vmatprep.subr.mxu0 %v266
      %518 = vmatpush1.msra.mxu0 %v265
      %519 = vmatprep.subr.mxu0 %v282
      %520 = vmatpush1.msra.mxu0 %v281
      %521 = vmatprep.subr.mxu0 0.0
      %522 = vmatpush1.msra.mxu0 0.0
      %523 = vmatprep.subr.mxu0 0.0
      %524 = vmatpush1.msra.mxu0 0.0
      %525 = vmatprep.subr.mxu0 0.0
      %526 = vmatpush1.msra.mxu0 0.0
      %527 = vmatprep.subr.mxu0 0.0
      %528 = vmatpush1.msra.mxu0 0.0
      %529 = vmatprep.subr.mxu0 0.0
      %530 = vmatpush1.msra.mxu0 0.0
      %531 = vmatprep.subr.mxu0 0.0
      %532 = vmatpush1.msra.mxu0 0.0
      %533 = vmatprep.subr.mxu0 0.0
      %534 = vmatpush1.msra.mxu0 0.0
      %535 = vmatprep.subr.mxu0 0.0
      %536 = vmatpush1.msra.mxu0 0.0
      %537 = vmatprep.subr.mxu0 0.0
      %538 = vmatpush1.msra.mxu0 0.0
      %539 = vmatprep.subr.mxu0 0.0
      %540 = vmatpush1.msra.mxu0 0.0
      %541 = vmatprep.subr.mxu0 0.0
      %542 = vmatpush1.msra.mxu0 0.0
      %543 = vmatprep.subr.mxu0 0.0
      %544 = vmatpush1.msra.mxu0 0.0
      %545 = vmatprep.subr.mxu0 0.0
      %546 = vmatpush1.msra.mxu0 0.0
      %547 = vmatprep.subr.mxu0 0.0
      %548 = vmatpush1.msra.mxu0 0.0
      %549 = vmatprep.subr.mxu0 0.0
      %550 = vmatpush1.msra.mxu0 0.0
      %551 = vmatprep.subr.mxu0 0.0
      %552 = vmatpush1.msra.mxu0 0.0
      %553 = vmatprep.subr.mxu0 0.0
      %554 = vmatpush1.msra.mxu0 0.0
      %555 = vmatprep.subr.mxu0 0.0
      %556 = vmatpush1.msra.mxu0 0.0
      %557 = vmatprep.subr.mxu0 0.0
      %558 = vmatpush1.msra.mxu0 0.0
      %559 = vmatprep.subr.mxu0 0.0
      %560 = vmatpush1.msra.mxu0 0.0
      %561 = vmatprep.subr.mxu0 0.0
      %562 = vmatpush1.msra.mxu0 0.0
      %563 = vmatprep.subr.mxu0 0.0
      %564 = vmatpush1.msra.mxu0 0.0
      %565 = vmatprep.subr.mxu0 0.0
      %566 = vmatpush1.msra.mxu0 0.0
      %567 = vmatprep.subr.mxu0 0.0
      %568 = vmatpush1.msra.mxu0 0.0
      %569 = vmatprep.subr.mxu0 0.0
      %570 = vmatpush1.msra.mxu0 0.0
      %571 = vmatprep.subr.mxu0 0.0
      %572 = vmatpush1.msra.mxu0 0.0
      %573 = vmatprep.subr.mxu0 0.0
      %574 = vmatpush1.msra.mxu0 0.0
      %575 = vmatprep.subr.mxu0 0.0
      %576 = vmatpush1.msra.mxu0 0.0
      %577 = vmatprep.mubr.f32.mxu0 0.0
      %578 = vmatmul.mubr.f32.gmra.mrb[0].mxu0 %v298
      %v579 = vpop.f32.mrb[0].mxu0
      %v580 = vadd.f32 %v294, %v579
      %v581 = vpop.f32.mrb[0].mxu0
      %v582 = vadd.f32 %v294, %v581
      %583 = vdwg.mxu0
      %584 = vmatprep.subr.mxu0 %v236
      %585 = vmatpush1.msra.mxu0 %v235
      %586 = vmatprep.subr.mxu0 %v252
      %587 = vmatpush1.msra.mxu0 %v251
      %588 = vmatprep.subr.mxu0 %v268
      %589 = vmatpush1.msra.mxu0 %v267
      %590 = vmatprep.subr.mxu0 %v284
      %591 = vmatpush1.msra.mxu0 %v283
      %592 = vmatprep.subr.mxu0 0.0
      %593 = vmatpush1.msra.mxu0 0.0
      %594 = vmatprep.subr.mxu0 0.0
      %595 = vmatpush1.msra.mxu0 0.0
      %596 = vmatprep.subr.mxu0 0.0
      %597 = vmatpush1.msra.mxu0 0.0
      %598 = vmatprep.subr.mxu0 0.0
      %599 = vmatpush1.msra.mxu0 0.0
      %600 = vmatprep.subr.mxu0 0.0
      %601 = vmatpush1.msra.mxu0 0.0
      %602 = vmatprep.subr.mxu0 0.0
      %603 = vmatpush1.msra.mxu0 0.0
      %604 = vmatprep.subr.mxu0 0.0
      %605 = vmatpush1.msra.mxu0 0.0
      %606 = vmatprep.subr.mxu0 0.0
      %607 = vmatpush1.msra.mxu0 0.0
      %608 = vmatprep.subr.mxu0 0.0
      %609 = vmatpush1.msra.mxu0 0.0
      %610 = vmatprep.subr.mxu0 0.0
      %611 = vmatpush1.msra.mxu0 0.0
      %612 = vmatprep.subr.mxu0 0.0
      %613 = vmatpush1.msra.mxu0 0.0
      %614 = vmatprep.subr.mxu0 0.0
      %615 = vmatpush1.msra.mxu0 0.0
      %616 = vmatprep.subr.mxu0 0.0
      %617 = vmatpush1.msra.mxu0 0.0
      %618 = vmatprep.subr.mxu0 0.0
      %619 = vmatpush1.msra.mxu0 0.0
      %620 = vmatprep.subr.mxu0 0.0
      %621 = vmatpush1.msra.mxu0 0.0
      %622 = vmatprep.subr.mxu0 0.0
      %623 = vmatpush1.msra.mxu0 0.0
      %624 = vmatprep.subr.mxu0 0.0
      %625 = vmatpush1.msra.mxu0 0.0
      %626 = vmatprep.subr.mxu0 0.0
      %627 = vmatpush1.msra.mxu0 0.0
      %628 = vmatprep.subr.mxu0 0.0
      %629 = vmatpush1.msra.mxu0 0.0
      %630 = vmatprep.subr.mxu0 0.0
      %631 = vmatpush1.msra.mxu0 0.0
      %632 = vmatprep.subr.mxu0 0.0
      %633 = vmatpush1.msra.mxu0 0.0
      %634 = vmatprep.subr.mxu0 0.0
      %635 = vmatpush1.msra.mxu0 0.0
      %636 = vmatprep.subr.mxu0 0.0
      %637 = vmatpush1.msra.mxu0 0.0
      %638 = vmatprep.subr.mxu0 0.0
      %639 = vmatpush1.msra.mxu0 0.0
      %640 = vmatprep.subr.mxu0 0.0
      %641 = vmatpush1.msra.mxu0 0.0
      %642 = vmatprep.subr.mxu0 0.0
      %643 = vmatpush1.msra.mxu0 0.0
      %644 = vmatprep.subr.mxu0 0.0
      %645 = vmatpush1.msra.mxu0 0.0
      %646 = vmatprep.subr.mxu0 0.0
      %647 = vmatpush1.msra.mxu0 0.0
      %648 = vmatprep.mubr.f32.mxu0 0.0
      %649 = vmatmul.mubr.f32.gmra.mrb[0].mxu0 %v298
      %v650 = vpop.f32.mrb[0].mxu0
      %v651 = vadd.f32 %v294, %v650
      %v652 = vpop.f32.mrb[0].mxu0
      %v653 = vadd.f32 %v294, %v652
      %654 = vdwg.mxu0
      %655 = vmatprep.subr.mxu0 %v238
      %656 = vmatpush1.msra.mxu0 %v237
      %657 = vmatprep.subr.mxu0 %v254
      %658 = vmatpush1.msra.mxu0 %v253
      %659 = vmatprep.subr.mxu0 %v270
      %660 = vmatpush1.msra.mxu0 %v269
      %661 = vmatprep.subr.mxu0 %v286
      %662 = vmatpush1.msra.mxu0 %v285
      %663 = vmatprep.subr.mxu0 0.0
      %664 = vmatpush1.msra.mxu0 0.0
      %665 = vmatprep.subr.mxu0 0.0
      %666 = vmatpush1.msra.mxu0 0.0
      %667 = vmatprep.subr.mxu0 0.0
      %668 = vmatpush1.msra.mxu0 0.0
      %669 = vmatprep.subr.mxu0 0.0
      %670 = vmatpush1.msra.mxu0 0.0
      %671 = vmatprep.subr.mxu0 0.0
      %672 = vmatpush1.msra.mxu0 0.0
      %673 = vmatprep.subr.mxu0 0.0
      %674 = vmatpush1.msra.mxu0 0.0
      %675 = vmatprep.subr.mxu0 0.0
      %676 = vmatpush1.msra.mxu0 0.0
      %677 = vmatprep.subr.mxu0 0.0
      %678 = vmatpush1.msra.mxu0 0.0
      %679 = vmatprep.subr.mxu0 0.0
      %680 = vmatpush1.msra.mxu0 0.0
      %681 = vmatprep.subr.mxu0 0.0
      %682 = vmatpush1.msra.mxu0 0.0
      %683 = vmatprep.subr.mxu0 0.0
      %684 = vmatpush1.msra.mxu0 0.0
      %685 = vmatprep.subr.mxu0 0.0
      %686 = vmatpush1.msra.mxu0 0.0
      %687 = vmatprep.subr.mxu0 0.0
      %688 = vmatpush1.msra.mxu0 0.0
      %689 = vmatprep.subr.mxu0 0.0
      %690 = vmatpush1.msra.mxu0 0.0
      %691 = vmatprep.subr.mxu0 0.0
      %692 = vmatpush1.msra.mxu0 0.0
      %693 = vmatprep.subr.mxu0 0.0
      %694 = vmatpush1.msra.mxu0 0.0
      %695 = vmatprep.subr.mxu0 0.0
      %696 = vmatpush1.msra.mxu0 0.0
      %697 = vmatprep.subr.mxu0 0.0
      %698 = vmatpush1.msra.mxu0 0.0
      %699 = vmatprep.subr.mxu0 0.0
      %700 = vmatpush1.msra.mxu0 0.0
      %701 = vmatprep.subr.mxu0 0.0
      %702 = vmatpush1.msra.mxu0 0.0
      %703 = vmatprep.subr.mxu0 0.0
      %704 = vmatpush1.msra.mxu0 0.0
      %705 = vmatprep.subr.mxu0 0.0
      %706 = vmatpush1.msra.mxu0 0.0
      %707 = vmatprep.subr.mxu0 0.0
      %708 = vmatpush1.msra.mxu0 0.0
      %709 = vmatprep.subr.mxu0 0.0
      %710 = vmatpush1.msra.mxu0 0.0
      %711 = vmatprep.subr.mxu0 0.0
      %712 = vmatpush1.msra.mxu0 0.0
      %713 = vmatprep.subr.mxu0 0.0
      %714 = vmatpush1.msra.mxu0 0.0
      %715 = vmatprep.subr.mxu0 0.0
      %716 = vmatpush1.msra.mxu0 0.0
      %717 = vmatprep.subr.mxu0 0.0
      %718 = vmatpush1.msra.mxu0 0.0
      %719 = vmatprep.mubr.f32.mxu0 0.0
      %720 = vmatmul.mubr.f32.gmra.mrb[0].mxu0 %v298
      %v721 = vpop.f32.mrb[0].mxu0
      %v722 = vadd.f32 %v294, %v721
      %v723 = vpop.f32.mrb[0].mxu0
      %v724 = vadd.f32 %v294, %v723
      %725 = vdwg.mxu0
      %726 = vmatprep.subr.mxu0 %v240
      %727 = vmatpush1.msra.mxu0 %v239
      %728 = vmatprep.subr.mxu0 %v256
      %729 = vmatpush1.msra.mxu0 %v255
      %730 = vmatprep.subr.mxu0 %v272
      %731 = vmatpush1.msra.mxu0 %v271
      %732 = vmatprep.subr.mxu0 %v288
      %733 = vmatpush1.msra.mxu0 %v287
      %734 = vmatprep.subr.mxu0 0.0
      %735 = vmatpush1.msra.mxu0 0.0
      %736 = vmatprep.subr.mxu0 0.0
      %737 = vmatpush1.msra.mxu0 0.0
      %738 = vmatprep.subr.mxu0 0.0
      %739 = vmatpush1.msra.mxu0 0.0
      %740 = vmatprep.subr.mxu0 0.0
      %741 = vmatpush1.msra.mxu0 0.0
      %742 = vmatprep.subr.mxu0 0.0
      %743 = vmatpush1.msra.mxu0 0.0
      %744 = vmatprep.subr.mxu0 0.0
      %745 = vmatpush1.msra.mxu0 0.0
      %746 = vmatprep.subr.mxu0 0.0
      %747 = vmatpush1.msra.mxu0 0.0
      %748 = vmatprep.subr.mxu0 0.0
      %749 = vmatpush1.msra.mxu0 0.0
      %750 = vmatprep.subr.mxu0 0.0
      %751 = vmatpush1.msra.mxu0 0.0
      %752 = vmatprep.subr.mxu0 0.0
      %753 = vmatpush1.msra.mxu0 0.0
      %754 = vmatprep.subr.mxu0 0.0
      %755 = vmatpush1.msra.mxu0 0.0
      %756 = vmatprep.subr.mxu0 0.0
      %757 = vmatpush1.msra.mxu0 0.0
      %758 = vmatprep.subr.mxu0 0.0
      %759 = vmatpush1.msra.mxu0 0.0
      %760 = vmatprep.subr.mxu0 0.0
      %761 = vmatpush1.msra.mxu0 0.0
      %762 = vmatprep.subr.mxu0 0.0
      %763 = vmatpush1.msra.mxu0 0.0
      %764 = vmatprep.subr.mxu0 0.0
      %765 = vmatpush1.msra.mxu0 0.0
      %766 = vmatprep.subr.mxu0 0.0
      %767 = vmatpush1.msra.mxu0 0.0
      %768 = vmatprep.subr.mxu0 0.0
      %769 = vmatpush1.msra.mxu0 0.0
      %770 = vmatprep.subr.mxu0 0.0
      %771 = vmatpush1.msra.mxu0 0.0
      %772 = vmatprep.subr.mxu0 0.0
      %773 = vmatpush1.msra.mxu0 0.0
      %774 = vmatprep.subr.mxu0 0.0
      %775 = vmatpush1.msra.mxu0 0.0
      %776 = vmatprep.subr.mxu0 0.0
      %777 = vmatpush1.msra.mxu0 0.0
      %778 = vmatprep.subr.mxu0 0.0
      %779 = vmatpush1.msra.mxu0 0.0
      %780 = vmatprep.subr.mxu0 0.0
      %781 = vmatpush1.msra.mxu0 0.0
      %782 = vmatprep.subr.mxu0 0.0
      %783 = vmatpush1.msra.mxu0 0.0
      %784 = vmatprep.subr.mxu0 0.0
      %785 = vmatpush1.msra.mxu0 0.0
      %786 = vmatprep.subr.mxu0 0.0
      %787 = vmatpush1.msra.mxu0 0.0
      %788 = vmatprep.subr.mxu0 0.0
      %789 = vmatpush1.msra.mxu0 0.0
      %790 = vmatprep.mubr.f32.mxu0 0.0
      %791 = vmatmul.mubr.f32.gmra.mrb[0].mxu0 %v298
      %v792 = vpop.f32.mrb[0].mxu0
      %v793 = vadd.f32 %v294, %v792
      %v794 = vpop.f32.mrb[0].mxu0
      %v795 = vadd.f32 %v294, %v794
      %796 = vdwg.mxu0
      %797 = vmatprep.subr.mxu0 %v242
      %798 = vmatpush1.msra.mxu0 %v241
      %799 = vmatprep.subr.mxu0 %v258
      %800 = vmatpush1.msra.mxu0 %v257
      %801 = vmatprep.subr.mxu0 %v274
      %802 = vmatpush1.msra.mxu0 %v273
      %803 = vmatprep.subr.mxu0 %v290
      %804 = vmatpush1.msra.mxu0 %v289
      %805 = vmatprep.subr.mxu0 0.0
      %806 = vmatpush1.msra.mxu0 0.0
      %807 = vmatprep.subr.mxu0 0.0
      %808 = vmatpush1.msra.mxu0 0.0
      %809 = vmatprep.subr.mxu0 0.0
      %810 = vmatpush1.msra.mxu0 0.0
      %811 = vmatprep.subr.mxu0 0.0
      %812 = vmatpush1.msra.mxu0 0.0
      %813 = vmatprep.subr.mxu0 0.0
      %814 = vmatpush1.msra.mxu0 0.0
      %815 = vmatprep.subr.mxu0 0.0
      %816 = vmatpush1.msra.mxu0 0.0
      %817 = vmatprep.subr.mxu0 0.0
      %818 = vmatpush1.msra.mxu0 0.0
      %819 = vmatprep.subr.mxu0 0.0
      %820 = vmatpush1.msra.mxu0 0.0
      %821 = vmatprep.subr.mxu0 0.0
      %822 = vmatpush1.msra.mxu0 0.0
      %823 = vmatprep.subr.mxu0 0.0
      %824 = vmatpush1.msra.mxu0 0.0
      %825 = vmatprep.subr.mxu0 0.0
      %826 = vmatpush1.msra.mxu0 0.0
      %827 = vmatprep.subr.mxu0 0.0
      %828 = vmatpush1.msra.mxu0 0.0
      %829 = vmatprep.subr.mxu0 0.0
      %830 = vmatpush1.msra.mxu0 0.0
      %831 = vmatprep.subr.mxu0 0.0
      %832 = vmatpush1.msra.mxu0 0.0
      %833 = vmatprep.subr.mxu0 0.0
      %834 = vmatpush1.msra.mxu0 0.0
      %835 = vmatprep.subr.mxu0 0.0
      %836 = vmatpush1.msra.mxu0 0.0
      %837 = vmatprep.subr.mxu0 0.0
      %838 = vmatpush1.msra.mxu0 0.0
      %839 = vmatprep.subr.mxu0 0.0
      %840 = vmatpush1.msra.mxu0 0.0
      %841 = vmatprep.subr.mxu0 0.0
      %842 = vmatpush1.msra.mxu0 0.0
      %843 = vmatprep.subr.mxu0 0.0
      %844 = vmatpush1.msra.mxu0 0.0
      %845 = vmatprep.subr.mxu0 0.0
      %846 = vmatpush1.msra.mxu0 0.0
      %847 = vmatprep.subr.mxu0 0.0
      %848 = vmatpush1.msra.mxu0 0.0
      %849 = vmatprep.subr.mxu0 0.0
      %850 = vmatpush1.msra.mxu0 0.0
      %851 = vmatprep.subr.mxu0 0.0
      %852 = vmatpush1.msra.mxu0 0.0
      %853 = vmatprep.subr.mxu0 0.0
      %854 = vmatpush1.msra.mxu0 0.0
      %855 = vmatprep.subr.mxu0 0.0
      %856 = vmatpush1.msra.mxu0 0.0
      %857 = vmatprep.subr.mxu0 0.0
      %858 = vmatpush1.msra.mxu0 0.0
      %859 = vmatprep.subr.mxu0 0.0
      %860 = vmatpush1.msra.mxu0 0.0
      %861 = vmatprep.mubr.f32.mxu0 0.0
      %862 = vmatmul.mubr.f32.gmra.mrb[0].mxu0 %v298
      %v863 = vpop.f32.mrb[0].mxu0
      %v864 = vadd.f32 %v294, %v863
      %v865 = vpop.f32.mrb[0].mxu0
      %v866 = vadd.f32 %v294, %v865
      %867 = vdwg.mxu0
      %v868 = vmax.f32 %v367, 0.0
      %v869 = vmax.f32 %v369, 0.0
      %v870 = vmax.f32 %v438, 0.0
      %v871 = vmax.f32 %v440, 0.0
      %v872 = vmax.f32 %v509, 0.0
      %v873 = vmax.f32 %v511, 0.0
      %v874 = vmax.f32 %v580, 0.0
      %v875 = vmax.f32 %v582, 0.0
      %v876 = vmax.f32 %v651, 0.0
      %v877 = vmax.f32 %v653, 0.0
      %v878 = vmax.f32 %v722, 0.0
      %v879 = vmax.f32 %v724, 0.0
      %v880 = vmax.f32 %v793, 0.0
      %v881 = vmax.f32 %v795, 0.0
      %v882 = vmax.f32 %v864, 0.0
      %v883 = vmax.f32 %v866, 0.0
      %v884 = vld [vmem:[%s219 + $0x80] sm:$0xff]
      %v885 = vld [vmem:[%s219 + $0x88] sm:$0xff]
      %v886 = vld [vmem:[%s219 + $0x90] sm:$0xff]
      %v887 = vld [vmem:[%s219 + $0x98] sm:$0xff]
      %v888 = vld [vmem:[%s219 + $0xa0] sm:$0xff]
      %v889 = vld [vmem:[%s219 + $0xa8] sm:$0xff]
      %v890 = vld [vmem:[%s219 + $0xb0] sm:$0xff]
      %v891 = vld [vmem:[%s219 + $0xb8] sm:$0xff]
      %v892 = vld [vmem:[%s219 + $0xc0] sm:$0xff]
      %v893 = vld [vmem:[%s219 + $0xc8] sm:$0xff]
      %v894 = vld [vmem:[%s219 + $0xd0] sm:$0xff]
      %v895 = vld [vmem:[%s219 + $0xd8] sm:$0xff]
      %v896 = vld [vmem:[%s219 + $0xe0] sm:$0xff]
      %v897 = vld [vmem:[%s219 + $0xe8] sm:$0xff]
      %v898 = vld [vmem:[%s219 + $0xf0] sm:$0xff]
      %v899 = vld [vmem:[%s219 + $0xf8] sm:$0xff]
      %v900 = vld [vmem:[%s219 + $0x280] sm:$0xff]
      %v901 = vld [vmem:[%s219 + $0x288] sm:$0xff]
      %v902 = vld [vmem:[%s219 + $0x290] sm:$0xff]
      %v903 = vld [vmem:[%s219 + $0x298] sm:$0xff]
      %v904 = vld [vmem:[%s219 + $0x2a0] sm:$0xff]
      %v905 = vld [vmem:[%s219 + $0x2a8] sm:$0xff]
      %v906 = vld [vmem:[%s219 + $0x2b0] sm:$0xff]
      %v907 = vld [vmem:[%s219 + $0x2b8] sm:$0xff]
      %v908 = vld [vmem:[%s219 + $0x2c0] sm:$0xff]
      %v909 = vld [vmem:[%s219 + $0x2c8] sm:$0xff]
      %v910 = vld [vmem:[%s219 + $0x2d0] sm:$0xff]
      %v911 = vld [vmem:[%s219 + $0x2d8] sm:$0xff]
      %v912 = vld [vmem:[%s219 + $0x2e0] sm:$0xff]
      %v913 = vld [vmem:[%s219 + $0x2e8] sm:$0xff]
      %v914 = vld [vmem:[%s219 + $0x2f0] sm:$0xff]
      %v915 = vld [vmem:[%s219 + $0x2f8] sm:$0xff]
      %v916 = vld [vmem:[%s219 + $0x480] sm:$0xff]
      %v917 = vld [vmem:[%s219 + $0x488] sm:$0xff]
      %v918 = vld [vmem:[%s219 + $0x490] sm:$0xff]
      %v919 = vld [vmem:[%s219 + $0x498] sm:$0xff]
      %v920 = vld [vmem:[%s219 + $0x4a0] sm:$0xff]
      %v921 = vld [vmem:[%s219 + $0x4a8] sm:$0xff]
      %v922 = vld [vmem:[%s219 + $0x4b0] sm:$0xff]
      %v923 = vld [vmem:[%s219 + $0x4b8] sm:$0xff]
      %v924 = vld [vmem:[%s219 + $0x4c0] sm:$0xff]
      %v925 = vld [vmem:[%s219 + $0x4c8] sm:$0xff]
      %v926 = vld [vmem:[%s219 + $0x4d0] sm:$0xff]
      %v927 = vld [vmem:[%s219 + $0x4d8] sm:$0xff]
      %v928 = vld [vmem:[%s219 + $0x4e0] sm:$0xff]
      %v929 = vld [vmem:[%s219 + $0x4e8] sm:$0xff]
      %v930 = vld [vmem:[%s219 + $0x4f0] sm:$0xff]
      %v931 = vld [vmem:[%s219 + $0x4f8] sm:$0xff]
      %v932 = vld [vmem:[%s219 + $0x680] sm:$0xff]
      %v933 = vld [vmem:[%s219 + $0x688] sm:$0xff]
      %v934 = vld [vmem:[%s219 + $0x690] sm:$0xff]
      %v935 = vld [vmem:[%s219 + $0x698] sm:$0xff]
      %v936 = vld [vmem:[%s219 + $0x6a0] sm:$0xff]
      %v937 = vld [vmem:[%s219 + $0x6a8] sm:$0xff]
      %v938 = vld [vmem:[%s219 + $0x6b0] sm:$0xff]
      %v939 = vld [vmem:[%s219 + $0x6b8] sm:$0xff]
      %v940 = vld [vmem:[%s219 + $0x6c0] sm:$0xff]
      %v941 = vld [vmem:[%s219 + $0x6c8] sm:$0xff]
      %v942 = vld [vmem:[%s219 + $0x6d0] sm:$0xff]
      %v943 = vld [vmem:[%s219 + $0x6d8] sm:$0xff]
      %v944 = vld [vmem:[%s219 + $0x6e0] sm:$0xff]
      %v945 = vld [vmem:[%s219 + $0x6e8] sm:$0xff]
      %v946 = vld [vmem:[%s219 + $0x6f0] sm:$0xff]
      %v947 = vld [vmem:[%s219 + $0x6f8] sm:$0xff]
      %948 = vmatprep.subr.mxu0 %v885
      %949 = vmatpush1.msra.mxu0 %v884
      %950 = vmatprep.subr.mxu0 %v901
      %951 = vmatpush1.msra.mxu0 %v900
      %952 = vmatprep.subr.mxu0 %v917
      %953 = vmatpush1.msra.mxu0 %v916
      %954 = vmatprep.subr.mxu0 %v933
      %955 = vmatpush1.msra.mxu0 %v932
      %956 = vmatprep.subr.mxu0 0.0
      %957 = vmatpush1.msra.mxu0 0.0
      %958 = vmatprep.subr.mxu0 0.0
      %959 = vmatpush1.msra.mxu0 0.0
      %960 = vmatprep.subr.mxu0 0.0
      %961 = vmatpush1.msra.mxu0 0.0
      %962 = vmatprep.subr.mxu0 0.0
      %963 = vmatpush1.msra.mxu0 0.0
      %964 = vmatprep.subr.mxu0 0.0
      %965 = vmatpush1.msra.mxu0 0.0
      %966 = vmatprep.subr.mxu0 0.0
      %967 = vmatpush1.msra.mxu0 0.0
      %968 = vmatprep.subr.mxu0 0.0
      %969 = vmatpush1.msra.mxu0 0.0
      %970 = vmatprep.subr.mxu0 0.0
      %971 = vmatpush1.msra.mxu0 0.0
      %972 = vmatprep.subr.mxu0 0.0
      %973 = vmatpush1.msra.mxu0 0.0
      %974 = vmatprep.subr.mxu0 0.0
      %975 = vmatpush1.msra.mxu0 0.0
      %976 = vmatprep.subr.mxu0 0.0
      %977 = vmatpush1.msra.mxu0 0.0
      %978 = vmatprep.subr.mxu0 0.0
      %979 = vmatpush1.msra.mxu0 0.0
      %980 = vmatprep.subr.mxu0 0.0
      %981 = vmatpush1.msra.mxu0 0.0
      %982 = vmatprep.subr.mxu0 0.0
      %983 = vmatpush1.msra.mxu0 0.0
      %984 = vmatprep.subr.mxu0 0.0
      %985 = vmatpush1.msra.mxu0 0.0
      %986 = vmatprep.subr.mxu0 0.0
      %987 = vmatpush1.msra.mxu0 0.0
      %988 = vmatprep.subr.mxu0 0.0
      %989 = vmatpush1.msra.mxu0 0.0
      %990 = vmatprep.subr.mxu0 0.0
      %991 = vmatpush1.msra.mxu0 0.0
      %992 = vmatprep.subr.mxu0 0.0
      %993 = vmatpush1.msra.mxu0 0.0
      %994 = vmatprep.subr.mxu0 0.0
      %995 = vmatpush1.msra.mxu0 0.0
      %996 = vmatprep.subr.mxu0 0.0
      %997 = vmatpush1.msra.mxu0 0.0
      %998 = vmatprep.subr.mxu0 0.0
      %999 = vmatpush1.msra.mxu0 0.0
      %1000 = vmatprep.subr.mxu0 0.0
      %1001 = vmatpush1.msra.mxu0 0.0
      %1002 = vmatprep.subr.mxu0 0.0
      %1003 = vmatpush1.msra.mxu0 0.0
      %1004 = vmatprep.subr.mxu0 0.0
      %1005 = vmatpush1.msra.mxu0 0.0
      %1006 = vmatprep.subr.mxu0 0.0
      %1007 = vmatpush1.msra.mxu0 0.0
      %1008 = vmatprep.subr.mxu0 0.0
      %1009 = vmatpush1.msra.mxu0 0.0
      %1010 = vmatprep.subr.mxu0 0.0
      %1011 = vmatpush1.msra.mxu0 0.0
      %1012 = vmatprep.mubr.f32.mxu0 0.0
      %1013 = vmatmul.mubr.f32.gmra.mrb[0].mxu0 %v298
      %v1014 = vpop.f32.mrb[0].mxu0
      %v1015 = vadd.f32 %v294, %v1014
      %v1016 = vpop.f32.mrb[0].mxu0
      %v1017 = vadd.f32 %v294, %v1016
      %1018 = vdwg.mxu0
      %1019 = vmatprep.subr.mxu0 %v887
      %1020 = vmatpush1.msra.mxu0 %v886
      %1021 = vmatprep.subr.mxu0 %v903
      %1022 = vmatpush1.msra.mxu0 %v902
      %1023 = vmatprep.subr.mxu0 %v919
      %1024 = vmatpush1.msra.mxu0 %v918
      %1025 = vmatprep.subr.mxu0 %v935
      %1026 = vmatpush1.msra.mxu0 %v934
      %1027 = vmatprep.subr.mxu0 0.0
      %1028 = vmatpush1.msra.mxu0 0.0
      %1029 = vmatprep.subr.mxu0 0.0
      %1030 = vmatpush1.msra.mxu0 0.0
      %1031 = vmatprep.subr.mxu0 0.0
      %1032 = vmatpush1.msra.mxu0 0.0
      %1033 = vmatprep.subr.mxu0 0.0
      %1034 = vmatpush1.msra.mxu0 0.0
      %1035 = vmatprep.subr.mxu0 0.0
      %1036 = vmatpush1.msra.mxu0 0.0
      %1037 = vmatprep.subr.mxu0 0.0
      %1038 = vmatpush1.msra.mxu0 0.0
      %1039 = vmatprep.subr.mxu0 0.0
      %1040 = vmatpush1.msra.mxu0 0.0
      %1041 = vmatprep.subr.mxu0 0.0
      %1042 = vmatpush1.msra.mxu0 0.0
      %1043 = vmatprep.subr.mxu0 0.0
      %1044 = vmatpush1.msra.mxu0 0.0
      %1045 = vmatprep.subr.mxu0 0.0
      %1046 = vmatpush1.msra.mxu0 0.0
      %1047 = vmatprep.subr.mxu0 0.0
      %1048 = vmatpush1.msra.mxu0 0.0
      %1049 = vmatprep.subr.mxu0 0.0
      %1050 = vmatpush1.msra.mxu0 0.0
      %1051 = vmatprep.subr.mxu0 0.0
      %1052 = vmatpush1.msra.mxu0 0.0
      %1053 = vmatprep.subr.mxu0 0.0
      %1054 = vmatpush1.msra.mxu0 0.0
      %1055 = vmatprep.subr.mxu0 0.0
      %1056 = vmatpush1.msra.mxu0 0.0
      %1057 = vmatprep.subr.mxu0 0.0
      %1058 = vmatpush1.msra.mxu0 0.0
      %1059 = vmatprep.subr.mxu0 0.0
      %1060 = vmatpush1.msra.mxu0 0.0
      %1061 = vmatprep.subr.mxu0 0.0
      %1062 = vmatpush1.msra.mxu0 0.0
      %1063 = vmatprep.subr.mxu0 0.0
      %1064 = vmatpush1.msra.mxu0 0.0
      %1065 = vmatprep.subr.mxu0 0.0
      %1066 = vmatpush1.msra.mxu0 0.0
      %1067 = vmatprep.subr.mxu0 0.0
      %1068 = vmatpush1.msra.mxu0 0.0
      %1069 = vmatprep.subr.mxu0 0.0
      %1070 = vmatpush1.msra.mxu0 0.0
      %1071 = vmatprep.subr.mxu0 0.0
      %1072 = vmatpush1.msra.mxu0 0.0
      %1073 = vmatprep.subr.mxu0 0.0
      %1074 = vmatpush1.msra.mxu0 0.0
      %1075 = vmatprep.subr.mxu0 0.0
      %1076 = vmatpush1.msra.mxu0 0.0
      %1077 = vmatprep.subr.mxu0 0.0
      %1078 = vmatpush1.msra.mxu0 0.0
      %1079 = vmatprep.subr.mxu0 0.0
      %1080 = vmatpush1.msra.mxu0 0.0
      %1081 = vmatprep.subr.mxu0 0.0
      %1082 = vmatpush1.msra.mxu0 0.0
      %1083 = vmatprep.mubr.f32.mxu0 0.0
      %1084 = vmatmul.mubr.f32.gmra.mrb[0].mxu0 %v298
      %v1085 = vpop.f32.mrb[0].mxu0
      %v1086 = vadd.f32 %v294, %v1085
      %v1087 = vpop.f32.mrb[0].mxu0
      %v1088 = vadd.f32 %v294, %v1087
      %1089 = vdwg.mxu0
      %1090 = vmatprep.subr.mxu0 %v889
      %1091 = vmatpush1.msra.mxu0 %v888
      %1092 = vmatprep.subr.mxu0 %v905
      %1093 = vmatpush1.msra.mxu0 %v904
      %1094 = vmatprep.subr.mxu0 %v921
      %1095 = vmatpush1.msra.mxu0 %v920
      %1096 = vmatprep.subr.mxu0 %v937
      %1097 = vmatpush1.msra.mxu0 %v936
      %1098 = vmatprep.subr.mxu0 0.0
      %1099 = vmatpush1.msra.mxu0 0.0
      %1100 = vmatprep.subr.mxu0 0.0
      %1101 = vmatpush1.msra.mxu0 0.0
      %1102 = vmatprep.subr.mxu0 0.0
      %1103 = vmatpush1.msra.mxu0 0.0
      %1104 = vmatprep.subr.mxu0 0.0
      %1105 = vmatpush1.msra.mxu0 0.0
      %1106 = vmatprep.subr.mxu0 0.0
      %1107 = vmatpush1.msra.mxu0 0.0
      %1108 = vmatprep.subr.mxu0 0.0
      %1109 = vmatpush1.msra.mxu0 0.0
      %1110 = vmatprep.subr.mxu0 0.0
      %1111 = vmatpush1.msra.mxu0 0.0
      %1112 = vmatprep.subr.mxu0 0.0
      %1113 = vmatpush1.msra.mxu0 0.0
      %1114 = vmatprep.subr.mxu0 0.0
      %1115 = vmatpush1.msra.mxu0 0.0
      %1116 = vmatprep.subr.mxu0 0.0
      %1117 = vmatpush1.msra.mxu0 0.0
      %1118 = vmatprep.subr.mxu0 0.0
      %1119 = vmatpush1.msra.mxu0 0.0
      %1120 = vmatprep.subr.mxu0 0.0
      %1121 = vmatpush1.msra.mxu0 0.0
      %1122 = vmatprep.subr.mxu0 0.0
      %1123 = vmatpush1.msra.mxu0 0.0
      %1124 = vmatprep.subr.mxu0 0.0
      %1125 = vmatpush1.msra.mxu0 0.0
      %1126 = vmatprep.subr.mxu0 0.0
      %1127 = vmatpush1.msra.mxu0 0.0
      %1128 = vmatprep.subr.mxu0 0.0
      %1129 = vmatpush1.msra.mxu0 0.0
      %1130 = vmatprep.subr.mxu0 0.0
      %1131 = vmatpush1.msra.mxu0 0.0
      %1132 = vmatprep.subr.mxu0 0.0
      %1133 = vmatpush1.msra.mxu0 0.0
      %1134 = vmatprep.subr.mxu0 0.0
      %1135 = vmatpush1.msra.mxu0 0.0
      %1136 = vmatprep.subr.mxu0 0.0
      %1137 = vmatpush1.msra.mxu0 0.0
      %1138 = vmatprep.subr.mxu0 0.0
      %1139 = vmatpush1.msra.mxu0 0.0
      %1140 = vmatprep.subr.mxu0 0.0
      %1141 = vmatpush1.msra.mxu0 0.0
      %1142 = vmatprep.subr.mxu0 0.0
      %1143 = vmatpush1.msra.mxu0 0.0
      %1144 = vmatprep.subr.mxu0 0.0
      %1145 = vmatpush1.msra.mxu0 0.0
      %1146 = vmatprep.subr.mxu0 0.0
      %1147 = vmatpush1.msra.mxu0 0.0
      %1148 = vmatprep.subr.mxu0 0.0
      %1149 = vmatpush1.msra.mxu0 0.0
      %1150 = vmatprep.subr.mxu0 0.0
      %1151 = vmatpush1.msra.mxu0 0.0
      %1152 = vmatprep.subr.mxu0 0.0
      %1153 = vmatpush1.msra.mxu0 0.0
      %1154 = vmatprep.mubr.f32.mxu0 0.0
      %1155 = vmatmul.mubr.f32.gmra.mrb[0].mxu0 %v298
      %v1156 = vpop.f32.mrb[0].mxu0
      %v1157 = vadd.f32 %v294, %v1156
      %v1158 = vpop.f32.mrb[0].mxu0
      %v1159 = vadd.f32 %v294, %v1158
      %1160 = vdwg.mxu0
      %1161 = vmatprep.subr.mxu0 %v891
      %1162 = vmatpush1.msra.mxu0 %v890
      %1163 = vmatprep.subr.mxu0 %v907
      %1164 = vmatpush1.msra.mxu0 %v906
      %1165 = vmatprep.subr.mxu0 %v923
      %1166 = vmatpush1.msra.mxu0 %v922
      %1167 = vmatprep.subr.mxu0 %v939
      %1168 = vmatpush1.msra.mxu0 %v938
      %1169 = vmatprep.subr.mxu0 0.0
      %1170 = vmatpush1.msra.mxu0 0.0
      %1171 = vmatprep.subr.mxu0 0.0
      %1172 = vmatpush1.msra.mxu0 0.0
      %1173 = vmatprep.subr.mxu0 0.0
      %1174 = vmatpush1.msra.mxu0 0.0
      %1175 = vmatprep.subr.mxu0 0.0
      %1176 = vmatpush1.msra.mxu0 0.0
      %1177 = vmatprep.subr.mxu0 0.0
      %1178 = vmatpush1.msra.mxu0 0.0
      %1179 = vmatprep.subr.mxu0 0.0
      %1180 = vmatpush1.msra.mxu0 0.0
      %1181 = vmatprep.subr.mxu0 0.0
      %1182 = vmatpush1.msra.mxu0 0.0
      %1183 = vmatprep.subr.mxu0 0.0
      %1184 = vmatpush1.msra.mxu0 0.0
      %1185 = vmatprep.subr.mxu0 0.0
      %1186 = vmatpush1.msra.mxu0 0.0
      %1187 = vmatprep.subr.mxu0 0.0
      %1188 = vmatpush1.msra.mxu0 0.0
      %1189 = vmatprep.subr.mxu0 0.0
      %1190 = vmatpush1.msra.mxu0 0.0
      %1191 = vmatprep.subr.mxu0 0.0
      %1192 = vmatpush1.msra.mxu0 0.0
      %1193 = vmatprep.subr.mxu0 0.0
      %1194 = vmatpush1.msra.mxu0 0.0
      %1195 = vmatprep.subr.mxu0 0.0
      %1196 = vmatpush1.msra.mxu0 0.0
      %1197 = vmatprep.subr.mxu0 0.0
      %1198 = vmatpush1.msra.mxu0 0.0
      %1199 = vmatprep.subr.mxu0 0.0
      %1200 = vmatpush1.msra.mxu0 0.0
      %1201 = vmatprep.subr.mxu0 0.0
      %1202 = vmatpush1.msra.mxu0 0.0
      %1203 = vmatprep.subr.mxu0 0.0
      %1204 = vmatpush1.msra.mxu0 0.0
      %1205 = vmatprep.subr.mxu0 0.0
      %1206 = vmatpush1.msra.mxu0 0.0
      %1207 = vmatprep.subr.mxu0 0.0
      %1208 = vmatpush1.msra.mxu0 0.0
      %1209 = vmatprep.subr.mxu0 0.0
      %1210 = vmatpush1.msra.mxu0 0.0
      %1211 = vmatprep.subr.mxu0 0.0
      %1212 = vmatpush1.msra.mxu0 0.0
      %1213 = vmatprep.subr.mxu0 0.0
      %1214 = vmatpush1.msra.mxu0 0.0
      %1215 = vmatprep.subr.mxu0 0.0
      %1216 = vmatpush1.msra.mxu0 0.0
      %1217 = vmatprep.subr.mxu0 0.0
      %1218 = vmatpush1.msra.mxu0 0.0
      %1219 = vmatprep.subr.mxu0 0.0
      %1220 = vmatpush1.msra.mxu0 0.0
      %1221 = vmatprep.subr.mxu0 0.0
      %1222 = vmatpush1.msra.mxu0 0.0
      %1223 = vmatprep.subr.mxu0 0.0
      %1224 = vmatpush1.msra.mxu0 0.0
      %1225 = vmatprep.mubr.f32.mxu0 0.0
      %1226 = vmatmul.mubr.f32.gmra.mrb[0].mxu0 %v298
      %v1227 = vpop.f32.mrb[0].mxu0
      %v1228 = vadd.f32 %v294, %v1227
      %v1229 = vpop.f32.mrb[0].mxu0
      %v1230 = vadd.f32 %v294, %v1229
      %1231 = vdwg.mxu0
      %1232 = vmatprep.subr.mxu0 %v893
      %1233 = vmatpush1.msra.mxu0 %v892
      %1234 = vmatprep.subr.mxu0 %v909
      %1235 = vmatpush1.msra.mxu0 %v908
      %1236 = vmatprep.subr.mxu0 %v925
      %1237 = vmatpush1.msra.mxu0 %v924
      %1238 = vmatprep.subr.mxu0 %v941
      %1239 = vmatpush1.msra.mxu0 %v940
      %1240 = vmatprep.subr.mxu0 0.0
      %1241 = vmatpush1.msra.mxu0 0.0
      %1242 = vmatprep.subr.mxu0 0.0
      %1243 = vmatpush1.msra.mxu0 0.0
      %1244 = vmatprep.subr.mxu0 0.0
      %1245 = vmatpush1.msra.mxu0 0.0
      %1246 = vmatprep.subr.mxu0 0.0
      %1247 = vmatpush1.msra.mxu0 0.0
      %1248 = vmatprep.subr.mxu0 0.0
      %1249 = vmatpush1.msra.mxu0 0.0
      %1250 = vmatprep.subr.mxu0 0.0
      %1251 = vmatpush1.msra.mxu0 0.0
      %1252 = vmatprep.subr.mxu0 0.0
      %1253 = vmatpush1.msra.mxu0 0.0
      %1254 = vmatprep.subr.mxu0 0.0
      %1255 = vmatpush1.msra.mxu0 0.0
      %1256 = vmatprep.subr.mxu0 0.0
      %1257 = vmatpush1.msra.mxu0 0.0
      %1258 = vmatprep.subr.mxu0 0.0
      %1259 = vmatpush1.msra.mxu0 0.0
      %1260 = vmatprep.subr.mxu0 0.0
      %1261 = vmatpush1.msra.mxu0 0.0
      %1262 = vmatprep.subr.mxu0 0.0
      %1263 = vmatpush1.msra.mxu0 0.0
      %1264 = vmatprep.subr.mxu0 0.0
      %1265 = vmatpush1.msra.mxu0 0.0
      %1266 = vmatprep.subr.mxu0 0.0
      %1267 = vmatpush1.msra.mxu0 0.0
      %1268 = vmatprep.subr.mxu0 0.0
      %1269 = vmatpush1.msra.mxu0 0.0
      %1270 = vmatprep.subr.mxu0 0.0
      %1271 = vmatpush1.msra.mxu0 0.0
      %1272 = vmatprep.subr.mxu0 0.0
      %1273 = vmatpush1.msra.mxu0 0.0
      %1274 = vmatprep.subr.mxu0 0.0
      %1275 = vmatpush1.msra.mxu0 0.0
      %1276 = vmatprep.subr.mxu0 0.0
      %1277 = vmatpush1.msra.mxu0 0.0
      %1278 = vmatprep.subr.mxu0 0.0
      %1279 = vmatpush1.msra.mxu0 0.0
      %1280 = vmatprep.subr.mxu0 0.0
      %1281 = vmatpush1.msra.mxu0 0.0
      %1282 = vmatprep.subr.mxu0 0.0
      %1283 = vmatpush1.msra.mxu0 0.0
      %1284 = vmatprep.subr.mxu0 0.0
      %1285 = vmatpush1.msra.mxu0 0.0
      %1286 = vmatprep.subr.mxu0 0.0
      %1287 = vmatpush1.msra.mxu0 0.0
      %1288 = vmatprep.subr.mxu0 0.0
      %1289 = vmatpush1.msra.mxu0 0.0
      %1290 = vmatprep.subr.mxu0 0.0
      %1291 = vmatpush1.msra.mxu0 0.0
      %1292 = vmatprep.subr.mxu0 0.0
      %1293 = vmatpush1.msra.mxu0 0.0
      %1294 = vmatprep.subr.mxu0 0.0
      %1295 = vmatpush1.msra.mxu0 0.0
      %1296 = vmatprep.mubr.f32.mxu0 0.0
      %1297 = vmatmul.mubr.f32.gmra.mrb[0].mxu0 %v298
      %v1298 = vpop.f32.mrb[0].mxu0
      %v1299 = vadd.f32 %v294, %v1298
      %v1300 = vpop.f32.mrb[0].mxu0
      %v1301 = vadd.f32 %v294, %v1300
      %1302 = vdwg.mxu0
      %1303 = vmatprep.subr.mxu0 %v895
      %1304 = vmatpush1.msra.mxu0 %v894
      %1305 = vmatprep.subr.mxu0 %v911
      %1306 = vmatpush1.msra.mxu0 %v910
      %1307 = vmatprep.subr.mxu0 %v927
      %1308 = vmatpush1.msra.mxu0 %v926
      %1309 = vmatprep.subr.mxu0 %v943
      %1310 = vmatpush1.msra.mxu0 %v942
      %1311 = vmatprep.subr.mxu0 0.0
      %1312 = vmatpush1.msra.mxu0 0.0
      %1313 = vmatprep.subr.mxu0 0.0
      %1314 = vmatpush1.msra.mxu0 0.0
      %1315 = vmatprep.subr.mxu0 0.0
      %1316 = vmatpush1.msra.mxu0 0.0
      %1317 = vmatprep.subr.mxu0 0.0
      %1318 = vmatpush1.msra.mxu0 0.0
      %1319 = vmatprep.subr.mxu0 0.0
      %1320 = vmatpush1.msra.mxu0 0.0
      %1321 = vmatprep.subr.mxu0 0.0
      %1322 = vmatpush1.msra.mxu0 0.0
      %1323 = vmatprep.subr.mxu0 0.0
      %1324 = vmatpush1.msra.mxu0 0.0
      %1325 = vmatprep.subr.mxu0 0.0
      %1326 = vmatpush1.msra.mxu0 0.0
      %1327 = vmatprep.subr.mxu0 0.0
      %1328 = vmatpush1.msra.mxu0 0.0
      %1329 = vmatprep.subr.mxu0 0.0
      %1330 = vmatpush1.msra.mxu0 0.0
      %1331 = vmatprep.subr.mxu0 0.0
      %1332 = vmatpush1.msra.mxu0 0.0
      %1333 = vmatprep.subr.mxu0 0.0
      %1334 = vmatpush1.msra.mxu0 0.0
      %1335 = vmatprep.subr.mxu0 0.0
      %1336 = vmatpush1.msra.mxu0 0.0
      %1337 = vmatprep.subr.mxu0 0.0
      %1338 = vmatpush1.msra.mxu0 0.0
      %1339 = vmatprep.subr.mxu0 0.0
      %1340 = vmatpush1.msra.mxu0 0.0
      %1341 = vmatprep.subr.mxu0 0.0
      %1342 = vmatpush1.msra.mxu0 0.0
      %1343 = vmatprep.subr.mxu0 0.0
      %1344 = vmatpush1.msra.mxu0 0.0
      %1345 = vmatprep.subr.mxu0 0.0
      %1346 = vmatpush1.msra.mxu0 0.0
      %1347 = vmatprep.subr.mxu0 0.0
      %1348 = vmatpush1.msra.mxu0 0.0
      %1349 = vmatprep.subr.mxu0 0.0
      %1350 = vmatpush1.msra.mxu0 0.0
      %1351 = vmatprep.subr.mxu0 0.0
      %1352 = vmatpush1.msra.mxu0 0.0
      %1353 = vmatprep.subr.mxu0 0.0
      %1354 = vmatpush1.msra.mxu0 0.0
      %1355 = vmatprep.subr.mxu0 0.0
      %1356 = vmatpush1.msra.mxu0 0.0
      %1357 = vmatprep.subr.mxu0 0.0
      %1358 = vmatpush1.msra.mxu0 0.0
      %1359 = vmatprep.subr.mxu0 0.0
      %1360 = vmatpush1.msra.mxu0 0.0
      %1361 = vmatprep.subr.mxu0 0.0
      %1362 = vmatpush1.msra.mxu0 0.0
      %1363 = vmatprep.subr.mxu0 0.0
      %1364 = vmatpush1.msra.mxu0 0.0
      %1365 = vmatprep.subr.mxu0 0.0
      %1366 = vmatpush1.msra.mxu0 0.0
      %1367 = vmatprep.mubr.f32.mxu0 0.0
      %1368 = vmatmul.mubr.f32.gmra.mrb[0].mxu0 %v298
      %v1369 = vpop.f32.mrb[0].mxu0
      %v1370 = vadd.f32 %v294, %v1369
      %v1371 = vpop.f32.mrb[0].mxu0
      %v1372 = vadd.f32 %v294, %v1371
      %1373 = vdwg.mxu0
      %1374 = vmatprep.subr.mxu0 %v897
      %1375 = vmatpush1.msra.mxu0 %v896
      %1376 = vmatprep.subr.mxu0 %v913
      %1377 = vmatpush1.msra.mxu0 %v912
      %1378 = vmatprep.subr.mxu0 %v929
      %1379 = vmatpush1.msra.mxu0 %v928
      %1380 = vmatprep.subr.mxu0 %v945
      %1381 = vmatpush1.msra.mxu0 %v944
      %1382 = vmatprep.subr.mxu0 0.0
      %1383 = vmatpush1.msra.mxu0 0.0
      %1384 = vmatprep.subr.mxu0 0.0
      %1385 = vmatpush1.msra.mxu0 0.0
      %1386 = vmatprep.subr.mxu0 0.0
      %1387 = vmatpush1.msra.mxu0 0.0
      %1388 = vmatprep.subr.mxu0 0.0
      %1389 = vmatpush1.msra.mxu0 0.0
      %1390 = vmatprep.subr.mxu0 0.0
      %1391 = vmatpush1.msra.mxu0 0.0
      %1392 = vmatprep.subr.mxu0 0.0
      %1393 = vmatpush1.msra.mxu0 0.0
      %1394 = vmatprep.subr.mxu0 0.0
      %1395 = vmatpush1.msra.mxu0 0.0
      %1396 = vmatprep.subr.mxu0 0.0
      %1397 = vmatpush1.msra.mxu0 0.0
      %1398 = vmatprep.subr.mxu0 0.0
      %1399 = vmatpush1.msra.mxu0 0.0
      %1400 = vmatprep.subr.mxu0 0.0
      %1401 = vmatpush1.msra.mxu0 0.0
      %1402 = vmatprep.subr.mxu0 0.0
      %1403 = vmatpush1.msra.mxu0 0.0
      %1404 = vmatprep.subr.mxu0 0.0
      %1405 = vmatpush1.msra.mxu0 0.0
      %1406 = vmatprep.subr.mxu0 0.0
      %1407 = vmatpush1.msra.mxu0 0.0
      %1408 = vmatprep.subr.mxu0 0.0
      %1409 = vmatpush1.msra.mxu0 0.0
      %1410 = vmatprep.subr.mxu0 0.0
      %1411 = vmatpush1.msra.mxu0 0.0
      %1412 = vmatprep.subr.mxu0 0.0
      %1413 = vmatpush1.msra.mxu0 0.0
      %1414 = vmatprep.subr.mxu0 0.0
      %1415 = vmatpush1.msra.mxu0 0.0
      %1416 = vmatprep.subr.mxu0 0.0
      %1417 = vmatpush1.msra.mxu0 0.0
      %1418 = vmatprep.subr.mxu0 0.0
      %1419 = vmatpush1.msra.mxu0 0.0
      %1420 = vmatprep.subr.mxu0 0.0
      %1421 = vmatpush1.msra.mxu0 0.0
      %1422 = vmatprep.subr.mxu0 0.0
      %1423 = vmatpush1.msra.mxu0 0.0
      %1424 = vmatprep.subr.mxu0 0.0
      %1425 = vmatpush1.msra.mxu0 0.0
      %1426 = vmatprep.subr.mxu0 0.0
      %1427 = vmatpush1.msra.mxu0 0.0
      %1428 = vmatprep.subr.mxu0 0.0
      %1429 = vmatpush1.msra.mxu0 0.0
      %1430 = vmatprep.subr.mxu0 0.0
      %1431 = vmatpush1.msra.mxu0 0.0
      %1432 = vmatprep.subr.mxu0 0.0
      %1433 = vmatpush1.msra.mxu0 0.0
      %1434 = vmatprep.subr.mxu0 0.0
      %1435 = vmatpush1.msra.mxu0 0.0
      %1436 = vmatprep.subr.mxu0 0.0
      %1437 = vmatpush1.msra.mxu0 0.0
      %1438 = vmatprep.mubr.f32.mxu0 0.0
      %1439 = vmatmul.mubr.f32.gmra.mrb[0].mxu0 %v298
      %v1440 = vpop.f32.mrb[0].mxu0
      %v1441 = vadd.f32 %v294, %v1440
      %v1442 = vpop.f32.mrb[0].mxu0
      %v1443 = vadd.f32 %v294, %v1442
      %1444 = vdwg.mxu0
      %1445 = vmatprep.subr.mxu0 %v899
      %1446 = vmatpush1.msra.mxu0 %v898
      %1447 = vmatprep.subr.mxu0 %v915
      %1448 = vmatpush1.msra.mxu0 %v914
      %1449 = vmatprep.subr.mxu0 %v931
      %1450 = vmatpush1.msra.mxu0 %v930
      %1451 = vmatprep.subr.mxu0 %v947
      %1452 = vmatpush1.msra.mxu0 %v946
      %1453 = vmatprep.subr.mxu0 0.0
      %1454 = vmatpush1.msra.mxu0 0.0
      %1455 = vmatprep.subr.mxu0 0.0
      %1456 = vmatpush1.msra.mxu0 0.0
      %1457 = vmatprep.subr.mxu0 0.0
      %1458 = vmatpush1.msra.mxu0 0.0
      %1459 = vmatprep.subr.mxu0 0.0
      %1460 = vmatpush1.msra.mxu0 0.0
      %1461 = vmatprep.subr.mxu0 0.0
      %1462 = vmatpush1.msra.mxu0 0.0
      %1463 = vmatprep.subr.mxu0 0.0
      %1464 = vmatpush1.msra.mxu0 0.0
      %1465 = vmatprep.subr.mxu0 0.0
      %1466 = vmatpush1.msra.mxu0 0.0
      %1467 = vmatprep.subr.mxu0 0.0
      %1468 = vmatpush1.msra.mxu0 0.0
      %1469 = vmatprep.subr.mxu0 0.0
      %1470 = vmatpush1.msra.mxu0 0.0
      %1471 = vmatprep.subr.mxu0 0.0
      %1472 = vmatpush1.msra.mxu0 0.0
      %1473 = vmatprep.subr.mxu0 0.0
      %1474 = vmatpush1.msra.mxu0 0.0
      %1475 = vmatprep.subr.mxu0 0.0
      %1476 = vmatpush1.msra.mxu0 0.0
      %1477 = vmatprep.subr.mxu0 0.0
      %1478 = vmatpush1.msra.mxu0 0.0
      %1479 = vmatprep.subr.mxu0 0.0
      %1480 = vmatpush1.msra.mxu0 0.0
      %1481 = vmatprep.subr.mxu0 0.0
      %1482 = vmatpush1.msra.mxu0 0.0
      %1483 = vmatprep.subr.mxu0 0.0
      %1484 = vmatpush1.msra.mxu0 0.0
      %1485 = vmatprep.subr.mxu0 0.0
      %1486 = vmatpush1.msra.mxu0 0.0
      %1487 = vmatprep.subr.mxu0 0.0
      %1488 = vmatpush1.msra.mxu0 0.0
      %1489 = vmatprep.subr.mxu0 0.0
      %1490 = vmatpush1.msra.mxu0 0.0
      %1491 = vmatprep.subr.mxu0 0.0
      %1492 = vmatpush1.msra.mxu0 0.0
      %1493 = vmatprep.subr.mxu0 0.0
      %1494 = vmatpush1.msra.mxu0 0.0
      %1495 = vmatprep.subr.mxu0 0.0
      %1496 = vmatpush1.msra.mxu0 0.0
      %1497 = vmatprep.subr.mxu0 0.0
      %1498 = vmatpush1.msra.mxu0 0.0
      %1499 = vmatprep.subr.mxu0 0.0
      %1500 = vmatpush1.msra.mxu0 0.0
      %1501 = vmatprep.subr.mxu0 0.0
      %1502 = vmatpush1.msra.mxu0 0.0
      %1503 = vmatprep.subr.mxu0 0.0
      %1504 = vmatpush1.msra.mxu0 0.0
      %1505 = vmatprep.subr.mxu0 0.0
      %1506 = vmatpush1.msra.mxu0 0.0
      %1507 = vmatprep.subr.mxu0 0.0
      %1508 = vmatpush1.msra.mxu0 0.0
      %1509 = vmatprep.mubr.f32.mxu0 0.0
      %1510 = vmatmul.mubr.f32.gmra.mrb[0].mxu0 %v298
      %v1511 = vpop.f32.mrb[0].mxu0
      %v1512 = vadd.f32 %v294, %v1511
      %v1513 = vpop.f32.mrb[0].mxu0
      %v1514 = vadd.f32 %v294, %v1513
      %1515 = vdwg.mxu0
      %v1516 = vmax.f32 %v1015, 0.0
      %v1517 = vmax.f32 %v1017, 0.0
      %v1518 = vmax.f32 %v1086, 0.0
      %v1519 = vmax.f32 %v1088, 0.0
      %v1520 = vmax.f32 %v1157, 0.0
      %v1521 = vmax.f32 %v1159, 0.0
      %v1522 = vmax.f32 %v1228, 0.0
      %v1523 = vmax.f32 %v1230, 0.0
      %v1524 = vmax.f32 %v1299, 0.0
      %v1525 = vmax.f32 %v1301, 0.0
      %v1526 = vmax.f32 %v1370, 0.0
      %v1527 = vmax.f32 %v1372, 0.0
      %v1528 = vmax.f32 %v1441, 0.0
      %v1529 = vmax.f32 %v1443, 0.0
      %v1530 = vmax.f32 %v1512, 0.0
      %v1531 = vmax.f32 %v1514, 0.0
      %v1532 = vmax.f32 %v868, %v1516
      %v1533 = vmax.f32 %v869, %v1517
      %v1534 = vmax.f32 %v870, %v1518
      %v1535 = vmax.f32 %v871, %v1519
      %v1536 = vmax.f32 %v872, %v1520
      %v1537 = vmax.f32 %v873, %v1521
      %v1538 = vmax.f32 %v874, %v1522
      %v1539 = vmax.f32 %v875, %v1523
      %v1540 = vmax.f32 %v876, %v1524
      %v1541 = vmax.f32 %v877, %v1525
      %v1542 = vmax.f32 %v878, %v1526
      %v1543 = vmax.f32 %v879, %v1527
      %v1544 = vmax.f32 %v880, %v1528
      %v1545 = vmax.f32 %v881, %v1529
      %v1546 = vmax.f32 %v882, %v1530
      %v1547 = vmax.f32 %v883, %v1531
      %v1548 = vld [vmem:[%s219 + $0x100] sm:$0xff]
      %v1549 = vld [vmem:[%s219 + $0x108] sm:$0xff]
      %v1550 = vld [vmem:[%s219 + $0x110] sm:$0xff]
      %v1551 = vld [vmem:[%s219 + $0x118] sm:$0xff]
      %v1552 = vld [vmem:[%s219 + $0x120] sm:$0xff]
      %v1553 = vld [vmem:[%s219 + $0x128] sm:$0xff]
      %v1554 = vld [vmem:[%s219 + $0x130] sm:$0xff]
      %v1555 = vld [vmem:[%s219 + $0x138] sm:$0xff]
      %v1556 = vld [vmem:[%s219 + $0x140] sm:$0xff]
      %v1557 = vld [vmem:[%s219 + $0x148] sm:$0xff]
      %v1558 = vld [vmem:[%s219 + $0x150] sm:$0xff]
      %v1559 = vld [vmem:[%s219 + $0x158] sm:$0xff]
      %v1560 = vld [vmem:[%s219 + $0x160] sm:$0xff]
      %v1561 = vld [vmem:[%s219 + $0x168] sm:$0xff]
      %v1562 = vld [vmem:[%s219 + $0x170] sm:$0xff]
      %v1563 = vld [vmem:[%s219 + $0x178] sm:$0xff]
      %v1564 = vld [vmem:[%s219 + $0x300] sm:$0xff]
      %v1565 = vld [vmem:[%s219 + $0x308] sm:$0xff]
      %v1566 = vld [vmem:[%s219 + $0x310] sm:$0xff]
      %v1567 = vld [vmem:[%s219 + $0x318] sm:$0xff]
      %v1568 = vld [vmem:[%s219 + $0x320] sm:$0xff]
      %v1569 = vld [vmem:[%s219 + $0x328] sm:$0xff]
      %v1570 = vld [vmem:[%s219 + $0x330] sm:$0xff]
      %v1571 = vld [vmem:[%s219 + $0x338] sm:$0xff]
      %v1572 = vld [vmem:[%s219 + $0x340] sm:$0xff]
      %v1573 = vld [vmem:[%s219 + $0x348] sm:$0xff]
      %v1574 = vld [vmem:[%s219 + $0x350] sm:$0xff]
      %v1575 = vld [vmem:[%s219 + $0x358] sm:$0xff]
      %v1576 = vld [vmem:[%s219 + $0x360] sm:$0xff]
      %v1577 = vld [vmem:[%s219 + $0x368] sm:$0xff]
      %v1578 = vld [vmem:[%s219 + $0x370] sm:$0xff]
      %v1579 = vld [vmem:[%s219 + $0x378] sm:$0xff]
      %v1580 = vld [vmem:[%s219 + $0x500] sm:$0xff]
      %v1581 = vld [vmem:[%s219 + $0x508] sm:$0xff]
      %v1582 = vld [vmem:[%s219 + $0x510] sm:$0xff]
      %v1583 = vld [vmem:[%s219 + $0x518] sm:$0xff]
      %v1584 = vld [vmem:[%s219 + $0x520] sm:$0xff]
      %v1585 = vld [vmem:[%s219 + $0x528] sm:$0xff]
      %v1586 = vld [vmem:[%s219 + $0x530] sm:$0xff]
      %v1587 = vld [vmem:[%s219 + $0x538] sm:$0xff]
      %v1588 = vld [vmem:[%s219 + $0x540] sm:$0xff]
      %v1589 = vld [vmem:[%s219 + $0x548] sm:$0xff]
      %v1590 = vld [vmem:[%s219 + $0x550] sm:$0xff]
      %v1591 = vld [vmem:[%s219 + $0x558] sm:$0xff]
      %v1592 = vld [vmem:[%s219 + $0x560] sm:$0xff]
      %v1593 = vld [vmem:[%s219 + $0x568] sm:$0xff]
      %v1594 = vld [vmem:[%s219 + $0x570] sm:$0xff]
      %v1595 = vld [vmem:[%s219 + $0x578] sm:$0xff]
      %v1596 = vld [vmem:[%s219 + $0x700] sm:$0xff]
      %v1597 = vld [vmem:[%s219 + $0x708] sm:$0xff]
      %v1598 = vld [vmem:[%s219 + $0x710] sm:$0xff]
      %v1599 = vld [vmem:[%s219 + $0x718] sm:$0xff]
      %v1600 = vld [vmem:[%s219 + $0x720] sm:$0xff]
      %v1601 = vld [vmem:[%s219 + $0x728] sm:$0xff]
      %v1602 = vld [vmem:[%s219 + $0x730] sm:$0xff]
      %v1603 = vld [vmem:[%s219 + $0x738] sm:$0xff]
      %v1604 = vld [vmem:[%s219 + $0x740] sm:$0xff]
      %v1605 = vld [vmem:[%s219 + $0x748] sm:$0xff]
      %v1606 = vld [vmem:[%s219 + $0x750] sm:$0xff]
      %v1607 = vld [vmem:[%s219 + $0x758] sm:$0xff]
      %v1608 = vld [vmem:[%s219 + $0x760] sm:$0xff]
      %v1609 = vld [vmem:[%s219 + $0x768] sm:$0xff]
      %v1610 = vld [vmem:[%s219 + $0x770] sm:$0xff]
      %v1611 = vld [vmem:[%s219 + $0x778] sm:$0xff]
      %1612 = vmatprep.subr.mxu0 %v1549
      %1613 = vmatpush1.msra.mxu0 %v1548
      %1614 = vmatprep.subr.mxu0 %v1565
      %1615 = vmatpush1.msra.mxu0 %v1564
      %1616 = vmatprep.subr.mxu0 %v1581
      %1617 = vmatpush1.msra.mxu0 %v1580
      %1618 = vmatprep.subr.mxu0 %v1597
      %1619 = vmatpush1.msra.mxu0 %v1596
      %1620 = vmatprep.subr.mxu0 0.0
      %1621 = vmatpush1.msra.mxu0 0.0
      %1622 = vmatprep.subr.mxu0 0.0
      %1623 = vmatpush1.msra.mxu0 0.0
      %1624 = vmatprep.subr.mxu0 0.0
      %1625 = vmatpush1.msra.mxu0 0.0
      %1626 = vmatprep.subr.mxu0 0.0
      %1627 = vmatpush1.msra.mxu0 0.0
      %1628 = vmatprep.subr.mxu0 0.0
      %1629 = vmatpush1.msra.mxu0 0.0
      %1630 = vmatprep.subr.mxu0 0.0
      %1631 = vmatpush1.msra.mxu0 0.0
      %1632 = vmatprep.subr.mxu0 0.0
      %1633 = vmatpush1.msra.mxu0 0.0
      %1634 = vmatprep.subr.mxu0 0.0
      %1635 = vmatpush1.msra.mxu0 0.0
      %1636 = vmatprep.subr.mxu0 0.0
      %1637 = vmatpush1.msra.mxu0 0.0
      %1638 = vmatprep.subr.mxu0 0.0
      %1639 = vmatpush1.msra.mxu0 0.0
      %1640 = vmatprep.subr.mxu0 0.0
      %1641 = vmatpush1.msra.mxu0 0.0
      %1642 = vmatprep.subr.mxu0 0.0
      %1643 = vmatpush1.msra.mxu0 0.0
      %1644 = vmatprep.subr.mxu0 0.0
      %1645 = vmatpush1.msra.mxu0 0.0
      %1646 = vmatprep.subr.mxu0 0.0
      %1647 = vmatpush1.msra.mxu0 0.0
      %1648 = vmatprep.subr.mxu0 0.0
      %1649 = vmatpush1.msra.mxu0 0.0
      %1650 = vmatprep.subr.mxu0 0.0
      %1651 = vmatpush1.msra.mxu0 0.0
      %1652 = vmatprep.subr.mxu0 0.0
      %1653 = vmatpush1.msra.mxu0 0.0
      %1654 = vmatprep.subr.mxu0 0.0
      %1655 = vmatpush1.msra.mxu0 0.0
      %1656 = vmatprep.subr.mxu0 0.0
      %1657 = vmatpush1.msra.mxu0 0.0
      %1658 = vmatprep.subr.mxu0 0.0
      %1659 = vmatpush1.msra.mxu0 0.0
      %1660 = vmatprep.subr.mxu0 0.0
      %1661 = vmatpush1.msra.mxu0 0.0
      %1662 = vmatprep.subr.mxu0 0.0
      %1663 = vmatpush1.msra.mxu0 0.0
      %1664 = vmatprep.subr.mxu0 0.0
      %1665 = vmatpush1.msra.mxu0 0.0
      %1666 = vmatprep.subr.mxu0 0.0
      %1667 = vmatpush1.msra.mxu0 0.0
      %1668 = vmatprep.subr.mxu0 0.0
      %1669 = vmatpush1.msra.mxu0 0.0
      %1670 = vmatprep.subr.mxu0 0.0
      %1671 = vmatpush1.msra.mxu0 0.0
      %1672 = vmatprep.subr.mxu0 0.0
      %1673 = vmatpush1.msra.mxu0 0.0
      %1674 = vmatprep.subr.mxu0 0.0
      %1675 = vmatpush1.msra.mxu0 0.0
      %1676 = vmatprep.mubr.f32.mxu0 0.0
      %1677 = vmatmul.mubr.f32.gmra.mrb[0].mxu0 %v298
      %v1678 = vpop.f32.mrb[0].mxu0
      %v1679 = vadd.f32 %v294, %v1678
      %v1680 = vpop.f32.mrb[0].mxu0
      %v1681 = vadd.f32 %v294, %v1680
      %1682 = vdwg.mxu0
      %1683 = vmatprep.subr.mxu0 %v1551
      %1684 = vmatpush1.msra.mxu0 %v1550
      %1685 = vmatprep.subr.mxu0 %v1567
      %1686 = vmatpush1.msra.mxu0 %v1566
      %1687 = vmatprep.subr.mxu0 %v1583
      %1688 = vmatpush1.msra.mxu0 %v1582
      %1689 = vmatprep.subr.mxu0 %v1599
      %1690 = vmatpush1.msra.mxu0 %v1598
      %1691 = vmatprep.subr.mxu0 0.0
      %1692 = vmatpush1.msra.mxu0 0.0
      %1693 = vmatprep.subr.mxu0 0.0
      %1694 = vmatpush1.msra.mxu0 0.0
      %1695 = vmatprep.subr.mxu0 0.0
      %1696 = vmatpush1.msra.mxu0 0.0
      %1697 = vmatprep.subr.mxu0 0.0
      %1698 = vmatpush1.msra.mxu0 0.0
      %1699 = vmatprep.subr.mxu0 0.0
      %1700 = vmatpush1.msra.mxu0 0.0
      %1701 = vmatprep.subr.mxu0 0.0
      %1702 = vmatpush1.msra.mxu0 0.0
      %1703 = vmatprep.subr.mxu0 0.0
      %1704 = vmatpush1.msra.mxu0 0.0
      %1705 = vmatprep.subr.mxu0 0.0
      %1706 = vmatpush1.msra.mxu0 0.0
      %1707 = vmatprep.subr.mxu0 0.0
      %1708 = vmatpush1.msra.mxu0 0.0
      %1709 = vmatprep.subr.mxu0 0.0
      %1710 = vmatpush1.msra.mxu0 0.0
      %1711 = vmatprep.subr.mxu0 0.0
      %1712 = vmatpush1.msra.mxu0 0.0
      %1713 = vmatprep.subr.mxu0 0.0
      %1714 = vmatpush1.msra.mxu0 0.0
      %1715 = vmatprep.subr.mxu0 0.0
      %1716 = vmatpush1.msra.mxu0 0.0
      %1717 = vmatprep.subr.mxu0 0.0
      %1718 = vmatpush1.msra.mxu0 0.0
      %1719 = vmatprep.subr.mxu0 0.0
      %1720 = vmatpush1.msra.mxu0 0.0
      %1721 = vmatprep.subr.mxu0 0.0
      %1722 = vmatpush1.msra.mxu0 0.0
      %1723 = vmatprep.subr.mxu0 0.0
      %1724 = vmatpush1.msra.mxu0 0.0
      %1725 = vmatprep.subr.mxu0 0.0
      %1726 = vmatpush1.msra.mxu0 0.0
      %1727 = vmatprep.subr.mxu0 0.0
      %1728 = vmatpush1.msra.mxu0 0.0
      %1729 = vmatprep.subr.mxu0 0.0
      %1730 = vmatpush1.msra.mxu0 0.0
      %1731 = vmatprep.subr.mxu0 0.0
      %1732 = vmatpush1.msra.mxu0 0.0
      %1733 = vmatprep.subr.mxu0 0.0
      %1734 = vmatpush1.msra.mxu0 0.0
      %1735 = vmatprep.subr.mxu0 0.0
      %1736 = vmatpush1.msra.mxu0 0.0
      %1737 = vmatprep.subr.mxu0 0.0
      %1738 = vmatpush1.msra.mxu0 0.0
      %1739 = vmatprep.subr.mxu0 0.0
      %1740 = vmatpush1.msra.mxu0 0.0
      %1741 = vmatprep.subr.mxu0 0.0
      %1742 = vmatpush1.msra.mxu0 0.0
      %1743 = vmatprep.subr.mxu0 0.0
      %1744 = vmatpush1.msra.mxu0 0.0
      %1745 = vmatprep.subr.mxu0 0.0
      %1746 = vmatpush1.msra.mxu0 0.0
      %1747 = vmatprep.mubr.f32.mxu0 0.0
      %1748 = vmatmul.mubr.f32.gmra.mrb[0].mxu0 %v298
      %v1749 = vpop.f32.mrb[0].mxu0
      %v1750 = vadd.f32 %v294, %v1749
      %v1751 = vpop.f32.mrb[0].mxu0
      %v1752 = vadd.f32 %v294, %v1751
      %1753 = vdwg.mxu0
      %1754 = vmatprep.subr.mxu0 %v1553
      %1755 = vmatpush1.msra.mxu0 %v1552
      %1756 = vmatprep.subr.mxu0 %v1569
      %1757 = vmatpush1.msra.mxu0 %v1568
      %1758 = vmatprep.subr.mxu0 %v1585
      %1759 = vmatpush1.msra.mxu0 %v1584
      %1760 = vmatprep.subr.mxu0 %v1601
      %1761 = vmatpush1.msra.mxu0 %v1600
      %1762 = vmatprep.subr.mxu0 0.0
      %1763 = vmatpush1.msra.mxu0 0.0
      %1764 = vmatprep.subr.mxu0 0.0
      %1765 = vmatpush1.msra.mxu0 0.0
      %1766 = vmatprep.subr.mxu0 0.0
      %1767 = vmatpush1.msra.mxu0 0.0
      %1768 = vmatprep.subr.mxu0 0.0
      %1769 = vmatpush1.msra.mxu0 0.0
      %1770 = vmatprep.subr.mxu0 0.0
      %1771 = vmatpush1.msra.mxu0 0.0
      %1772 = vmatprep.subr.mxu0 0.0
      %1773 = vmatpush1.msra.mxu0 0.0
      %1774 = vmatprep.subr.mxu0 0.0
      %1775 = vmatpush1.msra.mxu0 0.0
      %1776 = vmatprep.subr.mxu0 0.0
      %1777 = vmatpush1.msra.mxu0 0.0
      %1778 = vmatprep.subr.mxu0 0.0
      %1779 = vmatpush1.msra.mxu0 0.0
      %1780 = vmatprep.subr.mxu0 0.0
      %1781 = vmatpush1.msra.mxu0 0.0
      %1782 = vmatprep.subr.mxu0 0.0
      %1783 = vmatpush1.msra.mxu0 0.0
      %1784 = vmatprep.subr.mxu0 0.0
      %1785 = vmatpush1.msra.mxu0 0.0
      %1786 = vmatprep.subr.mxu0 0.0
      %1787 = vmatpush1.msra.mxu0 0.0
      %1788 = vmatprep.subr.mxu0 0.0
      %1789 = vmatpush1.msra.mxu0 0.0
      %1790 = vmatprep.subr.mxu0 0.0
      %1791 = vmatpush1.msra.mxu0 0.0
      %1792 = vmatprep.subr.mxu0 0.0
      %1793 = vmatpush1.msra.mxu0 0.0
      %1794 = vmatprep.subr.mxu0 0.0
      %1795 = vmatpush1.msra.mxu0 0.0
      %1796 = vmatprep.subr.mxu0 0.0
      %1797 = vmatpush1.msra.mxu0 0.0
      %1798 = vmatprep.subr.mxu0 0.0
      %1799 = vmatpush1.msra.mxu0 0.0
      %1800 = vmatprep.subr.mxu0 0.0
      %1801 = vmatpush1.msra.mxu0 0.0
      %1802 = vmatprep.subr.mxu0 0.0
      %1803 = vmatpush1.msra.mxu0 0.0
      %1804 = vmatprep.subr.mxu0 0.0
      %1805 = vmatpush1.msra.mxu0 0.0
      %1806 = vmatprep.subr.mxu0 0.0
      %1807 = vmatpush1.msra.mxu0 0.0
      %1808 = vmatprep.subr.mxu0 0.0
      %1809 = vmatpush1.msra.mxu0 0.0
      %1810 = vmatprep.subr.mxu0 0.0
      %1811 = vmatpush1.msra.mxu0 0.0
      %1812 = vmatprep.subr.mxu0 0.0
      %1813 = vmatpush1.msra.mxu0 0.0
      %1814 = vmatprep.subr.mxu0 0.0
      %1815 = vmatpush1.msra.mxu0 0.0
      %1816 = vmatprep.subr.mxu0 0.0
      %1817 = vmatpush1.msra.mxu0 0.0
      %1818 = vmatprep.mubr.f32.mxu0 0.0
      %1819 = vmatmul.mubr.f32.gmra.mrb[0].mxu0 %v298
      %v1820 = vpop.f32.mrb[0].mxu0
      %v1821 = vadd.f32 %v294, %v1820
      %v1822 = vpop.f32.mrb[0].mxu0
      %v1823 = vadd.f32 %v294, %v1822
      %1824 = vdwg.mxu0
      %1825 = vmatprep.subr.mxu0 %v1555
      %1826 = vmatpush1.msra.mxu0 %v1554
      %1827 = vmatprep.subr.mxu0 %v1571
      %1828 = vmatpush1.msra.mxu0 %v1570
      %1829 = vmatprep.subr.mxu0 %v1587
      %1830 = vmatpush1.msra.mxu0 %v1586
      %1831 = vmatprep.subr.mxu0 %v1603
      %1832 = vmatpush1.msra.mxu0 %v1602
      %1833 = vmatprep.subr.mxu0 0.0
      %1834 = vmatpush1.msra.mxu0 0.0
      %1835 = vmatprep.subr.mxu0 0.0
      %1836 = vmatpush1.msra.mxu0 0.0
      %1837 = vmatprep.subr.mxu0 0.0
      %1838 = vmatpush1.msra.mxu0 0.0
      %1839 = vmatprep.subr.mxu0 0.0
      %1840 = vmatpush1.msra.mxu0 0.0
      %1841 = vmatprep.subr.mxu0 0.0
      %1842 = vmatpush1.msra.mxu0 0.0
      %1843 = vmatprep.subr.mxu0 0.0
      %1844 = vmatpush1.msra.mxu0 0.0
      %1845 = vmatprep.subr.mxu0 0.0
      %1846 = vmatpush1.msra.mxu0 0.0
      %1847 = vmatprep.subr.mxu0 0.0
      %1848 = vmatpush1.msra.mxu0 0.0
      %1849 = vmatprep.subr.mxu0 0.0
      %1850 = vmatpush1.msra.mxu0 0.0
      %1851 = vmatprep.subr.mxu0 0.0
      %1852 = vmatpush1.msra.mxu0 0.0
      %1853 = vmatprep.subr.mxu0 0.0
      %1854 = vmatpush1.msra.mxu0 0.0
      %1855 = vmatprep.subr.mxu0 0.0
      %1856 = vmatpush1.msra.mxu0 0.0
      %1857 = vmatprep.subr.mxu0 0.0
      %1858 = vmatpush1.msra.mxu0 0.0
      %1859 = vmatprep.subr.mxu0 0.0
      %1860 = vmatpush1.msra.mxu0 0.0
      %1861 = vmatprep.subr.mxu0 0.0
      %1862 = vmatpush1.msra.mxu0 0.0
      %1863 = vmatprep.subr.mxu0 0.0
      %1864 = vmatpush1.msra.mxu0 0.0
      %1865 = vmatprep.subr.mxu0 0.0
      %1866 = vmatpush1.msra.mxu0 0.0
      %1867 = vmatprep.subr.mxu0 0.0
      %1868 = vmatpush1.msra.mxu0 0.0
      %1869 = vmatprep.subr.mxu0 0.0
      %1870 = vmatpush1.msra.mxu0 0.0
      %1871 = vmatprep.subr.mxu0 0.0
      %1872 = vmatpush1.msra.mxu0 0.0
      %1873 = vmatprep.subr.mxu0 0.0
      %1874 = vmatpush1.msra.mxu0 0.0
      %1875 = vmatprep.subr.mxu0 0.0
      %1876 = vmatpush1.msra.mxu0 0.0
      %1877 = vmatprep.subr.mxu0 0.0
      %1878 = vmatpush1.msra.mxu0 0.0
      %1879 = vmatprep.subr.mxu0 0.0
      %1880 = vmatpush1.msra.mxu0 0.0
      %1881 = vmatprep.subr.mxu0 0.0
      %1882 = vmatpush1.msra.mxu0 0.0
      %1883 = vmatprep.subr.mxu0 0.0
      %1884 = vmatpush1.msra.mxu0 0.0
      %1885 = vmatprep.subr.mxu0 0.0
      %1886 = vmatpush1.msra.mxu0 0.0
      %1887 = vmatprep.subr.mxu0 0.0
      %1888 = vmatpush1.msra.mxu0 0.0
      %1889 = vmatprep.mubr.f32.mxu0 0.0
      %1890 = vmatmul.mubr.f32.gmra.mrb[0].mxu0 %v298
      %v1891 = vpop.f32.mrb[0].mxu0
      %v1892 = vadd.f32 %v294, %v1891
      %v1893 = vpop.f32.mrb[0].mxu0
      %v1894 = vadd.f32 %v294, %v1893
      %1895 = vdwg.mxu0
      %1896 = vmatprep.subr.mxu0 %v1557
      %1897 = vmatpush1.msra.mxu0 %v1556
      %1898 = vmatprep.subr.mxu0 %v1573
      %1899 = vmatpush1.msra.mxu0 %v1572
      %1900 = vmatprep.subr.mxu0 %v1589
      %1901 = vmatpush1.msra.mxu0 %v1588
      %1902 = vmatprep.subr.mxu0 %v1605
      %1903 = vmatpush1.msra.mxu0 %v1604
      %1904 = vmatprep.subr.mxu0 0.0
      %1905 = vmatpush1.msra.mxu0 0.0
      %1906 = vmatprep.subr.mxu0 0.0
      %1907 = vmatpush1.msra.mxu0 0.0
      %1908 = vmatprep.subr.mxu0 0.0
      %1909 = vmatpush1.msra.mxu0 0.0
      %1910 = vmatprep.subr.mxu0 0.0
      %1911 = vmatpush1.msra.mxu0 0.0
      %1912 = vmatprep.subr.mxu0 0.0
      %1913 = vmatpush1.msra.mxu0 0.0
      %1914 = vmatprep.subr.mxu0 0.0
      %1915 = vmatpush1.msra.mxu0 0.0
      %1916 = vmatprep.subr.mxu0 0.0
      %1917 = vmatpush1.msra.mxu0 0.0
      %1918 = vmatprep.subr.mxu0 0.0
      %1919 = vmatpush1.msra.mxu0 0.0
      %1920 = vmatprep.subr.mxu0 0.0
      %1921 = vmatpush1.msra.mxu0 0.0
      %1922 = vmatprep.subr.mxu0 0.0
      %1923 = vmatpush1.msra.mxu0 0.0
      %1924 = vmatprep.subr.mxu0 0.0
      %1925 = vmatpush1.msra.mxu0 0.0
      %1926 = vmatprep.subr.mxu0 0.0
      %1927 = vmatpush1.msra.mxu0 0.0
      %1928 = vmatprep.subr.mxu0 0.0
      %1929 = vmatpush1.msra.mxu0 0.0
      %1930 = vmatprep.subr.mxu0 0.0
      %1931 = vmatpush1.msra.mxu0 0.0
      %1932 = vmatprep.subr.mxu0 0.0
      %1933 = vmatpush1.msra.mxu0 0.0
      %1934 = vmatprep.subr.mxu0 0.0
      %1935 = vmatpush1.msra.mxu0 0.0
      %1936 = vmatprep.subr.mxu0 0.0
      %1937 = vmatpush1.msra.mxu0 0.0
      %1938 = vmatprep.subr.mxu0 0.0
      %1939 = vmatpush1.msra.mxu0 0.0
      %1940 = vmatprep.subr.mxu0 0.0
      %1941 = vmatpush1.msra.mxu0 0.0
      %1942 = vmatprep.subr.mxu0 0.0
      %1943 = vmatpush1.msra.mxu0 0.0
      %1944 = vmatprep.subr.mxu0 0.0
      %1945 = vmatpush1.msra.mxu0 0.0
      %1946 = vmatprep.subr.mxu0 0.0
      %1947 = vmatpush1.msra.mxu0 0.0
      %1948 = vmatprep.subr.mxu0 0.0
      %1949 = vmatpush1.msra.mxu0 0.0
      %1950 = vmatprep.subr.mxu0 0.0
      %1951 = vmatpush1.msra.mxu0 0.0
      %1952 = vmatprep.subr.mxu0 0.0
      %1953 = vmatpush1.msra.mxu0 0.0
      %1954 = vmatprep.subr.mxu0 0.0
      %1955 = vmatpush1.msra.mxu0 0.0
      %1956 = vmatprep.subr.mxu0 0.0
      %1957 = vmatpush1.msra.mxu0 0.0
      %1958 = vmatprep.subr.mxu0 0.0
      %1959 = vmatpush1.msra.mxu0 0.0
      %1960 = vmatprep.mubr.f32.mxu0 0.0
      %1961 = vmatmul.mubr.f32.gmra.mrb[0].mxu0 %v298
      %v1962 = vpop.f32.mrb[0].mxu0
      %v1963 = vadd.f32 %v294, %v1962
      %v1964 = vpop.f32.mrb[0].mxu0
      %v1965 = vadd.f32 %v294, %v1964
      %1966 = vdwg.mxu0
      %1967 = vmatprep.subr.mxu0 %v1559
      %1968 = vmatpush1.msra.mxu0 %v1558
      %1969 = vmatprep.subr.mxu0 %v1575
      %1970 = vmatpush1.msra.mxu0 %v1574
      %1971 = vmatprep.subr.mxu0 %v1591
      %1972 = vmatpush1.msra.mxu0 %v1590
      %1973 = vmatprep.subr.mxu0 %v1607
      %1974 = vmatpush1.msra.mxu0 %v1606
      %1975 = vmatprep.subr.mxu0 0.0
      %1976 = vmatpush1.msra.mxu0 0.0
      %1977 = vmatprep.subr.mxu0 0.0
      %1978 = vmatpush1.msra.mxu0 0.0
      %1979 = vmatprep.subr.mxu0 0.0
      %1980 = vmatpush1.msra.mxu0 0.0
      %1981 = vmatprep.subr.mxu0 0.0
      %1982 = vmatpush1.msra.mxu0 0.0
      %1983 = vmatprep.subr.mxu0 0.0
      %1984 = vmatpush1.msra.mxu0 0.0
      %1985 = vmatprep.subr.mxu0 0.0
      %1986 = vmatpush1.msra.mxu0 0.0
      %1987 = vmatprep.subr.mxu0 0.0
      %1988 = vmatpush1.msra.mxu0 0.0
      %1989 = vmatprep.subr.mxu0 0.0
      %1990 = vmatpush1.msra.mxu0 0.0
      %1991 = vmatprep.subr.mxu0 0.0
      %1992 = vmatpush1.msra.mxu0 0.0
      %1993 = vmatprep.subr.mxu0 0.0
      %1994 = vmatpush1.msra.mxu0 0.0
      %1995 = vmatprep.subr.mxu0 0.0
      %1996 = vmatpush1.msra.mxu0 0.0
      %1997 = vmatprep.subr.mxu0 0.0
      %1998 = vmatpush1.msra.mxu0 0.0
      %1999 = vmatprep.subr.mxu0 0.0
      %2000 = vmatpush1.msra.mxu0 0.0
      %2001 = vmatprep.subr.mxu0 0.0
      %2002 = vmatpush1.msra.mxu0 0.0
      %2003 = vmatprep.subr.mxu0 0.0
      %2004 = vmatpush1.msra.mxu0 0.0
      %2005 = vmatprep.subr.mxu0 0.0
      %2006 = vmatpush1.msra.mxu0 0.0
      %2007 = vmatprep.subr.mxu0 0.0
      %2008 = vmatpush1.msra.mxu0 0.0
      %2009 = vmatprep.subr.mxu0 0.0
      %2010 = vmatpush1.msra.mxu0 0.0
      %2011 = vmatprep.subr.mxu0 0.0
      %2012 = vmatpush1.msra.mxu0 0.0
      %2013 = vmatprep.subr.mxu0 0.0
      %2014 = vmatpush1.msra.mxu0 0.0
      %2015 = vmatprep.subr.mxu0 0.0
      %2016 = vmatpush1.msra.mxu0 0.0
      %2017 = vmatprep.subr.mxu0 0.0
      %2018 = vmatpush1.msra.mxu0 0.0
      %2019 = vmatprep.subr.mxu0 0.0
      %2020 = vmatpush1.msra.mxu0 0.0
      %2021 = vmatprep.subr.mxu0 0.0
      %2022 = vmatpush1.msra.mxu0 0.0
      %2023 = vmatprep.subr.mxu0 0.0
      %2024 = vmatpush1.msra.mxu0 0.0
      %2025 = vmatprep.subr.mxu0 0.0
      %2026 = vmatpush1.msra.mxu0 0.0
      %2027 = vmatprep.subr.mxu0 0.0
      %2028 = vmatpush1.msra.mxu0 0.0
      %2029 = vmatprep.subr.mxu0 0.0
      %2030 = vmatpush1.msra.mxu0 0.0
      %2031 = vmatprep.mubr.f32.mxu0 0.0
      %2032 = vmatmul.mubr.f32.gmra.mrb[0].mxu0 %v298
      %v2033 = vpop.f32.mrb[0].mxu0
      %v2034 = vadd.f32 %v294, %v2033
      %v2035 = vpop.f32.mrb[0].mxu0
      %v2036 = vadd.f32 %v294, %v2035
      %2037 = vdwg.mxu0
      %2038 = vmatprep.subr.mxu0 %v1561
      %2039 = vmatpush1.msra.mxu0 %v1560
      %2040 = vmatprep.subr.mxu0 %v1577
      %2041 = vmatpush1.msra.mxu0 %v1576
      %2042 = vmatprep.subr.mxu0 %v1593
      %2043 = vmatpush1.msra.mxu0 %v1592
      %2044 = vmatprep.subr.mxu0 %v1609
      %2045 = vmatpush1.msra.mxu0 %v1608
      %2046 = vmatprep.subr.mxu0 0.0
      %2047 = vmatpush1.msra.mxu0 0.0
      %2048 = vmatprep.subr.mxu0 0.0
      %2049 = vmatpush1.msra.mxu0 0.0
      %2050 = vmatprep.subr.mxu0 0.0
      %2051 = vmatpush1.msra.mxu0 0.0
      %2052 = vmatprep.subr.mxu0 0.0
      %2053 = vmatpush1.msra.mxu0 0.0
      %2054 = vmatprep.subr.mxu0 0.0
      %2055 = vmatpush1.msra.mxu0 0.0
      %2056 = vmatprep.subr.mxu0 0.0
      %2057 = vmatpush1.msra.mxu0 0.0
      %2058 = vmatprep.subr.mxu0 0.0
      %2059 = vmatpush1.msra.mxu0 0.0
      %2060 = vmatprep.subr.mxu0 0.0
      %2061 = vmatpush1.msra.mxu0 0.0
      %2062 = vmatprep.subr.mxu0 0.0
      %2063 = vmatpush1.msra.mxu0 0.0
      %2064 = vmatprep.subr.mxu0 0.0
      %2065 = vmatpush1.msra.mxu0 0.0
      %2066 = vmatprep.subr.mxu0 0.0
      %2067 = vmatpush1.msra.mxu0 0.0
      %2068 = vmatprep.subr.mxu0 0.0
      %2069 = vmatpush1.msra.mxu0 0.0
      %2070 = vmatprep.subr.mxu0 0.0
      %2071 = vmatpush1.msra.mxu0 0.0
      %2072 = vmatprep.subr.mxu0 0.0
      %2073 = vmatpush1.msra.mxu0 0.0
      %2074 = vmatprep.subr.mxu0 0.0
      %2075 = vmatpush1.msra.mxu0 0.0
      %2076 = vmatprep.subr.mxu0 0.0
      %2077 = vmatpush1.msra.mxu0 0.0
      %2078 = vmatprep.subr.mxu0 0.0
      %2079 = vmatpush1.msra.mxu0 0.0
      %2080 = vmatprep.subr.mxu0 0.0
      %2081 = vmatpush1.msra.mxu0 0.0
      %2082 = vmatprep.subr.mxu0 0.0
      %2083 = vmatpush1.msra.mxu0 0.0
      %2084 = vmatprep.subr.mxu0 0.0
      %2085 = vmatpush1.msra.mxu0 0.0
      %2086 = vmatprep.subr.mxu0 0.0
      %2087 = vmatpush1.msra.mxu0 0.0
      %2088 = vmatprep.subr.mxu0 0.0
      %2089 = vmatpush1.msra.mxu0 0.0
      %2090 = vmatprep.subr.mxu0 0.0
      %2091 = vmatpush1.msra.mxu0 0.0
      %2092 = vmatprep.subr.mxu0 0.0
      %2093 = vmatpush1.msra.mxu0 0.0
      %2094 = vmatprep.subr.mxu0 0.0
      %2095 = vmatpush1.msra.mxu0 0.0
      %2096 = vmatprep.subr.mxu0 0.0
      %2097 = vmatpush1.msra.mxu0 0.0
      %2098 = vmatprep.subr.mxu0 0.0
      %2099 = vmatpush1.msra.mxu0 0.0
      %2100 = vmatprep.subr.mxu0 0.0
      %2101 = vmatpush1.msra.mxu0 0.0
      %2102 = vmatprep.mubr.f32.mxu0 0.0
      %2103 = vmatmul.mubr.f32.gmra.mrb[0].mxu0 %v298
      %v2104 = vpop.f32.mrb[0].mxu0
      %v2105 = vadd.f32 %v294, %v2104
      %v2106 = vpop.f32.mrb[0].mxu0
      %v2107 = vadd.f32 %v294, %v2106
      %2108 = vdwg.mxu0
      %2109 = vmatprep.subr.mxu0 %v1563
      %2110 = vmatpush1.msra.mxu0 %v1562
      %2111 = vmatprep.subr.mxu0 %v1579
      %2112 = vmatpush1.msra.mxu0 %v1578
      %2113 = vmatprep.subr.mxu0 %v1595
      %2114 = vmatpush1.msra.mxu0 %v1594
      %2115 = vmatprep.subr.mxu0 %v1611
      %2116 = vmatpush1.msra.mxu0 %v1610
      %2117 = vmatprep.subr.mxu0 0.0
      %2118 = vmatpush1.msra.mxu0 0.0
      %2119 = vmatprep.subr.mxu0 0.0
      %2120 = vmatpush1.msra.mxu0 0.0
      %2121 = vmatprep.subr.mxu0 0.0
      %2122 = vmatpush1.msra.mxu0 0.0
      %2123 = vmatprep.subr.mxu0 0.0
      %2124 = vmatpush1.msra.mxu0 0.0
      %2125 = vmatprep.subr.mxu0 0.0
      %2126 = vmatpush1.msra.mxu0 0.0
      %2127 = vmatprep.subr.mxu0 0.0
      %2128 = vmatpush1.msra.mxu0 0.0
      %2129 = vmatprep.subr.mxu0 0.0
      %2130 = vmatpush1.msra.mxu0 0.0
      %2131 = vmatprep.subr.mxu0 0.0
      %2132 = vmatpush1.msra.mxu0 0.0
      %2133 = vmatprep.subr.mxu0 0.0
      %2134 = vmatpush1.msra.mxu0 0.0
      %2135 = vmatprep.subr.mxu0 0.0
      %2136 = vmatpush1.msra.mxu0 0.0
      %2137 = vmatprep.subr.mxu0 0.0
      %2138 = vmatpush1.msra.mxu0 0.0
      %2139 = vmatprep.subr.mxu0 0.0
      %2140 = vmatpush1.msra.mxu0 0.0
      %2141 = vmatprep.subr.mxu0 0.0
      %2142 = vmatpush1.msra.mxu0 0.0
      %2143 = vmatprep.subr.mxu0 0.0
      %2144 = vmatpush1.msra.mxu0 0.0
      %2145 = vmatprep.subr.mxu0 0.0
      %2146 = vmatpush1.msra.mxu0 0.0
      %2147 = vmatprep.subr.mxu0 0.0
      %2148 = vmatpush1.msra.mxu0 0.0
      %2149 = vmatprep.subr.mxu0 0.0
      %2150 = vmatpush1.msra.mxu0 0.0
      %2151 = vmatprep.subr.mxu0 0.0
      %2152 = vmatpush1.msra.mxu0 0.0
      %2153 = vmatprep.subr.mxu0 0.0
      %2154 = vmatpush1.msra.mxu0 0.0
      %2155 = vmatprep.subr.mxu0 0.0
      %2156 = vmatpush1.msra.mxu0 0.0
      %2157 = vmatprep.subr.mxu0 0.0
      %2158 = vmatpush1.msra.mxu0 0.0
      %2159 = vmatprep.subr.mxu0 0.0
      %2160 = vmatpush1.msra.mxu0 0.0
      %2161 = vmatprep.subr.mxu0 0.0
      %2162 = vmatpush1.msra.mxu0 0.0
      %2163 = vmatprep.subr.mxu0 0.0
      %2164 = vmatpush1.msra.mxu0 0.0
      %2165 = vmatprep.subr.mxu0 0.0
      %2166 = vmatpush1.msra.mxu0 0.0
      %2167 = vmatprep.subr.mxu0 0.0
      %2168 = vmatpush1.msra.mxu0 0.0
      %2169 = vmatprep.subr.mxu0 0.0
      %2170 = vmatpush1.msra.mxu0 0.0
      %2171 = vmatprep.subr.mxu0 0.0
      %2172 = vmatpush1.msra.mxu0 0.0
      %2173 = vmatprep.mubr.f32.mxu0 0.0
      %2174 = vmatmul.mubr.f32.gmra.mrb[0].mxu0 %v298
      %v2175 = vpop.f32.mrb[0].mxu0
      %v2176 = vadd.f32 %v294, %v2175
      %v2177 = vpop.f32.mrb[0].mxu0
      %v2178 = vadd.f32 %v294, %v2177
      %2179 = vdwg.mxu0
      %v2180 = vmax.f32 %v1679, 0.0
      %v2181 = vmax.f32 %v1681, 0.0
      %v2182 = vmax.f32 %v1750, 0.0
      %v2183 = vmax.f32 %v1752, 0.0
      %v2184 = vmax.f32 %v1821, 0.0
      %v2185 = vmax.f32 %v1823, 0.0
      %v2186 = vmax.f32 %v1892, 0.0
      %v2187 = vmax.f32 %v1894, 0.0
      %v2188 = vmax.f32 %v1963, 0.0
      %v2189 = vmax.f32 %v1965, 0.0
      %v2190 = vmax.f32 %v2034, 0.0
      %v2191 = vmax.f32 %v2036, 0.0
      %v2192 = vmax.f32 %v2105, 0.0
      %v2193 = vmax.f32 %v2107, 0.0
      %v2194 = vmax.f32 %v2176, 0.0
      %v2195 = vmax.f32 %v2178, 0.0
      %v2196 = vmax.f32 %v1532, %v2180
      %v2197 = vmax.f32 %v1533, %v2181
      %v2198 = vmax.f32 %v1534, %v2182
      %v2199 = vmax.f32 %v1535, %v2183
      %v2200 = vmax.f32 %v1536, %v2184
      %v2201 = vmax.f32 %v1537, %v2185
      %v2202 = vmax.f32 %v1538, %v2186
      %v2203 = vmax.f32 %v1539, %v2187
      %v2204 = vmax.f32 %v1540, %v2188
      %v2205 = vmax.f32 %v1541, %v2189
      %v2206 = vmax.f32 %v1542, %v2190
      %v2207 = vmax.f32 %v1543, %v2191
      %v2208 = vmax.f32 %v1544, %v2192
      %v2209 = vmax.f32 %v1545, %v2193
      %v2210 = vmax.f32 %v1546, %v2194
      %v2211 = vmax.f32 %v1547, %v2195
      %v2212 = vld [vmem:[%s219 + $0x180] sm:$0xff]
      %v2213 = vld [vmem:[%s219 + $0x188] sm:$0xff]
      %v2214 = vld [vmem:[%s219 + $0x190] sm:$0xff]
      %v2215 = vld [vmem:[%s219 + $0x198] sm:$0xff]
      %v2216 = vld [vmem:[%s219 + $0x1a0] sm:$0xff]
      %v2217 = vld [vmem:[%s219 + $0x1a8] sm:$0xff]
      %v2218 = vld [vmem:[%s219 + $0x1b0] sm:$0xff]
      %v2219 = vld [vmem:[%s219 + $0x1b8] sm:$0xff]
      %v2220 = vld [vmem:[%s219 + $0x1c0] sm:$0xff]
      %v2221 = vld [vmem:[%s219 + $0x1c8] sm:$0xff]
      %v2222 = vld [vmem:[%s219 + $0x1d0] sm:$0xff]
      %v2223 = vld [vmem:[%s219 + $0x1d8] sm:$0xff]
      %v2224 = vld [vmem:[%s219 + $0x1e0] sm:$0xff]
      %v2225 = vld [vmem:[%s219 + $0x1e8] sm:$0xff]
      %v2226 = vld [vmem:[%s219 + $0x1f0] sm:$0xff]
      %v2227 = vld [vmem:[%s219 + $0x1f8] sm:$0xff]
      %v2228 = vld [vmem:[%s219 + $0x380] sm:$0xff]
      %v2229 = vld [vmem:[%s219 + $0x388] sm:$0xff]
      %v2230 = vld [vmem:[%s219 + $0x390] sm:$0xff]
      %v2231 = vld [vmem:[%s219 + $0x398] sm:$0xff]
      %v2232 = vld [vmem:[%s219 + $0x3a0] sm:$0xff]
      %v2233 = vld [vmem:[%s219 + $0x3a8] sm:$0xff]
      %v2234 = vld [vmem:[%s219 + $0x3b0] sm:$0xff]
      %v2235 = vld [vmem:[%s219 + $0x3b8] sm:$0xff]
      %v2236 = vld [vmem:[%s219 + $0x3c0] sm:$0xff]
      %v2237 = vld [vmem:[%s219 + $0x3c8] sm:$0xff]
      %v2238 = vld [vmem:[%s219 + $0x3d0] sm:$0xff]
      %v2239 = vld [vmem:[%s219 + $0x3d8] sm:$0xff]
      %v2240 = vld [vmem:[%s219 + $0x3e0] sm:$0xff]
      %v2241 = vld [vmem:[%s219 + $0x3e8] sm:$0xff]
      %v2242 = vld [vmem:[%s219 + $0x3f0] sm:$0xff]
      %v2243 = vld [vmem:[%s219 + $0x3f8] sm:$0xff]
      %v2244 = vld [vmem:[%s219 + $0x580] sm:$0xff]
      %v2245 = vld [vmem:[%s219 + $0x588] sm:$0xff]
      %v2246 = vld [vmem:[%s219 + $0x590] sm:$0xff]
      %v2247 = vld [vmem:[%s219 + $0x598] sm:$0xff]
      %v2248 = vld [vmem:[%s219 + $0x5a0] sm:$0xff]
      %v2249 = vld [vmem:[%s219 + $0x5a8] sm:$0xff]
      %v2250 = vld [vmem:[%s219 + $0x5b0] sm:$0xff]
      %v2251 = vld [vmem:[%s219 + $0x5b8] sm:$0xff]
      %v2252 = vld [vmem:[%s219 + $0x5c0] sm:$0xff]
      %v2253 = vld [vmem:[%s219 + $0x5c8] sm:$0xff]
      %v2254 = vld [vmem:[%s219 + $0x5d0] sm:$0xff]
      %v2255 = vld [vmem:[%s219 + $0x5d8] sm:$0xff]
      %v2256 = vld [vmem:[%s219 + $0x5e0] sm:$0xff]
      %v2257 = vld [vmem:[%s219 + $0x5e8] sm:$0xff]
      %v2258 = vld [vmem:[%s219 + $0x5f0] sm:$0xff]
      %v2259 = vld [vmem:[%s219 + $0x5f8] sm:$0xff]
      %v2260 = vld [vmem:[%s219 + $0x780] sm:$0xff]
      %v2261 = vld [vmem:[%s219 + $0x788] sm:$0xff]
      %v2262 = vld [vmem:[%s219 + $0x790] sm:$0xff]
      %v2263 = vld [vmem:[%s219 + $0x798] sm:$0xff]
      %v2264 = vld [vmem:[%s219 + $0x7a0] sm:$0xff]
      %v2265 = vld [vmem:[%s219 + $0x7a8] sm:$0xff]
      %v2266 = vld [vmem:[%s219 + $0x7b0] sm:$0xff]
      %v2267 = vld [vmem:[%s219 + $0x7b8] sm:$0xff]
      %v2268 = vld [vmem:[%s219 + $0x7c0] sm:$0xff]
      %v2269 = vld [vmem:[%s219 + $0x7c8] sm:$0xff]
      %v2270 = vld [vmem:[%s219 + $0x7d0] sm:$0xff]
      %v2271 = vld [vmem:[%s219 + $0x7d8] sm:$0xff]
      %v2272 = vld [vmem:[%s219 + $0x7e0] sm:$0xff]
      %v2273 = vld [vmem:[%s219 + $0x7e8] sm:$0xff]
      %v2274 = vld [vmem:[%s219 + $0x7f0] sm:$0xff]
      %v2275 = vld [vmem:[%s219 + $0x7f8] sm:$0xff]
      %2276 = vmatprep.subr.mxu0 %v2213
      %2277 = vmatpush1.msra.mxu0 %v2212
      %2278 = vmatprep.subr.mxu0 %v2229
      %2279 = vmatpush1.msra.mxu0 %v2228
      %2280 = vmatprep.subr.mxu0 %v2245
      %2281 = vmatpush1.msra.mxu0 %v2244
      %2282 = vmatprep.subr.mxu0 %v2261
      %2283 = vmatpush1.msra.mxu0 %v2260
      %2284 = vmatprep.subr.mxu0 0.0
      %2285 = vmatpush1.msra.mxu0 0.0
      %2286 = vmatprep.subr.mxu0 0.0
      %2287 = vmatpush1.msra.mxu0 0.0
      %2288 = vmatprep.subr.mxu0 0.0
      %2289 = vmatpush1.msra.mxu0 0.0
      %2290 = vmatprep.subr.mxu0 0.0
      %2291 = vmatpush1.msra.mxu0 0.0
      %2292 = vmatprep.subr.mxu0 0.0
      %2293 = vmatpush1.msra.mxu0 0.0
      %2294 = vmatprep.subr.mxu0 0.0
      %2295 = vmatpush1.msra.mxu0 0.0
      %2296 = vmatprep.subr.mxu0 0.0
      %2297 = vmatpush1.msra.mxu0 0.0
      %2298 = vmatprep.subr.mxu0 0.0
      %2299 = vmatpush1.msra.mxu0 0.0
      %2300 = vmatprep.subr.mxu0 0.0
      %2301 = vmatpush1.msra.mxu0 0.0
      %2302 = vmatprep.subr.mxu0 0.0
      %2303 = vmatpush1.msra.mxu0 0.0
      %2304 = vmatprep.subr.mxu0 0.0
      %2305 = vmatpush1.msra.mxu0 0.0
      %2306 = vmatprep.subr.mxu0 0.0
      %2307 = vmatpush1.msra.mxu0 0.0
      %2308 = vmatprep.subr.mxu0 0.0
      %2309 = vmatpush1.msra.mxu0 0.0
      %2310 = vmatprep.subr.mxu0 0.0
      %2311 = vmatpush1.msra.mxu0 0.0
      %2312 = vmatprep.subr.mxu0 0.0
      %2313 = vmatpush1.msra.mxu0 0.0
      %2314 = vmatprep.subr.mxu0 0.0
      %2315 = vmatpush1.msra.mxu0 0.0
      %2316 = vmatprep.subr.mxu0 0.0
      %2317 = vmatpush1.msra.mxu0 0.0
      %2318 = vmatprep.subr.mxu0 0.0
      %2319 = vmatpush1.msra.mxu0 0.0
      %2320 = vmatprep.subr.mxu0 0.0
      %2321 = vmatpush1.msra.mxu0 0.0
      %2322 = vmatprep.subr.mxu0 0.0
      %2323 = vmatpush1.msra.mxu0 0.0
      %2324 = vmatprep.subr.mxu0 0.0
      %2325 = vmatpush1.msra.mxu0 0.0
      %2326 = vmatprep.subr.mxu0 0.0
      %2327 = vmatpush1.msra.mxu0 0.0
      %2328 = vmatprep.subr.mxu0 0.0
      %2329 = vmatpush1.msra.mxu0 0.0
      %2330 = vmatprep.subr.mxu0 0.0
      %2331 = vmatpush1.msra.mxu0 0.0
      %2332 = vmatprep.subr.mxu0 0.0
      %2333 = vmatpush1.msra.mxu0 0.0
      %2334 = vmatprep.subr.mxu0 0.0
      %2335 = vmatpush1.msra.mxu0 0.0
      %2336 = vmatprep.subr.mxu0 0.0
      %2337 = vmatpush1.msra.mxu0 0.0
      %2338 = vmatprep.subr.mxu0 0.0
      %2339 = vmatpush1.msra.mxu0 0.0
      %2340 = vmatprep.mubr.f32.mxu0 0.0
      %2341 = vmatmul.mubr.f32.gmra.mrb[0].mxu0 %v298
      %v2342 = vpop.f32.mrb[0].mxu0
      %v2343 = vadd.f32 %v294, %v2342
      %v2344 = vpop.f32.mrb[0].mxu0
      %v2345 = vadd.f32 %v294, %v2344
      %2346 = vdwg.mxu0
      %2347 = vmatprep.subr.mxu0 %v2215
      %2348 = vmatpush1.msra.mxu0 %v2214
      %2349 = vmatprep.subr.mxu0 %v2231
      %2350 = vmatpush1.msra.mxu0 %v2230
      %2351 = vmatprep.subr.mxu0 %v2247
      %2352 = vmatpush1.msra.mxu0 %v2246
      %2353 = vmatprep.subr.mxu0 %v2263
      %2354 = vmatpush1.msra.mxu0 %v2262
      %2355 = vmatprep.subr.mxu0 0.0
      %2356 = vmatpush1.msra.mxu0 0.0
      %2357 = vmatprep.subr.mxu0 0.0
      %2358 = vmatpush1.msra.mxu0 0.0
      %2359 = vmatprep.subr.mxu0 0.0
      %2360 = vmatpush1.msra.mxu0 0.0
      %2361 = vmatprep.subr.mxu0 0.0
      %2362 = vmatpush1.msra.mxu0 0.0
      %2363 = vmatprep.subr.mxu0 0.0
      %2364 = vmatpush1.msra.mxu0 0.0
      %2365 = vmatprep.subr.mxu0 0.0
      %2366 = vmatpush1.msra.mxu0 0.0
      %2367 = vmatprep.subr.mxu0 0.0
      %2368 = vmatpush1.msra.mxu0 0.0
      %2369 = vmatprep.subr.mxu0 0.0
      %2370 = vmatpush1.msra.mxu0 0.0
      %2371 = vmatprep.subr.mxu0 0.0
      %2372 = vmatpush1.msra.mxu0 0.0
      %2373 = vmatprep.subr.mxu0 0.0
      %2374 = vmatpush1.msra.mxu0 0.0
      %2375 = vmatprep.subr.mxu0 0.0
      %2376 = vmatpush1.msra.mxu0 0.0
      %2377 = vmatprep.subr.mxu0 0.0
      %2378 = vmatpush1.msra.mxu0 0.0
      %2379 = vmatprep.subr.mxu0 0.0
      %2380 = vmatpush1.msra.mxu0 0.0
      %2381 = vmatprep.subr.mxu0 0.0
      %2382 = vmatpush1.msra.mxu0 0.0
      %2383 = vmatprep.subr.mxu0 0.0
      %2384 = vmatpush1.msra.mxu0 0.0
      %2385 = vmatprep.subr.mxu0 0.0
      %2386 = vmatpush1.msra.mxu0 0.0
      %2387 = vmatprep.subr.mxu0 0.0
      %2388 = vmatpush1.msra.mxu0 0.0
      %2389 = vmatprep.subr.mxu0 0.0
      %2390 = vmatpush1.msra.mxu0 0.0
      %2391 = vmatprep.subr.mxu0 0.0
      %2392 = vmatpush1.msra.mxu0 0.0
      %2393 = vmatprep.subr.mxu0 0.0
      %2394 = vmatpush1.msra.mxu0 0.0
      %2395 = vmatprep.subr.mxu0 0.0
      %2396 = vmatpush1.msra.mxu0 0.0
      %2397 = vmatprep.subr.mxu0 0.0
      %2398 = vmatpush1.msra.mxu0 0.0
      %2399 = vmatprep.subr.mxu0 0.0
      %2400 = vmatpush1.msra.mxu0 0.0
      %2401 = vmatprep.subr.mxu0 0.0
      %2402 = vmatpush1.msra.mxu0 0.0
      %2403 = vmatprep.subr.mxu0 0.0
      %2404 = vmatpush1.msra.mxu0 0.0
      %2405 = vmatprep.subr.mxu0 0.0
      %2406 = vmatpush1.msra.mxu0 0.0
      %2407 = vmatprep.subr.mxu0 0.0
      %2408 = vmatpush1.msra.mxu0 0.0
      %2409 = vmatprep.subr.mxu0 0.0
      %2410 = vmatpush1.msra.mxu0 0.0
      %2411 = vmatprep.mubr.f32.mxu0 0.0
      %2412 = vmatmul.mubr.f32.gmra.mrb[0].mxu0 %v298
      %v2413 = vpop.f32.mrb[0].mxu0
      %v2414 = vadd.f32 %v294, %v2413
      %v2415 = vpop.f32.mrb[0].mxu0
      %v2416 = vadd.f32 %v294, %v2415
      %2417 = vdwg.mxu0
      %2418 = vmatprep.subr.mxu0 %v2217
      %2419 = vmatpush1.msra.mxu0 %v2216
      %2420 = vmatprep.subr.mxu0 %v2233
      %2421 = vmatpush1.msra.mxu0 %v2232
      %2422 = vmatprep.subr.mxu0 %v2249
      %2423 = vmatpush1.msra.mxu0 %v2248
      %2424 = vmatprep.subr.mxu0 %v2265
      %2425 = vmatpush1.msra.mxu0 %v2264
      %2426 = vmatprep.subr.mxu0 0.0
      %2427 = vmatpush1.msra.mxu0 0.0
      %2428 = vmatprep.subr.mxu0 0.0
      %2429 = vmatpush1.msra.mxu0 0.0
      %2430 = vmatprep.subr.mxu0 0.0
      %2431 = vmatpush1.msra.mxu0 0.0
      %2432 = vmatprep.subr.mxu0 0.0
      %2433 = vmatpush1.msra.mxu0 0.0
      %2434 = vmatprep.subr.mxu0 0.0
      %2435 = vmatpush1.msra.mxu0 0.0
      %2436 = vmatprep.subr.mxu0 0.0
      %2437 = vmatpush1.msra.mxu0 0.0
      %2438 = vmatprep.subr.mxu0 0.0
      %2439 = vmatpush1.msra.mxu0 0.0
      %2440 = vmatprep.subr.mxu0 0.0
      %2441 = vmatpush1.msra.mxu0 0.0
      %2442 = vmatprep.subr.mxu0 0.0
      %2443 = vmatpush1.msra.mxu0 0.0
      %2444 = vmatprep.subr.mxu0 0.0
      %2445 = vmatpush1.msra.mxu0 0.0
      %2446 = vmatprep.subr.mxu0 0.0
      %2447 = vmatpush1.msra.mxu0 0.0
      %2448 = vmatprep.subr.mxu0 0.0
      %2449 = vmatpush1.msra.mxu0 0.0
      %2450 = vmatprep.subr.mxu0 0.0
      %2451 = vmatpush1.msra.mxu0 0.0
      %2452 = vmatprep.subr.mxu0 0.0
      %2453 = vmatpush1.msra.mxu0 0.0
      %2454 = vmatprep.subr.mxu0 0.0
      %2455 = vmatpush1.msra.mxu0 0.0
      %2456 = vmatprep.subr.mxu0 0.0
      %2457 = vmatpush1.msra.mxu0 0.0
      %2458 = vmatprep.subr.mxu0 0.0
      %2459 = vmatpush1.msra.mxu0 0.0
      %2460 = vmatprep.subr.mxu0 0.0
      %2461 = vmatpush1.msra.mxu0 0.0
      %2462 = vmatprep.subr.mxu0 0.0
      %2463 = vmatpush1.msra.mxu0 0.0
      %2464 = vmatprep.subr.mxu0 0.0
      %2465 = vmatpush1.msra.mxu0 0.0
      %2466 = vmatprep.subr.mxu0 0.0
      %2467 = vmatpush1.msra.mxu0 0.0
      %2468 = vmatprep.subr.mxu0 0.0
      %2469 = vmatpush1.msra.mxu0 0.0
      %2470 = vmatprep.subr.mxu0 0.0
      %2471 = vmatpush1.msra.mxu0 0.0
      %2472 = vmatprep.subr.mxu0 0.0
      %2473 = vmatpush1.msra.mxu0 0.0
      %2474 = vmatprep.subr.mxu0 0.0
      %2475 = vmatpush1.msra.mxu0 0.0
      %2476 = vmatprep.subr.mxu0 0.0
      %2477 = vmatpush1.msra.mxu0 0.0
      %2478 = vmatprep.subr.mxu0 0.0
      %2479 = vmatpush1.msra.mxu0 0.0
      %2480 = vmatprep.subr.mxu0 0.0
      %2481 = vmatpush1.msra.mxu0 0.0
      %2482 = vmatprep.mubr.f32.mxu0 0.0
      %2483 = vmatmul.mubr.f32.gmra.mrb[0].mxu0 %v298
      %v2484 = vpop.f32.mrb[0].mxu0
      %v2485 = vadd.f32 %v294, %v2484
      %v2486 = vpop.f32.mrb[0].mxu0
      %v2487 = vadd.f32 %v294, %v2486
      %2488 = vdwg.mxu0
      %2489 = vmatprep.subr.mxu0 %v2219
      %2490 = vmatpush1.msra.mxu0 %v2218
      %2491 = vmatprep.subr.mxu0 %v2235
      %2492 = vmatpush1.msra.mxu0 %v2234
      %2493 = vmatprep.subr.mxu0 %v2251
      %2494 = vmatpush1.msra.mxu0 %v2250
      %2495 = vmatprep.subr.mxu0 %v2267
      %2496 = vmatpush1.msra.mxu0 %v2266
      %2497 = vmatprep.subr.mxu0 0.0
      %2498 = vmatpush1.msra.mxu0 0.0
      %2499 = vmatprep.subr.mxu0 0.0
      %2500 = vmatpush1.msra.mxu0 0.0
      %2501 = vmatprep.subr.mxu0 0.0
      %2502 = vmatpush1.msra.mxu0 0.0
      %2503 = vmatprep.subr.mxu0 0.0
      %2504 = vmatpush1.msra.mxu0 0.0
      %2505 = vmatprep.subr.mxu0 0.0
      %2506 = vmatpush1.msra.mxu0 0.0
      %2507 = vmatprep.subr.mxu0 0.0
      %2508 = vmatpush1.msra.mxu0 0.0
      %2509 = vmatprep.subr.mxu0 0.0
      %2510 = vmatpush1.msra.mxu0 0.0
      %2511 = vmatprep.subr.mxu0 0.0
      %2512 = vmatpush1.msra.mxu0 0.0
      %2513 = vmatprep.subr.mxu0 0.0
      %2514 = vmatpush1.msra.mxu0 0.0
      %2515 = vmatprep.subr.mxu0 0.0
      %2516 = vmatpush1.msra.mxu0 0.0
      %2517 = vmatprep.subr.mxu0 0.0
      %2518 = vmatpush1.msra.mxu0 0.0
      %2519 = vmatprep.subr.mxu0 0.0
      %2520 = vmatpush1.msra.mxu0 0.0
      %2521 = vmatprep.subr.mxu0 0.0
      %2522 = vmatpush1.msra.mxu0 0.0
      %2523 = vmatprep.subr.mxu0 0.0
      %2524 = vmatpush1.msra.mxu0 0.0
      %2525 = vmatprep.subr.mxu0 0.0
      %2526 = vmatpush1.msra.mxu0 0.0
      %2527 = vmatprep.subr.mxu0 0.0
      %2528 = vmatpush1.msra.mxu0 0.0
      %2529 = vmatprep.subr.mxu0 0.0
      %2530 = vmatpush1.msra.mxu0 0.0
      %2531 = vmatprep.subr.mxu0 0.0
      %2532 = vmatpush1.msra.mxu0 0.0
      %2533 = vmatprep.subr.mxu0 0.0
      %2534 = vmatpush1.msra.mxu0 0.0
      %2535 = vmatprep.subr.mxu0 0.0
      %2536 = vmatpush1.msra.mxu0 0.0
      %2537 = vmatprep.subr.mxu0 0.0
      %2538 = vmatpush1.msra.mxu0 0.0
      %2539 = vmatprep.subr.mxu0 0.0
      %2540 = vmatpush1.msra.mxu0 0.0
      %2541 = vmatprep.subr.mxu0 0.0
      %2542 = vmatpush1.msra.mxu0 0.0
      %2543 = vmatprep.subr.mxu0 0.0
      %2544 = vmatpush1.msra.mxu0 0.0
      %2545 = vmatprep.subr.mxu0 0.0
      %2546 = vmatpush1.msra.mxu0 0.0
      %2547 = vmatprep.subr.mxu0 0.0
      %2548 = vmatpush1.msra.mxu0 0.0
      %2549 = vmatprep.subr.mxu0 0.0
      %2550 = vmatpush1.msra.mxu0 0.0
      %2551 = vmatprep.subr.mxu0 0.0
      %2552 = vmatpush1.msra.mxu0 0.0
      %2553 = vmatprep.mubr.f32.mxu0 0.0
      %2554 = vmatmul.mubr.f32.gmra.mrb[0].mxu0 %v298
      %v2555 = vpop.f32.mrb[0].mxu0
      %v2556 = vadd.f32 %v294, %v2555
      %v2557 = vpop.f32.mrb[0].mxu0
      %v2558 = vadd.f32 %v294, %v2557
      %2559 = vdwg.mxu0
      %2560 = vmatprep.subr.mxu0 %v2221
      %2561 = vmatpush1.msra.mxu0 %v2220
      %2562 = vmatprep.subr.mxu0 %v2237
      %2563 = vmatpush1.msra.mxu0 %v2236
      %2564 = vmatprep.subr.mxu0 %v2253
      %2565 = vmatpush1.msra.mxu0 %v2252
      %2566 = vmatprep.subr.mxu0 %v2269
      %2567 = vmatpush1.msra.mxu0 %v2268
      %2568 = vmatprep.subr.mxu0 0.0
      %2569 = vmatpush1.msra.mxu0 0.0
      %2570 = vmatprep.subr.mxu0 0.0
      %2571 = vmatpush1.msra.mxu0 0.0
      %2572 = vmatprep.subr.mxu0 0.0
      %2573 = vmatpush1.msra.mxu0 0.0
      %2574 = vmatprep.subr.mxu0 0.0
      %2575 = vmatpush1.msra.mxu0 0.0
      %2576 = vmatprep.subr.mxu0 0.0
      %2577 = vmatpush1.msra.mxu0 0.0
      %2578 = vmatprep.subr.mxu0 0.0
      %2579 = vmatpush1.msra.mxu0 0.0
      %2580 = vmatprep.subr.mxu0 0.0
      %2581 = vmatpush1.msra.mxu0 0.0
      %2582 = vmatprep.subr.mxu0 0.0
      %2583 = vmatpush1.msra.mxu0 0.0
      %2584 = vmatprep.subr.mxu0 0.0
      %2585 = vmatpush1.msra.mxu0 0.0
      %2586 = vmatprep.subr.mxu0 0.0
      %2587 = vmatpush1.msra.mxu0 0.0
      %2588 = vmatprep.subr.mxu0 0.0
      %2589 = vmatpush1.msra.mxu0 0.0
      %2590 = vmatprep.subr.mxu0 0.0
      %2591 = vmatpush1.msra.mxu0 0.0
      %2592 = vmatprep.subr.mxu0 0.0
      %2593 = vmatpush1.msra.mxu0 0.0
      %2594 = vmatprep.subr.mxu0 0.0
      %2595 = vmatpush1.msra.mxu0 0.0
      %2596 = vmatprep.subr.mxu0 0.0
      %2597 = vmatpush1.msra.mxu0 0.0
      %2598 = vmatprep.subr.mxu0 0.0
      %2599 = vmatpush1.msra.mxu0 0.0
      %2600 = vmatprep.subr.mxu0 0.0
      %2601 = vmatpush1.msra.mxu0 0.0
      %2602 = vmatprep.subr.mxu0 0.0
      %2603 = vmatpush1.msra.mxu0 0.0
      %2604 = vmatprep.subr.mxu0 0.0
      %2605 = vmatpush1.msra.mxu0 0.0
      %2606 = vmatprep.subr.mxu0 0.0
      %2607 = vmatpush1.msra.mxu0 0.0
      %2608 = vmatprep.subr.mxu0 0.0
      %2609 = vmatpush1.msra.mxu0 0.0
      %2610 = vmatprep.subr.mxu0 0.0
      %2611 = vmatpush1.msra.mxu0 0.0
      %2612 = vmatprep.subr.mxu0 0.0
      %2613 = vmatpush1.msra.mxu0 0.0
      %2614 = vmatprep.subr.mxu0 0.0
      %2615 = vmatpush1.msra.mxu0 0.0
      %2616 = vmatprep.subr.mxu0 0.0
      %2617 = vmatpush1.msra.mxu0 0.0
      %2618 = vmatprep.subr.mxu0 0.0
      %2619 = vmatpush1.msra.mxu0 0.0
      %2620 = vmatprep.subr.mxu0 0.0
      %2621 = vmatpush1.msra.mxu0 0.0
      %2622 = vmatprep.subr.mxu0 0.0
      %2623 = vmatpush1.msra.mxu0 0.0
      %2624 = vmatprep.mubr.f32.mxu0 0.0
      %2625 = vmatmul.mubr.f32.gmra.mrb[0].mxu0 %v298
      %v2626 = vpop.f32.mrb[0].mxu0
      %v2627 = vadd.f32 %v294, %v2626
      %v2628 = vpop.f32.mrb[0].mxu0
      %v2629 = vadd.f32 %v294, %v2628
      %2630 = vdwg.mxu0
      %2631 = vmatprep.subr.mxu0 %v2223
      %2632 = vmatpush1.msra.mxu0 %v2222
      %2633 = vmatprep.subr.mxu0 %v2239
      %2634 = vmatpush1.msra.mxu0 %v2238
      %2635 = vmatprep.subr.mxu0 %v2255
      %2636 = vmatpush1.msra.mxu0 %v2254
      %2637 = vmatprep.subr.mxu0 %v2271
      %2638 = vmatpush1.msra.mxu0 %v2270
      %2639 = vmatprep.subr.mxu0 0.0
      %2640 = vmatpush1.msra.mxu0 0.0
      %2641 = vmatprep.subr.mxu0 0.0
      %2642 = vmatpush1.msra.mxu0 0.0
      %2643 = vmatprep.subr.mxu0 0.0
      %2644 = vmatpush1.msra.mxu0 0.0
      %2645 = vmatprep.subr.mxu0 0.0
      %2646 = vmatpush1.msra.mxu0 0.0
      %2647 = vmatprep.subr.mxu0 0.0
      %2648 = vmatpush1.msra.mxu0 0.0
      %2649 = vmatprep.subr.mxu0 0.0
      %2650 = vmatpush1.msra.mxu0 0.0
      %2651 = vmatprep.subr.mxu0 0.0
      %2652 = vmatpush1.msra.mxu0 0.0
      %2653 = vmatprep.subr.mxu0 0.0
      %2654 = vmatpush1.msra.mxu0 0.0
      %2655 = vmatprep.subr.mxu0 0.0
      %2656 = vmatpush1.msra.mxu0 0.0
      %2657 = vmatprep.subr.mxu0 0.0
      %2658 = vmatpush1.msra.mxu0 0.0
      %2659 = vmatprep.subr.mxu0 0.0
      %2660 = vmatpush1.msra.mxu0 0.0
      %2661 = vmatprep.subr.mxu0 0.0
      %2662 = vmatpush1.msra.mxu0 0.0
      %2663 = vmatprep.subr.mxu0 0.0
      %2664 = vmatpush1.msra.mxu0 0.0
      %2665 = vmatprep.subr.mxu0 0.0
      %2666 = vmatpush1.msra.mxu0 0.0
      %2667 = vmatprep.subr.mxu0 0.0
      %2668 = vmatpush1.msra.mxu0 0.0
      %2669 = vmatprep.subr.mxu0 0.0
      %2670 = vmatpush1.msra.mxu0 0.0
      %2671 = vmatprep.subr.mxu0 0.0
      %2672 = vmatpush1.msra.mxu0 0.0
      %2673 = vmatprep.subr.mxu0 0.0
      %2674 = vmatpush1.msra.mxu0 0.0
      %2675 = vmatprep.subr.mxu0 0.0
      %2676 = vmatpush1.msra.mxu0 0.0
      %2677 = vmatprep.subr.mxu0 0.0
      %2678 = vmatpush1.msra.mxu0 0.0
      %2679 = vmatprep.subr.mxu0 0.0
      %2680 = vmatpush1.msra.mxu0 0.0
      %2681 = vmatprep.subr.mxu0 0.0
      %2682 = vmatpush1.msra.mxu0 0.0
      %2683 = vmatprep.subr.mxu0 0.0
      %2684 = vmatpush1.msra.mxu0 0.0
      %2685 = vmatprep.subr.mxu0 0.0
      %2686 = vmatpush1.msra.mxu0 0.0
      %2687 = vmatprep.subr.mxu0 0.0
      %2688 = vmatpush1.msra.mxu0 0.0
      %2689 = vmatprep.subr.mxu0 0.0
      %2690 = vmatpush1.msra.mxu0 0.0
      %2691 = vmatprep.subr.mxu0 0.0
      %2692 = vmatpush1.msra.mxu0 0.0
      %2693 = vmatprep.subr.mxu0 0.0
      %2694 = vmatpush1.msra.mxu0 0.0
      %2695 = vmatprep.mubr.f32.mxu0 0.0
      %2696 = vmatmul.mubr.f32.gmra.mrb[0].mxu0 %v298
      %v2697 = vpop.f32.mrb[0].mxu0
      %v2698 = vadd.f32 %v294, %v2697
      %v2699 = vpop.f32.mrb[0].mxu0
      %v2700 = vadd.f32 %v294, %v2699
      %2701 = vdwg.mxu0
      %2702 = vmatprep.subr.mxu0 %v2225
      %2703 = vmatpush1.msra.mxu0 %v2224
      %2704 = vmatprep.subr.mxu0 %v2241
      %2705 = vmatpush1.msra.mxu0 %v2240
      %2706 = vmatprep.subr.mxu0 %v2257
      %2707 = vmatpush1.msra.mxu0 %v2256
      %2708 = vmatprep.subr.mxu0 %v2273
      %2709 = vmatpush1.msra.mxu0 %v2272
      %2710 = vmatprep.subr.mxu0 0.0
      %2711 = vmatpush1.msra.mxu0 0.0
      %2712 = vmatprep.subr.mxu0 0.0
      %2713 = vmatpush1.msra.mxu0 0.0
      %2714 = vmatprep.subr.mxu0 0.0
      %2715 = vmatpush1.msra.mxu0 0.0
      %2716 = vmatprep.subr.mxu0 0.0
      %2717 = vmatpush1.msra.mxu0 0.0
      %2718 = vmatprep.subr.mxu0 0.0
      %2719 = vmatpush1.msra.mxu0 0.0
      %2720 = vmatprep.subr.mxu0 0.0
      %2721 = vmatpush1.msra.mxu0 0.0
      %2722 = vmatprep.subr.mxu0 0.0
      %2723 = vmatpush1.msra.mxu0 0.0
      %2724 = vmatprep.subr.mxu0 0.0
      %2725 = vmatpush1.msra.mxu0 0.0
      %2726 = vmatprep.subr.mxu0 0.0
      %2727 = vmatpush1.msra.mxu0 0.0
      %2728 = vmatprep.subr.mxu0 0.0
      %2729 = vmatpush1.msra.mxu0 0.0
      %2730 = vmatprep.subr.mxu0 0.0
      %2731 = vmatpush1.msra.mxu0 0.0
      %2732 = vmatprep.subr.mxu0 0.0
      %2733 = vmatpush1.msra.mxu0 0.0
      %2734 = vmatprep.subr.mxu0 0.0
      %2735 = vmatpush1.msra.mxu0 0.0
      %2736 = vmatprep.subr.mxu0 0.0
      %2737 = vmatpush1.msra.mxu0 0.0
      %2738 = vmatprep.subr.mxu0 0.0
      %2739 = vmatpush1.msra.mxu0 0.0
      %2740 = vmatprep.subr.mxu0 0.0
      %2741 = vmatpush1.msra.mxu0 0.0
      %2742 = vmatprep.subr.mxu0 0.0
      %2743 = vmatpush1.msra.mxu0 0.0
      %2744 = vmatprep.subr.mxu0 0.0
      %2745 = vmatpush1.msra.mxu0 0.0
      %2746 = vmatprep.subr.mxu0 0.0
      %2747 = vmatpush1.msra.mxu0 0.0
      %2748 = vmatprep.subr.mxu0 0.0
      %2749 = vmatpush1.msra.mxu0 0.0
      %2750 = vmatprep.subr.mxu0 0.0
      %2751 = vmatpush1.msra.mxu0 0.0
      %2752 = vmatprep.subr.mxu0 0.0
      %2753 = vmatpush1.msra.mxu0 0.0
      %2754 = vmatprep.subr.mxu0 0.0
      %2755 = vmatpush1.msra.mxu0 0.0
      %2756 = vmatprep.subr.mxu0 0.0
      %2757 = vmatpush1.msra.mxu0 0.0
      %2758 = vmatprep.subr.mxu0 0.0
      %2759 = vmatpush1.msra.mxu0 0.0
      %2760 = vmatprep.subr.mxu0 0.0
      %2761 = vmatpush1.msra.mxu0 0.0
      %2762 = vmatprep.subr.mxu0 0.0
      %2763 = vmatpush1.msra.mxu0 0.0
      %2764 = vmatprep.subr.mxu0 0.0
      %2765 = vmatpush1.msra.mxu0 0.0
      %2766 = vmatprep.mubr.f32.mxu0 0.0
      %2767 = vmatmul.mubr.f32.gmra.mrb[0].mxu0 %v298
      %v2768 = vpop.f32.mrb[0].mxu0
      %v2769 = vadd.f32 %v294, %v2768
      %v2770 = vpop.f32.mrb[0].mxu0
      %v2771 = vadd.f32 %v294, %v2770
      %2772 = vdwg.mxu0
      %2773 = vmatprep.subr.mxu0 %v2227
      %2774 = vmatpush1.msra.mxu0 %v2226
      %2775 = vmatprep.subr.mxu0 %v2243
      %2776 = vmatpush1.msra.mxu0 %v2242
      %2777 = vmatprep.subr.mxu0 %v2259
      %2778 = vmatpush1.msra.mxu0 %v2258
      %2779 = vmatprep.subr.mxu0 %v2275
      %2780 = vmatpush1.msra.mxu0 %v2274
      %2781 = vmatprep.subr.mxu0 0.0
      %2782 = vmatpush1.msra.mxu0 0.0
      %2783 = vmatprep.subr.mxu0 0.0
      %2784 = vmatpush1.msra.mxu0 0.0
      %2785 = vmatprep.subr.mxu0 0.0
      %2786 = vmatpush1.msra.mxu0 0.0
      %2787 = vmatprep.subr.mxu0 0.0
      %2788 = vmatpush1.msra.mxu0 0.0
      %2789 = vmatprep.subr.mxu0 0.0
      %2790 = vmatpush1.msra.mxu0 0.0
      %2791 = vmatprep.subr.mxu0 0.0
      %2792 = vmatpush1.msra.mxu0 0.0
      %2793 = vmatprep.subr.mxu0 0.0
      %2794 = vmatpush1.msra.mxu0 0.0
      %2795 = vmatprep.subr.mxu0 0.0
      %2796 = vmatpush1.msra.mxu0 0.0
      %2797 = vmatprep.subr.mxu0 0.0
      %2798 = vmatpush1.msra.mxu0 0.0
      %2799 = vmatprep.subr.mxu0 0.0
      %2800 = vmatpush1.msra.mxu0 0.0
      %2801 = vmatprep.subr.mxu0 0.0
      %2802 = vmatpush1.msra.mxu0 0.0
      %2803 = vmatprep.subr.mxu0 0.0
      %2804 = vmatpush1.msra.mxu0 0.0
      %2805 = vmatprep.subr.mxu0 0.0
      %2806 = vmatpush1.msra.mxu0 0.0
      %2807 = vmatprep.subr.mxu0 0.0
      %2808 = vmatpush1.msra.mxu0 0.0
      %2809 = vmatprep.subr.mxu0 0.0
      %2810 = vmatpush1.msra.mxu0 0.0
      %2811 = vmatprep.subr.mxu0 0.0
      %2812 = vmatpush1.msra.mxu0 0.0
      %2813 = vmatprep.subr.mxu0 0.0
      %2814 = vmatpush1.msra.mxu0 0.0
      %2815 = vmatprep.subr.mxu0 0.0
      %2816 = vmatpush1.msra.mxu0 0.0
      %2817 = vmatprep.subr.mxu0 0.0
      %2818 = vmatpush1.msra.mxu0 0.0
      %2819 = vmatprep.subr.mxu0 0.0
      %2820 = vmatpush1.msra.mxu0 0.0
      %2821 = vmatprep.subr.mxu0 0.0
      %2822 = vmatpush1.msra.mxu0 0.0
      %2823 = vmatprep.subr.mxu0 0.0
      %2824 = vmatpush1.msra.mxu0 0.0
      %2825 = vmatprep.subr.mxu0 0.0
      %2826 = vmatpush1.msra.mxu0 0.0
      %2827 = vmatprep.subr.mxu0 0.0
      %2828 = vmatpush1.msra.mxu0 0.0
      %2829 = vmatprep.subr.mxu0 0.0
      %2830 = vmatpush1.msra.mxu0 0.0
      %2831 = vmatprep.subr.mxu0 0.0
      %2832 = vmatpush1.msra.mxu0 0.0
      %2833 = vmatprep.subr.mxu0 0.0
      %2834 = vmatpush1.msra.mxu0 0.0
      %2835 = vmatprep.subr.mxu0 0.0
      %2836 = vmatpush1.msra.mxu0 0.0
      %2837 = vmatprep.mubr.f32.mxu0 0.0
      %2838 = vmatmul.mubr.f32.gmra.mrb[0].mxu0 %v298
      %v2839 = vpop.f32.mrb[0].mxu0
      %v2840 = vadd.f32 %v294, %v2839
      %v2841 = vpop.f32.mrb[0].mxu0
      %v2842 = vadd.f32 %v294, %v2841
      %2843 = vdwg.mxu0
      %v2844 = vmax.f32 %v2343, 0.0
      %v2845 = vmax.f32 %v2345, 0.0
      %v2846 = vmax.f32 %v2414, 0.0
      %v2847 = vmax.f32 %v2416, 0.0
      %v2848 = vmax.f32 %v2485, 0.0
      %v2849 = vmax.f32 %v2487, 0.0
      %v2850 = vmax.f32 %v2556, 0.0
      %v2851 = vmax.f32 %v2558, 0.0
      %v2852 = vmax.f32 %v2627, 0.0
      %v2853 = vmax.f32 %v2629, 0.0
      %v2854 = vmax.f32 %v2698, 0.0
      %v2855 = vmax.f32 %v2700, 0.0
      %v2856 = vmax.f32 %v2769, 0.0
      %v2857 = vmax.f32 %v2771, 0.0
      %v2858 = vmax.f32 %v2840, 0.0
      %v2859 = vmax.f32 %v2842, 0.0
      %v2860 = vmax.f32 %v2196, %v2844
      %v2861 = vmax.f32 %v2197, %v2845
      %v2862 = vmax.f32 %v2198, %v2846
      %v2863 = vmax.f32 %v2199, %v2847
      %v2864 = vmax.f32 %v2200, %v2848
      %v2865 = vmax.f32 %v2201, %v2849
      %v2866 = vmax.f32 %v2202, %v2850
      %v2867 = vmax.f32 %v2203, %v2851
      %v2868 = vmax.f32 %v2204, %v2852
      %v2869 = vmax.f32 %v2205, %v2853
      %v2870 = vmax.f32 %v2206, %v2854
      %v2871 = vmax.f32 %v2207, %v2855
      %v2872 = vmax.f32 %v2208, %v2856
      %v2873 = vmax.f32 %v2209, %v2857
      %v2874 = vmax.f32 %v2210, %v2858
      %v2875 = vmax.f32 %v2211, %v2859
      %2876 = vst [vmem:[#allocation2] sm:$0xff] %v2860
      %2877 = vst [vmem:[#allocation2 + $0x8] sm:$0xff] %v2861
      %2878 = vst [vmem:[#allocation2 + $0x10] sm:$0xff] %v2862
      %2879 = vst [vmem:[#allocation2 + $0x18] sm:$0xff] %v2863
      %2880 = vst [vmem:[#allocation2 + $0x20] sm:$0xff] %v2864
      %2881 = vst [vmem:[#allocation2 + $0x28] sm:$0xff] %v2865
      %2882 = vst [vmem:[#allocation2 + $0x30] sm:$0xff] %v2866
      %2883 = vst [vmem:[#allocation2 + $0x38] sm:$0xff] %v2867
      %2884 = vst [vmem:[#allocation2 + $0x40] sm:$0xff] %v2868
      %2885 = vst [vmem:[#allocation2 + $0x48] sm:$0xff] %v2869
      %2886 = vst [vmem:[#allocation2 + $0x50] sm:$0xff] %v2870
      %2887 = vst [vmem:[#allocation2 + $0x58] sm:$0xff] %v2871
      %2888 = vst [vmem:[#allocation2 + $0x60] sm:$0xff] %v2872
      %2889 = vst [vmem:[#allocation2 + $0x68] sm:$0xff] %v2873
      %2890 = vst [vmem:[#allocation2 + $0x70] sm:$0xff] %v2874
      %2891 = vst [vmem:[#allocation2 + $0x78] sm:$0xff] %v2875
      %2908 = vrot.lane.b32.xlu0 %v2860, 127
      %v2909 = vpop.permute.xlu0 %2908
      %2910 = vrot.lane.b32.xlu0 %v2861, 127
      %v2911 = vpop.permute.xlu0 %2910
      %2912 = vrot.lane.b32.xlu0 %v2862, 127
      %v2913 = vpop.permute.xlu0 %2912
      %2914 = vrot.lane.b32.xlu0 %v2863, 127
      %v2915 = vpop.permute.xlu0 %2914
      %2916 = vrot.lane.b32.xlu0 %v2864, 127
      %v2917 = vpop.permute.xlu0 %2916
      %2918 = vrot.lane.b32.xlu0 %v2865, 127
      %v2919 = vpop.permute.xlu0 %2918
      %2920 = vrot.lane.b32.xlu0 %v2866, 127
      %v2921 = vpop.permute.xlu0 %2920
      %2922 = vrot.lane.b32.xlu0 %v2867, 127
      %v2923 = vpop.permute.xlu0 %2922
      %2924 = vrot.lane.b32.xlu0 %v2868, 127
      %v2925 = vpop.permute.xlu0 %2924
      %2926 = vrot.lane.b32.xlu0 %v2869, 127
      %v2927 = vpop.permute.xlu0 %2926
      %2928 = vrot.lane.b32.xlu0 %v2870, 127
      %v2929 = vpop.permute.xlu0 %2928
      %2930 = vrot.lane.b32.xlu0 %v2871, 127
      %v2931 = vpop.permute.xlu0 %2930
      %2932 = vrot.lane.b32.xlu0 %v2872, 127
      %v2933 = vpop.permute.xlu0 %2932
      %2934 = vrot.lane.b32.xlu0 %v2873, 127
      %v2935 = vpop.permute.xlu0 %2934
      %2936 = vrot.lane.b32.xlu0 %v2874, 127
      %v2937 = vpop.permute.xlu0 %2936
      %2938 = vrot.lane.b32.xlu0 %v2875, 127
      %v2939 = vpop.permute.xlu0 %2938
      %vm2940 = vcmask 1039360
      %v2941 = vsel %vm2940, %v2909, %v2911
      %v2942 = vsel %vm2940, %v2911, %v2913
      %v2943 = vsel %vm2940, %v2913, %v2915
      %v2944 = vsel %vm2940, %v2915, %v2917
      %v2945 = vsel %vm2940, %v2917, %v2919
      %v2946 = vsel %vm2940, %v2919, %v2921
      %v2947 = vsel %vm2940, %v2921, %v2923
      %v2948 = vsel %vm2940, %v2923, %v2925
      %v2949 = vsel %vm2940, %v2925, %v2927
      %v2950 = vsel %vm2940, %v2927, %v2929
      %v2951 = vsel %vm2940, %v2929, %v2931
      %v2952 = vsel %vm2940, %v2931, %v2933
      %v2953 = vsel %vm2940, %v2933, %v2935
      %v2954 = vsel %vm2940, %v2935, %v2937
      %v2955 = vsel %vm2940, %v2937, %v2939
      %v2956 = vsel %vm2940, %v2939, %v2909
      %2973 = vst [vmem:[#allocation2 + $0x80] sm:$0xff] %v2941
      %2974 = vst [vmem:[#allocation2 + $0x88] sm:$0xff] %v2942
      %2975 = vst [vmem:[#allocation2 + $0x90] sm:$0xff] %v2943
      %2976 = vst [vmem:[#allocation2 + $0x98] sm:$0xff] %v2944
      %2977 = vst [vmem:[#allocation2 + $0xa0] sm:$0xff] %v2945
      %2978 = vst [vmem:[#allocation2 + $0xa8] sm:$0xff] %v2946
      %2979 = vst [vmem:[#allocation2 + $0xb0] sm:$0xff] %v2947
      %2980 = vst [vmem:[#allocation2 + $0xb8] sm:$0xff] %v2948
      %2981 = vst [vmem:[#allocation2 + $0xc0] sm:$0xff] %v2949
      %2982 = vst [vmem:[#allocation2 + $0xc8] sm:$0xff] %v2950
      %2983 = vst [vmem:[#allocation2 + $0xd0] sm:$0xff] %v2951
      %2984 = vst [vmem:[#allocation2 + $0xd8] sm:$0xff] %v2952
      %2985 = vst [vmem:[#allocation2 + $0xe0] sm:$0xff] %v2953
      %2986 = vst [vmem:[#allocation2 + $0xe8] sm:$0xff] %v2954
      %2987 = vst [vmem:[#allocation2 + $0xf0] sm:$0xff] %v2955
      %2988 = vst [vmem:[#allocation2 + $0xf8] sm:$0xff] %v2956
      %2989 = vrot.lane.b32.xlu0 %v2860, 126
      %v2990 = vpop.permute.xlu0 %2989
      %2991 = vrot.lane.b32.xlu0 %v2861, 126
      %v2992 = vpop.permute.xlu0 %2991
      %2993 = vrot.lane.b32.xlu0 %v2862, 126
      %v2994 = vpop.permute.xlu0 %2993
      %2995 = vrot.lane.b32.xlu0 %v2863, 126
      %v2996 = vpop.permute.xlu0 %2995
      %2997 = vrot.lane.b32.xlu0 %v2864, 126
      %v2998 = vpop.permute.xlu0 %2997
      %2999 = vrot.lane.b32.xlu0 %v2865, 126
      %v3000 = vpop.permute.xlu0 %2999
      %3001 = vrot.lane.b32.xlu0 %v2866, 126
      %v3002 = vpop.permute.xlu0 %3001
      %3003 = vrot.lane.b32.xlu0 %v2867, 126
      %v3004 = vpop.permute.xlu0 %3003
      %3005 = vrot.lane.b32.xlu0 %v2868, 126
      %v3006 = vpop.permute.xlu0 %3005
      %3007 = vrot.lane.b32.xlu0 %v2869, 126
      %v3008 = vpop.permute.xlu0 %3007
      %3009 = vrot.lane.b32.xlu0 %v2870, 126
      %v3010 = vpop.permute.xlu0 %3009
      %3011 = vrot.lane.b32.xlu0 %v2871, 126
      %v3012 = vpop.permute.xlu0 %3011
      %3013 = vrot.lane.b32.xlu0 %v2872, 126
      %v3014 = vpop.permute.xlu0 %3013
      %3015 = vrot.lane.b32.xlu0 %v2873, 126
      %v3016 = vpop.permute.xlu0 %3015
      %3017 = vrot.lane.b32.xlu0 %v2874, 126
      %v3018 = vpop.permute.xlu0 %3017
      %3019 = vrot.lane.b32.xlu0 %v2875, 126
      %v3020 = vpop.permute.xlu0 %3019
      %vm3021 = vcmask 1031168
      %v3022 = vsel %vm3021, %v2990, %v2992
      %v3023 = vsel %vm3021, %v2992, %v2994
      %v3024 = vsel %vm3021, %v2994, %v2996
      %v3025 = vsel %vm3021, %v2996, %v2998
      %v3026 = vsel %vm3021, %v2998, %v3000
      %v3027 = vsel %vm3021, %v3000, %v3002
      %v3028 = vsel %vm3021, %v3002, %v3004
      %v3029 = vsel %vm3021, %v3004, %v3006
      %v3030 = vsel %vm3021, %v3006, %v3008
      %v3031 = vsel %vm3021, %v3008, %v3010
      %v3032 = vsel %vm3021, %v3010, %v3012
      %v3033 = vsel %vm3021, %v3012, %v3014
      %v3034 = vsel %vm3021, %v3014, %v3016
      %v3035 = vsel %vm3021, %v3016, %v3018
      %v3036 = vsel %vm3021, %v3018, %v3020
      %v3037 = vsel %vm3021, %v3020, %v2990
      %3054 = vst [vmem:[#allocation2 + $0x100] sm:$0xff] %v3022
      %3055 = vst [vmem:[#allocation2 + $0x108] sm:$0xff] %v3023
      %3056 = vst [vmem:[#allocation2 + $0x110] sm:$0xff] %v3024
      %3057 = vst [vmem:[#allocation2 + $0x118] sm:$0xff] %v3025
      %3058 = vst [vmem:[#allocation2 + $0x120] sm:$0xff] %v3026
      %3059 = vst [vmem:[#allocation2 + $0x128] sm:$0xff] %v3027
      %3060 = vst [vmem:[#allocation2 + $0x130] sm:$0xff] %v3028
      %3061 = vst [vmem:[#allocation2 + $0x138] sm:$0xff] %v3029
      %3062 = vst [vmem:[#allocation2 + $0x140] sm:$0xff] %v3030
      %3063 = vst [vmem:[#allocation2 + $0x148] sm:$0xff] %v3031
      %3064 = vst [vmem:[#allocation2 + $0x150] sm:$0xff] %v3032
      %3065 = vst [vmem:[#allocation2 + $0x158] sm:$0xff] %v3033
      %3066 = vst [vmem:[#allocation2 + $0x160] sm:$0xff] %v3034
      %3067 = vst [vmem:[#allocation2 + $0x168] sm:$0xff] %v3035
      %3068 = vst [vmem:[#allocation2 + $0x170] sm:$0xff] %v3036
      %3069 = vst [vmem:[#allocation2 + $0x178] sm:$0xff] %v3037
      %3070 = vrot.lane.b32.xlu0 %v2860, 125
      %v3071 = vpop.permute.xlu0 %3070
      %3072 = vrot.lane.b32.xlu0 %v2861, 125
      %v3073 = vpop.permute.xlu0 %3072
      %3074 = vrot.lane.b32.xlu0 %v2862, 125
      %v3075 = vpop.permute.xlu0 %3074
      %3076 = vrot.lane.b32.xlu0 %v2863, 125
      %v3077 = vpop.permute.xlu0 %3076
      %3078 = vrot.lane.b32.xlu0 %v2864, 125
      %v3079 = vpop.permute.xlu0 %3078
      %3080 = vrot.lane.b32.xlu0 %v2865, 125
      %v3081 = vpop.permute.xlu0 %3080
      %3082 = vrot.lane.b32.xlu0 %v2866, 125
      %v3083 = vpop.permute.xlu0 %3082
      %3084 = vrot.lane.b32.xlu0 %v2867, 125
      %v3085 = vpop.permute.xlu0 %3084
      %3086 = vrot.lane.b32.xlu0 %v2868, 125
      %v3087 = vpop.permute.xlu0 %3086
      %3088 = vrot.lane.b32.xlu0 %v2869, 125
      %v3089 = vpop.permute.xlu0 %3088
      %3090 = vrot.lane.b32.xlu0 %v2870, 125
      %v3091 = vpop.permute.xlu0 %3090
      %3092 = vrot.lane.b32.xlu0 %v2871, 125
      %v3093 = vpop.permute.xlu0 %3092
      %3094 = vrot.lane.b32.xlu0 %v2872, 125
      %v3095 = vpop.permute.xlu0 %3094
      %3096 = vrot.lane.b32.xlu0 %v2873, 125
      %v3097 = vpop.permute.xlu0 %3096
      %3098 = vrot.lane.b32.xlu0 %v2874, 125
      %v3099 = vpop.permute.xlu0 %3098
      %3100 = vrot.lane.b32.xlu0 %v2875, 125
      %v3101 = vpop.permute.xlu0 %3100
      %vm3102 = vcmask 1022976
      %v3103 = vsel %vm3102, %v3071, %v3073
      %v3104 = vsel %vm3102, %v3073, %v3075
      %v3105 = vsel %vm3102, %v3075, %v3077
      %v3106 = vsel %vm3102, %v3077, %v3079
      %v3107 = vsel %vm3102, %v3079, %v3081
      %v3108 = vsel %vm3102, %v3081, %v3083
      %v3109 = vsel %vm3102, %v3083, %v3085
      %v3110 = vsel %vm3102, %v3085, %v3087
      %v3111 = vsel %vm3102, %v3087, %v3089
      %v3112 = vsel %vm3102, %v3089, %v3091
      %v3113 = vsel %vm3102, %v3091, %v3093
      %v3114 = vsel %vm3102, %v3093, %v3095
      %v3115 = vsel %vm3102, %v3095, %v3097
      %v3116 = vsel %vm3102, %v3097, %v3099
      %v3117 = vsel %vm3102, %v3099, %v3101
      %v3118 = vsel %vm3102, %v3101, %v3071
      %3135 = vst [vmem:[#allocation2 + $0x180] sm:$0xff] %v3103
      %3136 = vst [vmem:[#allocation2 + $0x188] sm:$0xff] %v3104
      %3137 = vst [vmem:[#allocation2 + $0x190] sm:$0xff] %v3105
      %3138 = vst [vmem:[#allocation2 + $0x198] sm:$0xff] %v3106
      %3139 = vst [vmem:[#allocation2 + $0x1a0] sm:$0xff] %v3107
      %3140 = vst [vmem:[#allocation2 + $0x1a8] sm:$0xff] %v3108
      %3141 = vst [vmem:[#allocation2 + $0x1b0] sm:$0xff] %v3109
      %3142 = vst [vmem:[#allocation2 + $0x1b8] sm:$0xff] %v3110
      %3143 = vst [vmem:[#allocation2 + $0x1c0] sm:$0xff] %v3111
      %3144 = vst [vmem:[#allocation2 + $0x1c8] sm:$0xff] %v3112
      %3145 = vst [vmem:[#allocation2 + $0x1d0] sm:$0xff] %v3113
      %3146 = vst [vmem:[#allocation2 + $0x1d8] sm:$0xff] %v3114
      %3147 = vst [vmem:[#allocation2 + $0x1e0] sm:$0xff] %v3115
      %3148 = vst [vmem:[#allocation2 + $0x1e8] sm:$0xff] %v3116
      %3149 = vst [vmem:[#allocation2 + $0x1f0] sm:$0xff] %v3117
      %3150 = vst [vmem:[#allocation2 + $0x1f8] sm:$0xff] %v3118
      %3151 = vrot.lane.b32.xlu0 %v2860, 124
      %v3152 = vpop.permute.xlu0 %3151
      %3153 = vrot.lane.b32.xlu0 %v2861, 124
      %v3154 = vpop.permute.xlu0 %3153
      %3155 = vrot.lane.b32.xlu0 %v2862, 124
      %v3156 = vpop.permute.xlu0 %3155
      %3157 = vrot.lane.b32.xlu0 %v2863, 124
      %v3158 = vpop.permute.xlu0 %3157
      %3159 = vrot.lane.b32.xlu0 %v2864, 124
      %v3160 = vpop.permute.xlu0 %3159
      %3161 = vrot.lane.b32.xlu0 %v2865, 124
      %v3162 = vpop.permute.xlu0 %3161
      %3163 = vrot.lane.b32.xlu0 %v2866, 124
      %v3164 = vpop.permute.xlu0 %3163
      %3165 = vrot.lane.b32.xlu0 %v2867, 124
      %v3166 = vpop.permute.xlu0 %3165
      %3167 = vrot.lane.b32.xlu0 %v2868, 124
      %v3168 = vpop.permute.xlu0 %3167
      %3169 = vrot.lane.b32.xlu0 %v2869, 124
      %v3170 = vpop.permute.xlu0 %3169
      %3171 = vrot.lane.b32.xlu0 %v2870, 124
      %v3172 = vpop.permute.xlu0 %3171
      %3173 = vrot.lane.b32.xlu0 %v2871, 124
      %v3174 = vpop.permute.xlu0 %3173
      %3175 = vrot.lane.b32.xlu0 %v2872, 124
      %v3176 = vpop.permute.xlu0 %3175
      %3177 = vrot.lane.b32.xlu0 %v2873, 124
      %v3178 = vpop.permute.xlu0 %3177
      %3179 = vrot.lane.b32.xlu0 %v2874, 124
      %v3180 = vpop.permute.xlu0 %3179
      %3181 = vrot.lane.b32.xlu0 %v2875, 124
      %v3182 = vpop.permute.xlu0 %3181
      %vm3183 = vcmask 1014784
      %v3184 = vsel %vm3183, %v3152, %v3154
      %v3185 = vsel %vm3183, %v3154, %v3156
      %v3186 = vsel %vm3183, %v3156, %v3158
      %v3187 = vsel %vm3183, %v3158, %v3160
      %v3188 = vsel %vm3183, %v3160, %v3162
      %v3189 = vsel %vm3183, %v3162, %v3164
      %v3190 = vsel %vm3183, %v3164, %v3166
      %v3191 = vsel %vm3183, %v3166, %v3168
      %v3192 = vsel %vm3183, %v3168, %v3170
      %v3193 = vsel %vm3183, %v3170, %v3172
      %v3194 = vsel %vm3183, %v3172, %v3174
      %v3195 = vsel %vm3183, %v3174, %v3176
      %v3196 = vsel %vm3183, %v3176, %v3178
      %v3197 = vsel %vm3183, %v3178, %v3180
      %v3198 = vsel %vm3183, %v3180, %v3182
      %v3199 = vsel %vm3183, %v3182, %v3152
      %3216 = vst [vmem:[#allocation2 + $0x200] sm:$0xff] %v3184
      %3217 = vst [vmem:[#allocation2 + $0x208] sm:$0xff] %v3185
      %3218 = vst [vmem:[#allocation2 + $0x210] sm:$0xff] %v3186
      %3219 = vst [vmem:[#allocation2 + $0x218] sm:$0xff] %v3187
      %3220 = vst [vmem:[#allocation2 + $0x220] sm:$0xff] %v3188
      %3221 = vst [vmem:[#allocation2 + $0x228] sm:$0xff] %v3189
      %3222 = vst [vmem:[#allocation2 + $0x230] sm:$0xff] %v3190
      %3223 = vst [vmem:[#allocation2 + $0x238] sm:$0xff] %v3191
      %3224 = vst [vmem:[#allocation2 + $0x240] sm:$0xff] %v3192
      %3225 = vst [vmem:[#allocation2 + $0x248] sm:$0xff] %v3193
      %3226 = vst [vmem:[#allocation2 + $0x250] sm:$0xff] %v3194
      %3227 = vst [vmem:[#allocation2 + $0x258] sm:$0xff] %v3195
      %3228 = vst [vmem:[#allocation2 + $0x260] sm:$0xff] %v3196
      %3229 = vst [vmem:[#allocation2 + $0x268] sm:$0xff] %v3197
      %3230 = vst [vmem:[#allocation2 + $0x270] sm:$0xff] %v3198
      %3231 = vst [vmem:[#allocation2 + $0x278] sm:$0xff] %v3199
      %3232 = vrot.lane.b32.xlu0 %v2860, 114
      %v3233 = vpop.permute.xlu0 %3232
      %3234 = vrot.lane.b32.xlu0 %v2861, 114
      %v3235 = vpop.permute.xlu0 %3234
      %3236 = vrot.lane.b32.xlu0 %v2862, 114
      %v3237 = vpop.permute.xlu0 %3236
      %3238 = vrot.lane.b32.xlu0 %v2863, 114
      %v3239 = vpop.permute.xlu0 %3238
      %3240 = vrot.lane.b32.xlu0 %v2864, 114
      %v3241 = vpop.permute.xlu0 %3240
      %3242 = vrot.lane.b32.xlu0 %v2865, 114
      %v3243 = vpop.permute.xlu0 %3242
      %3244 = vrot.lane.b32.xlu0 %v2866, 114
      %v3245 = vpop.permute.xlu0 %3244
      %3246 = vrot.lane.b32.xlu0 %v2867, 114
      %v3247 = vpop.permute.xlu0 %3246
      %3248 = vrot.lane.b32.xlu0 %v2868, 114
      %v3249 = vpop.permute.xlu0 %3248
      %3250 = vrot.lane.b32.xlu0 %v2869, 114
      %v3251 = vpop.permute.xlu0 %3250
      %3252 = vrot.lane.b32.xlu0 %v2870, 114
      %v3253 = vpop.permute.xlu0 %3252
      %3254 = vrot.lane.b32.xlu0 %v2871, 114
      %v3255 = vpop.permute.xlu0 %3254
      %3256 = vrot.lane.b32.xlu0 %v2872, 114
      %v3257 = vpop.permute.xlu0 %3256
      %3258 = vrot.lane.b32.xlu0 %v2873, 114
      %v3259 = vpop.permute.xlu0 %3258
      %3260 = vrot.lane.b32.xlu0 %v2874, 114
      %v3261 = vpop.permute.xlu0 %3260
      %3262 = vrot.lane.b32.xlu0 %v2875, 114
      %v3263 = vpop.permute.xlu0 %3262
      %vm3264 = vcmask 932864
      %v3265 = vsel %vm3264, %v3233, %v3235
      %v3266 = vsel %vm3264, %v3235, %v3237
      %v3267 = vsel %vm3264, %v3237, %v3239
      %v3268 = vsel %vm3264, %v3239, %v3241
      %v3269 = vsel %vm3264, %v3241, %v3243
      %v3270 = vsel %vm3264, %v3243, %v3245
      %v3271 = vsel %vm3264, %v3245, %v3247
      %v3272 = vsel %vm3264, %v3247, %v3249
      %v3273 = vsel %vm3264, %v3249, %v3251
      %v3274 = vsel %vm3264, %v3251, %v3253
      %v3275 = vsel %vm3264, %v3253, %v3255
      %v3276 = vsel %vm3264, %v3255, %v3257
      %v3277 = vsel %vm3264, %v3257, %v3259
      %v3278 = vsel %vm3264, %v3259, %v3261
      %v3279 = vsel %vm3264, %v3261, %v3263
      %v3280 = vsel %vm3264, %v3263, %v3233
      %3297 = vst [vmem:[#allocation2 + $0x280] sm:$0xff] %v3265
      %3298 = vst [vmem:[#allocation2 + $0x288] sm:$0xff] %v3266
      %3299 = vst [vmem:[#allocation2 + $0x290] sm:$0xff] %v3267
      %3300 = vst [vmem:[#allocation2 + $0x298] sm:$0xff] %v3268
      %3301 = vst [vmem:[#allocation2 + $0x2a0] sm:$0xff] %v3269
      %3302 = vst [vmem:[#allocation2 + $0x2a8] sm:$0xff] %v3270
      %3303 = vst [vmem:[#allocation2 + $0x2b0] sm:$0xff] %v3271
      %3304 = vst [vmem:[#allocation2 + $0x2b8] sm:$0xff] %v3272
      %3305 = vst [vmem:[#allocation2 + $0x2c0] sm:$0xff] %v3273
      %3306 = vst [vmem:[#allocation2 + $0x2c8] sm:$0xff] %v3274
      %3307 = vst [vmem:[#allocation2 + $0x2d0] sm:$0xff] %v3275
      %3308 = vst [vmem:[#allocation2 + $0x2d8] sm:$0xff] %v3276
      %3309 = vst [vmem:[#allocation2 + $0x2e0] sm:$0xff] %v3277
      %3310 = vst [vmem:[#allocation2 + $0x2e8] sm:$0xff] %v3278
      %3311 = vst [vmem:[#allocation2 + $0x2f0] sm:$0xff] %v3279
      %3312 = vst [vmem:[#allocation2 + $0x2f8] sm:$0xff] %v3280
      %3313 = vrot.lane.b32.xlu0 %v2860, 113
      %v3314 = vpop.permute.xlu0 %3313
      %3315 = vrot.lane.b32.xlu0 %v2861, 113
      %v3316 = vpop.permute.xlu0 %3315
      %3317 = vrot.lane.b32.xlu0 %v2862, 113
      %v3318 = vpop.permute.xlu0 %3317
      %3319 = vrot.lane.b32.xlu0 %v2863, 113
      %v3320 = vpop.permute.xlu0 %3319
      %3321 = vrot.lane.b32.xlu0 %v2864, 113
      %v3322 = vpop.permute.xlu0 %3321
      %3323 = vrot.lane.b32.xlu0 %v2865, 113
      %v3324 = vpop.permute.xlu0 %3323
      %3325 = vrot.lane.b32.xlu0 %v2866, 113
      %v3326 = vpop.permute.xlu0 %3325
      %3327 = vrot.lane.b32.xlu0 %v2867, 113
      %v3328 = vpop.permute.xlu0 %3327
      %3329 = vrot.lane.b32.xlu0 %v2868, 113
      %v3330 = vpop.permute.xlu0 %3329
      %3331 = vrot.lane.b32.xlu0 %v2869, 113
      %v3332 = vpop.permute.xlu0 %3331
      %3333 = vrot.lane.b32.xlu0 %v2870, 113
      %v3334 = vpop.permute.xlu0 %3333
      %3335 = vrot.lane.b32.xlu0 %v2871, 113
      %v3336 = vpop.permute.xlu0 %3335
      %3337 = vrot.lane.b32.xlu0 %v2872, 113
      %v3338 = vpop.permute.xlu0 %3337
      %3339 = vrot.lane.b32.xlu0 %v2873, 113
      %v3340 = vpop.permute.xlu0 %3339
      %3341 = vrot.lane.b32.xlu0 %v2874, 113
      %v3342 = vpop.permute.xlu0 %3341
      %3343 = vrot.lane.b32.xlu0 %v2875, 113
      %v3344 = vpop.permute.xlu0 %3343
      %vm3345 = vcmask 924672
      %v3346 = vsel %vm3345, %v3314, %v3316
      %v3347 = vsel %vm3345, %v3316, %v3318
      %v3348 = vsel %vm3345, %v3318, %v3320
      %v3349 = vsel %vm3345, %v3320, %v3322
      %v3350 = vsel %vm3345, %v3322, %v3324
      %v3351 = vsel %vm3345, %v3324, %v3326
      %v3352 = vsel %vm3345, %v3326, %v3328
      %v3353 = vsel %vm3345, %v3328, %v3330
      %v3354 = vsel %vm3345, %v3330, %v3332
      %v3355 = vsel %vm3345, %v3332, %v3334
      %v3356 = vsel %vm3345, %v3334, %v3336
      %v3357 = vsel %vm3345, %v3336, %v3338
      %v3358 = vsel %vm3345, %v3338, %v3340
      %v3359 = vsel %vm3345, %v3340, %v3342
      %v3360 = vsel %vm3345, %v3342, %v3344
      %v3361 = vsel %vm3345, %v3344, %v3314
      %3378 = vst [vmem:[#allocation2 + $0x300] sm:$0xff] %v3346
      %3379 = vst [vmem:[#allocation2 + $0x308] sm:$0xff] %v3347
      %3380 = vst [vmem:[#allocation2 + $0x310] sm:$0xff] %v3348
      %3381 = vst [vmem:[#allocation2 + $0x318] sm:$0xff] %v3349
      %3382 = vst [vmem:[#allocation2 + $0x320] sm:$0xff] %v3350
      %3383 = vst [vmem:[#allocation2 + $0x328] sm:$0xff] %v3351
      %3384 = vst [vmem:[#allocation2 + $0x330] sm:$0xff] %v3352
      %3385 = vst [vmem:[#allocation2 + $0x338] sm:$0xff] %v3353
      %3386 = vst [vmem:[#allocation2 + $0x340] sm:$0xff] %v3354
      %3387 = vst [vmem:[#allocation2 + $0x348] sm:$0xff] %v3355
      %3388 = vst [vmem:[#allocation2 + $0x350] sm:$0xff] %v3356
      %3389 = vst [vmem:[#allocation2 + $0x358] sm:$0xff] %v3357
      %3390 = vst [vmem:[#allocation2 + $0x360] sm:$0xff] %v3358
      %3391 = vst [vmem:[#allocation2 + $0x368] sm:$0xff] %v3359
      %3392 = vst [vmem:[#allocation2 + $0x370] sm:$0xff] %v3360
      %3393 = vst [vmem:[#allocation2 + $0x378] sm:$0xff] %v3361
      %3394 = vrot.lane.b32.xlu0 %v2860, 112
      %v3395 = vpop.permute.xlu0 %3394
      %3396 = vrot.lane.b32.xlu0 %v2861, 112
      %v3397 = vpop.permute.xlu0 %3396
      %3398 = vrot.lane.b32.xlu0 %v2862, 112
      %v3399 = vpop.permute.xlu0 %3398
      %3400 = vrot.lane.b32.xlu0 %v2863, 112
      %v3401 = vpop.permute.xlu0 %3400
      %3402 = vrot.lane.b32.xlu0 %v2864, 112
      %v3403 = vpop.permute.xlu0 %3402
      %3404 = vrot.lane.b32.xlu0 %v2865, 112
      %v3405 = vpop.permute.xlu0 %3404
      %3406 = vrot.lane.b32.xlu0 %v2866, 112
      %v3407 = vpop.permute.xlu0 %3406
      %3408 = vrot.lane.b32.xlu0 %v2867, 112
      %v3409 = vpop.permute.xlu0 %3408
      %3410 = vrot.lane.b32.xlu0 %v2868, 112
      %v3411 = vpop.permute.xlu0 %3410
      %3412 = vrot.lane.b32.xlu0 %v2869, 112
      %v3413 = vpop.permute.xlu0 %3412
      %3414 = vrot.lane.b32.xlu0 %v2870, 112
      %v3415 = vpop.permute.xlu0 %3414
      %3416 = vrot.lane.b32.xlu0 %v2871, 112
      %v3417 = vpop.permute.xlu0 %3416
      %3418 = vrot.lane.b32.xlu0 %v2872, 112
      %v3419 = vpop.permute.xlu0 %3418
      %3420 = vrot.lane.b32.xlu0 %v2873, 112
      %v3421 = vpop.permute.xlu0 %3420
      %3422 = vrot.lane.b32.xlu0 %v2874, 112
      %v3423 = vpop.permute.xlu0 %3422
      %3424 = vrot.lane.b32.xlu0 %v2875, 112
      %v3425 = vpop.permute.xlu0 %3424
      %vm3426 = vcmask 916480
      %v3427 = vsel %vm3426, %v3395, %v3397
      %v3428 = vsel %vm3426, %v3397, %v3399
      %v3429 = vsel %vm3426, %v3399, %v3401
      %v3430 = vsel %vm3426, %v3401, %v3403
      %v3431 = vsel %vm3426, %v3403, %v3405
      %v3432 = vsel %vm3426, %v3405, %v3407
      %v3433 = vsel %vm3426, %v3407, %v3409
      %v3434 = vsel %vm3426, %v3409, %v3411
      %v3435 = vsel %vm3426, %v3411, %v3413
      %v3436 = vsel %vm3426, %v3413, %v3415
      %v3437 = vsel %vm3426, %v3415, %v3417
      %v3438 = vsel %vm3426, %v3417, %v3419
      %v3439 = vsel %vm3426, %v3419, %v3421
      %v3440 = vsel %vm3426, %v3421, %v3423
      %v3441 = vsel %vm3426, %v3423, %v3425
      %v3442 = vsel %vm3426, %v3425, %v3395
      %3459 = vst [vmem:[#allocation2 + $0x380] sm:$0xff] %v3427
      %3460 = vst [vmem:[#allocation2 + $0x388] sm:$0xff] %v3428
      %3461 = vst [vmem:[#allocation2 + $0x390] sm:$0xff] %v3429
      %3462 = vst [vmem:[#allocation2 + $0x398] sm:$0xff] %v3430
      %3463 = vst [vmem:[#allocation2 + $0x3a0] sm:$0xff] %v3431
      %3464 = vst [vmem:[#allocation2 + $0x3a8] sm:$0xff] %v3432
      %3465 = vst [vmem:[#allocation2 + $0x3b0] sm:$0xff] %v3433
      %3466 = vst [vmem:[#allocation2 + $0x3b8] sm:$0xff] %v3434
      %3467 = vst [vmem:[#allocation2 + $0x3c0] sm:$0xff] %v3435
      %3468 = vst [vmem:[#allocation2 + $0x3c8] sm:$0xff] %v3436
      %3469 = vst [vmem:[#allocation2 + $0x3d0] sm:$0xff] %v3437
      %3470 = vst [vmem:[#allocation2 + $0x3d8] sm:$0xff] %v3438
      %3471 = vst [vmem:[#allocation2 + $0x3e0] sm:$0xff] %v3439
      %3472 = vst [vmem:[#allocation2 + $0x3e8] sm:$0xff] %v3440
      %3473 = vst [vmem:[#allocation2 + $0x3f0] sm:$0xff] %v3441
      %3474 = vst [vmem:[#allocation2 + $0x3f8] sm:$0xff] %v3442
      %3475 = vrot.lane.b32.xlu0 %v2860, 111
      %v3476 = vpop.permute.xlu0 %3475
      %3477 = vrot.lane.b32.xlu0 %v2861, 111
      %v3478 = vpop.permute.xlu0 %3477
      %3479 = vrot.lane.b32.xlu0 %v2862, 111
      %v3480 = vpop.permute.xlu0 %3479
      %3481 = vrot.lane.b32.xlu0 %v2863, 111
      %v3482 = vpop.permute.xlu0 %3481
      %3483 = vrot.lane.b32.xlu0 %v2864, 111
      %v3484 = vpop.permute.xlu0 %3483
      %3485 = vrot.lane.b32.xlu0 %v2865, 111
      %v3486 = vpop.permute.xlu0 %3485
      %3487 = vrot.lane.b32.xlu0 %v2866, 111
      %v3488 = vpop.permute.xlu0 %3487
      %3489 = vrot.lane.b32.xlu0 %v2867, 111
      %v3490 = vpop.permute.xlu0 %3489
      %3491 = vrot.lane.b32.xlu0 %v2868, 111
      %v3492 = vpop.permute.xlu0 %3491
      %3493 = vrot.lane.b32.xlu0 %v2869, 111
      %v3494 = vpop.permute.xlu0 %3493
      %3495 = vrot.lane.b32.xlu0 %v2870, 111
      %v3496 = vpop.permute.xlu0 %3495
      %3497 = vrot.lane.b32.xlu0 %v2871, 111
      %v3498 = vpop.permute.xlu0 %3497
      %3499 = vrot.lane.b32.xlu0 %v2872, 111
      %v3500 = vpop.permute.xlu0 %3499
      %3501 = vrot.lane.b32.xlu0 %v2873, 111
      %v3502 = vpop.permute.xlu0 %3501
      %3503 = vrot.lane.b32.xlu0 %v2874, 111
      %v3504 = vpop.permute.xlu0 %3503
      %3505 = vrot.lane.b32.xlu0 %v2875, 111
      %v3506 = vpop.permute.xlu0 %3505
      %vm3507 = vcmask 908288
      %v3508 = vsel %vm3507, %v3476, %v3478
      %v3509 = vsel %vm3507, %v3478, %v3480
      %v3510 = vsel %vm3507, %v3480, %v3482
      %v3511 = vsel %vm3507, %v3482, %v3484
      %v3512 = vsel %vm3507, %v3484, %v3486
      %v3513 = vsel %vm3507, %v3486, %v3488
      %v3514 = vsel %vm3507, %v3488, %v3490
      %v3515 = vsel %vm3507, %v3490, %v3492
      %v3516 = vsel %vm3507, %v3492, %v3494
      %v3517 = vsel %vm3507, %v3494, %v3496
      %v3518 = vsel %vm3507, %v3496, %v3498
      %v3519 = vsel %vm3507, %v3498, %v3500
      %v3520 = vsel %vm3507, %v3500, %v3502
      %v3521 = vsel %vm3507, %v3502, %v3504
      %v3522 = vsel %vm3507, %v3504, %v3506
      %v3523 = vsel %vm3507, %v3506, %v3476
      %3540 = vst [vmem:[#allocation2 + $0x400] sm:$0xff] %v3508
      %3541 = vst [vmem:[#allocation2 + $0x408] sm:$0xff] %v3509
      %3542 = vst [vmem:[#allocation2 + $0x410] sm:$0xff] %v3510
      %3543 = vst [vmem:[#allocation2 + $0x418] sm:$0xff] %v3511
      %3544 = vst [vmem:[#allocation2 + $0x420] sm:$0xff] %v3512
      %3545 = vst [vmem:[#allocation2 + $0x428] sm:$0xff] %v3513
      %3546 = vst [vmem:[#allocation2 + $0x430] sm:$0xff] %v3514
      %3547 = vst [vmem:[#allocation2 + $0x438] sm:$0xff] %v3515
      %3548 = vst [vmem:[#allocation2 + $0x440] sm:$0xff] %v3516
      %3549 = vst [vmem:[#allocation2 + $0x448] sm:$0xff] %v3517
      %3550 = vst [vmem:[#allocation2 + $0x450] sm:$0xff] %v3518
      %3551 = vst [vmem:[#allocation2 + $0x458] sm:$0xff] %v3519
      %3552 = vst [vmem:[#allocation2 + $0x460] sm:$0xff] %v3520
      %3553 = vst [vmem:[#allocation2 + $0x468] sm:$0xff] %v3521
      %3554 = vst [vmem:[#allocation2 + $0x470] sm:$0xff] %v3522
      %3555 = vst [vmem:[#allocation2 + $0x478] sm:$0xff] %v3523
      %3556 = vrot.lane.b32.xlu0 %v2860, 110
      %v3557 = vpop.permute.xlu0 %3556
      %3558 = vrot.lane.b32.xlu0 %v2861, 110
      %v3559 = vpop.permute.xlu0 %3558
      %3560 = vrot.lane.b32.xlu0 %v2862, 110
      %v3561 = vpop.permute.xlu0 %3560
      %3562 = vrot.lane.b32.xlu0 %v2863, 110
      %v3563 = vpop.permute.xlu0 %3562
      %3564 = vrot.lane.b32.xlu0 %v2864, 110
      %v3565 = vpop.permute.xlu0 %3564
      %3566 = vrot.lane.b32.xlu0 %v2865, 110
      %v3567 = vpop.permute.xlu0 %3566
      %3568 = vrot.lane.b32.xlu0 %v2866, 110
      %v3569 = vpop.permute.xlu0 %3568
      %3570 = vrot.lane.b32.xlu0 %v2867, 110
      %v3571 = vpop.permute.xlu0 %3570
      %3572 = vrot.lane.b32.xlu0 %v2868, 110
      %v3573 = vpop.permute.xlu0 %3572
      %3574 = vrot.lane.b32.xlu0 %v2869, 110
      %v3575 = vpop.permute.xlu0 %3574
      %3576 = vrot.lane.b32.xlu0 %v2870, 110
      %v3577 = vpop.permute.xlu0 %3576
      %3578 = vrot.lane.b32.xlu0 %v2871, 110
      %v3579 = vpop.permute.xlu0 %3578
      %3580 = vrot.lane.b32.xlu0 %v2872, 110
      %v3581 = vpop.permute.xlu0 %3580
      %3582 = vrot.lane.b32.xlu0 %v2873, 110
      %v3583 = vpop.permute.xlu0 %3582
      %3584 = vrot.lane.b32.xlu0 %v2874, 110
      %v3585 = vpop.permute.xlu0 %3584
      %3586 = vrot.lane.b32.xlu0 %v2875, 110
      %v3587 = vpop.permute.xlu0 %3586
      %vm3588 = vcmask 900096
      %v3589 = vsel %vm3588, %v3557, %v3559
      %v3590 = vsel %vm3588, %v3559, %v3561
      %v3591 = vsel %vm3588, %v3561, %v3563
      %v3592 = vsel %vm3588, %v3563, %v3565
      %v3593 = vsel %vm3588, %v3565, %v3567
      %v3594 = vsel %vm3588, %v3567, %v3569
      %v3595 = vsel %vm3588, %v3569, %v3571
      %v3596 = vsel %vm3588, %v3571, %v3573
      %v3597 = vsel %vm3588, %v3573, %v3575
      %v3598 = vsel %vm3588, %v3575, %v3577
      %v3599 = vsel %vm3588, %v3577, %v3579
      %v3600 = vsel %vm3588, %v3579, %v3581
      %v3601 = vsel %vm3588, %v3581, %v3583
      %v3602 = vsel %vm3588, %v3583, %v3585
      %v3603 = vsel %vm3588, %v3585, %v3587
      %v3604 = vsel %vm3588, %v3587, %v3557
      %3621 = vst [vmem:[#allocation2 + $0x480] sm:$0xff] %v3589
      %3622 = vst [vmem:[#allocation2 + $0x488] sm:$0xff] %v3590
      %3623 = vst [vmem:[#allocation2 + $0x490] sm:$0xff] %v3591
      %3624 = vst [vmem:[#allocation2 + $0x498] sm:$0xff] %v3592
      %3625 = vst [vmem:[#allocation2 + $0x4a0] sm:$0xff] %v3593
      %3626 = vst [vmem:[#allocation2 + $0x4a8] sm:$0xff] %v3594
      %3627 = vst [vmem:[#allocation2 + $0x4b0] sm:$0xff] %v3595
      %3628 = vst [vmem:[#allocation2 + $0x4b8] sm:$0xff] %v3596
      %3629 = vst [vmem:[#allocation2 + $0x4c0] sm:$0xff] %v3597
      %3630 = vst [vmem:[#allocation2 + $0x4c8] sm:$0xff] %v3598
      %3631 = vst [vmem:[#allocation2 + $0x4d0] sm:$0xff] %v3599
      %3632 = vst [vmem:[#allocation2 + $0x4d8] sm:$0xff] %v3600
      %3633 = vst [vmem:[#allocation2 + $0x4e0] sm:$0xff] %v3601
      %3634 = vst [vmem:[#allocation2 + $0x4e8] sm:$0xff] %v3602
      %3635 = vst [vmem:[#allocation2 + $0x4f0] sm:$0xff] %v3603
      %3636 = vst [vmem:[#allocation2 + $0x4f8] sm:$0xff] %v3604
      %3637 = vrot.lane.b32.xlu0 %v2860, 100
      %v3638 = vpop.permute.xlu0 %3637
      %3639 = vrot.lane.b32.xlu0 %v2861, 100
      %v3640 = vpop.permute.xlu0 %3639
      %3641 = vrot.lane.b32.xlu0 %v2862, 100
      %v3642 = vpop.permute.xlu0 %3641
      %3643 = vrot.lane.b32.xlu0 %v2863, 100
      %v3644 = vpop.permute.xlu0 %3643
      %3645 = vrot.lane.b32.xlu0 %v2864, 100
      %v3646 = vpop.permute.xlu0 %3645
      %3647 = vrot.lane.b32.xlu0 %v2865, 100
      %v3648 = vpop.permute.xlu0 %3647
      %3649 = vrot.lane.b32.xlu0 %v2866, 100
      %v3650 = vpop.permute.xlu0 %3649
      %3651 = vrot.lane.b32.xlu0 %v2867, 100
      %v3652 = vpop.permute.xlu0 %3651
      %3653 = vrot.lane.b32.xlu0 %v2868, 100
      %v3654 = vpop.permute.xlu0 %3653
      %3655 = vrot.lane.b32.xlu0 %v2869, 100
      %v3656 = vpop.permute.xlu0 %3655
      %3657 = vrot.lane.b32.xlu0 %v2870, 100
      %v3658 = vpop.permute.xlu0 %3657
      %3659 = vrot.lane.b32.xlu0 %v2871, 100
      %v3660 = vpop.permute.xlu0 %3659
      %3661 = vrot.lane.b32.xlu0 %v2872, 100
      %v3662 = vpop.permute.xlu0 %3661
      %3663 = vrot.lane.b32.xlu0 %v2873, 100
      %v3664 = vpop.permute.xlu0 %3663
      %3665 = vrot.lane.b32.xlu0 %v2874, 100
      %v3666 = vpop.permute.xlu0 %3665
      %3667 = vrot.lane.b32.xlu0 %v2875, 100
      %v3668 = vpop.permute.xlu0 %3667
      %vm3669 = vcmask 818176
      %v3670 = vsel %vm3669, %v3638, %v3640
      %v3671 = vsel %vm3669, %v3640, %v3642
      %v3672 = vsel %vm3669, %v3642, %v3644
      %v3673 = vsel %vm3669, %v3644, %v3646
      %v3674 = vsel %vm3669, %v3646, %v3648
      %v3675 = vsel %vm3669, %v3648, %v3650
      %v3676 = vsel %vm3669, %v3650, %v3652
      %v3677 = vsel %vm3669, %v3652, %v3654
      %v3678 = vsel %vm3669, %v3654, %v3656
      %v3679 = vsel %vm3669, %v3656, %v3658
      %v3680 = vsel %vm3669, %v3658, %v3660
      %v3681 = vsel %vm3669, %v3660, %v3662
      %v3682 = vsel %vm3669, %v3662, %v3664
      %v3683 = vsel %vm3669, %v3664, %v3666
      %v3684 = vsel %vm3669, %v3666, %v3668
      %v3685 = vsel %vm3669, %v3668, %v3638
      %3702 = vst [vmem:[#allocation2 + $0x500] sm:$0xff] %v3670
      %3703 = vst [vmem:[#allocation2 + $0x508] sm:$0xff] %v3671
      %3704 = vst [vmem:[#allocation2 + $0x510] sm:$0xff] %v3672
      %3705 = vst [vmem:[#allocation2 + $0x518] sm:$0xff] %v3673
      %3706 = vst [vmem:[#allocation2 + $0x520] sm:$0xff] %v3674
      %3707 = vst [vmem:[#allocation2 + $0x528] sm:$0xff] %v3675
      %3708 = vst [vmem:[#allocation2 + $0x530] sm:$0xff] %v3676
      %3709 = vst [vmem:[#allocation2 + $0x538] sm:$0xff] %v3677
      %3710 = vst [vmem:[#allocation2 + $0x540] sm:$0xff] %v3678
      %3711 = vst [vmem:[#allocation2 + $0x548] sm:$0xff] %v3679
      %3712 = vst [vmem:[#allocation2 + $0x550] sm:$0xff] %v3680
      %3713 = vst [vmem:[#allocation2 + $0x558] sm:$0xff] %v3681
      %3714 = vst [vmem:[#allocation2 + $0x560] sm:$0xff] %v3682
      %3715 = vst [vmem:[#allocation2 + $0x568] sm:$0xff] %v3683
      %3716 = vst [vmem:[#allocation2 + $0x570] sm:$0xff] %v3684
      %3717 = vst [vmem:[#allocation2 + $0x578] sm:$0xff] %v3685
      %3718 = vrot.lane.b32.xlu0 %v2860, 99
      %v3719 = vpop.permute.xlu0 %3718
      %3720 = vrot.lane.b32.xlu0 %v2861, 99
      %v3721 = vpop.permute.xlu0 %3720
      %3722 = vrot.lane.b32.xlu0 %v2862, 99
      %v3723 = vpop.permute.xlu0 %3722
      %3724 = vrot.lane.b32.xlu0 %v2863, 99
      %v3725 = vpop.permute.xlu0 %3724
      %3726 = vrot.lane.b32.xlu0 %v2864, 99
      %v3727 = vpop.permute.xlu0 %3726
      %3728 = vrot.lane.b32.xlu0 %v2865, 99
      %v3729 = vpop.permute.xlu0 %3728
      %3730 = vrot.lane.b32.xlu0 %v2866, 99
      %v3731 = vpop.permute.xlu0 %3730
      %3732 = vrot.lane.b32.xlu0 %v2867, 99
      %v3733 = vpop.permute.xlu0 %3732
      %3734 = vrot.lane.b32.xlu0 %v2868, 99
      %v3735 = vpop.permute.xlu0 %3734
      %3736 = vrot.lane.b32.xlu0 %v2869, 99
      %v3737 = vpop.permute.xlu0 %3736
      %3738 = vrot.lane.b32.xlu0 %v2870, 99
      %v3739 = vpop.permute.xlu0 %3738
      %3740 = vrot.lane.b32.xlu0 %v2871, 99
      %v3741 = vpop.permute.xlu0 %3740
      %3742 = vrot.lane.b32.xlu0 %v2872, 99
      %v3743 = vpop.permute.xlu0 %3742
      %3744 = vrot.lane.b32.xlu0 %v2873, 99
      %v3745 = vpop.permute.xlu0 %3744
      %3746 = vrot.lane.b32.xlu0 %v2874, 99
      %v3747 = vpop.permute.xlu0 %3746
      %3748 = vrot.lane.b32.xlu0 %v2875, 99
      %v3749 = vpop.permute.xlu0 %3748
      %vm3750 = vcmask 809984
      %v3751 = vsel %vm3750, %v3719, %v3721
      %v3752 = vsel %vm3750, %v3721, %v3723
      %v3753 = vsel %vm3750, %v3723, %v3725
      %v3754 = vsel %vm3750, %v3725, %v3727
      %v3755 = vsel %vm3750, %v3727, %v3729
      %v3756 = vsel %vm3750, %v3729, %v3731
      %v3757 = vsel %vm3750, %v3731, %v3733
      %v3758 = vsel %vm3750, %v3733, %v3735
      %v3759 = vsel %vm3750, %v3735, %v3737
      %v3760 = vsel %vm3750, %v3737, %v3739
      %v3761 = vsel %vm3750, %v3739, %v3741
      %v3762 = vsel %vm3750, %v3741, %v3743
      %v3763 = vsel %vm3750, %v3743, %v3745
      %v3764 = vsel %vm3750, %v3745, %v3747
      %v3765 = vsel %vm3750, %v3747, %v3749
      %v3766 = vsel %vm3750, %v3749, %v3719
      %3783 = vst [vmem:[#allocation2 + $0x580] sm:$0xff] %v3751
      %3784 = vst [vmem:[#allocation2 + $0x588] sm:$0xff] %v3752
      %3785 = vst [vmem:[#allocation2 + $0x590] sm:$0xff] %v3753
      %3786 = vst [vmem:[#allocation2 + $0x598] sm:$0xff] %v3754
      %3787 = vst [vmem:[#allocation2 + $0x5a0] sm:$0xff] %v3755
      %3788 = vst [vmem:[#allocation2 + $0x5a8] sm:$0xff] %v3756
      %3789 = vst [vmem:[#allocation2 + $0x5b0] sm:$0xff] %v3757
      %3790 = vst [vmem:[#allocation2 + $0x5b8] sm:$0xff] %v3758
      %3791 = vst [vmem:[#allocation2 + $0x5c0] sm:$0xff] %v3759
      %3792 = vst [vmem:[#allocation2 + $0x5c8] sm:$0xff] %v3760
      %3793 = vst [vmem:[#allocation2 + $0x5d0] sm:$0xff] %v3761
      %3794 = vst [vmem:[#allocation2 + $0x5d8] sm:$0xff] %v3762
      %3795 = vst [vmem:[#allocation2 + $0x5e0] sm:$0xff] %v3763
      %3796 = vst [vmem:[#allocation2 + $0x5e8] sm:$0xff] %v3764
      %3797 = vst [vmem:[#allocation2 + $0x5f0] sm:$0xff] %v3765
      %3798 = vst [vmem:[#allocation2 + $0x5f8] sm:$0xff] %v3766
      %3799 = vrot.lane.b32.xlu0 %v2860, 98
      %v3800 = vpop.permute.xlu0 %3799
      %3801 = vrot.lane.b32.xlu0 %v2861, 98
      %v3802 = vpop.permute.xlu0 %3801
      %3803 = vrot.lane.b32.xlu0 %v2862, 98
      %v3804 = vpop.permute.xlu0 %3803
      %3805 = vrot.lane.b32.xlu0 %v2863, 98
      %v3806 = vpop.permute.xlu0 %3805
      %3807 = vrot.lane.b32.xlu0 %v2864, 98
      %v3808 = vpop.permute.xlu0 %3807
      %3809 = vrot.lane.b32.xlu0 %v2865, 98
      %v3810 = vpop.permute.xlu0 %3809
      %3811 = vrot.lane.b32.xlu0 %v2866, 98
      %v3812 = vpop.permute.xlu0 %3811
      %3813 = vrot.lane.b32.xlu0 %v2867, 98
      %v3814 = vpop.permute.xlu0 %3813
      %3815 = vrot.lane.b32.xlu0 %v2868, 98
      %v3816 = vpop.permute.xlu0 %3815
      %3817 = vrot.lane.b32.xlu0 %v2869, 98
      %v3818 = vpop.permute.xlu0 %3817
      %3819 = vrot.lane.b32.xlu0 %v2870, 98
      %v3820 = vpop.permute.xlu0 %3819
      %3821 = vrot.lane.b32.xlu0 %v2871, 98
      %v3822 = vpop.permute.xlu0 %3821
      %3823 = vrot.lane.b32.xlu0 %v2872, 98
      %v3824 = vpop.permute.xlu0 %3823
      %3825 = vrot.lane.b32.xlu0 %v2873, 98
      %v3826 = vpop.permute.xlu0 %3825
      %3827 = vrot.lane.b32.xlu0 %v2874, 98
      %v3828 = vpop.permute.xlu0 %3827
      %3829 = vrot.lane.b32.xlu0 %v2875, 98
      %v3830 = vpop.permute.xlu0 %3829
      %vm3831 = vcmask 801792
      %v3832 = vsel %vm3831, %v3800, %v3802
      %v3833 = vsel %vm3831, %v3802, %v3804
      %v3834 = vsel %vm3831, %v3804, %v3806
      %v3835 = vsel %vm3831, %v3806, %v3808
      %v3836 = vsel %vm3831, %v3808, %v3810
      %v3837 = vsel %vm3831, %v3810, %v3812
      %v3838 = vsel %vm3831, %v3812, %v3814
      %v3839 = vsel %vm3831, %v3814, %v3816
      %v3840 = vsel %vm3831, %v3816, %v3818
      %v3841 = vsel %vm3831, %v3818, %v3820
      %v3842 = vsel %vm3831, %v3820, %v3822
      %v3843 = vsel %vm3831, %v3822, %v3824
      %v3844 = vsel %vm3831, %v3824, %v3826
      %v3845 = vsel %vm3831, %v3826, %v3828
      %v3846 = vsel %vm3831, %v3828, %v3830
      %v3847 = vsel %vm3831, %v3830, %v3800
      %3864 = vst [vmem:[#allocation2 + $0x600] sm:$0xff] %v3832
      %3865 = vst [vmem:[#allocation2 + $0x608] sm:$0xff] %v3833
      %3866 = vst [vmem:[#allocation2 + $0x610] sm:$0xff] %v3834
      %3867 = vst [vmem:[#allocation2 + $0x618] sm:$0xff] %v3835
      %3868 = vst [vmem:[#allocation2 + $0x620] sm:$0xff] %v3836
      %3869 = vst [vmem:[#allocation2 + $0x628] sm:$0xff] %v3837
      %3870 = vst [vmem:[#allocation2 + $0x630] sm:$0xff] %v3838
      %3871 = vst [vmem:[#allocation2 + $0x638] sm:$0xff] %v3839
      %3872 = vst [vmem:[#allocation2 + $0x640] sm:$0xff] %v3840
      %3873 = vst [vmem:[#allocation2 + $0x648] sm:$0xff] %v3841
      %3874 = vst [vmem:[#allocation2 + $0x650] sm:$0xff] %v3842
      %3875 = vst [vmem:[#allocation2 + $0x658] sm:$0xff] %v3843
      %3876 = vst [vmem:[#allocation2 + $0x660] sm:$0xff] %v3844
      %3877 = vst [vmem:[#allocation2 + $0x668] sm:$0xff] %v3845
      %3878 = vst [vmem:[#allocation2 + $0x670] sm:$0xff] %v3846
      %3879 = vst [vmem:[#allocation2 + $0x678] sm:$0xff] %v3847
      %3880 = vrot.lane.b32.xlu0 %v2860, 97
      %v3881 = vpop.permute.xlu0 %3880
      %3882 = vrot.lane.b32.xlu0 %v2861, 97
      %v3883 = vpop.permute.xlu0 %3882
      %3884 = vrot.lane.b32.xlu0 %v2862, 97
      %v3885 = vpop.permute.xlu0 %3884
      %3886 = vrot.lane.b32.xlu0 %v2863, 97
      %v3887 = vpop.permute.xlu0 %3886
      %3888 = vrot.lane.b32.xlu0 %v2864, 97
      %v3889 = vpop.permute.xlu0 %3888
      %3890 = vrot.lane.b32.xlu0 %v2865, 97
      %v3891 = vpop.permute.xlu0 %3890
      %3892 = vrot.lane.b32.xlu0 %v2866, 97
      %v3893 = vpop.permute.xlu0 %3892
      %3894 = vrot.lane.b32.xlu0 %v2867, 97
      %v3895 = vpop.permute.xlu0 %3894
      %3896 = vrot.lane.b32.xlu0 %v2868, 97
      %v3897 = vpop.permute.xlu0 %3896
      %3898 = vrot.lane.b32.xlu0 %v2869, 97
      %v3899 = vpop.permute.xlu0 %3898
      %3900 = vrot.lane.b32.xlu0 %v2870, 97
      %v3901 = vpop.permute.xlu0 %3900
      %3902 = vrot.lane.b32.xlu0 %v2871, 97
      %v3903 = vpop.permute.xlu0 %3902
      %3904 = vrot.lane.b32.xlu0 %v2872, 97
      %v3905 = vpop.permute.xlu0 %3904
      %3906 = vrot.lane.b32.xlu0 %v2873, 97
      %v3907 = vpop.permute.xlu0 %3906
      %3908 = vrot.lane.b32.xlu0 %v2874, 97
      %v3909 = vpop.permute.xlu0 %3908
      %3910 = vrot.lane.b32.xlu0 %v2875, 97
      %v3911 = vpop.permute.xlu0 %3910
      %vm3912 = vcmask 793600
      %v3913 = vsel %vm3912, %v3881, %v3883
      %v3914 = vsel %vm3912, %v3883, %v3885
      %v3915 = vsel %vm3912, %v3885, %v3887
      %v3916 = vsel %vm3912, %v3887, %v3889
      %v3917 = vsel %vm3912, %v3889, %v3891
      %v3918 = vsel %vm3912, %v3891, %v3893
      %v3919 = vsel %vm3912, %v3893, %v3895
      %v3920 = vsel %vm3912, %v3895, %v3897
      %v3921 = vsel %vm3912, %v3897, %v3899
      %v3922 = vsel %vm3912, %v3899, %v3901
      %v3923 = vsel %vm3912, %v3901, %v3903
      %v3924 = vsel %vm3912, %v3903, %v3905
      %v3925 = vsel %vm3912, %v3905, %v3907
      %v3926 = vsel %vm3912, %v3907, %v3909
      %v3927 = vsel %vm3912, %v3909, %v3911
      %v3928 = vsel %vm3912, %v3911, %v3881
      %3945 = vst [vmem:[#allocation2 + $0x680] sm:$0xff] %v3913
      %3946 = vst [vmem:[#allocation2 + $0x688] sm:$0xff] %v3914
      %3947 = vst [vmem:[#allocation2 + $0x690] sm:$0xff] %v3915
      %3948 = vst [vmem:[#allocation2 + $0x698] sm:$0xff] %v3916
      %3949 = vst [vmem:[#allocation2 + $0x6a0] sm:$0xff] %v3917
      %3950 = vst [vmem:[#allocation2 + $0x6a8] sm:$0xff] %v3918
      %3951 = vst [vmem:[#allocation2 + $0x6b0] sm:$0xff] %v3919
      %3952 = vst [vmem:[#allocation2 + $0x6b8] sm:$0xff] %v3920
      %3953 = vst [vmem:[#allocation2 + $0x6c0] sm:$0xff] %v3921
      %3954 = vst [vmem:[#allocation2 + $0x6c8] sm:$0xff] %v3922
      %3955 = vst [vmem:[#allocation2 + $0x6d0] sm:$0xff] %v3923
      %3956 = vst [vmem:[#allocation2 + $0x6d8] sm:$0xff] %v3924
      %3957 = vst [vmem:[#allocation2 + $0x6e0] sm:$0xff] %v3925
      %3958 = vst [vmem:[#allocation2 + $0x6e8] sm:$0xff] %v3926
      %3959 = vst [vmem:[#allocation2 + $0x6f0] sm:$0xff] %v3927
      %3960 = vst [vmem:[#allocation2 + $0x6f8] sm:$0xff] %v3928
      %3961 = vrot.lane.b32.xlu0 %v2860, 96
      %v3962 = vpop.permute.xlu0 %3961
      %3963 = vrot.lane.b32.xlu0 %v2861, 96
      %v3964 = vpop.permute.xlu0 %3963
      %3965 = vrot.lane.b32.xlu0 %v2862, 96
      %v3966 = vpop.permute.xlu0 %3965
      %3967 = vrot.lane.b32.xlu0 %v2863, 96
      %v3968 = vpop.permute.xlu0 %3967
      %3969 = vrot.lane.b32.xlu0 %v2864, 96
      %v3970 = vpop.permute.xlu0 %3969
      %3971 = vrot.lane.b32.xlu0 %v2865, 96
      %v3972 = vpop.permute.xlu0 %3971
      %3973 = vrot.lane.b32.xlu0 %v2866, 96
      %v3974 = vpop.permute.xlu0 %3973
      %3975 = vrot.lane.b32.xlu0 %v2867, 96
      %v3976 = vpop.permute.xlu0 %3975
      %3977 = vrot.lane.b32.xlu0 %v2868, 96
      %v3978 = vpop.permute.xlu0 %3977
      %3979 = vrot.lane.b32.xlu0 %v2869, 96
      %v3980 = vpop.permute.xlu0 %3979
      %3981 = vrot.lane.b32.xlu0 %v2870, 96
      %v3982 = vpop.permute.xlu0 %3981
      %3983 = vrot.lane.b32.xlu0 %v2871, 96
      %v3984 = vpop.permute.xlu0 %3983
      %3985 = vrot.lane.b32.xlu0 %v2872, 96
      %v3986 = vpop.permute.xlu0 %3985
      %3987 = vrot.lane.b32.xlu0 %v2873, 96
      %v3988 = vpop.permute.xlu0 %3987
      %3989 = vrot.lane.b32.xlu0 %v2874, 96
      %v3990 = vpop.permute.xlu0 %3989
      %3991 = vrot.lane.b32.xlu0 %v2875, 96
      %v3992 = vpop.permute.xlu0 %3991
      %vm3993 = vcmask 785408
      %v3994 = vsel %vm3993, %v3962, %v3964
      %v3995 = vsel %vm3993, %v3964, %v3966
      %v3996 = vsel %vm3993, %v3966, %v3968
      %v3997 = vsel %vm3993, %v3968, %v3970
      %v3998 = vsel %vm3993, %v3970, %v3972
      %v3999 = vsel %vm3993, %v3972, %v3974
      %v4000 = vsel %vm3993, %v3974, %v3976
      %v4001 = vsel %vm3993, %v3976, %v3978
      %v4002 = vsel %vm3993, %v3978, %v3980
      %v4003 = vsel %vm3993, %v3980, %v3982
      %v4004 = vsel %vm3993, %v3982, %v3984
      %v4005 = vsel %vm3993, %v3984, %v3986
      %v4006 = vsel %vm3993, %v3986, %v3988
      %v4007 = vsel %vm3993, %v3988, %v3990
      %v4008 = vsel %vm3993, %v3990, %v3992
      %v4009 = vsel %vm3993, %v3992, %v3962
      %4026 = vst [vmem:[#allocation2 + $0x700] sm:$0xff] %v3994
      %4027 = vst [vmem:[#allocation2 + $0x708] sm:$0xff] %v3995
      %4028 = vst [vmem:[#allocation2 + $0x710] sm:$0xff] %v3996
      %4029 = vst [vmem:[#allocation2 + $0x718] sm:$0xff] %v3997
      %4030 = vst [vmem:[#allocation2 + $0x720] sm:$0xff] %v3998
      %4031 = vst [vmem:[#allocation2 + $0x728] sm:$0xff] %v3999
      %4032 = vst [vmem:[#allocation2 + $0x730] sm:$0xff] %v4000
      %4033 = vst [vmem:[#allocation2 + $0x738] sm:$0xff] %v4001
      %4034 = vst [vmem:[#allocation2 + $0x740] sm:$0xff] %v4002
      %4035 = vst [vmem:[#allocation2 + $0x748] sm:$0xff] %v4003
      %4036 = vst [vmem:[#allocation2 + $0x750] sm:$0xff] %v4004
      %4037 = vst [vmem:[#allocation2 + $0x758] sm:$0xff] %v4005
      %4038 = vst [vmem:[#allocation2 + $0x760] sm:$0xff] %v4006
      %4039 = vst [vmem:[#allocation2 + $0x768] sm:$0xff] %v4007
      %4040 = vst [vmem:[#allocation2 + $0x770] sm:$0xff] %v4008
      %4041 = vst [vmem:[#allocation2 + $0x778] sm:$0xff] %v4009
      %4042 = vrot.lane.b32.xlu0 %v2860, 86
      %v4043 = vpop.permute.xlu0 %4042
      %4044 = vrot.lane.b32.xlu0 %v2861, 86
      %v4045 = vpop.permute.xlu0 %4044
      %4046 = vrot.lane.b32.xlu0 %v2862, 86
      %v4047 = vpop.permute.xlu0 %4046
      %4048 = vrot.lane.b32.xlu0 %v2863, 86
      %v4049 = vpop.permute.xlu0 %4048
      %4050 = vrot.lane.b32.xlu0 %v2864, 86
      %v4051 = vpop.permute.xlu0 %4050
      %4052 = vrot.lane.b32.xlu0 %v2865, 86
      %v4053 = vpop.permute.xlu0 %4052
      %4054 = vrot.lane.b32.xlu0 %v2866, 86
      %v4055 = vpop.permute.xlu0 %4054
      %4056 = vrot.lane.b32.xlu0 %v2867, 86
      %v4057 = vpop.permute.xlu0 %4056
      %4058 = vrot.lane.b32.xlu0 %v2868, 86
      %v4059 = vpop.permute.xlu0 %4058
      %4060 = vrot.lane.b32.xlu0 %v2869, 86
      %v4061 = vpop.permute.xlu0 %4060
      %4062 = vrot.lane.b32.xlu0 %v2870, 86
      %v4063 = vpop.permute.xlu0 %4062
      %4064 = vrot.lane.b32.xlu0 %v2871, 86
      %v4065 = vpop.permute.xlu0 %4064
      %4066 = vrot.lane.b32.xlu0 %v2872, 86
      %v4067 = vpop.permute.xlu0 %4066
      %4068 = vrot.lane.b32.xlu0 %v2873, 86
      %v4069 = vpop.permute.xlu0 %4068
      %4070 = vrot.lane.b32.xlu0 %v2874, 86
      %v4071 = vpop.permute.xlu0 %4070
      %4072 = vrot.lane.b32.xlu0 %v2875, 86
      %v4073 = vpop.permute.xlu0 %4072
      %vm4074 = vcmask 703488
      %v4075 = vsel %vm4074, %v4043, %v4045
      %v4076 = vsel %vm4074, %v4045, %v4047
      %v4077 = vsel %vm4074, %v4047, %v4049
      %v4078 = vsel %vm4074, %v4049, %v4051
      %v4079 = vsel %vm4074, %v4051, %v4053
      %v4080 = vsel %vm4074, %v4053, %v4055
      %v4081 = vsel %vm4074, %v4055, %v4057
      %v4082 = vsel %vm4074, %v4057, %v4059
      %v4083 = vsel %vm4074, %v4059, %v4061
      %v4084 = vsel %vm4074, %v4061, %v4063
      %v4085 = vsel %vm4074, %v4063, %v4065
      %v4086 = vsel %vm4074, %v4065, %v4067
      %v4087 = vsel %vm4074, %v4067, %v4069
      %v4088 = vsel %vm4074, %v4069, %v4071
      %v4089 = vsel %vm4074, %v4071, %v4073
      %v4090 = vsel %vm4074, %v4073, %v4043
      %4107 = vst [vmem:[#allocation2 + $0x780] sm:$0xff] %v4075
      %4108 = vst [vmem:[#allocation2 + $0x788] sm:$0xff] %v4076
      %4109 = vst [vmem:[#allocation2 + $0x790] sm:$0xff] %v4077
      %4110 = vst [vmem:[#allocation2 + $0x798] sm:$0xff] %v4078
      %4111 = vst [vmem:[#allocation2 + $0x7a0] sm:$0xff] %v4079
      %4112 = vst [vmem:[#allocation2 + $0x7a8] sm:$0xff] %v4080
      %4113 = vst [vmem:[#allocation2 + $0x7b0] sm:$0xff] %v4081
      %4114 = vst [vmem:[#allocation2 + $0x7b8] sm:$0xff] %v4082
      %4115 = vst [vmem:[#allocation2 + $0x7c0] sm:$0xff] %v4083
      %4116 = vst [vmem:[#allocation2 + $0x7c8] sm:$0xff] %v4084
      %4117 = vst [vmem:[#allocation2 + $0x7d0] sm:$0xff] %v4085
      %4118 = vst [vmem:[#allocation2 + $0x7d8] sm:$0xff] %v4086
      %4119 = vst [vmem:[#allocation2 + $0x7e0] sm:$0xff] %v4087
      %4120 = vst [vmem:[#allocation2 + $0x7e8] sm:$0xff] %v4088
      %4121 = vst [vmem:[#allocation2 + $0x7f0] sm:$0xff] %v4089
      %4122 = vst [vmem:[#allocation2 + $0x7f8] sm:$0xff] %v4090
      %4123 = vrot.lane.b32.xlu0 %v2860, 85
      %v4124 = vpop.permute.xlu0 %4123
      %4125 = vrot.lane.b32.xlu0 %v2861, 85
      %v4126 = vpop.permute.xlu0 %4125
      %4127 = vrot.lane.b32.xlu0 %v2862, 85
      %v4128 = vpop.permute.xlu0 %4127
      %4129 = vrot.lane.b32.xlu0 %v2863, 85
      %v4130 = vpop.permute.xlu0 %4129
      %4131 = vrot.lane.b32.xlu0 %v2864, 85
      %v4132 = vpop.permute.xlu0 %4131
      %4133 = vrot.lane.b32.xlu0 %v2865, 85
      %v4134 = vpop.permute.xlu0 %4133
      %4135 = vrot.lane.b32.xlu0 %v2866, 85
      %v4136 = vpop.permute.xlu0 %4135
      %4137 = vrot.lane.b32.xlu0 %v2867, 85
      %v4138 = vpop.permute.xlu0 %4137
      %4139 = vrot.lane.b32.xlu0 %v2868, 85
      %v4140 = vpop.permute.xlu0 %4139
      %4141 = vrot.lane.b32.xlu0 %v2869, 85
      %v4142 = vpop.permute.xlu0 %4141
      %4143 = vrot.lane.b32.xlu0 %v2870, 85
      %v4144 = vpop.permute.xlu0 %4143
      %4145 = vrot.lane.b32.xlu0 %v2871, 85
      %v4146 = vpop.permute.xlu0 %4145
      %4147 = vrot.lane.b32.xlu0 %v2872, 85
      %v4148 = vpop.permute.xlu0 %4147
      %4149 = vrot.lane.b32.xlu0 %v2873, 85
      %v4150 = vpop.permute.xlu0 %4149
      %4151 = vrot.lane.b32.xlu0 %v2874, 85
      %v4152 = vpop.permute.xlu0 %4151
      %4153 = vrot.lane.b32.xlu0 %v2875, 85
      %v4154 = vpop.permute.xlu0 %4153
      %vm4155 = vcmask 695296
      %v4156 = vsel %vm4155, %v4124, %v4126
      %v4157 = vsel %vm4155, %v4126, %v4128
      %v4158 = vsel %vm4155, %v4128, %v4130
      %v4159 = vsel %vm4155, %v4130, %v4132
      %v4160 = vsel %vm4155, %v4132, %v4134
      %v4161 = vsel %vm4155, %v4134, %v4136
      %v4162 = vsel %vm4155, %v4136, %v4138
      %v4163 = vsel %vm4155, %v4138, %v4140
      %v4164 = vsel %vm4155, %v4140, %v4142
      %v4165 = vsel %vm4155, %v4142, %v4144
      %v4166 = vsel %vm4155, %v4144, %v4146
      %v4167 = vsel %vm4155, %v4146, %v4148
      %v4168 = vsel %vm4155, %v4148, %v4150
      %v4169 = vsel %vm4155, %v4150, %v4152
      %v4170 = vsel %vm4155, %v4152, %v4154
      %v4171 = vsel %vm4155, %v4154, %v4124
      %4188 = vst [vmem:[#allocation2 + $0x800] sm:$0xff] %v4156
      %4189 = vst [vmem:[#allocation2 + $0x808] sm:$0xff] %v4157
      %4190 = vst [vmem:[#allocation2 + $0x810] sm:$0xff] %v4158
      %4191 = vst [vmem:[#allocation2 + $0x818] sm:$0xff] %v4159
      %4192 = vst [vmem:[#allocation2 + $0x820] sm:$0xff] %v4160
      %4193 = vst [vmem:[#allocation2 + $0x828] sm:$0xff] %v4161
      %4194 = vst [vmem:[#allocation2 + $0x830] sm:$0xff] %v4162
      %4195 = vst [vmem:[#allocation2 + $0x838] sm:$0xff] %v4163
      %4196 = vst [vmem:[#allocation2 + $0x840] sm:$0xff] %v4164
      %4197 = vst [vmem:[#allocation2 + $0x848] sm:$0xff] %v4165
      %4198 = vst [vmem:[#allocation2 + $0x850] sm:$0xff] %v4166
      %4199 = vst [vmem:[#allocation2 + $0x858] sm:$0xff] %v4167
      %4200 = vst [vmem:[#allocation2 + $0x860] sm:$0xff] %v4168
      %4201 = vst [vmem:[#allocation2 + $0x868] sm:$0xff] %v4169
      %4202 = vst [vmem:[#allocation2 + $0x870] sm:$0xff] %v4170
      %4203 = vst [vmem:[#allocation2 + $0x878] sm:$0xff] %v4171
      %4204 = vrot.lane.b32.xlu0 %v2860, 84
      %v4205 = vpop.permute.xlu0 %4204
      %4206 = vrot.lane.b32.xlu0 %v2861, 84
      %v4207 = vpop.permute.xlu0 %4206
      %4208 = vrot.lane.b32.xlu0 %v2862, 84
      %v4209 = vpop.permute.xlu0 %4208
      %4210 = vrot.lane.b32.xlu0 %v2863, 84
      %v4211 = vpop.permute.xlu0 %4210
      %4212 = vrot.lane.b32.xlu0 %v2864, 84
      %v4213 = vpop.permute.xlu0 %4212
      %4214 = vrot.lane.b32.xlu0 %v2865, 84
      %v4215 = vpop.permute.xlu0 %4214
      %4216 = vrot.lane.b32.xlu0 %v2866, 84
      %v4217 = vpop.permute.xlu0 %4216
      %4218 = vrot.lane.b32.xlu0 %v2867, 84
      %v4219 = vpop.permute.xlu0 %4218
      %4220 = vrot.lane.b32.xlu0 %v2868, 84
      %v4221 = vpop.permute.xlu0 %4220
      %4222 = vrot.lane.b32.xlu0 %v2869, 84
      %v4223 = vpop.permute.xlu0 %4222
      %4224 = vrot.lane.b32.xlu0 %v2870, 84
      %v4225 = vpop.permute.xlu0 %4224
      %4226 = vrot.lane.b32.xlu0 %v2871, 84
      %v4227 = vpop.permute.xlu0 %4226
      %4228 = vrot.lane.b32.xlu0 %v2872, 84
      %v4229 = vpop.permute.xlu0 %4228
      %4230 = vrot.lane.b32.xlu0 %v2873, 84
      %v4231 = vpop.permute.xlu0 %4230
      %4232 = vrot.lane.b32.xlu0 %v2874, 84
      %v4233 = vpop.permute.xlu0 %4232
      %4234 = vrot.lane.b32.xlu0 %v2875, 84
      %v4235 = vpop.permute.xlu0 %4234
      %vm4236 = vcmask 687104
      %v4237 = vsel %vm4236, %v4205, %v4207
      %v4238 = vsel %vm4236, %v4207, %v4209
      %v4239 = vsel %vm4236, %v4209, %v4211
      %v4240 = vsel %vm4236, %v4211, %v4213
      %v4241 = vsel %vm4236, %v4213, %v4215
      %v4242 = vsel %vm4236, %v4215, %v4217
      %v4243 = vsel %vm4236, %v4217, %v4219
      %v4244 = vsel %vm4236, %v4219, %v4221
      %v4245 = vsel %vm4236, %v4221, %v4223
      %v4246 = vsel %vm4236, %v4223, %v4225
      %v4247 = vsel %vm4236, %v4225, %v4227
      %v4248 = vsel %vm4236, %v4227, %v4229
      %v4249 = vsel %vm4236, %v4229, %v4231
      %v4250 = vsel %vm4236, %v4231, %v4233
      %v4251 = vsel %vm4236, %v4233, %v4235
      %v4252 = vsel %vm4236, %v4235, %v4205
      %4269 = vst [vmem:[#allocation2 + $0x880] sm:$0xff] %v4237
      %4270 = vst [vmem:[#allocation2 + $0x888] sm:$0xff] %v4238
      %4271 = vst [vmem:[#allocation2 + $0x890] sm:$0xff] %v4239
      %4272 = vst [vmem:[#allocation2 + $0x898] sm:$0xff] %v4240
      %4273 = vst [vmem:[#allocation2 + $0x8a0] sm:$0xff] %v4241
      %4274 = vst [vmem:[#allocation2 + $0x8a8] sm:$0xff] %v4242
      %4275 = vst [vmem:[#allocation2 + $0x8b0] sm:$0xff] %v4243
      %4276 = vst [vmem:[#allocation2 + $0x8b8] sm:$0xff] %v4244
      %4277 = vst [vmem:[#allocation2 + $0x8c0] sm:$0xff] %v4245
      %4278 = vst [vmem:[#allocation2 + $0x8c8] sm:$0xff] %v4246
      %4279 = vst [vmem:[#allocation2 + $0x8d0] sm:$0xff] %v4247
      %4280 = vst [vmem:[#allocation2 + $0x8d8] sm:$0xff] %v4248
      %4281 = vst [vmem:[#allocation2 + $0x8e0] sm:$0xff] %v4249
      %4282 = vst [vmem:[#allocation2 + $0x8e8] sm:$0xff] %v4250
      %4283 = vst [vmem:[#allocation2 + $0x8f0] sm:$0xff] %v4251
      %4284 = vst [vmem:[#allocation2 + $0x8f8] sm:$0xff] %v4252
      %4285 = vrot.lane.b32.xlu0 %v2860, 83
      %v4286 = vpop.permute.xlu0 %4285
      %4287 = vrot.lane.b32.xlu0 %v2861, 83
      %v4288 = vpop.permute.xlu0 %4287
      %4289 = vrot.lane.b32.xlu0 %v2862, 83
      %v4290 = vpop.permute.xlu0 %4289
      %4291 = vrot.lane.b32.xlu0 %v2863, 83
      %v4292 = vpop.permute.xlu0 %4291
      %4293 = vrot.lane.b32.xlu0 %v2864, 83
      %v4294 = vpop.permute.xlu0 %4293
      %4295 = vrot.lane.b32.xlu0 %v2865, 83
      %v4296 = vpop.permute.xlu0 %4295
      %4297 = vrot.lane.b32.xlu0 %v2866, 83
      %v4298 = vpop.permute.xlu0 %4297
      %4299 = vrot.lane.b32.xlu0 %v2867, 83
      %v4300 = vpop.permute.xlu0 %4299
      %4301 = vrot.lane.b32.xlu0 %v2868, 83
      %v4302 = vpop.permute.xlu0 %4301
      %4303 = vrot.lane.b32.xlu0 %v2869, 83
      %v4304 = vpop.permute.xlu0 %4303
      %4305 = vrot.lane.b32.xlu0 %v2870, 83
      %v4306 = vpop.permute.xlu0 %4305
      %4307 = vrot.lane.b32.xlu0 %v2871, 83
      %v4308 = vpop.permute.xlu0 %4307
      %4309 = vrot.lane.b32.xlu0 %v2872, 83
      %v4310 = vpop.permute.xlu0 %4309
      %4311 = vrot.lane.b32.xlu0 %v2873, 83
      %v4312 = vpop.permute.xlu0 %4311
      %4313 = vrot.lane.b32.xlu0 %v2874, 83
      %v4314 = vpop.permute.xlu0 %4313
      %4315 = vrot.lane.b32.xlu0 %v2875, 83
      %v4316 = vpop.permute.xlu0 %4315
      %vm4317 = vcmask 678912
      %v4318 = vsel %vm4317, %v4286, %v4288
      %v4319 = vsel %vm4317, %v4288, %v4290
      %v4320 = vsel %vm4317, %v4290, %v4292
      %v4321 = vsel %vm4317, %v4292, %v4294
      %v4322 = vsel %vm4317, %v4294, %v4296
      %v4323 = vsel %vm4317, %v4296, %v4298
      %v4324 = vsel %vm4317, %v4298, %v4300
      %v4325 = vsel %vm4317, %v4300, %v4302
      %v4326 = vsel %vm4317, %v4302, %v4304
      %v4327 = vsel %vm4317, %v4304, %v4306
      %v4328 = vsel %vm4317, %v4306, %v4308
      %v4329 = vsel %vm4317, %v4308, %v4310
      %v4330 = vsel %vm4317, %v4310, %v4312
      %v4331 = vsel %vm4317, %v4312, %v4314
      %v4332 = vsel %vm4317, %v4314, %v4316
      %v4333 = vsel %vm4317, %v4316, %v4286
      %4350 = vst [vmem:[#allocation2 + $0x900] sm:$0xff] %v4318
      %4351 = vst [vmem:[#allocation2 + $0x908] sm:$0xff] %v4319
      %4352 = vst [vmem:[#allocation2 + $0x910] sm:$0xff] %v4320
      %4353 = vst [vmem:[#allocation2 + $0x918] sm:$0xff] %v4321
      %4354 = vst [vmem:[#allocation2 + $0x920] sm:$0xff] %v4322
      %4355 = vst [vmem:[#allocation2 + $0x928] sm:$0xff] %v4323
      %4356 = vst [vmem:[#allocation2 + $0x930] sm:$0xff] %v4324
      %4357 = vst [vmem:[#allocation2 + $0x938] sm:$0xff] %v4325
      %4358 = vst [vmem:[#allocation2 + $0x940] sm:$0xff] %v4326
      %4359 = vst [vmem:[#allocation2 + $0x948] sm:$0xff] %v4327
      %4360 = vst [vmem:[#allocation2 + $0x950] sm:$0xff] %v4328
      %4361 = vst [vmem:[#allocation2 + $0x958] sm:$0xff] %v4329
      %4362 = vst [vmem:[#allocation2 + $0x960] sm:$0xff] %v4330
      %4363 = vst [vmem:[#allocation2 + $0x968] sm:$0xff] %v4331
      %4364 = vst [vmem:[#allocation2 + $0x970] sm:$0xff] %v4332
      %4365 = vst [vmem:[#allocation2 + $0x978] sm:$0xff] %v4333
      %4366 = vrot.lane.b32.xlu0 %v2860, 82
      %v4367 = vpop.permute.xlu0 %4366
      %4368 = vrot.lane.b32.xlu0 %v2861, 82
      %v4369 = vpop.permute.xlu0 %4368
      %4370 = vrot.lane.b32.xlu0 %v2862, 82
      %v4371 = vpop.permute.xlu0 %4370
      %4372 = vrot.lane.b32.xlu0 %v2863, 82
      %v4373 = vpop.permute.xlu0 %4372
      %4374 = vrot.lane.b32.xlu0 %v2864, 82
      %v4375 = vpop.permute.xlu0 %4374
      %4376 = vrot.lane.b32.xlu0 %v2865, 82
      %v4377 = vpop.permute.xlu0 %4376
      %4378 = vrot.lane.b32.xlu0 %v2866, 82
      %v4379 = vpop.permute.xlu0 %4378
      %4380 = vrot.lane.b32.xlu0 %v2867, 82
      %v4381 = vpop.permute.xlu0 %4380
      %4382 = vrot.lane.b32.xlu0 %v2868, 82
      %v4383 = vpop.permute.xlu0 %4382
      %4384 = vrot.lane.b32.xlu0 %v2869, 82
      %v4385 = vpop.permute.xlu0 %4384
      %4386 = vrot.lane.b32.xlu0 %v2870, 82
      %v4387 = vpop.permute.xlu0 %4386
      %4388 = vrot.lane.b32.xlu0 %v2871, 82
      %v4389 = vpop.permute.xlu0 %4388
      %4390 = vrot.lane.b32.xlu0 %v2872, 82
      %v4391 = vpop.permute.xlu0 %4390
      %4392 = vrot.lane.b32.xlu0 %v2873, 82
      %v4393 = vpop.permute.xlu0 %4392
      %4394 = vrot.lane.b32.xlu0 %v2874, 82
      %v4395 = vpop.permute.xlu0 %4394
      %4396 = vrot.lane.b32.xlu0 %v2875, 82
      %v4397 = vpop.permute.xlu0 %4396
      %vm4398 = vcmask 670720
      %v4399 = vsel %vm4398, %v4367, %v4369
      %v4400 = vsel %vm4398, %v4369, %v4371
      %v4401 = vsel %vm4398, %v4371, %v4373
      %v4402 = vsel %vm4398, %v4373, %v4375
      %v4403 = vsel %vm4398, %v4375, %v4377
      %v4404 = vsel %vm4398, %v4377, %v4379
      %v4405 = vsel %vm4398, %v4379, %v4381
      %v4406 = vsel %vm4398, %v4381, %v4383
      %v4407 = vsel %vm4398, %v4383, %v4385
      %v4408 = vsel %vm4398, %v4385, %v4387
      %v4409 = vsel %vm4398, %v4387, %v4389
      %v4410 = vsel %vm4398, %v4389, %v4391
      %v4411 = vsel %vm4398, %v4391, %v4393
      %v4412 = vsel %vm4398, %v4393, %v4395
      %v4413 = vsel %vm4398, %v4395, %v4397
      %v4414 = vsel %vm4398, %v4397, %v4367
      %4431 = vst [vmem:[#allocation2 + $0x980] sm:$0xff] %v4399
      %4432 = vst [vmem:[#allocation2 + $0x988] sm:$0xff] %v4400
      %4433 = vst [vmem:[#allocation2 + $0x990] sm:$0xff] %v4401
      %4434 = vst [vmem:[#allocation2 + $0x998] sm:$0xff] %v4402
      %4435 = vst [vmem:[#allocation2 + $0x9a0] sm:$0xff] %v4403
      %4436 = vst [vmem:[#allocation2 + $0x9a8] sm:$0xff] %v4404
      %4437 = vst [vmem:[#allocation2 + $0x9b0] sm:$0xff] %v4405
      %4438 = vst [vmem:[#allocation2 + $0x9b8] sm:$0xff] %v4406
      %4439 = vst [vmem:[#allocation2 + $0x9c0] sm:$0xff] %v4407
      %4440 = vst [vmem:[#allocation2 + $0x9c8] sm:$0xff] %v4408
      %4441 = vst [vmem:[#allocation2 + $0x9d0] sm:$0xff] %v4409
      %4442 = vst [vmem:[#allocation2 + $0x9d8] sm:$0xff] %v4410
      %4443 = vst [vmem:[#allocation2 + $0x9e0] sm:$0xff] %v4411
      %4444 = vst [vmem:[#allocation2 + $0x9e8] sm:$0xff] %v4412
      %4445 = vst [vmem:[#allocation2 + $0x9f0] sm:$0xff] %v4413
      %4446 = vst [vmem:[#allocation2 + $0x9f8] sm:$0xff] %v4414
      %4447 = vrot.lane.b32.xlu0 %v2860, 72
      %v4448 = vpop.permute.xlu0 %4447
      %4449 = vrot.lane.b32.xlu0 %v2861, 72
      %v4450 = vpop.permute.xlu0 %4449
      %4451 = vrot.lane.b32.xlu0 %v2862, 72
      %v4452 = vpop.permute.xlu0 %4451
      %4453 = vrot.lane.b32.xlu0 %v2863, 72
      %v4454 = vpop.permute.xlu0 %4453
      %4455 = vrot.lane.b32.xlu0 %v2864, 72
      %v4456 = vpop.permute.xlu0 %4455
      %4457 = vrot.lane.b32.xlu0 %v2865, 72
      %v4458 = vpop.permute.xlu0 %4457
      %4459 = vrot.lane.b32.xlu0 %v2866, 72
      %v4460 = vpop.permute.xlu0 %4459
      %4461 = vrot.lane.b32.xlu0 %v2867, 72
      %v4462 = vpop.permute.xlu0 %4461
      %4463 = vrot.lane.b32.xlu0 %v2868, 72
      %v4464 = vpop.permute.xlu0 %4463
      %4465 = vrot.lane.b32.xlu0 %v2869, 72
      %v4466 = vpop.permute.xlu0 %4465
      %4467 = vrot.lane.b32.xlu0 %v2870, 72
      %v4468 = vpop.permute.xlu0 %4467
      %4469 = vrot.lane.b32.xlu0 %v2871, 72
      %v4470 = vpop.permute.xlu0 %4469
      %4471 = vrot.lane.b32.xlu0 %v2872, 72
      %v4472 = vpop.permute.xlu0 %4471
      %4473 = vrot.lane.b32.xlu0 %v2873, 72
      %v4474 = vpop.permute.xlu0 %4473
      %4475 = vrot.lane.b32.xlu0 %v2874, 72
      %v4476 = vpop.permute.xlu0 %4475
      %4477 = vrot.lane.b32.xlu0 %v2875, 72
      %v4478 = vpop.permute.xlu0 %4477
      %vm4479 = vcmask 588800
      %v4480 = vsel %vm4479, %v4448, %v4450
      %v4481 = vsel %vm4479, %v4450, %v4452
      %v4482 = vsel %vm4479, %v4452, %v4454
      %v4483 = vsel %vm4479, %v4454, %v4456
      %v4484 = vsel %vm4479, %v4456, %v4458
      %v4485 = vsel %vm4479, %v4458, %v4460
      %v4486 = vsel %vm4479, %v4460, %v4462
      %v4487 = vsel %vm4479, %v4462, %v4464
      %v4488 = vsel %vm4479, %v4464, %v4466
      %v4489 = vsel %vm4479, %v4466, %v4468
      %v4490 = vsel %vm4479, %v4468, %v4470
      %v4491 = vsel %vm4479, %v4470, %v4472
      %v4492 = vsel %vm4479, %v4472, %v4474
      %v4493 = vsel %vm4479, %v4474, %v4476
      %v4494 = vsel %vm4479, %v4476, %v4478
      %v4495 = vsel %vm4479, %v4478, %v4448
      %4512 = vst [vmem:[#allocation2 + $0xa00] sm:$0xff] %v4480
      %4513 = vst [vmem:[#allocation2 + $0xa08] sm:$0xff] %v4481
      %4514 = vst [vmem:[#allocation2 + $0xa10] sm:$0xff] %v4482
      %4515 = vst [vmem:[#allocation2 + $0xa18] sm:$0xff] %v4483
      %4516 = vst [vmem:[#allocation2 + $0xa20] sm:$0xff] %v4484
      %4517 = vst [vmem:[#allocation2 + $0xa28] sm:$0xff] %v4485
      %4518 = vst [vmem:[#allocation2 + $0xa30] sm:$0xff] %v4486
      %4519 = vst [vmem:[#allocation2 + $0xa38] sm:$0xff] %v4487
      %4520 = vst [vmem:[#allocation2 + $0xa40] sm:$0xff] %v4488
      %4521 = vst [vmem:[#allocation2 + $0xa48] sm:$0xff] %v4489
      %4522 = vst [vmem:[#allocation2 + $0xa50] sm:$0xff] %v4490
      %4523 = vst [vmem:[#allocation2 + $0xa58] sm:$0xff] %v4491
      %4524 = vst [vmem:[#allocation2 + $0xa60] sm:$0xff] %v4492
      %4525 = vst [vmem:[#allocation2 + $0xa68] sm:$0xff] %v4493
      %4526 = vst [vmem:[#allocation2 + $0xa70] sm:$0xff] %v4494
      %4527 = vst [vmem:[#allocation2 + $0xa78] sm:$0xff] %v4495
      %4528 = vrot.lane.b32.xlu0 %v2860, 71
      %v4529 = vpop.permute.xlu0 %4528
      %4530 = vrot.lane.b32.xlu0 %v2861, 71
      %v4531 = vpop.permute.xlu0 %4530
      %4532 = vrot.lane.b32.xlu0 %v2862, 71
      %v4533 = vpop.permute.xlu0 %4532
      %4534 = vrot.lane.b32.xlu0 %v2863, 71
      %v4535 = vpop.permute.xlu0 %4534
      %4536 = vrot.lane.b32.xlu0 %v2864, 71
      %v4537 = vpop.permute.xlu0 %4536
      %4538 = vrot.lane.b32.xlu0 %v2865, 71
      %v4539 = vpop.permute.xlu0 %4538
      %4540 = vrot.lane.b32.xlu0 %v2866, 71
      %v4541 = vpop.permute.xlu0 %4540
      %4542 = vrot.lane.b32.xlu0 %v2867, 71
      %v4543 = vpop.permute.xlu0 %4542
      %4544 = vrot.lane.b32.xlu0 %v2868, 71
      %v4545 = vpop.permute.xlu0 %4544
      %4546 = vrot.lane.b32.xlu0 %v2869, 71
      %v4547 = vpop.permute.xlu0 %4546
      %4548 = vrot.lane.b32.xlu0 %v2870, 71
      %v4549 = vpop.permute.xlu0 %4548
      %4550 = vrot.lane.b32.xlu0 %v2871, 71
      %v4551 = vpop.permute.xlu0 %4550
      %4552 = vrot.lane.b32.xlu0 %v2872, 71
      %v4553 = vpop.permute.xlu0 %4552
      %4554 = vrot.lane.b32.xlu0 %v2873, 71
      %v4555 = vpop.permute.xlu0 %4554
      %4556 = vrot.lane.b32.xlu0 %v2874, 71
      %v4557 = vpop.permute.xlu0 %4556
      %4558 = vrot.lane.b32.xlu0 %v2875, 71
      %v4559 = vpop.permute.xlu0 %4558
      %vm4560 = vcmask 580608
      %v4561 = vsel %vm4560, %v4529, %v4531
      %v4562 = vsel %vm4560, %v4531, %v4533
      %v4563 = vsel %vm4560, %v4533, %v4535
      %v4564 = vsel %vm4560, %v4535, %v4537
      %v4565 = vsel %vm4560, %v4537, %v4539
      %v4566 = vsel %vm4560, %v4539, %v4541
      %v4567 = vsel %vm4560, %v4541, %v4543
      %v4568 = vsel %vm4560, %v4543, %v4545
      %v4569 = vsel %vm4560, %v4545, %v4547
      %v4570 = vsel %vm4560, %v4547, %v4549
      %v4571 = vsel %vm4560, %v4549, %v4551
      %v4572 = vsel %vm4560, %v4551, %v4553
      %v4573 = vsel %vm4560, %v4553, %v4555
      %v4574 = vsel %vm4560, %v4555, %v4557
      %v4575 = vsel %vm4560, %v4557, %v4559
      %v4576 = vsel %vm4560, %v4559, %v4529
      %4593 = vst [vmem:[#allocation2 + $0xa80] sm:$0xff] %v4561
      %4594 = vst [vmem:[#allocation2 + $0xa88] sm:$0xff] %v4562
      %4595 = vst [vmem:[#allocation2 + $0xa90] sm:$0xff] %v4563
      %4596 = vst [vmem:[#allocation2 + $0xa98] sm:$0xff] %v4564
      %4597 = vst [vmem:[#allocation2 + $0xaa0] sm:$0xff] %v4565
      %4598 = vst [vmem:[#allocation2 + $0xaa8] sm:$0xff] %v4566
      %4599 = vst [vmem:[#allocation2 + $0xab0] sm:$0xff] %v4567
      %4600 = vst [vmem:[#allocation2 + $0xab8] sm:$0xff] %v4568
      %4601 = vst [vmem:[#allocation2 + $0xac0] sm:$0xff] %v4569
      %4602 = vst [vmem:[#allocation2 + $0xac8] sm:$0xff] %v4570
      %4603 = vst [vmem:[#allocation2 + $0xad0] sm:$0xff] %v4571
      %4604 = vst [vmem:[#allocation2 + $0xad8] sm:$0xff] %v4572
      %4605 = vst [vmem:[#allocation2 + $0xae0] sm:$0xff] %v4573
      %4606 = vst [vmem:[#allocation2 + $0xae8] sm:$0xff] %v4574
      %4607 = vst [vmem:[#allocation2 + $0xaf0] sm:$0xff] %v4575
      %4608 = vst [vmem:[#allocation2 + $0xaf8] sm:$0xff] %v4576
      %4609 = vrot.lane.b32.xlu0 %v2860, 70
      %v4610 = vpop.permute.xlu0 %4609
      %4611 = vrot.lane.b32.xlu0 %v2861, 70
      %v4612 = vpop.permute.xlu0 %4611
      %4613 = vrot.lane.b32.xlu0 %v2862, 70
      %v4614 = vpop.permute.xlu0 %4613
      %4615 = vrot.lane.b32.xlu0 %v2863, 70
      %v4616 = vpop.permute.xlu0 %4615
      %4617 = vrot.lane.b32.xlu0 %v2864, 70
      %v4618 = vpop.permute.xlu0 %4617
      %4619 = vrot.lane.b32.xlu0 %v2865, 70
      %v4620 = vpop.permute.xlu0 %4619
      %4621 = vrot.lane.b32.xlu0 %v2866, 70
      %v4622 = vpop.permute.xlu0 %4621
      %4623 = vrot.lane.b32.xlu0 %v2867, 70
      %v4624 = vpop.permute.xlu0 %4623
      %4625 = vrot.lane.b32.xlu0 %v2868, 70
      %v4626 = vpop.permute.xlu0 %4625
      %4627 = vrot.lane.b32.xlu0 %v2869, 70
      %v4628 = vpop.permute.xlu0 %4627
      %4629 = vrot.lane.b32.xlu0 %v2870, 70
      %v4630 = vpop.permute.xlu0 %4629
      %4631 = vrot.lane.b32.xlu0 %v2871, 70
      %v4632 = vpop.permute.xlu0 %4631
      %4633 = vrot.lane.b32.xlu0 %v2872, 70
      %v4634 = vpop.permute.xlu0 %4633
      %4635 = vrot.lane.b32.xlu0 %v2873, 70
      %v4636 = vpop.permute.xlu0 %4635
      %4637 = vrot.lane.b32.xlu0 %v2874, 70
      %v4638 = vpop.permute.xlu0 %4637
      %4639 = vrot.lane.b32.xlu0 %v2875, 70
      %v4640 = vpop.permute.xlu0 %4639
      %vm4641 = vcmask 572416
      %v4642 = vsel %vm4641, %v4610, %v4612
      %v4643 = vsel %vm4641, %v4612, %v4614
      %v4644 = vsel %vm4641, %v4614, %v4616
      %v4645 = vsel %vm4641, %v4616, %v4618
      %v4646 = vsel %vm4641, %v4618, %v4620
      %v4647 = vsel %vm4641, %v4620, %v4622
      %v4648 = vsel %vm4641, %v4622, %v4624
      %v4649 = vsel %vm4641, %v4624, %v4626
      %v4650 = vsel %vm4641, %v4626, %v4628
      %v4651 = vsel %vm4641, %v4628, %v4630
      %v4652 = vsel %vm4641, %v4630, %v4632
      %v4653 = vsel %vm4641, %v4632, %v4634
      %v4654 = vsel %vm4641, %v4634, %v4636
      %v4655 = vsel %vm4641, %v4636, %v4638
      %v4656 = vsel %vm4641, %v4638, %v4640
      %v4657 = vsel %vm4641, %v4640, %v4610
      %4674 = vst [vmem:[#allocation2 + $0xb00] sm:$0xff] %v4642
      %4675 = vst [vmem:[#allocation2 + $0xb08] sm:$0xff] %v4643
      %4676 = vst [vmem:[#allocation2 + $0xb10] sm:$0xff] %v4644
      %4677 = vst [vmem:[#allocation2 + $0xb18] sm:$0xff] %v4645
      %4678 = vst [vmem:[#allocation2 + $0xb20] sm:$0xff] %v4646
      %4679 = vst [vmem:[#allocation2 + $0xb28] sm:$0xff] %v4647
      %4680 = vst [vmem:[#allocation2 + $0xb30] sm:$0xff] %v4648
      %4681 = vst [vmem:[#allocation2 + $0xb38] sm:$0xff] %v4649
      %4682 = vst [vmem:[#allocation2 + $0xb40] sm:$0xff] %v4650
      %4683 = vst [vmem:[#allocation2 + $0xb48] sm:$0xff] %v4651
      %4684 = vst [vmem:[#allocation2 + $0xb50] sm:$0xff] %v4652
      %4685 = vst [vmem:[#allocation2 + $0xb58] sm:$0xff] %v4653
      %4686 = vst [vmem:[#allocation2 + $0xb60] sm:$0xff] %v4654
      %4687 = vst [vmem:[#allocation2 + $0xb68] sm:$0xff] %v4655
      %4688 = vst [vmem:[#allocation2 + $0xb70] sm:$0xff] %v4656
      %4689 = vst [vmem:[#allocation2 + $0xb78] sm:$0xff] %v4657
      %4690 = vrot.lane.b32.xlu0 %v2860, 69
      %v4691 = vpop.permute.xlu0 %4690
      %4692 = vrot.lane.b32.xlu0 %v2861, 69
      %v4693 = vpop.permute.xlu0 %4692
      %4694 = vrot.lane.b32.xlu0 %v2862, 69
      %v4695 = vpop.permute.xlu0 %4694
      %4696 = vrot.lane.b32.xlu0 %v2863, 69
      %v4697 = vpop.permute.xlu0 %4696
      %4698 = vrot.lane.b32.xlu0 %v2864, 69
      %v4699 = vpop.permute.xlu0 %4698
      %4700 = vrot.lane.b32.xlu0 %v2865, 69
      %v4701 = vpop.permute.xlu0 %4700
      %4702 = vrot.lane.b32.xlu0 %v2866, 69
      %v4703 = vpop.permute.xlu0 %4702
      %4704 = vrot.lane.b32.xlu0 %v2867, 69
      %v4705 = vpop.permute.xlu0 %4704
      %4706 = vrot.lane.b32.xlu0 %v2868, 69
      %v4707 = vpop.permute.xlu0 %4706
      %4708 = vrot.lane.b32.xlu0 %v2869, 69
      %v4709 = vpop.permute.xlu0 %4708
      %4710 = vrot.lane.b32.xlu0 %v2870, 69
      %v4711 = vpop.permute.xlu0 %4710
      %4712 = vrot.lane.b32.xlu0 %v2871, 69
      %v4713 = vpop.permute.xlu0 %4712
      %4714 = vrot.lane.b32.xlu0 %v2872, 69
      %v4715 = vpop.permute.xlu0 %4714
      %4716 = vrot.lane.b32.xlu0 %v2873, 69
      %v4717 = vpop.permute.xlu0 %4716
      %4718 = vrot.lane.b32.xlu0 %v2874, 69
      %v4719 = vpop.permute.xlu0 %4718
      %4720 = vrot.lane.b32.xlu0 %v2875, 69
      %v4721 = vpop.permute.xlu0 %4720
      %vm4722 = vcmask 564224
      %v4723 = vsel %vm4722, %v4691, %v4693
      %v4724 = vsel %vm4722, %v4693, %v4695
      %v4725 = vsel %vm4722, %v4695, %v4697
      %v4726 = vsel %vm4722, %v4697, %v4699
      %v4727 = vsel %vm4722, %v4699, %v4701
      %v4728 = vsel %vm4722, %v4701, %v4703
      %v4729 = vsel %vm4722, %v4703, %v4705
      %v4730 = vsel %vm4722, %v4705, %v4707
      %v4731 = vsel %vm4722, %v4707, %v4709
      %v4732 = vsel %vm4722, %v4709, %v4711
      %v4733 = vsel %vm4722, %v4711, %v4713
      %v4734 = vsel %vm4722, %v4713, %v4715
      %v4735 = vsel %vm4722, %v4715, %v4717
      %v4736 = vsel %vm4722, %v4717, %v4719
      %v4737 = vsel %vm4722, %v4719, %v4721
      %v4738 = vsel %vm4722, %v4721, %v4691
      %4755 = vst [vmem:[#allocation2 + $0xb80] sm:$0xff] %v4723
      %4756 = vst [vmem:[#allocation2 + $0xb88] sm:$0xff] %v4724
      %4757 = vst [vmem:[#allocation2 + $0xb90] sm:$0xff] %v4725
      %4758 = vst [vmem:[#allocation2 + $0xb98] sm:$0xff] %v4726
      %4759 = vst [vmem:[#allocation2 + $0xba0] sm:$0xff] %v4727
      %4760 = vst [vmem:[#allocation2 + $0xba8] sm:$0xff] %v4728
      %4761 = vst [vmem:[#allocation2 + $0xbb0] sm:$0xff] %v4729
      %4762 = vst [vmem:[#allocation2 + $0xbb8] sm:$0xff] %v4730
      %4763 = vst [vmem:[#allocation2 + $0xbc0] sm:$0xff] %v4731
      %4764 = vst [vmem:[#allocation2 + $0xbc8] sm:$0xff] %v4732
      %4765 = vst [vmem:[#allocation2 + $0xbd0] sm:$0xff] %v4733
      %4766 = vst [vmem:[#allocation2 + $0xbd8] sm:$0xff] %v4734
      %4767 = vst [vmem:[#allocation2 + $0xbe0] sm:$0xff] %v4735
      %4768 = vst [vmem:[#allocation2 + $0xbe8] sm:$0xff] %v4736
      %4769 = vst [vmem:[#allocation2 + $0xbf0] sm:$0xff] %v4737
      %4770 = vst [vmem:[#allocation2 + $0xbf8] sm:$0xff] %v4738
      %4771 = vrot.lane.b32.xlu0 %v2860, 68
      %v4772 = vpop.permute.xlu0 %4771
      %4773 = vrot.lane.b32.xlu0 %v2861, 68
      %v4774 = vpop.permute.xlu0 %4773
      %4775 = vrot.lane.b32.xlu0 %v2862, 68
      %v4776 = vpop.permute.xlu0 %4775
      %4777 = vrot.lane.b32.xlu0 %v2863, 68
      %v4778 = vpop.permute.xlu0 %4777
      %4779 = vrot.lane.b32.xlu0 %v2864, 68
      %v4780 = vpop.permute.xlu0 %4779
      %4781 = vrot.lane.b32.xlu0 %v2865, 68
      %v4782 = vpop.permute.xlu0 %4781
      %4783 = vrot.lane.b32.xlu0 %v2866, 68
      %v4784 = vpop.permute.xlu0 %4783
      %4785 = vrot.lane.b32.xlu0 %v2867, 68
      %v4786 = vpop.permute.xlu0 %4785
      %4787 = vrot.lane.b32.xlu0 %v2868, 68
      %v4788 = vpop.permute.xlu0 %4787
      %4789 = vrot.lane.b32.xlu0 %v2869, 68
      %v4790 = vpop.permute.xlu0 %4789
      %4791 = vrot.lane.b32.xlu0 %v2870, 68
      %v4792 = vpop.permute.xlu0 %4791
      %4793 = vrot.lane.b32.xlu0 %v2871, 68
      %v4794 = vpop.permute.xlu0 %4793
      %4795 = vrot.lane.b32.xlu0 %v2872, 68
      %v4796 = vpop.permute.xlu0 %4795
      %4797 = vrot.lane.b32.xlu0 %v2873, 68
      %v4798 = vpop.permute.xlu0 %4797
      %4799 = vrot.lane.b32.xlu0 %v2874, 68
      %v4800 = vpop.permute.xlu0 %4799
      %4801 = vrot.lane.b32.xlu0 %v2875, 68
      %v4802 = vpop.permute.xlu0 %4801
      %vm4803 = vcmask 556032
      %v4804 = vsel %vm4803, %v4772, %v4774
      %v4805 = vsel %vm4803, %v4774, %v4776
      %v4806 = vsel %vm4803, %v4776, %v4778
      %v4807 = vsel %vm4803, %v4778, %v4780
      %v4808 = vsel %vm4803, %v4780, %v4782
      %v4809 = vsel %vm4803, %v4782, %v4784
      %v4810 = vsel %vm4803, %v4784, %v4786
      %v4811 = vsel %vm4803, %v4786, %v4788
      %v4812 = vsel %vm4803, %v4788, %v4790
      %v4813 = vsel %vm4803, %v4790, %v4792
      %v4814 = vsel %vm4803, %v4792, %v4794
      %v4815 = vsel %vm4803, %v4794, %v4796
      %v4816 = vsel %vm4803, %v4796, %v4798
      %v4817 = vsel %vm4803, %v4798, %v4800
      %v4818 = vsel %vm4803, %v4800, %v4802
      %v4819 = vsel %vm4803, %v4802, %v4772
      %4836 = vst [vmem:[#allocation2 + $0xc00] sm:$0xff] %v4804
      %4837 = vst [vmem:[#allocation2 + $0xc08] sm:$0xff] %v4805
      %4838 = vst [vmem:[#allocation2 + $0xc10] sm:$0xff] %v4806
      %4839 = vst [vmem:[#allocation2 + $0xc18] sm:$0xff] %v4807
      %4840 = vst [vmem:[#allocation2 + $0xc20] sm:$0xff] %v4808
      %4841 = vst [vmem:[#allocation2 + $0xc28] sm:$0xff] %v4809
      %4842 = vst [vmem:[#allocation2 + $0xc30] sm:$0xff] %v4810
      %4843 = vst [vmem:[#allocation2 + $0xc38] sm:$0xff] %v4811
      %4844 = vst [vmem:[#allocation2 + $0xc40] sm:$0xff] %v4812
      %4845 = vst [vmem:[#allocation2 + $0xc48] sm:$0xff] %v4813
      %4846 = vst [vmem:[#allocation2 + $0xc50] sm:$0xff] %v4814
      %4847 = vst [vmem:[#allocation2 + $0xc58] sm:$0xff] %v4815
      %4848 = vst [vmem:[#allocation2 + $0xc60] sm:$0xff] %v4816
      %4849 = vst [vmem:[#allocation2 + $0xc68] sm:$0xff] %v4817
      %4850 = vst [vmem:[#allocation2 + $0xc70] sm:$0xff] %v4818
      %4851 = vst [vmem:[#allocation2 + $0xc78] sm:$0xff] %v4819
      %v4852 = vld [vmem:[%s3] sm:$0xff]
      %v4853 = vld [vmem:[%s3 + $0x8] sm:$0xff]
      %v4854 = vld [vmem:[%s3 + $0x10] sm:$0xff]
      %v4855 = vld [vmem:[%s3 + $0x18] sm:$0xff]
      %v4856 = vld [vmem:[#allocation2] sm:$0xff]
      %v4857 = vld [vmem:[#allocation2 + $0x8] sm:$0xff]
      %v4858 = vld [vmem:[#allocation2 + $0x10] sm:$0xff]
      %v4859 = vld [vmem:[#allocation2 + $0x18] sm:$0xff]
      %v4860 = vld [vmem:[#allocation2 + $0x20] sm:$0xff]
      %v4861 = vld [vmem:[#allocation2 + $0x28] sm:$0xff]
      %v4862 = vld [vmem:[#allocation2 + $0x30] sm:$0xff]
      %v4863 = vld [vmem:[#allocation2 + $0x38] sm:$0xff]
      %v4864 = vld [vmem:[#allocation2 + $0x40] sm:$0xff]
      %v4865 = vld [vmem:[#allocation2 + $0x48] sm:$0xff]
      %v4866 = vld [vmem:[#allocation2 + $0x50] sm:$0xff]
      %v4867 = vld [vmem:[#allocation2 + $0x58] sm:$0xff]
      %v4868 = vld [vmem:[#allocation2 + $0x60] sm:$0xff]
      %v4869 = vld [vmem:[#allocation2 + $0x68] sm:$0xff]
      %v4870 = vld [vmem:[#allocation2 + $0x70] sm:$0xff]
      %v4871 = vld [vmem:[#allocation2 + $0x78] sm:$0xff]
      %v4872 = vld [vmem:[#allocation2 + $0x80] sm:$0xff]
      %v4873 = vld [vmem:[#allocation2 + $0x88] sm:$0xff]
      %v4874 = vld [vmem:[#allocation2 + $0x90] sm:$0xff]
      %v4875 = vld [vmem:[#allocation2 + $0x98] sm:$0xff]
      %v4876 = vld [vmem:[#allocation2 + $0xa0] sm:$0xff]
      %v4877 = vld [vmem:[#allocation2 + $0xa8] sm:$0xff]
      %v4878 = vld [vmem:[#allocation2 + $0xb0] sm:$0xff]
      %v4879 = vld [vmem:[#allocation2 + $0xb8] sm:$0xff]
      %v4880 = vld [vmem:[#allocation2 + $0xc0] sm:$0xff]
      %v4881 = vld [vmem:[#allocation2 + $0xc8] sm:$0xff]
      %v4882 = vld [vmem:[#allocation2 + $0xd0] sm:$0xff]
      %v4883 = vld [vmem:[#allocation2 + $0xd8] sm:$0xff]
      %v4884 = vld [vmem:[#allocation2 + $0xe0] sm:$0xff]
      %v4885 = vld [vmem:[#allocation2 + $0xe8] sm:$0xff]
      %v4886 = vld [vmem:[#allocation2 + $0xf0] sm:$0xff]
      %v4887 = vld [vmem:[#allocation2 + $0xf8] sm:$0xff]
      %v4888 = vld [vmem:[#allocation2 + $0x100] sm:$0xff]
      %v4889 = vld [vmem:[#allocation2 + $0x108] sm:$0xff]
      %v4890 = vld [vmem:[#allocation2 + $0x110] sm:$0xff]
      %v4891 = vld [vmem:[#allocation2 + $0x118] sm:$0xff]
      %v4892 = vld [vmem:[#allocation2 + $0x120] sm:$0xff]
      %v4893 = vld [vmem:[#allocation2 + $0x128] sm:$0xff]
      %v4894 = vld [vmem:[#allocation2 + $0x130] sm:$0xff]
      %v4895 = vld [vmem:[#allocation2 + $0x138] sm:$0xff]
      %v4896 = vld [vmem:[#allocation2 + $0x140] sm:$0xff]
      %v4897 = vld [vmem:[#allocation2 + $0x148] sm:$0xff]
      %v4898 = vld [vmem:[#allocation2 + $0x150] sm:$0xff]
      %v4899 = vld [vmem:[#allocation2 + $0x158] sm:$0xff]
      %v4900 = vld [vmem:[#allocation2 + $0x160] sm:$0xff]
      %v4901 = vld [vmem:[#allocation2 + $0x168] sm:$0xff]
      %v4902 = vld [vmem:[#allocation2 + $0x170] sm:$0xff]
      %v4903 = vld [vmem:[#allocation2 + $0x178] sm:$0xff]
      %v4904 = vld [vmem:[#allocation2 + $0x180] sm:$0xff]
      %v4905 = vld [vmem:[#allocation2 + $0x188] sm:$0xff]
      %v4906 = vld [vmem:[#allocation2 + $0x190] sm:$0xff]
      %v4907 = vld [vmem:[#allocation2 + $0x198] sm:$0xff]
      %v4908 = vld [vmem:[#allocation2 + $0x1a0] sm:$0xff]
      %v4909 = vld [vmem:[#allocation2 + $0x1a8] sm:$0xff]
      %v4910 = vld [vmem:[#allocation2 + $0x1b0] sm:$0xff]
      %v4911 = vld [vmem:[#allocation2 + $0x1b8] sm:$0xff]
      %v4912 = vld [vmem:[#allocation2 + $0x1c0] sm:$0xff]
      %v4913 = vld [vmem:[#allocation2 + $0x1c8] sm:$0xff]
      %v4914 = vld [vmem:[#allocation2 + $0x1d0] sm:$0xff]
      %v4915 = vld [vmem:[#allocation2 + $0x1d8] sm:$0xff]
      %v4916 = vld [vmem:[#allocation2 + $0x1e0] sm:$0xff]
      %v4917 = vld [vmem:[#allocation2 + $0x1e8] sm:$0xff]
      %v4918 = vld [vmem:[#allocation2 + $0x1f0] sm:$0xff]
      %v4919 = vld [vmem:[#allocation2 + $0x1f8] sm:$0xff]
      %v4920 = vld [vmem:[#allocation2 + $0x200] sm:$0xff]
      %v4921 = vld [vmem:[#allocation2 + $0x208] sm:$0xff]
      %v4922 = vld [vmem:[#allocation2 + $0x210] sm:$0xff]
      %v4923 = vld [vmem:[#allocation2 + $0x218] sm:$0xff]
      %v4924 = vld [vmem:[#allocation2 + $0x220] sm:$0xff]
      %v4925 = vld [vmem:[#allocation2 + $0x228] sm:$0xff]
      %v4926 = vld [vmem:[#allocation2 + $0x230] sm:$0xff]
      %v4927 = vld [vmem:[#allocation2 + $0x238] sm:$0xff]
      %v4928 = vld [vmem:[#allocation2 + $0x240] sm:$0xff]
      %v4929 = vld [vmem:[#allocation2 + $0x248] sm:$0xff]
      %v4930 = vld [vmem:[#allocation2 + $0x250] sm:$0xff]
      %v4931 = vld [vmem:[#allocation2 + $0x258] sm:$0xff]
      %v4932 = vld [vmem:[#allocation2 + $0x260] sm:$0xff]
      %v4933 = vld [vmem:[#allocation2 + $0x268] sm:$0xff]
      %v4934 = vld [vmem:[#allocation2 + $0x270] sm:$0xff]
      %v4935 = vld [vmem:[#allocation2 + $0x278] sm:$0xff]
      %v4936 = vld [vmem:[#allocation2 + $0x280] sm:$0xff]
      %v4937 = vld [vmem:[#allocation2 + $0x288] sm:$0xff]
      %v4938 = vld [vmem:[#allocation2 + $0x290] sm:$0xff]
      %v4939 = vld [vmem:[#allocation2 + $0x298] sm:$0xff]
      %v4940 = vld [vmem:[#allocation2 + $0x2a0] sm:$0xff]
      %v4941 = vld [vmem:[#allocation2 + $0x2a8] sm:$0xff]
      %v4942 = vld [vmem:[#allocation2 + $0x2b0] sm:$0xff]
      %v4943 = vld [vmem:[#allocation2 + $0x2b8] sm:$0xff]
      %v4944 = vld [vmem:[#allocation2 + $0x2c0] sm:$0xff]
      %v4945 = vld [vmem:[#allocation2 + $0x2c8] sm:$0xff]
      %v4946 = vld [vmem:[#allocation2 + $0x2d0] sm:$0xff]
      %v4947 = vld [vmem:[#allocation2 + $0x2d8] sm:$0xff]
      %v4948 = vld [vmem:[#allocation2 + $0x2e0] sm:$0xff]
      %v4949 = vld [vmem:[#allocation2 + $0x2e8] sm:$0xff]
      %v4950 = vld [vmem:[#allocation2 + $0x2f0] sm:$0xff]
      %v4951 = vld [vmem:[#allocation2 + $0x2f8] sm:$0xff]
      %v4952 = vld [vmem:[#allocation2 + $0x300] sm:$0xff]
      %v4953 = vld [vmem:[#allocation2 + $0x308] sm:$0xff]
      %v4954 = vld [vmem:[#allocation2 + $0x310] sm:$0xff]
      %v4955 = vld [vmem:[#allocation2 + $0x318] sm:$0xff]
      %v4956 = vld [vmem:[#allocation2 + $0x320] sm:$0xff]
      %v4957 = vld [vmem:[#allocation2 + $0x328] sm:$0xff]
      %v4958 = vld [vmem:[#allocation2 + $0x330] sm:$0xff]
      %v4959 = vld [vmem:[#allocation2 + $0x338] sm:$0xff]
      %v4960 = vld [vmem:[#allocation2 + $0x340] sm:$0xff]
      %v4961 = vld [vmem:[#allocation2 + $0x348] sm:$0xff]
      %v4962 = vld [vmem:[#allocation2 + $0x350] sm:$0xff]
      %v4963 = vld [vmem:[#allocation2 + $0x358] sm:$0xff]
      %v4964 = vld [vmem:[#allocation2 + $0x360] sm:$0xff]
      %v4965 = vld [vmem:[#allocation2 + $0x368] sm:$0xff]
      %v4966 = vld [vmem:[#allocation2 + $0x370] sm:$0xff]
      %v4967 = vld [vmem:[#allocation2 + $0x378] sm:$0xff]
      %v4968 = vld [vmem:[#allocation2 + $0x380] sm:$0xff]
      %v4969 = vld [vmem:[#allocation2 + $0x388] sm:$0xff]
      %v4970 = vld [vmem:[#allocation2 + $0x390] sm:$0xff]
      %v4971 = vld [vmem:[#allocation2 + $0x398] sm:$0xff]
      %v4972 = vld [vmem:[#allocation2 + $0x3a0] sm:$0xff]
      %v4973 = vld [vmem:[#allocation2 + $0x3a8] sm:$0xff]
      %v4974 = vld [vmem:[#allocation2 + $0x3b0] sm:$0xff]
      %v4975 = vld [vmem:[#allocation2 + $0x3b8] sm:$0xff]
      %v4976 = vld [vmem:[#allocation2 + $0x3c0] sm:$0xff]
      %v4977 = vld [vmem:[#allocation2 + $0x3c8] sm:$0xff]
      %v4978 = vld [vmem:[#allocation2 + $0x3d0] sm:$0xff]
      %v4979 = vld [vmem:[#allocation2 + $0x3d8] sm:$0xff]
      %v4980 = vld [vmem:[#allocation2 + $0x3e0] sm:$0xff]
      %v4981 = vld [vmem:[#allocation2 + $0x3e8] sm:$0xff]
      %v4982 = vld [vmem:[#allocation2 + $0x3f0] sm:$0xff]
      %v4983 = vld [vmem:[#allocation2 + $0x3f8] sm:$0xff]
      %v4984 = vld [vmem:[#allocation2 + $0x400] sm:$0xff]
      %v4985 = vld [vmem:[#allocation2 + $0x408] sm:$0xff]
      %v4986 = vld [vmem:[#allocation2 + $0x410] sm:$0xff]
      %v4987 = vld [vmem:[#allocation2 + $0x418] sm:$0xff]
      %v4988 = vld [vmem:[#allocation2 + $0x420] sm:$0xff]
      %v4989 = vld [vmem:[#allocation2 + $0x428] sm:$0xff]
      %v4990 = vld [vmem:[#allocation2 + $0x430] sm:$0xff]
      %v4991 = vld [vmem:[#allocation2 + $0x438] sm:$0xff]
      %v4992 = vld [vmem:[#allocation2 + $0x440] sm:$0xff]
      %v4993 = vld [vmem:[#allocation2 + $0x448] sm:$0xff]
      %v4994 = vld [vmem:[#allocation2 + $0x450] sm:$0xff]
      %v4995 = vld [vmem:[#allocation2 + $0x458] sm:$0xff]
      %v4996 = vld [vmem:[#allocation2 + $0x460] sm:$0xff]
      %v4997 = vld [vmem:[#allocation2 + $0x468] sm:$0xff]
      %v4998 = vld [vmem:[#allocation2 + $0x470] sm:$0xff]
      %v4999 = vld [vmem:[#allocation2 + $0x478] sm:$0xff]
      %v5000 = vld [vmem:[#allocation2 + $0x480] sm:$0xff]
      %v5001 = vld [vmem:[#allocation2 + $0x488] sm:$0xff]
      %v5002 = vld [vmem:[#allocation2 + $0x490] sm:$0xff]
      %v5003 = vld [vmem:[#allocation2 + $0x498] sm:$0xff]
      %v5004 = vld [vmem:[#allocation2 + $0x4a0] sm:$0xff]
      %v5005 = vld [vmem:[#allocation2 + $0x4a8] sm:$0xff]
      %v5006 = vld [vmem:[#allocation2 + $0x4b0] sm:$0xff]
      %v5007 = vld [vmem:[#allocation2 + $0x4b8] sm:$0xff]
      %v5008 = vld [vmem:[#allocation2 + $0x4c0] sm:$0xff]
      %v5009 = vld [vmem:[#allocation2 + $0x4c8] sm:$0xff]
      %v5010 = vld [vmem:[#allocation2 + $0x4d0] sm:$0xff]
      %v5011 = vld [vmem:[#allocation2 + $0x4d8] sm:$0xff]
      %v5012 = vld [vmem:[#allocation2 + $0x4e0] sm:$0xff]
      %v5013 = vld [vmem:[#allocation2 + $0x4e8] sm:$0xff]
      %v5014 = vld [vmem:[#allocation2 + $0x4f0] sm:$0xff]
      %v5015 = vld [vmem:[#allocation2 + $0x4f8] sm:$0xff]
      %v5016 = vld [vmem:[#allocation2 + $0x500] sm:$0xff]
      %v5017 = vld [vmem:[#allocation2 + $0x508] sm:$0xff]
      %v5018 = vld [vmem:[#allocation2 + $0x510] sm:$0xff]
      %v5019 = vld [vmem:[#allocation2 + $0x518] sm:$0xff]
      %v5020 = vld [vmem:[#allocation2 + $0x520] sm:$0xff]
      %v5021 = vld [vmem:[#allocation2 + $0x528] sm:$0xff]
      %v5022 = vld [vmem:[#allocation2 + $0x530] sm:$0xff]
      %v5023 = vld [vmem:[#allocation2 + $0x538] sm:$0xff]
      %v5024 = vld [vmem:[#allocation2 + $0x540] sm:$0xff]
      %v5025 = vld [vmem:[#allocation2 + $0x548] sm:$0xff]
      %v5026 = vld [vmem:[#allocation2 + $0x550] sm:$0xff]
      %v5027 = vld [vmem:[#allocation2 + $0x558] sm:$0xff]
      %v5028 = vld [vmem:[#allocation2 + $0x560] sm:$0xff]
      %v5029 = vld [vmem:[#allocation2 + $0x568] sm:$0xff]
      %v5030 = vld [vmem:[#allocation2 + $0x570] sm:$0xff]
      %v5031 = vld [vmem:[#allocation2 + $0x578] sm:$0xff]
      %v5032 = vld [vmem:[#allocation2 + $0x580] sm:$0xff]
      %v5033 = vld [vmem:[#allocation2 + $0x588] sm:$0xff]
      %v5034 = vld [vmem:[#allocation2 + $0x590] sm:$0xff]
      %v5035 = vld [vmem:[#allocation2 + $0x598] sm:$0xff]
      %v5036 = vld [vmem:[#allocation2 + $0x5a0] sm:$0xff]
      %v5037 = vld [vmem:[#allocation2 + $0x5a8] sm:$0xff]
      %v5038 = vld [vmem:[#allocation2 + $0x5b0] sm:$0xff]
      %v5039 = vld [vmem:[#allocation2 + $0x5b8] sm:$0xff]
      %v5040 = vld [vmem:[#allocation2 + $0x5c0] sm:$0xff]
      %v5041 = vld [vmem:[#allocation2 + $0x5c8] sm:$0xff]
      %v5042 = vld [vmem:[#allocation2 + $0x5d0] sm:$0xff]
      %v5043 = vld [vmem:[#allocation2 + $0x5d8] sm:$0xff]
      %v5044 = vld [vmem:[#allocation2 + $0x5e0] sm:$0xff]
      %v5045 = vld [vmem:[#allocation2 + $0x5e8] sm:$0xff]
      %v5046 = vld [vmem:[#allocation2 + $0x5f0] sm:$0xff]
      %v5047 = vld [vmem:[#allocation2 + $0x5f8] sm:$0xff]
      %v5048 = vld [vmem:[#allocation2 + $0x600] sm:$0xff]
      %v5049 = vld [vmem:[#allocation2 + $0x608] sm:$0xff]
      %v5050 = vld [vmem:[#allocation2 + $0x610] sm:$0xff]
      %v5051 = vld [vmem:[#allocation2 + $0x618] sm:$0xff]
      %v5052 = vld [vmem:[#allocation2 + $0x620] sm:$0xff]
      %v5053 = vld [vmem:[#allocation2 + $0x628] sm:$0xff]
      %v5054 = vld [vmem:[#allocation2 + $0x630] sm:$0xff]
      %v5055 = vld [vmem:[#allocation2 + $0x638] sm:$0xff]
      %v5056 = vld [vmem:[#allocation2 + $0x640] sm:$0xff]
      %v5057 = vld [vmem:[#allocation2 + $0x648] sm:$0xff]
      %v5058 = vld [vmem:[#allocation2 + $0x650] sm:$0xff]
      %v5059 = vld [vmem:[#allocation2 + $0x658] sm:$0xff]
      %v5060 = vld [vmem:[#allocation2 + $0x660] sm:$0xff]
      %v5061 = vld [vmem:[#allocation2 + $0x668] sm:$0xff]
      %v5062 = vld [vmem:[#allocation2 + $0x670] sm:$0xff]
      %v5063 = vld [vmem:[#allocation2 + $0x678] sm:$0xff]
      %v5064 = vld [vmem:[#allocation2 + $0x680] sm:$0xff]
      %v5065 = vld [vmem:[#allocation2 + $0x688] sm:$0xff]
      %v5066 = vld [vmem:[#allocation2 + $0x690] sm:$0xff]
      %v5067 = vld [vmem:[#allocation2 + $0x698] sm:$0xff]
      %v5068 = vld [vmem:[#allocation2 + $0x6a0] sm:$0xff]
      %v5069 = vld [vmem:[#allocation2 + $0x6a8] sm:$0xff]
      %v5070 = vld [vmem:[#allocation2 + $0x6b0] sm:$0xff]
      %v5071 = vld [vmem:[#allocation2 + $0x6b8] sm:$0xff]
      %v5072 = vld [vmem:[#allocation2 + $0x6c0] sm:$0xff]
      %v5073 = vld [vmem:[#allocation2 + $0x6c8] sm:$0xff]
      %v5074 = vld [vmem:[#allocation2 + $0x6d0] sm:$0xff]
      %v5075 = vld [vmem:[#allocation2 + $0x6d8] sm:$0xff]
      %v5076 = vld [vmem:[#allocation2 + $0x6e0] sm:$0xff]
      %v5077 = vld [vmem:[#allocation2 + $0x6e8] sm:$0xff]
      %v5078 = vld [vmem:[#allocation2 + $0x6f0] sm:$0xff]
      %v5079 = vld [vmem:[#allocation2 + $0x6f8] sm:$0xff]
      %v5080 = vld [vmem:[#allocation2 + $0x700] sm:$0xff]
      %v5081 = vld [vmem:[#allocation2 + $0x708] sm:$0xff]
      %v5082 = vld [vmem:[#allocation2 + $0x710] sm:$0xff]
      %v5083 = vld [vmem:[#allocation2 + $0x718] sm:$0xff]
      %v5084 = vld [vmem:[#allocation2 + $0x720] sm:$0xff]
      %v5085 = vld [vmem:[#allocation2 + $0x728] sm:$0xff]
      %v5086 = vld [vmem:[#allocation2 + $0x730] sm:$0xff]
      %v5087 = vld [vmem:[#allocation2 + $0x738] sm:$0xff]
      %v5088 = vld [vmem:[#allocation2 + $0x740] sm:$0xff]
      %v5089 = vld [vmem:[#allocation2 + $0x748] sm:$0xff]
      %v5090 = vld [vmem:[#allocation2 + $0x750] sm:$0xff]
      %v5091 = vld [vmem:[#allocation2 + $0x758] sm:$0xff]
      %v5092 = vld [vmem:[#allocation2 + $0x760] sm:$0xff]
      %v5093 = vld [vmem:[#allocation2 + $0x768] sm:$0xff]
      %v5094 = vld [vmem:[#allocation2 + $0x770] sm:$0xff]
      %v5095 = vld [vmem:[#allocation2 + $0x778] sm:$0xff]
      %v5096 = vld [vmem:[#allocation2 + $0x780] sm:$0xff]
      %v5097 = vld [vmem:[#allocation2 + $0x788] sm:$0xff]
      %v5098 = vld [vmem:[#allocation2 + $0x790] sm:$0xff]
      %v5099 = vld [vmem:[#allocation2 + $0x798] sm:$0xff]
      %v5100 = vld [vmem:[#allocation2 + $0x7a0] sm:$0xff]
      %v5101 = vld [vmem:[#allocation2 + $0x7a8] sm:$0xff]
      %v5102 = vld [vmem:[#allocation2 + $0x7b0] sm:$0xff]
      %v5103 = vld [vmem:[#allocation2 + $0x7b8] sm:$0xff]
      %v5104 = vld [vmem:[#allocation2 + $0x7c0] sm:$0xff]
      %v5105 = vld [vmem:[#allocation2 + $0x7c8] sm:$0xff]
      %v5106 = vld [vmem:[#allocation2 + $0x7d0] sm:$0xff]
      %v5107 = vld [vmem:[#allocation2 + $0x7d8] sm:$0xff]
      %v5108 = vld [vmem:[#allocation2 + $0x7e0] sm:$0xff]
      %v5109 = vld [vmem:[#allocation2 + $0x7e8] sm:$0xff]
      %v5110 = vld [vmem:[#allocation2 + $0x7f0] sm:$0xff]
      %v5111 = vld [vmem:[#allocation2 + $0x7f8] sm:$0xff]
      %v5112 = vld [vmem:[#allocation2 + $0x800] sm:$0xff]
      %v5113 = vld [vmem:[#allocation2 + $0x808] sm:$0xff]
      %v5114 = vld [vmem:[#allocation2 + $0x810] sm:$0xff]
      %v5115 = vld [vmem:[#allocation2 + $0x818] sm:$0xff]
      %v5116 = vld [vmem:[#allocation2 + $0x820] sm:$0xff]
      %v5117 = vld [vmem:[#allocation2 + $0x828] sm:$0xff]
      %v5118 = vld [vmem:[#allocation2 + $0x830] sm:$0xff]
      %v5119 = vld [vmem:[#allocation2 + $0x838] sm:$0xff]
      %v5120 = vld [vmem:[#allocation2 + $0x840] sm:$0xff]
      %v5121 = vld [vmem:[#allocation2 + $0x848] sm:$0xff]
      %v5122 = vld [vmem:[#allocation2 + $0x850] sm:$0xff]
      %v5123 = vld [vmem:[#allocation2 + $0x858] sm:$0xff]
      %v5124 = vld [vmem:[#allocation2 + $0x860] sm:$0xff]
      %v5125 = vld [vmem:[#allocation2 + $0x868] sm:$0xff]
      %v5126 = vld [vmem:[#allocation2 + $0x870] sm:$0xff]
      %v5127 = vld [vmem:[#allocation2 + $0x878] sm:$0xff]
      %v5128 = vld [vmem:[#allocation2 + $0x880] sm:$0xff]
      %v5129 = vld [vmem:[#allocation2 + $0x888] sm:$0xff]
      %v5130 = vld [vmem:[#allocation2 + $0x890] sm:$0xff]
      %v5131 = vld [vmem:[#allocation2 + $0x898] sm:$0xff]
      %v5132 = vld [vmem:[#allocation2 + $0x8a0] sm:$0xff]
      %v5133 = vld [vmem:[#allocation2 + $0x8a8] sm:$0xff]
      %v5134 = vld [vmem:[#allocation2 + $0x8b0] sm:$0xff]
      %v5135 = vld [vmem:[#allocation2 + $0x8b8] sm:$0xff]
      %v5136 = vld [vmem:[#allocation2 + $0x8c0] sm:$0xff]
      %v5137 = vld [vmem:[#allocation2 + $0x8c8] sm:$0xff]
      %v5138 = vld [vmem:[#allocation2 + $0x8d0] sm:$0xff]
      %v5139 = vld [vmem:[#allocation2 + $0x8d8] sm:$0xff]
      %v5140 = vld [vmem:[#allocation2 + $0x8e0] sm:$0xff]
      %v5141 = vld [vmem:[#allocation2 + $0x8e8] sm:$0xff]
      %v5142 = vld [vmem:[#allocation2 + $0x8f0] sm:$0xff]
      %v5143 = vld [vmem:[#allocation2 + $0x8f8] sm:$0xff]
      %v5144 = vld [vmem:[#allocation2 + $0x900] sm:$0xff]
      %v5145 = vld [vmem:[#allocation2 + $0x908] sm:$0xff]
      %v5146 = vld [vmem:[#allocation2 + $0x910] sm:$0xff]
      %v5147 = vld [vmem:[#allocation2 + $0x918] sm:$0xff]
      %v5148 = vld [vmem:[#allocation2 + $0x920] sm:$0xff]
      %v5149 = vld [vmem:[#allocation2 + $0x928] sm:$0xff]
      %v5150 = vld [vmem:[#allocation2 + $0x930] sm:$0xff]
      %v5151 = vld [vmem:[#allocation2 + $0x938] sm:$0xff]
      %v5152 = vld [vmem:[#allocation2 + $0x940] sm:$0xff]
      %v5153 = vld [vmem:[#allocation2 + $0x948] sm:$0xff]
      %v5154 = vld [vmem:[#allocation2 + $0x950] sm:$0xff]
      %v5155 = vld [vmem:[#allocation2 + $0x958] sm:$0xff]
      %v5156 = vld [vmem:[#allocation2 + $0x960] sm:$0xff]
      %v5157 = vld [vmem:[#allocation2 + $0x968] sm:$0xff]
      %v5158 = vld [vmem:[#allocation2 + $0x970] sm:$0xff]
      %v5159 = vld [vmem:[#allocation2 + $0x978] sm:$0xff]
      %v5160 = vld [vmem:[#allocation2 + $0x980] sm:$0xff]
      %v5161 = vld [vmem:[#allocation2 + $0x988] sm:$0xff]
      %v5162 = vld [vmem:[#allocation2 + $0x990] sm:$0xff]
      %v5163 = vld [vmem:[#allocation2 + $0x998] sm:$0xff]
      %v5164 = vld [vmem:[#allocation2 + $0x9a0] sm:$0xff]
      %v5165 = vld [vmem:[#allocation2 + $0x9a8] sm:$0xff]
      %v5166 = vld [vmem:[#allocation2 + $0x9b0] sm:$0xff]
      %v5167 = vld [vmem:[#allocation2 + $0x9b8] sm:$0xff]
      %v5168 = vld [vmem:[#allocation2 + $0x9c0] sm:$0xff]
      %v5169 = vld [vmem:[#allocation2 + $0x9c8] sm:$0xff]
      %v5170 = vld [vmem:[#allocation2 + $0x9d0] sm:$0xff]
      %v5171 = vld [vmem:[#allocation2 + $0x9d8] sm:$0xff]
      %v5172 = vld [vmem:[#allocation2 + $0x9e0] sm:$0xff]
      %v5173 = vld [vmem:[#allocation2 + $0x9e8] sm:$0xff]
      %v5174 = vld [vmem:[#allocation2 + $0x9f0] sm:$0xff]
      %v5175 = vld [vmem:[#allocation2 + $0x9f8] sm:$0xff]
      %v5176 = vld [vmem:[#allocation2 + $0xa00] sm:$0xff]
      %v5177 = vld [vmem:[#allocation2 + $0xa08] sm:$0xff]
      %v5178 = vld [vmem:[#allocation2 + $0xa10] sm:$0xff]
      %v5179 = vld [vmem:[#allocation2 + $0xa18] sm:$0xff]
      %v5180 = vld [vmem:[#allocation2 + $0xa20] sm:$0xff]
      %v5181 = vld [vmem:[#allocation2 + $0xa28] sm:$0xff]
      %v5182 = vld [vmem:[#allocation2 + $0xa30] sm:$0xff]
      %v5183 = vld [vmem:[#allocation2 + $0xa38] sm:$0xff]
      %v5184 = vld [vmem:[#allocation2 + $0xa40] sm:$0xff]
      %v5185 = vld [vmem:[#allocation2 + $0xa48] sm:$0xff]
      %v5186 = vld [vmem:[#allocation2 + $0xa50] sm:$0xff]
      %v5187 = vld [vmem:[#allocation2 + $0xa58] sm:$0xff]
      %v5188 = vld [vmem:[#allocation2 + $0xa60] sm:$0xff]
      %v5189 = vld [vmem:[#allocation2 + $0xa68] sm:$0xff]
      %v5190 = vld [vmem:[#allocation2 + $0xa70] sm:$0xff]
      %v5191 = vld [vmem:[#allocation2 + $0xa78] sm:$0xff]
      %v5192 = vld [vmem:[#allocation2 + $0xa80] sm:$0xff]
      %v5193 = vld [vmem:[#allocation2 + $0xa88] sm:$0xff]
      %v5194 = vld [vmem:[#allocation2 + $0xa90] sm:$0xff]
      %v5195 = vld [vmem:[#allocation2 + $0xa98] sm:$0xff]
      %v5196 = vld [vmem:[#allocation2 + $0xaa0] sm:$0xff]
      %v5197 = vld [vmem:[#allocation2 + $0xaa8] sm:$0xff]
      %v5198 = vld [vmem:[#allocation2 + $0xab0] sm:$0xff]
      %v5199 = vld [vmem:[#allocation2 + $0xab8] sm:$0xff]
      %v5200 = vld [vmem:[#allocation2 + $0xac0] sm:$0xff]
      %v5201 = vld [vmem:[#allocation2 + $0xac8] sm:$0xff]
      %v5202 = vld [vmem:[#allocation2 + $0xad0] sm:$0xff]
      %v5203 = vld [vmem:[#allocation2 + $0xad8] sm:$0xff]
      %v5204 = vld [vmem:[#allocation2 + $0xae0] sm:$0xff]
      %v5205 = vld [vmem:[#allocation2 + $0xae8] sm:$0xff]
      %v5206 = vld [vmem:[#allocation2 + $0xaf0] sm:$0xff]
      %v5207 = vld [vmem:[#allocation2 + $0xaf8] sm:$0xff]
      %v5208 = vld [vmem:[#allocation2 + $0xb00] sm:$0xff]
      %v5209 = vld [vmem:[#allocation2 + $0xb08] sm:$0xff]
      %v5210 = vld [vmem:[#allocation2 + $0xb10] sm:$0xff]
      %v5211 = vld [vmem:[#allocation2 + $0xb18] sm:$0xff]
      %v5212 = vld [vmem:[#allocation2 + $0xb20] sm:$0xff]
      %v5213 = vld [vmem:[#allocation2 + $0xb28] sm:$0xff]
      %v5214 = vld [vmem:[#allocation2 + $0xb30] sm:$0xff]
      %v5215 = vld [vmem:[#allocation2 + $0xb38] sm:$0xff]
      %v5216 = vld [vmem:[#allocation2 + $0xb40] sm:$0xff]
      %v5217 = vld [vmem:[#allocation2 + $0xb48] sm:$0xff]
      %v5218 = vld [vmem:[#allocation2 + $0xb50] sm:$0xff]
      %v5219 = vld [vmem:[#allocation2 + $0xb58] sm:$0xff]
      %v5220 = vld [vmem:[#allocation2 + $0xb60] sm:$0xff]
      %v5221 = vld [vmem:[#allocation2 + $0xb68] sm:$0xff]
      %v5222 = vld [vmem:[#allocation2 + $0xb70] sm:$0xff]
      %v5223 = vld [vmem:[#allocation2 + $0xb78] sm:$0xff]
      %v5224 = vld [vmem:[#allocation2 + $0xb80] sm:$0xff]
      %v5225 = vld [vmem:[#allocation2 + $0xb88] sm:$0xff]
      %v5226 = vld [vmem:[#allocation2 + $0xb90] sm:$0xff]
      %v5227 = vld [vmem:[#allocation2 + $0xb98] sm:$0xff]
      %v5228 = vld [vmem:[#allocation2 + $0xba0] sm:$0xff]
      %v5229 = vld [vmem:[#allocation2 + $0xba8] sm:$0xff]
      %v5230 = vld [vmem:[#allocation2 + $0xbb0] sm:$0xff]
      %v5231 = vld [vmem:[#allocation2 + $0xbb8] sm:$0xff]
      %v5232 = vld [vmem:[#allocation2 + $0xbc0] sm:$0xff]
      %v5233 = vld [vmem:[#allocation2 + $0xbc8] sm:$0xff]
      %v5234 = vld [vmem:[#allocation2 + $0xbd0] sm:$0xff]
      %v5235 = vld [vmem:[#allocation2 + $0xbd8] sm:$0xff]
      %v5236 = vld [vmem:[#allocation2 + $0xbe0] sm:$0xff]
      %v5237 = vld [vmem:[#allocation2 + $0xbe8] sm:$0xff]
      %v5238 = vld [vmem:[#allocation2 + $0xbf0] sm:$0xff]
      %v5239 = vld [vmem:[#allocation2 + $0xbf8] sm:$0xff]
      %v5240 = vld [vmem:[#allocation2 + $0xc00] sm:$0xff]
      %v5241 = vld [vmem:[#allocation2 + $0xc08] sm:$0xff]
      %v5242 = vld [vmem:[#allocation2 + $0xc10] sm:$0xff]
      %v5243 = vld [vmem:[#allocation2 + $0xc18] sm:$0xff]
      %v5244 = vld [vmem:[#allocation2 + $0xc20] sm:$0xff]
      %v5245 = vld [vmem:[#allocation2 + $0xc28] sm:$0xff]
      %v5246 = vld [vmem:[#allocation2 + $0xc30] sm:$0xff]
      %v5247 = vld [vmem:[#allocation2 + $0xc38] sm:$0xff]
      %v5248 = vld [vmem:[#allocation2 + $0xc40] sm:$0xff]
      %v5249 = vld [vmem:[#allocation2 + $0xc48] sm:$0xff]
      %v5250 = vld [vmem:[#allocation2 + $0xc50] sm:$0xff]
      %v5251 = vld [vmem:[#allocation2 + $0xc58] sm:$0xff]
      %v5252 = vld [vmem:[#allocation2 + $0xc60] sm:$0xff]
      %v5253 = vld [vmem:[#allocation2 + $0xc68] sm:$0xff]
      %v5254 = vld [vmem:[#allocation2 + $0xc70] sm:$0xff]
      %v5255 = vld [vmem:[#allocation2 + $0xc78] sm:$0xff]
      %v5256 = vld [vmem:[%s4] sm:$0xff]
      %v5257 = vld [vmem:[%s4 + $0x8] sm:$0xff]
      %5259 = vset.pattern.permute.xlu0 0
      %5260 = vperm.xlu0 %5259, %v5256
      %v5261 = vpop.permute.xlu0 %5260
      %5264 = vset.pattern.permute.xlu0 0
      %5265 = vperm.xlu0 %5264, %v5257
      %v5266 = vpop.permute.xlu0 %5265
      %v5269 = vsel %vm4479, %v4853, 0
      %v5272 = vsel %vm4479, %v4855, 0
      %5274 = vmatprep.subr.mxu0 %v4857
      %5275 = vmatpush1.msra.mxu0 %v4856
      %5276 = vmatprep.subr.mxu0 %v4873
      %5277 = vmatpush1.msra.mxu0 %v4872
      %5278 = vmatprep.subr.mxu0 %v4889
      %5279 = vmatpush1.msra.mxu0 %v4888
      %5280 = vmatprep.subr.mxu0 %v4905
      %5281 = vmatpush1.msra.mxu0 %v4904
      %5282 = vmatprep.subr.mxu0 %v4921
      %5283 = vmatpush1.msra.mxu0 %v4920
      %5284 = vmatprep.subr.mxu0 %v4937
      %5285 = vmatpush1.msra.mxu0 %v4936
      %5286 = vmatprep.subr.mxu0 %v4953
      %5287 = vmatpush1.msra.mxu0 %v4952
      %5288 = vmatprep.subr.mxu0 %v4969
      %5289 = vmatpush1.msra.mxu0 %v4968
      %5290 = vmatprep.subr.mxu0 %v4985
      %5291 = vmatpush1.msra.mxu0 %v4984
      %5292 = vmatprep.subr.mxu0 %v5001
      %5293 = vmatpush1.msra.mxu0 %v5000
      %5294 = vmatprep.subr.mxu0 %v5017
      %5295 = vmatpush1.msra.mxu0 %v5016
      %5296 = vmatprep.subr.mxu0 %v5033
      %5297 = vmatpush1.msra.mxu0 %v5032
      %5298 = vmatprep.subr.mxu0 %v5049
      %5299 = vmatpush1.msra.mxu0 %v5048
      %5300 = vmatprep.subr.mxu0 %v5065
      %5301 = vmatpush1.msra.mxu0 %v5064
      %5302 = vmatprep.subr.mxu0 %v5081
      %5303 = vmatpush1.msra.mxu0 %v5080
      %5304 = vmatprep.subr.mxu0 %v5097
      %5305 = vmatpush1.msra.mxu0 %v5096
      %5306 = vmatprep.subr.mxu0 %v5113
      %5307 = vmatpush1.msra.mxu0 %v5112
      %5308 = vmatprep.subr.mxu0 %v5129
      %5309 = vmatpush1.msra.mxu0 %v5128
      %5310 = vmatprep.subr.mxu0 %v5145
      %5311 = vmatpush1.msra.mxu0 %v5144
      %5312 = vmatprep.subr.mxu0 %v5161
      %5313 = vmatpush1.msra.mxu0 %v5160
      %5314 = vmatprep.subr.mxu0 %v5177
      %5315 = vmatpush1.msra.mxu0 %v5176
      %5316 = vmatprep.subr.mxu0 %v5193
      %5317 = vmatpush1.msra.mxu0 %v5192
      %5318 = vmatprep.subr.mxu0 %v5209
      %5319 = vmatpush1.msra.mxu0 %v5208
      %5320 = vmatprep.subr.mxu0 %v5225
      %5321 = vmatpush1.msra.mxu0 %v5224
      %5322 = vmatprep.subr.mxu0 %v5241
      %5323 = vmatpush1.msra.mxu0 %v5240
      %5324 = vmatprep.subr.mxu0 0.0
      %5325 = vmatpush1.msra.mxu0 0.0
      %5326 = vmatprep.subr.mxu0 0.0
      %5327 = vmatpush1.msra.mxu0 0.0
      %5328 = vmatprep.subr.mxu0 0.0
      %5329 = vmatpush1.msra.mxu0 0.0
      %5330 = vmatprep.subr.mxu0 0.0
      %5331 = vmatpush1.msra.mxu0 0.0
      %5332 = vmatprep.subr.mxu0 0.0
      %5333 = vmatpush1.msra.mxu0 0.0
      %5334 = vmatprep.subr.mxu0 0.0
      %5335 = vmatpush1.msra.mxu0 0.0
      %5336 = vmatprep.subr.mxu0 0.0
      %5337 = vmatpush1.msra.mxu0 0.0
      %5338 = vmatprep.mubr.f32.mxu0 %v5269
      %5339 = vmatmul.mubr.f32.gmra.mrb[0].mxu0 %v4852
      %v5340 = vpop.f32.mrb[0].mxu0
      %v5341 = vadd.f32 %v5261, %v5340
      %v5342 = vpop.f32.mrb[0].mxu0
      %v5343 = vadd.f32 %v5261, %v5342
      %5344 = vmatprep.mubr.f32.mxu0 %v5272
      %5345 = vmatmul.mubr.f32.gmra.mrb[0].mxu0 %v4854
      %v5346 = vpop.f32.mrb[0].mxu0
      %v5347 = vadd.f32 %v5266, %v5346
      %v5348 = vpop.f32.mrb[0].mxu0
      %v5349 = vadd.f32 %v5266, %v5348
      %5350 = vdwg.mxu0
      %5351 = vmatprep.subr.mxu0 %v4859
      %5352 = vmatpush1.msra.mxu0 %v4858
      %5353 = vmatprep.subr.mxu0 %v4875
      %5354 = vmatpush1.msra.mxu0 %v4874
      %5355 = vmatprep.subr.mxu0 %v4891
      %5356 = vmatpush1.msra.mxu0 %v4890
      %5357 = vmatprep.subr.mxu0 %v4907
      %5358 = vmatpush1.msra.mxu0 %v4906
      %5359 = vmatprep.subr.mxu0 %v4923
      %5360 = vmatpush1.msra.mxu0 %v4922
      %5361 = vmatprep.subr.mxu0 %v4939
      %5362 = vmatpush1.msra.mxu0 %v4938
      %5363 = vmatprep.subr.mxu0 %v4955
      %5364 = vmatpush1.msra.mxu0 %v4954
      %5365 = vmatprep.subr.mxu0 %v4971
      %5366 = vmatpush1.msra.mxu0 %v4970
      %5367 = vmatprep.subr.mxu0 %v4987
      %5368 = vmatpush1.msra.mxu0 %v4986
      %5369 = vmatprep.subr.mxu0 %v5003
      %5370 = vmatpush1.msra.mxu0 %v5002
      %5371 = vmatprep.subr.mxu0 %v5019
      %5372 = vmatpush1.msra.mxu0 %v5018
      %5373 = vmatprep.subr.mxu0 %v5035
      %5374 = vmatpush1.msra.mxu0 %v5034
      %5375 = vmatprep.subr.mxu0 %v5051
      %5376 = vmatpush1.msra.mxu0 %v5050
      %5377 = vmatprep.subr.mxu0 %v5067
      %5378 = vmatpush1.msra.mxu0 %v5066
      %5379 = vmatprep.subr.mxu0 %v5083
      %5380 = vmatpush1.msra.mxu0 %v5082
      %5381 = vmatprep.subr.mxu0 %v5099
      %5382 = vmatpush1.msra.mxu0 %v5098
      %5383 = vmatprep.subr.mxu0 %v5115
      %5384 = vmatpush1.msra.mxu0 %v5114
      %5385 = vmatprep.subr.mxu0 %v5131
      %5386 = vmatpush1.msra.mxu0 %v5130
      %5387 = vmatprep.subr.mxu0 %v5147
      %5388 = vmatpush1.msra.mxu0 %v5146
      %5389 = vmatprep.subr.mxu0 %v5163
      %5390 = vmatpush1.msra.mxu0 %v5162
      %5391 = vmatprep.subr.mxu0 %v5179
      %5392 = vmatpush1.msra.mxu0 %v5178
      %5393 = vmatprep.subr.mxu0 %v5195
      %5394 = vmatpush1.msra.mxu0 %v5194
      %5395 = vmatprep.subr.mxu0 %v5211
      %5396 = vmatpush1.msra.mxu0 %v5210
      %5397 = vmatprep.subr.mxu0 %v5227
      %5398 = vmatpush1.msra.mxu0 %v5226
      %5399 = vmatprep.subr.mxu0 %v5243
      %5400 = vmatpush1.msra.mxu0 %v5242
      %5401 = vmatprep.subr.mxu0 0.0
      %5402 = vmatpush1.msra.mxu0 0.0
      %5403 = vmatprep.subr.mxu0 0.0
      %5404 = vmatpush1.msra.mxu0 0.0
      %5405 = vmatprep.subr.mxu0 0.0
      %5406 = vmatpush1.msra.mxu0 0.0
      %5407 = vmatprep.subr.mxu0 0.0
      %5408 = vmatpush1.msra.mxu0 0.0
      %5409 = vmatprep.subr.mxu0 0.0
      %5410 = vmatpush1.msra.mxu0 0.0
      %5411 = vmatprep.subr.mxu0 0.0
      %5412 = vmatpush1.msra.mxu0 0.0
      %5413 = vmatprep.subr.mxu0 0.0
      %5414 = vmatpush1.msra.mxu0 0.0
      %5415 = vmatprep.mubr.f32.mxu0 %v5269
      %5416 = vmatmul.mubr.f32.gmra.mrb[0].mxu0 %v4852
      %v5417 = vpop.f32.mrb[0].mxu0
      %v5418 = vadd.f32 %v5261, %v5417
      %v5419 = vpop.f32.mrb[0].mxu0
      %v5420 = vadd.f32 %v5261, %v5419
      %5421 = vmatprep.mubr.f32.mxu0 %v5272
      %5422 = vmatmul.mubr.f32.gmra.mrb[0].mxu0 %v4854
      %v5423 = vpop.f32.mrb[0].mxu0
      %v5424 = vadd.f32 %v5266, %v5423
      %v5425 = vpop.f32.mrb[0].mxu0
      %v5426 = vadd.f32 %v5266, %v5425
      %5427 = vdwg.mxu0
      %5428 = vmatprep.subr.mxu0 %v4861
      %5429 = vmatpush1.msra.mxu0 %v4860
      %5430 = vmatprep.subr.mxu0 %v4877
      %5431 = vmatpush1.msra.mxu0 %v4876
      %5432 = vmatprep.subr.mxu0 %v4893
      %5433 = vmatpush1.msra.mxu0 %v4892
      %5434 = vmatprep.subr.mxu0 %v4909
      %5435 = vmatpush1.msra.mxu0 %v4908
      %5436 = vmatprep.subr.mxu0 %v4925
      %5437 = vmatpush1.msra.mxu0 %v4924
      %5438 = vmatprep.subr.mxu0 %v4941
      %5439 = vmatpush1.msra.mxu0 %v4940
      %5440 = vmatprep.subr.mxu0 %v4957
      %5441 = vmatpush1.msra.mxu0 %v4956
      %5442 = vmatprep.subr.mxu0 %v4973
      %5443 = vmatpush1.msra.mxu0 %v4972
      %5444 = vmatprep.subr.mxu0 %v4989
      %5445 = vmatpush1.msra.mxu0 %v4988
      %5446 = vmatprep.subr.mxu0 %v5005
      %5447 = vmatpush1.msra.mxu0 %v5004
      %5448 = vmatprep.subr.mxu0 %v5021
      %5449 = vmatpush1.msra.mxu0 %v5020
      %5450 = vmatprep.subr.mxu0 %v5037
      %5451 = vmatpush1.msra.mxu0 %v5036
      %5452 = vmatprep.subr.mxu0 %v5053
      %5453 = vmatpush1.msra.mxu0 %v5052
      %5454 = vmatprep.subr.mxu0 %v5069
      %5455 = vmatpush1.msra.mxu0 %v5068
      %5456 = vmatprep.subr.mxu0 %v5085
      %5457 = vmatpush1.msra.mxu0 %v5084
      %5458 = vmatprep.subr.mxu0 %v5101
      %5459 = vmatpush1.msra.mxu0 %v5100
      %5460 = vmatprep.subr.mxu0 %v5117
      %5461 = vmatpush1.msra.mxu0 %v5116
      %5462 = vmatprep.subr.mxu0 %v5133
      %5463 = vmatpush1.msra.mxu0 %v5132
      %5464 = vmatprep.subr.mxu0 %v5149
      %5465 = vmatpush1.msra.mxu0 %v5148
      %5466 = vmatprep.subr.mxu0 %v5165
      %5467 = vmatpush1.msra.mxu0 %v5164
      %5468 = vmatprep.subr.mxu0 %v5181
      %5469 = vmatpush1.msra.mxu0 %v5180
      %5470 = vmatprep.subr.mxu0 %v5197
      %5471 = vmatpush1.msra.mxu0 %v5196
      %5472 = vmatprep.subr.mxu0 %v5213
      %5473 = vmatpush1.msra.mxu0 %v5212
      %5474 = vmatprep.subr.mxu0 %v5229
      %5475 = vmatpush1.msra.mxu0 %v5228
      %5476 = vmatprep.subr.mxu0 %v5245
      %5477 = vmatpush1.msra.mxu0 %v5244
      %5478 = vmatprep.subr.mxu0 0.0
      %5479 = vmatpush1.msra.mxu0 0.0
      %5480 = vmatprep.subr.mxu0 0.0
      %5481 = vmatpush1.msra.mxu0 0.0
      %5482 = vmatprep.subr.mxu0 0.0
      %5483 = vmatpush1.msra.mxu0 0.0
      %5484 = vmatprep.subr.mxu0 0.0
      %5485 = vmatpush1.msra.mxu0 0.0
      %5486 = vmatprep.subr.mxu0 0.0
      %5487 = vmatpush1.msra.mxu0 0.0
      %5488 = vmatprep.subr.mxu0 0.0
      %5489 = vmatpush1.msra.mxu0 0.0
      %5490 = vmatprep.subr.mxu0 0.0
      %5491 = vmatpush1.msra.mxu0 0.0
      %5492 = vmatprep.mubr.f32.mxu0 %v5269
      %5493 = vmatmul.mubr.f32.gmra.mrb[0].mxu0 %v4852
      %v5494 = vpop.f32.mrb[0].mxu0
      %v5495 = vadd.f32 %v5261, %v5494
      %v5496 = vpop.f32.mrb[0].mxu0
      %v5497 = vadd.f32 %v5261, %v5496
      %5498 = vmatprep.mubr.f32.mxu0 %v5272
      %5499 = vmatmul.mubr.f32.gmra.mrb[0].mxu0 %v4854
      %v5500 = vpop.f32.mrb[0].mxu0
      %v5501 = vadd.f32 %v5266, %v5500
      %v5502 = vpop.f32.mrb[0].mxu0
      %v5503 = vadd.f32 %v5266, %v5502
      %5504 = vdwg.mxu0
      %5505 = vmatprep.subr.mxu0 %v4863
      %5506 = vmatpush1.msra.mxu0 %v4862
      %5507 = vmatprep.subr.mxu0 %v4879
      %5508 = vmatpush1.msra.mxu0 %v4878
      %5509 = vmatprep.subr.mxu0 %v4895
      %5510 = vmatpush1.msra.mxu0 %v4894
      %5511 = vmatprep.subr.mxu0 %v4911
      %5512 = vmatpush1.msra.mxu0 %v4910
      %5513 = vmatprep.subr.mxu0 %v4927
      %5514 = vmatpush1.msra.mxu0 %v4926
      %5515 = vmatprep.subr.mxu0 %v4943
      %5516 = vmatpush1.msra.mxu0 %v4942
      %5517 = vmatprep.subr.mxu0 %v4959
      %5518 = vmatpush1.msra.mxu0 %v4958
      %5519 = vmatprep.subr.mxu0 %v4975
      %5520 = vmatpush1.msra.mxu0 %v4974
      %5521 = vmatprep.subr.mxu0 %v4991
      %5522 = vmatpush1.msra.mxu0 %v4990
      %5523 = vmatprep.subr.mxu0 %v5007
      %5524 = vmatpush1.msra.mxu0 %v5006
      %5525 = vmatprep.subr.mxu0 %v5023
      %5526 = vmatpush1.msra.mxu0 %v5022
      %5527 = vmatprep.subr.mxu0 %v5039
      %5528 = vmatpush1.msra.mxu0 %v5038
      %5529 = vmatprep.subr.mxu0 %v5055
      %5530 = vmatpush1.msra.mxu0 %v5054
      %5531 = vmatprep.subr.mxu0 %v5071
      %5532 = vmatpush1.msra.mxu0 %v5070
      %5533 = vmatprep.subr.mxu0 %v5087
      %5534 = vmatpush1.msra.mxu0 %v5086
      %5535 = vmatprep.subr.mxu0 %v5103
      %5536 = vmatpush1.msra.mxu0 %v5102
      %5537 = vmatprep.subr.mxu0 %v5119
      %5538 = vmatpush1.msra.mxu0 %v5118
      %5539 = vmatprep.subr.mxu0 %v5135
      %5540 = vmatpush1.msra.mxu0 %v5134
      %5541 = vmatprep.subr.mxu0 %v5151
      %5542 = vmatpush1.msra.mxu0 %v5150
      %5543 = vmatprep.subr.mxu0 %v5167
      %5544 = vmatpush1.msra.mxu0 %v5166
      %5545 = vmatprep.subr.mxu0 %v5183
      %5546 = vmatpush1.msra.mxu0 %v5182
      %5547 = vmatprep.subr.mxu0 %v5199
      %5548 = vmatpush1.msra.mxu0 %v5198
      %5549 = vmatprep.subr.mxu0 %v5215
      %5550 = vmatpush1.msra.mxu0 %v5214
      %5551 = vmatprep.subr.mxu0 %v5231
      %5552 = vmatpush1.msra.mxu0 %v5230
      %5553 = vmatprep.subr.mxu0 %v5247
      %5554 = vmatpush1.msra.mxu0 %v5246
      %5555 = vmatprep.subr.mxu0 0.0
      %5556 = vmatpush1.msra.mxu0 0.0
      %5557 = vmatprep.subr.mxu0 0.0
      %5558 = vmatpush1.msra.mxu0 0.0
      %5559 = vmatprep.subr.mxu0 0.0
      %5560 = vmatpush1.msra.mxu0 0.0
      %5561 = vmatprep.subr.mxu0 0.0
      %5562 = vmatpush1.msra.mxu0 0.0
      %5563 = vmatprep.subr.mxu0 0.0
      %5564 = vmatpush1.msra.mxu0 0.0
      %5565 = vmatprep.subr.mxu0 0.0
      %5566 = vmatpush1.msra.mxu0 0.0
      %5567 = vmatprep.subr.mxu0 0.0
      %5568 = vmatpush1.msra.mxu0 0.0
      %5569 = vmatprep.mubr.f32.mxu0 %v5269
      %5570 = vmatmul.mubr.f32.gmra.mrb[0].mxu0 %v4852
      %v5571 = vpop.f32.mrb[0].mxu0
      %v5572 = vadd.f32 %v5261, %v5571
      %v5573 = vpop.f32.mrb[0].mxu0
      %v5574 = vadd.f32 %v5261, %v5573
      %5575 = vmatprep.mubr.f32.mxu0 %v5272
      %5576 = vmatmul.mubr.f32.gmra.mrb[0].mxu0 %v4854
      %v5577 = vpop.f32.mrb[0].mxu0
      %v5578 = vadd.f32 %v5266, %v5577
      %v5579 = vpop.f32.mrb[0].mxu0
      %v5580 = vadd.f32 %v5266, %v5579
      %5581 = vdwg.mxu0
      %5582 = vmatprep.subr.mxu0 %v4865
      %5583 = vmatpush1.msra.mxu0 %v4864
      %5584 = vmatprep.subr.mxu0 %v4881
      %5585 = vmatpush1.msra.mxu0 %v4880
      %5586 = vmatprep.subr.mxu0 %v4897
      %5587 = vmatpush1.msra.mxu0 %v4896
      %5588 = vmatprep.subr.mxu0 %v4913
      %5589 = vmatpush1.msra.mxu0 %v4912
      %5590 = vmatprep.subr.mxu0 %v4929
      %5591 = vmatpush1.msra.mxu0 %v4928
      %5592 = vmatprep.subr.mxu0 %v4945
      %5593 = vmatpush1.msra.mxu0 %v4944
      %5594 = vmatprep.subr.mxu0 %v4961
      %5595 = vmatpush1.msra.mxu0 %v4960
      %5596 = vmatprep.subr.mxu0 %v4977
      %5597 = vmatpush1.msra.mxu0 %v4976
      %5598 = vmatprep.subr.mxu0 %v4993
      %5599 = vmatpush1.msra.mxu0 %v4992
      %5600 = vmatprep.subr.mxu0 %v5009
      %5601 = vmatpush1.msra.mxu0 %v5008
      %5602 = vmatprep.subr.mxu0 %v5025
      %5603 = vmatpush1.msra.mxu0 %v5024
      %5604 = vmatprep.subr.mxu0 %v5041
      %5605 = vmatpush1.msra.mxu0 %v5040
      %5606 = vmatprep.subr.mxu0 %v5057
      %5607 = vmatpush1.msra.mxu0 %v5056
      %5608 = vmatprep.subr.mxu0 %v5073
      %5609 = vmatpush1.msra.mxu0 %v5072
      %5610 = vmatprep.subr.mxu0 %v5089
      %5611 = vmatpush1.msra.mxu0 %v5088
      %5612 = vmatprep.subr.mxu0 %v5105
      %5613 = vmatpush1.msra.mxu0 %v5104
      %5614 = vmatprep.subr.mxu0 %v5121
      %5615 = vmatpush1.msra.mxu0 %v5120
      %5616 = vmatprep.subr.mxu0 %v5137
      %5617 = vmatpush1.msra.mxu0 %v5136
      %5618 = vmatprep.subr.mxu0 %v5153
      %5619 = vmatpush1.msra.mxu0 %v5152
      %5620 = vmatprep.subr.mxu0 %v5169
      %5621 = vmatpush1.msra.mxu0 %v5168
      %5622 = vmatprep.subr.mxu0 %v5185
      %5623 = vmatpush1.msra.mxu0 %v5184
      %5624 = vmatprep.subr.mxu0 %v5201
      %5625 = vmatpush1.msra.mxu0 %v5200
      %5626 = vmatprep.subr.mxu0 %v5217
      %5627 = vmatpush1.msra.mxu0 %v5216
      %5628 = vmatprep.subr.mxu0 %v5233
      %5629 = vmatpush1.msra.mxu0 %v5232
      %5630 = vmatprep.subr.mxu0 %v5249
      %5631 = vmatpush1.msra.mxu0 %v5248
      %5632 = vmatprep.subr.mxu0 0.0
      %5633 = vmatpush1.msra.mxu0 0.0
      %5634 = vmatprep.subr.mxu0 0.0
      %5635 = vmatpush1.msra.mxu0 0.0
      %5636 = vmatprep.subr.mxu0 0.0
      %5637 = vmatpush1.msra.mxu0 0.0
      %5638 = vmatprep.subr.mxu0 0.0
      %5639 = vmatpush1.msra.mxu0 0.0
      %5640 = vmatprep.subr.mxu0 0.0
      %5641 = vmatpush1.msra.mxu0 0.0
      %5642 = vmatprep.subr.mxu0 0.0
      %5643 = vmatpush1.msra.mxu0 0.0
      %5644 = vmatprep.subr.mxu0 0.0
      %5645 = vmatpush1.msra.mxu0 0.0
      %5646 = vmatprep.mubr.f32.mxu0 %v5269
      %5647 = vmatmul.mubr.f32.gmra.mrb[0].mxu0 %v4852
      %v5648 = vpop.f32.mrb[0].mxu0
      %v5649 = vadd.f32 %v5261, %v5648
      %v5650 = vpop.f32.mrb[0].mxu0
      %v5651 = vadd.f32 %v5261, %v5650
      %5652 = vmatprep.mubr.f32.mxu0 %v5272
      %5653 = vmatmul.mubr.f32.gmra.mrb[0].mxu0 %v4854
      %v5654 = vpop.f32.mrb[0].mxu0
      %v5655 = vadd.f32 %v5266, %v5654
      %v5656 = vpop.f32.mrb[0].mxu0
      %v5657 = vadd.f32 %v5266, %v5656
      %5658 = vdwg.mxu0
      %5659 = vmatprep.subr.mxu0 %v4867
      %5660 = vmatpush1.msra.mxu0 %v4866
      %5661 = vmatprep.subr.mxu0 %v4883
      %5662 = vmatpush1.msra.mxu0 %v4882
      %5663 = vmatprep.subr.mxu0 %v4899
      %5664 = vmatpush1.msra.mxu0 %v4898
      %5665 = vmatprep.subr.mxu0 %v4915
      %5666 = vmatpush1.msra.mxu0 %v4914
      %5667 = vmatprep.subr.mxu0 %v4931
      %5668 = vmatpush1.msra.mxu0 %v4930
      %5669 = vmatprep.subr.mxu0 %v4947
      %5670 = vmatpush1.msra.mxu0 %v4946
      %5671 = vmatprep.subr.mxu0 %v4963
      %5672 = vmatpush1.msra.mxu0 %v4962
      %5673 = vmatprep.subr.mxu0 %v4979
      %5674 = vmatpush1.msra.mxu0 %v4978
      %5675 = vmatprep.subr.mxu0 %v4995
      %5676 = vmatpush1.msra.mxu0 %v4994
      %5677 = vmatprep.subr.mxu0 %v5011
      %5678 = vmatpush1.msra.mxu0 %v5010
      %5679 = vmatprep.subr.mxu0 %v5027
      %5680 = vmatpush1.msra.mxu0 %v5026
      %5681 = vmatprep.subr.mxu0 %v5043
      %5682 = vmatpush1.msra.mxu0 %v5042
      %5683 = vmatprep.subr.mxu0 %v5059
      %5684 = vmatpush1.msra.mxu0 %v5058
      %5685 = vmatprep.subr.mxu0 %v5075
      %5686 = vmatpush1.msra.mxu0 %v5074
      %5687 = vmatprep.subr.mxu0 %v5091
      %5688 = vmatpush1.msra.mxu0 %v5090
      %5689 = vmatprep.subr.mxu0 %v5107
      %5690 = vmatpush1.msra.mxu0 %v5106
      %5691 = vmatprep.subr.mxu0 %v5123
      %5692 = vmatpush1.msra.mxu0 %v5122
      %5693 = vmatprep.subr.mxu0 %v5139
      %5694 = vmatpush1.msra.mxu0 %v5138
      %5695 = vmatprep.subr.mxu0 %v5155
      %5696 = vmatpush1.msra.mxu0 %v5154
      %5697 = vmatprep.subr.mxu0 %v5171
      %5698 = vmatpush1.msra.mxu0 %v5170
      %5699 = vmatprep.subr.mxu0 %v5187
      %5700 = vmatpush1.msra.mxu0 %v5186
      %5701 = vmatprep.subr.mxu0 %v5203
      %5702 = vmatpush1.msra.mxu0 %v5202
      %5703 = vmatprep.subr.mxu0 %v5219
      %5704 = vmatpush1.msra.mxu0 %v5218
      %5705 = vmatprep.subr.mxu0 %v5235
      %5706 = vmatpush1.msra.mxu0 %v5234
      %5707 = vmatprep.subr.mxu0 %v5251
      %5708 = vmatpush1.msra.mxu0 %v5250
      %5709 = vmatprep.subr.mxu0 0.0
      %5710 = vmatpush1.msra.mxu0 0.0
      %5711 = vmatprep.subr.mxu0 0.0
      %5712 = vmatpush1.msra.mxu0 0.0
      %5713 = vmatprep.subr.mxu0 0.0
      %5714 = vmatpush1.msra.mxu0 0.0
      %5715 = vmatprep.subr.mxu0 0.0
      %5716 = vmatpush1.msra.mxu0 0.0
      %5717 = vmatprep.subr.mxu0 0.0
      %5718 = vmatpush1.msra.mxu0 0.0
      %5719 = vmatprep.subr.mxu0 0.0
      %5720 = vmatpush1.msra.mxu0 0.0
      %5721 = vmatprep.subr.mxu0 0.0
      %5722 = vmatpush1.msra.mxu0 0.0
      %5723 = vmatprep.mubr.f32.mxu0 %v5269
      %5724 = vmatmul.mubr.f32.gmra.mrb[0].mxu0 %v4852
      %v5725 = vpop.f32.mrb[0].mxu0
      %v5726 = vadd.f32 %v5261, %v5725
      %v5727 = vpop.f32.mrb[0].mxu0
      %v5728 = vadd.f32 %v5261, %v5727
      %5729 = vmatprep.mubr.f32.mxu0 %v5272
      %5730 = vmatmul.mubr.f32.gmra.mrb[0].mxu0 %v4854
      %v5731 = vpop.f32.mrb[0].mxu0
      %v5732 = vadd.f32 %v5266, %v5731
      %v5733 = vpop.f32.mrb[0].mxu0
      %v5734 = vadd.f32 %v5266, %v5733
      %5735 = vdwg.mxu0
      %5736 = vmatprep.subr.mxu0 %v4869
      %5737 = vmatpush1.msra.mxu0 %v4868
      %5738 = vmatprep.subr.mxu0 %v4885
      %5739 = vmatpush1.msra.mxu0 %v4884
      %5740 = vmatprep.subr.mxu0 %v4901
      %5741 = vmatpush1.msra.mxu0 %v4900
      %5742 = vmatprep.subr.mxu0 %v4917
      %5743 = vmatpush1.msra.mxu0 %v4916
      %5744 = vmatprep.subr.mxu0 %v4933
      %5745 = vmatpush1.msra.mxu0 %v4932
      %5746 = vmatprep.subr.mxu0 %v4949
      %5747 = vmatpush1.msra.mxu0 %v4948
      %5748 = vmatprep.subr.mxu0 %v4965
      %5749 = vmatpush1.msra.mxu0 %v4964
      %5750 = vmatprep.subr.mxu0 %v4981
      %5751 = vmatpush1.msra.mxu0 %v4980
      %5752 = vmatprep.subr.mxu0 %v4997
      %5753 = vmatpush1.msra.mxu0 %v4996
      %5754 = vmatprep.subr.mxu0 %v5013
      %5755 = vmatpush1.msra.mxu0 %v5012
      %5756 = vmatprep.subr.mxu0 %v5029
      %5757 = vmatpush1.msra.mxu0 %v5028
      %5758 = vmatprep.subr.mxu0 %v5045
      %5759 = vmatpush1.msra.mxu0 %v5044
      %5760 = vmatprep.subr.mxu0 %v5061
      %5761 = vmatpush1.msra.mxu0 %v5060
      %5762 = vmatprep.subr.mxu0 %v5077
      %5763 = vmatpush1.msra.mxu0 %v5076
      %5764 = vmatprep.subr.mxu0 %v5093
      %5765 = vmatpush1.msra.mxu0 %v5092
      %5766 = vmatprep.subr.mxu0 %v5109
      %5767 = vmatpush1.msra.mxu0 %v5108
      %5768 = vmatprep.subr.mxu0 %v5125
      %5769 = vmatpush1.msra.mxu0 %v5124
      %5770 = vmatprep.subr.mxu0 %v5141
      %5771 = vmatpush1.msra.mxu0 %v5140
      %5772 = vmatprep.subr.mxu0 %v5157
      %5773 = vmatpush1.msra.mxu0 %v5156
      %5774 = vmatprep.subr.mxu0 %v5173
      %5775 = vmatpush1.msra.mxu0 %v5172
      %5776 = vmatprep.subr.mxu0 %v5189
      %5777 = vmatpush1.msra.mxu0 %v5188
      %5778 = vmatprep.subr.mxu0 %v5205
      %5779 = vmatpush1.msra.mxu0 %v5204
      %5780 = vmatprep.subr.mxu0 %v5221
      %5781 = vmatpush1.msra.mxu0 %v5220
      %5782 = vmatprep.subr.mxu0 %v5237
      %5783 = vmatpush1.msra.mxu0 %v5236
      %5784 = vmatprep.subr.mxu0 %v5253
      %5785 = vmatpush1.msra.mxu0 %v5252
      %5786 = vmatprep.subr.mxu0 0.0
      %5787 = vmatpush1.msra.mxu0 0.0
      %5788 = vmatprep.subr.mxu0 0.0
      %5789 = vmatpush1.msra.mxu0 0.0
      %5790 = vmatprep.subr.mxu0 0.0
      %5791 = vmatpush1.msra.mxu0 0.0
      %5792 = vmatprep.subr.mxu0 0.0
      %5793 = vmatpush1.msra.mxu0 0.0
      %5794 = vmatprep.subr.mxu0 0.0
      %5795 = vmatpush1.msra.mxu0 0.0
      %5796 = vmatprep.subr.mxu0 0.0
      %5797 = vmatpush1.msra.mxu0 0.0
      %5798 = vmatprep.subr.mxu0 0.0
      %5799 = vmatpush1.msra.mxu0 0.0
      %5800 = vmatprep.mubr.f32.mxu0 %v5269
      %5801 = vmatmul.mubr.f32.gmra.mrb[0].mxu0 %v4852
      %v5802 = vpop.f32.mrb[0].mxu0
      %v5803 = vadd.f32 %v5261, %v5802
      %v5804 = vpop.f32.mrb[0].mxu0
      %v5805 = vadd.f32 %v5261, %v5804
      %5806 = vmatprep.mubr.f32.mxu0 %v5272
      %5807 = vmatmul.mubr.f32.gmra.mrb[0].mxu0 %v4854
      %v5808 = vpop.f32.mrb[0].mxu0
      %v5809 = vadd.f32 %v5266, %v5808
      %v5810 = vpop.f32.mrb[0].mxu0
      %v5811 = vadd.f32 %v5266, %v5810
      %5812 = vdwg.mxu0
      %5813 = vmatprep.subr.mxu0 %v4871
      %5814 = vmatpush1.msra.mxu0 %v4870
      %5815 = vmatprep.subr.mxu0 %v4887
      %5816 = vmatpush1.msra.mxu0 %v4886
      %5817 = vmatprep.subr.mxu0 %v4903
      %5818 = vmatpush1.msra.mxu0 %v4902
      %5819 = vmatprep.subr.mxu0 %v4919
      %5820 = vmatpush1.msra.mxu0 %v4918
      %5821 = vmatprep.subr.mxu0 %v4935
      %5822 = vmatpush1.msra.mxu0 %v4934
      %5823 = vmatprep.subr.mxu0 %v4951
      %5824 = vmatpush1.msra.mxu0 %v4950
      %5825 = vmatprep.subr.mxu0 %v4967
      %5826 = vmatpush1.msra.mxu0 %v4966
      %5827 = vmatprep.subr.mxu0 %v4983
      %5828 = vmatpush1.msra.mxu0 %v4982
      %5829 = vmatprep.subr.mxu0 %v4999
      %5830 = vmatpush1.msra.mxu0 %v4998
      %5831 = vmatprep.subr.mxu0 %v5015
      %5832 = vmatpush1.msra.mxu0 %v5014
      %5833 = vmatprep.subr.mxu0 %v5031
      %5834 = vmatpush1.msra.mxu0 %v5030
      %5835 = vmatprep.subr.mxu0 %v5047
      %5836 = vmatpush1.msra.mxu0 %v5046
      %5837 = vmatprep.subr.mxu0 %v5063
      %5838 = vmatpush1.msra.mxu0 %v5062
      %5839 = vmatprep.subr.mxu0 %v5079
      %5840 = vmatpush1.msra.mxu0 %v5078
      %5841 = vmatprep.subr.mxu0 %v5095
      %5842 = vmatpush1.msra.mxu0 %v5094
      %5843 = vmatprep.subr.mxu0 %v5111
      %5844 = vmatpush1.msra.mxu0 %v5110
      %5845 = vmatprep.subr.mxu0 %v5127
      %5846 = vmatpush1.msra.mxu0 %v5126
      %5847 = vmatprep.subr.mxu0 %v5143
      %5848 = vmatpush1.msra.mxu0 %v5142
      %5849 = vmatprep.subr.mxu0 %v5159
      %5850 = vmatpush1.msra.mxu0 %v5158
      %5851 = vmatprep.subr.mxu0 %v5175
      %5852 = vmatpush1.msra.mxu0 %v5174
      %5853 = vmatprep.subr.mxu0 %v5191
      %5854 = vmatpush1.msra.mxu0 %v5190
      %5855 = vmatprep.subr.mxu0 %v5207
      %5856 = vmatpush1.msra.mxu0 %v5206
      %5857 = vmatprep.subr.mxu0 %v5223
      %5858 = vmatpush1.msra.mxu0 %v5222
      %5859 = vmatprep.subr.mxu0 %v5239
      %5860 = vmatpush1.msra.mxu0 %v5238
      %5861 = vmatprep.subr.mxu0 %v5255
      %5862 = vmatpush1.msra.mxu0 %v5254
      %5863 = vmatprep.subr.mxu0 0.0
      %5864 = vmatpush1.msra.mxu0 0.0
      %5865 = vmatprep.subr.mxu0 0.0
      %5866 = vmatpush1.msra.mxu0 0.0
      %5867 = vmatprep.subr.mxu0 0.0
      %5868 = vmatpush1.msra.mxu0 0.0
      %5869 = vmatprep.subr.mxu0 0.0
      %5870 = vmatpush1.msra.mxu0 0.0
      %5871 = vmatprep.subr.mxu0 0.0
      %5872 = vmatpush1.msra.mxu0 0.0
      %5873 = vmatprep.subr.mxu0 0.0
      %5874 = vmatpush1.msra.mxu0 0.0
      %5875 = vmatprep.subr.mxu0 0.0
      %5876 = vmatpush1.msra.mxu0 0.0
      %5877 = vmatprep.mubr.f32.mxu0 %v5269
      %5878 = vmatmul.mubr.f32.gmra.mrb[0].mxu0 %v4852
      %v5879 = vpop.f32.mrb[0].mxu0
      %v5880 = vadd.f32 %v5261, %v5879
      %v5881 = vpop.f32.mrb[0].mxu0
      %v5882 = vadd.f32 %v5261, %v5881
      %5883 = vmatprep.mubr.f32.mxu0 %v5272
      %5884 = vmatmul.mubr.f32.gmra.mrb[0].mxu0 %v4854
      %v5885 = vpop.f32.mrb[0].mxu0
      %v5886 = vadd.f32 %v5266, %v5885
      %v5887 = vpop.f32.mrb[0].mxu0
      %v5888 = vadd.f32 %v5266, %v5887
      %5889 = vdwg.mxu0
      %v5890 = vmax.f32 %v5341, 0.0
      %v5891 = vmax.f32 %v5343, 0.0
      %v5892 = vmax.f32 %v5418, 0.0
      %v5893 = vmax.f32 %v5420, 0.0
      %v5894 = vmax.f32 %v5495, 0.0
      %v5895 = vmax.f32 %v5497, 0.0
      %v5896 = vmax.f32 %v5572, 0.0
      %v5897 = vmax.f32 %v5574, 0.0
      %v5898 = vmax.f32 %v5649, 0.0
      %v5899 = vmax.f32 %v5651, 0.0
      %v5900 = vmax.f32 %v5726, 0.0
      %v5901 = vmax.f32 %v5728, 0.0
      %v5902 = vmax.f32 %v5803, 0.0
      %v5903 = vmax.f32 %v5805, 0.0
      %v5904 = vmax.f32 %v5880, 0.0
      %v5905 = vmax.f32 %v5882, 0.0
      %v5906 = vmax.f32 %v5347, 0.0
      %v5907 = vmax.f32 %v5349, 0.0
      %v5908 = vmax.f32 %v5424, 0.0
      %v5909 = vmax.f32 %v5426, 0.0
      %v5910 = vmax.f32 %v5501, 0.0
      %v5911 = vmax.f32 %v5503, 0.0
      %v5912 = vmax.f32 %v5578, 0.0
      %v5913 = vmax.f32 %v5580, 0.0
      %v5914 = vmax.f32 %v5655, 0.0
      %v5915 = vmax.f32 %v5657, 0.0
      %v5916 = vmax.f32 %v5732, 0.0
      %v5917 = vmax.f32 %v5734, 0.0
      %v5918 = vmax.f32 %v5809, 0.0
      %v5919 = vmax.f32 %v5811, 0.0
      %v5920 = vmax.f32 %v5886, 0.0
      %v5921 = vmax.f32 %v5888, 0.0
      %5954 = vrot.lane.b32.xlu0 %v5890, 127
      %v5955 = vpop.permute.xlu0 %5954
      %5956 = vrot.lane.b32.xlu0 %v5891, 127
      %v5957 = vpop.permute.xlu0 %5956
      %5958 = vrot.lane.b32.xlu0 %v5892, 127
      %v5959 = vpop.permute.xlu0 %5958
      %5960 = vrot.lane.b32.xlu0 %v5893, 127
      %v5961 = vpop.permute.xlu0 %5960
      %5962 = vrot.lane.b32.xlu0 %v5894, 127
      %v5963 = vpop.permute.xlu0 %5962
      %5964 = vrot.lane.b32.xlu0 %v5895, 127
      %v5965 = vpop.permute.xlu0 %5964
      %5966 = vrot.lane.b32.xlu0 %v5896, 127
      %v5967 = vpop.permute.xlu0 %5966
      %5968 = vrot.lane.b32.xlu0 %v5897, 127
      %v5969 = vpop.permute.xlu0 %5968
      %5970 = vrot.lane.b32.xlu0 %v5898, 127
      %v5971 = vpop.permute.xlu0 %5970
      %5972 = vrot.lane.b32.xlu0 %v5899, 127
      %v5973 = vpop.permute.xlu0 %5972
      %5974 = vrot.lane.b32.xlu0 %v5900, 127
      %v5975 = vpop.permute.xlu0 %5974
      %5976 = vrot.lane.b32.xlu0 %v5901, 127
      %v5977 = vpop.permute.xlu0 %5976
      %5978 = vrot.lane.b32.xlu0 %v5902, 127
      %v5979 = vpop.permute.xlu0 %5978
      %5980 = vrot.lane.b32.xlu0 %v5903, 127
      %v5981 = vpop.permute.xlu0 %5980
      %5982 = vrot.lane.b32.xlu0 %v5904, 127
      %v5983 = vpop.permute.xlu0 %5982
      %5984 = vrot.lane.b32.xlu0 %v5905, 127
      %v5985 = vpop.permute.xlu0 %5984
      %5986 = vrot.lane.b32.xlu0 %v5906, 127
      %v5987 = vpop.permute.xlu0 %5986
      %5988 = vrot.lane.b32.xlu0 %v5907, 127
      %v5989 = vpop.permute.xlu0 %5988
      %5990 = vrot.lane.b32.xlu0 %v5908, 127
      %v5991 = vpop.permute.xlu0 %5990
      %5992 = vrot.lane.b32.xlu0 %v5909, 127
      %v5993 = vpop.permute.xlu0 %5992
      %5994 = vrot.lane.b32.xlu0 %v5910, 127
      %v5995 = vpop.permute.xlu0 %5994
      %5996 = vrot.lane.b32.xlu0 %v5911, 127
      %v5997 = vpop.permute.xlu0 %5996
      %5998 = vrot.lane.b32.xlu0 %v5912, 127
      %v5999 = vpop.permute.xlu0 %5998
      %6000 = vrot.lane.b32.xlu0 %v5913, 127
      %v6001 = vpop.permute.xlu0 %6000
      %6002 = vrot.lane.b32.xlu0 %v5914, 127
      %v6003 = vpop.permute.xlu0 %6002
      %6004 = vrot.lane.b32.xlu0 %v5915, 127
      %v6005 = vpop.permute.xlu0 %6004
      %6006 = vrot.lane.b32.xlu0 %v5916, 127
      %v6007 = vpop.permute.xlu0 %6006
      %6008 = vrot.lane.b32.xlu0 %v5917, 127
      %v6009 = vpop.permute.xlu0 %6008
      %6010 = vrot.lane.b32.xlu0 %v5918, 127
      %v6011 = vpop.permute.xlu0 %6010
      %6012 = vrot.lane.b32.xlu0 %v5919, 127
      %v6013 = vpop.permute.xlu0 %6012
      %6014 = vrot.lane.b32.xlu0 %v5920, 127
      %v6015 = vpop.permute.xlu0 %6014
      %6016 = vrot.lane.b32.xlu0 %v5921, 127
      %v6017 = vpop.permute.xlu0 %6016
      %v6018 = vsel %vm2940, %v5955, %v5957
      %v6019 = vsel %vm2940, %v5957, %v5959
      %v6020 = vsel %vm2940, %v5959, %v5961
      %v6021 = vsel %vm2940, %v5961, %v5963
      %v6022 = vsel %vm2940, %v5963, %v5965
      %v6023 = vsel %vm2940, %v5965, %v5967
      %v6024 = vsel %vm2940, %v5967, %v5969
      %v6025 = vsel %vm2940, %v5969, %v5971
      %v6026 = vsel %vm2940, %v5971, %v5973
      %v6027 = vsel %vm2940, %v5973, %v5975
      %v6028 = vsel %vm2940, %v5975, %v5977
      %v6029 = vsel %vm2940, %v5977, %v5979
      %v6030 = vsel %vm2940, %v5979, %v5981
      %v6031 = vsel %vm2940, %v5981, %v5983
      %v6032 = vsel %vm2940, %v5983, %v5985
      %v6033 = vsel %vm2940, %v5985, %v5955
      %v6034 = vsel %vm2940, %v5987, %v5989
      %v6035 = vsel %vm2940, %v5989, %v5991
      %v6036 = vsel %vm2940, %v5991, %v5993
      %v6037 = vsel %vm2940, %v5993, %v5995
      %v6038 = vsel %vm2940, %v5995, %v5997
      %v6039 = vsel %vm2940, %v5997, %v5999
      %v6040 = vsel %vm2940, %v5999, %v6001
      %v6041 = vsel %vm2940, %v6001, %v6003
      %v6042 = vsel %vm2940, %v6003, %v6005
      %v6043 = vsel %vm2940, %v6005, %v6007
      %v6044 = vsel %vm2940, %v6007, %v6009
      %v6045 = vsel %vm2940, %v6009, %v6011
      %v6046 = vsel %vm2940, %v6011, %v6013
      %v6047 = vsel %vm2940, %v6013, %v6015
      %v6048 = vsel %vm2940, %v6015, %v6017
      %v6049 = vsel %vm2940, %v6017, %v5987
      %v6082 = vmax.f32 %v5890, %v6018
      %v6083 = vmax.f32 %v5891, %v6019
      %v6084 = vmax.f32 %v5892, %v6020
      %v6085 = vmax.f32 %v5893, %v6021
      %v6086 = vmax.f32 %v5894, %v6022
      %v6087 = vmax.f32 %v5895, %v6023
      %v6088 = vmax.f32 %v5896, %v6024
      %v6089 = vmax.f32 %v5897, %v6025
      %v6090 = vmax.f32 %v5898, %v6026
      %v6091 = vmax.f32 %v5899, %v6027
      %v6092 = vmax.f32 %v5900, %v6028
      %v6093 = vmax.f32 %v5901, %v6029
      %v6094 = vmax.f32 %v5902, %v6030
      %v6095 = vmax.f32 %v5903, %v6031
      %v6096 = vmax.f32 %v5904, %v6032
      %v6097 = vmax.f32 %v5905, %v6033
      %v6098 = vmax.f32 %v5906, %v6034
      %v6099 = vmax.f32 %v5907, %v6035
      %v6100 = vmax.f32 %v5908, %v6036
      %v6101 = vmax.f32 %v5909, %v6037
      %v6102 = vmax.f32 %v5910, %v6038
      %v6103 = vmax.f32 %v5911, %v6039
      %v6104 = vmax.f32 %v5912, %v6040
      %v6105 = vmax.f32 %v5913, %v6041
      %v6106 = vmax.f32 %v5914, %v6042
      %v6107 = vmax.f32 %v5915, %v6043
      %v6108 = vmax.f32 %v5916, %v6044
      %v6109 = vmax.f32 %v5917, %v6045
      %v6110 = vmax.f32 %v5918, %v6046
      %v6111 = vmax.f32 %v5919, %v6047
      %v6112 = vmax.f32 %v5920, %v6048
      %v6113 = vmax.f32 %v5921, %v6049
      %v6116 = vmax.f32 %v5890, %v5955
      %v6117 = vmax.f32 %v5906, %v5987
      %6152 = vrot.lane.b32.xlu0 %v6082, 114
      %v6153 = vpop.permute.xlu0 %6152
      %6154 = vrot.lane.b32.xlu0 %v6083, 114
      %v6155 = vpop.permute.xlu0 %6154
      %6156 = vrot.lane.b32.xlu0 %v6084, 114
      %v6157 = vpop.permute.xlu0 %6156
      %6158 = vrot.lane.b32.xlu0 %v6085, 114
      %v6159 = vpop.permute.xlu0 %6158
      %6160 = vrot.lane.b32.xlu0 %v6086, 114
      %v6161 = vpop.permute.xlu0 %6160
      %6162 = vrot.lane.b32.xlu0 %v6087, 114
      %v6163 = vpop.permute.xlu0 %6162
      %6164 = vrot.lane.b32.xlu0 %v6088, 114
      %v6165 = vpop.permute.xlu0 %6164
      %6166 = vrot.lane.b32.xlu0 %v6089, 114
      %v6167 = vpop.permute.xlu0 %6166
      %6168 = vrot.lane.b32.xlu0 %v6090, 114
      %v6169 = vpop.permute.xlu0 %6168
      %6170 = vrot.lane.b32.xlu0 %v6091, 114
      %v6171 = vpop.permute.xlu0 %6170
      %6172 = vrot.lane.b32.xlu0 %v6092, 114
      %v6173 = vpop.permute.xlu0 %6172
      %6174 = vrot.lane.b32.xlu0 %v6093, 114
      %v6175 = vpop.permute.xlu0 %6174
      %6176 = vrot.lane.b32.xlu0 %v6094, 114
      %v6177 = vpop.permute.xlu0 %6176
      %6178 = vrot.lane.b32.xlu0 %v6095, 114
      %v6179 = vpop.permute.xlu0 %6178
      %6180 = vrot.lane.b32.xlu0 %v6096, 114
      %v6181 = vpop.permute.xlu0 %6180
      %6182 = vrot.lane.b32.xlu0 %v6097, 114
      %v6183 = vpop.permute.xlu0 %6182
      %6184 = vrot.lane.b32.xlu0 %v6116, 114
      %v6185 = vpop.permute.xlu0 %6184
      %6186 = vrot.lane.b32.xlu0 %v6098, 114
      %v6187 = vpop.permute.xlu0 %6186
      %6188 = vrot.lane.b32.xlu0 %v6099, 114
      %v6189 = vpop.permute.xlu0 %6188
      %6190 = vrot.lane.b32.xlu0 %v6100, 114
      %v6191 = vpop.permute.xlu0 %6190
      %6192 = vrot.lane.b32.xlu0 %v6101, 114
      %v6193 = vpop.permute.xlu0 %6192
      %6194 = vrot.lane.b32.xlu0 %v6102, 114
      %v6195 = vpop.permute.xlu0 %6194
      %6196 = vrot.lane.b32.xlu0 %v6103, 114
      %v6197 = vpop.permute.xlu0 %6196
      %6198 = vrot.lane.b32.xlu0 %v6104, 114
      %v6199 = vpop.permute.xlu0 %6198
      %6200 = vrot.lane.b32.xlu0 %v6105, 114
      %v6201 = vpop.permute.xlu0 %6200
      %6202 = vrot.lane.b32.xlu0 %v6106, 114
      %v6203 = vpop.permute.xlu0 %6202
      %6204 = vrot.lane.b32.xlu0 %v6107, 114
      %v6205 = vpop.permute.xlu0 %6204
      %6206 = vrot.lane.b32.xlu0 %v6108, 114
      %v6207 = vpop.permute.xlu0 %6206
      %6208 = vrot.lane.b32.xlu0 %v6109, 114
      %v6209 = vpop.permute.xlu0 %6208
      %6210 = vrot.lane.b32.xlu0 %v6110, 114
      %v6211 = vpop.permute.xlu0 %6210
      %6212 = vrot.lane.b32.xlu0 %v6111, 114
      %v6213 = vpop.permute.xlu0 %6212
      %6214 = vrot.lane.b32.xlu0 %v6112, 114
      %v6215 = vpop.permute.xlu0 %6214
      %6216 = vrot.lane.b32.xlu0 %v6113, 114
      %v6217 = vpop.permute.xlu0 %6216
      %6218 = vrot.lane.b32.xlu0 %v6117, 114
      %v6219 = vpop.permute.xlu0 %6218
      %v6220 = vsel %vm3264, %v6153, %v6155
      %v6221 = vsel %vm3264, %v6155, %v6157
      %v6222 = vsel %vm3264, %v6157, %v6159
      %v6223 = vsel %vm3264, %v6159, %v6161
      %v6224 = vsel %vm3264, %v6161, %v6163
      %v6225 = vsel %vm3264, %v6163, %v6165
      %v6226 = vsel %vm3264, %v6165, %v6167
      %v6227 = vsel %vm3264, %v6167, %v6169
      %v6228 = vsel %vm3264, %v6169, %v6171
      %v6229 = vsel %vm3264, %v6171, %v6173
      %v6230 = vsel %vm3264, %v6173, %v6175
      %v6231 = vsel %vm3264, %v6175, %v6177
      %v6232 = vsel %vm3264, %v6177, %v6179
      %v6233 = vsel %vm3264, %v6179, %v6181
      %v6234 = vsel %vm3264, %v6181, %v6183
      %v6235 = vsel %vm3264, %v6183, %v6185
      %v6236 = vsel %vm3264, %v6187, %v6189
      %v6237 = vsel %vm3264, %v6189, %v6191
      %v6238 = vsel %vm3264, %v6191, %v6193
      %v6239 = vsel %vm3264, %v6193, %v6195
      %v6240 = vsel %vm3264, %v6195, %v6197
      %v6241 = vsel %vm3264, %v6197, %v6199
      %v6242 = vsel %vm3264, %v6199, %v6201
      %v6243 = vsel %vm3264, %v6201, %v6203
      %v6244 = vsel %vm3264, %v6203, %v6205
      %v6245 = vsel %vm3264, %v6205, %v6207
      %v6246 = vsel %vm3264, %v6207, %v6209
      %v6247 = vsel %vm3264, %v6209, %v6211
      %v6248 = vsel %vm3264, %v6211, %v6213
      %v6249 = vsel %vm3264, %v6213, %v6215
      %v6250 = vsel %vm3264, %v6215, %v6217
      %v6251 = vsel %vm3264, %v6217, %v6219
      %v6284 = vmax.f32 %v6082, %v6220
      %v6285 = vmax.f32 %v6083, %v6221
      %v6286 = vmax.f32 %v6084, %v6222
      %v6287 = vmax.f32 %v6085, %v6223
      %v6288 = vmax.f32 %v6086, %v6224
      %v6289 = vmax.f32 %v6087, %v6225
      %v6290 = vmax.f32 %v6088, %v6226
      %v6291 = vmax.f32 %v6089, %v6227
      %v6292 = vmax.f32 %v6090, %v6228
      %v6293 = vmax.f32 %v6091, %v6229
      %v6294 = vmax.f32 %v6092, %v6230
      %v6295 = vmax.f32 %v6093, %v6231
      %v6296 = vmax.f32 %v6094, %v6232
      %v6297 = vmax.f32 %v6095, %v6233
      %v6298 = vmax.f32 %v6096, %v6234
      %v6299 = vmax.f32 %v6097, %v6235
      %v6300 = vmax.f32 %v6098, %v6236
      %v6301 = vmax.f32 %v6099, %v6237
      %v6302 = vmax.f32 %v6100, %v6238
      %v6303 = vmax.f32 %v6101, %v6239
      %v6304 = vmax.f32 %v6102, %v6240
      %v6305 = vmax.f32 %v6103, %v6241
      %v6306 = vmax.f32 %v6104, %v6242
      %v6307 = vmax.f32 %v6105, %v6243
      %v6308 = vmax.f32 %v6106, %v6244
      %v6309 = vmax.f32 %v6107, %v6245
      %v6310 = vmax.f32 %v6108, %v6246
      %v6311 = vmax.f32 %v6109, %v6247
      %v6312 = vmax.f32 %v6110, %v6248
      %v6313 = vmax.f32 %v6111, %v6249
      %v6314 = vmax.f32 %v6112, %v6250
      %v6315 = vmax.f32 %v6113, %v6251
      %6316 = vst [vmem:[%s224] sm:$0xff] %v6284
      %6317 = vst [vmem:[%s224 + $0x8] sm:$0xff] %v6285
      %6318 = vst [vmem:[%s224 + $0x10] sm:$0xff] %v6286
      %6319 = vst [vmem:[%s224 + $0x18] sm:$0xff] %v6287
      %6320 = vst [vmem:[%s224 + $0x20] sm:$0xff] %v6288
      %6321 = vst [vmem:[%s224 + $0x28] sm:$0xff] %v6289
      %6322 = vst [vmem:[%s224 + $0x30] sm:$0xff] %v6290
      %6323 = vst [vmem:[%s224 + $0x38] sm:$0xff] %v6291
      %6324 = vst [vmem:[%s224 + $0x40] sm:$0xff] %v6292
      %6325 = vst [vmem:[%s224 + $0x48] sm:$0xff] %v6293
      %6326 = vst [vmem:[%s224 + $0x50] sm:$0xff] %v6294
      %6327 = vst [vmem:[%s224 + $0x58] sm:$0xff] %v6295
      %6328 = vst [vmem:[%s224 + $0x60] sm:$0xff] %v6296
      %6329 = vst [vmem:[%s224 + $0x68] sm:$0xff] %v6297
      %6330 = vst [vmem:[%s224 + $0x70] sm:$0xff] %v6298
      %6331 = vst [vmem:[%s224 + $0x78] sm:$0xff] %v6299
      %6332 = vst [vmem:[%s224 + $0x80] sm:$0xff] %v6300
      %6333 = vst [vmem:[%s224 + $0x88] sm:$0xff] %v6301
      %6334 = vst [vmem:[%s224 + $0x90] sm:$0xff] %v6302
      %6335 = vst [vmem:[%s224 + $0x98] sm:$0xff] %v6303
      %6336 = vst [vmem:[%s224 + $0xa0] sm:$0xff] %v6304
      %6337 = vst [vmem:[%s224 + $0xa8] sm:$0xff] %v6305
      %6338 = vst [vmem:[%s224 + $0xb0] sm:$0xff] %v6306
      %6339 = vst [vmem:[%s224 + $0xb8] sm:$0xff] %v6307
      %6340 = vst [vmem:[%s224 + $0xc0] sm:$0xff] %v6308
      %6341 = vst [vmem:[%s224 + $0xc8] sm:$0xff] %v6309
      %6342 = vst [vmem:[%s224 + $0xd0] sm:$0xff] %v6310
      %6343 = vst [vmem:[%s224 + $0xd8] sm:$0xff] %v6311
      %6344 = vst [vmem:[%s224 + $0xe0] sm:$0xff] %v6312
      %6345 = vst [vmem:[%s224 + $0xe8] sm:$0xff] %v6313
      %6346 = vst [vmem:[%s224 + $0xf0] sm:$0xff] %v6314
      %6347 = vst [vmem:[%s224 + $0xf8] sm:$0xff] %v6315
      %p6348 = scmp.lt.s32.totalorder %s16, 1
      %s6349 = scalar_select %p6348, %s16, 1
      %s6350 = smul.addr %s6349, 32
      %s6351 = smul.addr %s6350, 8
      %s6352 = scalar_lea.vmem %s5, %s6351
      // Predicated region
      $region41: #{_net_forward.2} parent=39 // pred_check
        %p6353 = pneg %p144
      $region42: #{_net_forward.2} parent=39 // pred_check_branch
        %6355 = sbr.rel (%p6353) target = $region44
      $region43: #{_net_forward.2} parent=39 // pred_region
        _
      $region44: #{_net_forward.2} parent=39 // pred_fallthru
        _
    $region40: #{_net_forward.2} parent=5 // pred_fallthru
      _
    %p6356 = scmp.le.s32.totalorder 2, %s11
    // Predicated region
    $region45: #{_net_forward.2} parent=5 // pred_check
      %p6357 = pneg %p6356
    $region46: #{_net_forward.2} parent=5 // pred_check_branch
      %6359 = sbr.rel (%p6357) target = $region48
    $region47: #{_net_forward.2} parent=5 // pred_region
      %s6360 = ssub.s32 %s11, 2
      // Predicated region
      $region49: #{_net_forward.2} parent=47 // pred_check
        %p6361 = pneg %p150
      $region50: #{_net_forward.2} parent=47 // pred_check_branch
        %6363 = sbr.rel (%p6361) target = $region52
      $region51: #{_net_forward.2} parent=47 // pred_region
        %p6364 = scmp.lt.s32.totalorder %s17, 1
        %s6365 = scalar_select %p6364, %s17, 1
        %s6366 = smul.addr %s6365, 32
        %s6367 = smul.addr %s6366, 8
        %s6368 = scalar_lea.vmem %s5, %s6367
      $region52: #{_net_forward.2} parent=47 // pred_fallthru
        _
    $region48: #{_net_forward.2} parent=5 // pred_fallthru
      _
  $region6: #{_net_forward.2} parent=0 // loop_footer
    %s15 = sadd.s32 1, %s11
  $region7: #{_net_forward.2} parent=0 // loop_footer_branch
    %10 = sbr.rel target = $region3
  $region8: #{_net_forward.2} parent=0 // loop_exit
    _

</llo_original>
